<compile_context>
chip_gen: v7x
topology: tpu7x:2x2x1
jax: 0.10.0
libtpu: 0.0.40
codegen_flags: <defaults>
</compile_context>

<pallas_src>
import functools

import jax
import jax.numpy as jnp
from jax import lax
from jax.experimental import pallas as pl
from jax.experimental.pallas import tpu as pltpu


# ---------------------------------------------------------------------------
# Tunables
# ---------------------------------------------------------------------------
CONV_K = (5, 5)
POOL = (2, 2)

NB_CONV1 = 16          # samples per grid step for conv1 (VMEM ~20-25 MB)
NB_CONV2 = 64          # samples per grid step for conv2 (VMEM ~12 MB)
NB_MLP = 256           # rows per grid step for the fc head (VMEM ~2 MB)
K2_PAD = 256           # conv2 contraction dim padded 250 -> 256
VMEM_LIMIT_BYTES = 48 * 1024 * 1024   # sized against v7x's 64 MiB physical VMEM

# On v6e/v7x, setting this to jnp.bfloat16 halves the HBM traffic of the
# im2col operands and runs the MXU at full bf16 rate (epilogue stays f32).
# Kept at f32 here so the strict self-check tolerance below holds.
COMPUTE_DTYPE = jnp.float32


# ---------------------------------------------------------------------------
# Pallas kernels
# ---------------------------------------------------------------------------
def _conv_pool_relu_kernel(cols_ref, w_ref, b_ref, o_ref, *, n_phase):
    """Fused conv (im2col matmul) + maxpool + ReLU for a tile of Nb samples.

    cols_ref : (Nb, P2*M, K)  rows phase-major (row = q*M + m), K = KH*KW*Cin
    w_ref    : (K, Cout)
    b_ref    : (1, Cout)
    o_ref    : (Nb, M, Cout)  M = pooled spatial positions (raster order)
    """
    nb, pm, k = cols_ref.shape
    m = pm // n_phase
    c = w_ref.shape[1]

    # One MXU push for all samples and all pool phases of this tile.
    cols = cols_ref[...].reshape(nb * pm, k)          # layout-preserving merge
    y = jnp.dot(cols, w_ref[...], preferred_element_type=jnp.float32)
    y = y.reshape(nb, n_phase, m, c)                  # layout-preserving split
    y = jnp.max(y, axis=1)                            # maxpool: VPU max over phases
    # bias is per-channel constant, so max(conv)+b == max(conv+b); then ReLU.
    o_ref[...] = jnp.maximum(y + b_ref[...], 0.0)


def _mlp_logsoftmax_kernel(x_ref, w1_ref, b1_ref, w2_ref, b2_ref, o_ref):
    """fc1 -> ReLU -> fc2 -> log_softmax for one tile of batch rows."""
    h = jnp.dot(x_ref[...], w1_ref[...], preferred_element_type=jnp.float32)
    h = jnp.maximum(h + b1_ref[...], 0.0)
    # TODO(synk): F.dropout between fc1 and fc2 only when add_dropout_fc_layer
    # and training; disabled here (inference / add_dropout_fc_layer=False).
    logits = jnp.dot(h, w2_ref[...], preferred_element_type=jnp.float32) + b2_ref[...]
    mx = jnp.max(logits, axis=-1, keepdims=True)
    s = logits - mx
    o_ref[...] = s - jnp.log(jnp.sum(jnp.exp(s), axis=-1, keepdims=True))


# ---------------------------------------------------------------------------
# pallas_call wrappers
# ---------------------------------------------------------------------------
def _round_up(n, m):
    return ((n + m - 1) // m) * m


def _pad_batch(x, nb):
    n = x.shape[0]
    n_pad = _round_up(n, nb)
    if n_pad == n:
        return x
    pad = [(0, n_pad - n)] + [(0, 0)] * (x.ndim - 1)
    return jnp.pad(x, pad)


def conv_pool_relu(cols, w_mat, b, *, n_phase, nb):
    """cols: (Np, P2*M, K) -> (Np, M, Cout), Np a multiple of nb."""
    n_p, pm, k = cols.shape
    m = pm // n_phase
    cout = w_mat.shape[1]
    kern = functools.partial(_conv_pool_relu_kernel, n_phase=n_phase)
    return pl.pallas_call(
        kern,
        out_shape=jax.ShapeDtypeStruct((n_p, m, cout), jnp.float32),
        grid=(n_p // nb,),
        in_specs=[
            pl.BlockSpec((nb, pm, k), lambda i: (i, 0, 0)),
            pl.BlockSpec((k, cout), lambda i: (0, 0)),   # weights stay resident
            pl.BlockSpec((1, cout), lambda i: (0, 0)),
        ],
        out_specs=pl.BlockSpec((nb, m, cout), lambda i: (i, 0, 0)),
        compiler_params=pltpu.CompilerParams(
            dimension_semantics=("parallel",),
            vmem_limit_bytes=VMEM_LIMIT_BYTES),
    )(cols, w_mat, b)


def mlp_log_softmax(x, w1, b1, w2, b2, *, nb):
    """x: (Np, F) -> (Np, 10) log-probabilities, Np a multiple of nb."""
    n_p, f = x.shape
    h = w1.shape[1]
    o = w2.shape[1]
    return pl.pallas_call(
        _mlp_logsoftmax_kernel,
        out_shape=jax.ShapeDtypeStruct((n_p, o), jnp.float32),
        grid=(n_p // nb,),
        in_specs=[
            pl.BlockSpec((nb, f), lambda i: (i, 0)),
            pl.BlockSpec((f, h), lambda i: (0, 0)),      # weights stay resident
            pl.BlockSpec((1, h), lambda i: (0, 0)),
            pl.BlockSpec((h, o), lambda i: (0, 0)),
            pl.BlockSpec((1, o), lambda i: (0, 0)),
        ],
        out_specs=pl.BlockSpec((nb, o), lambda i: (i, 0)),
        compiler_params=pltpu.CompilerParams(
            dimension_semantics=("parallel",),
            vmem_limit_bytes=VMEM_LIMIT_BYTES),
    )(x, w1, b1, w2, b2)


# ---------------------------------------------------------------------------
# JAX glue: im2col grouped by max-pool phase (pure data rearrangement)
# ---------------------------------------------------------------------------
def im2col_pool(x, ksize, pool, dtype):
    """x: (N, H, W, C) -> cols (N, pool*pool*Hp*Wp, ksize*ksize*C), plus Hp, Wp.

    Row order is phase-major:  row = q*M + m,  q = i*pool + j,  m = ph*Wp + pw,
    so that the conv output at spatial (ph*pool+i, pw*pool+j) is cols @ w_mat.
    """
    n, h, w, c = x.shape
    ho, wo = h - ksize + 1, w - ksize + 1
    hp, wp = ho // pool, wo // pool
    phases = []
    for i in range(pool):
        for j in range(pool):
            patches = []
            for kh in range(ksize):
                for kw in range(ksize):
                    sl = x[:, i + kh: i + kh + hp * pool: pool,
                              j + kw: j + kw + wp * pool: pool, :]  # (N, Hp, Wp, C)
                    patches.append(sl)
            p = jnp.stack(patches, axis=3)                  # (N, Hp, Wp, KK, C)
            phases.append(p.reshape(n, hp * wp, ksize * ksize * c))
    cols = jnp.concatenate(phases, axis=1)                  # (N, P2*M, K)
    return cols.astype(dtype), hp, wp
# TODO(synk): a fully fused single-kernel forward with in-kernel patch
# extraction (no HBM im2col) would cut traffic further; kept in glue here for
# robust lowering.


# ---------------------------------------------------------------------------
# Model: parameters + forward
# ---------------------------------------------------------------------------
def init_params(key):
    def uniform(key, shape, fan_in):
        bound = 1.0 / jnp.sqrt(float(fan_in))
        return jax.random.uniform(key, shape, jnp.float32, -bound, bound)

    ks = jax.random.split(key, 8)
    k1, k2 = CONV_K
    return {
        # conv weights stored as (KH, KW, Cin, Cout)
        "w1": uniform(ks[0], (k1, k1, 1, 10), 1 * k1 * k1),
        "b1": uniform(ks[1], (1, 10), 1 * k1 * k1),
        "w2": uniform(ks[2], (k2, k2, 10, 20), 10 * k2 * k2),
        "b2": uniform(ks[3], (1, 20), 10 * k2 * k2),
        # fc1 rows are in PyTorch NCHW flatten order (c*16 + m)
        "fc1_w": uniform(ks[4], (320, 50), 320),
        "fc1_b": uniform(ks[5], (1, 50), 320),
        "fc2_w": uniform(ks[6], (50, 10), 50),
        "fc2_b": uniform(ks[7], (1, 10), 50),
    }


@jax.jit
def forward(x_nchw, params):
    """x_nchw: (N, 1, 28, 28) -> (N, 10) log-probabilities."""
    n = x_nchw.shape[0]
    cd = COMPUTE_DTYPE
    x = jnp.transpose(x_nchw, (0, 2, 3, 1))                 # -> NHWC

    # ---- conv1 + maxpool + relu (batched grid over NB_CONV1-sample tiles) ----
    nb1 = min(NB_CONV1, _round_up(n, 8))
    cols1, hp1, wp1 = im2col_pool(x, CONV_K[0], POOL[0], cd)      # (N, 576, 25)
    w1m = params["w1"].reshape(-1, 10).astype(cd)                 # (25, 10)
    y1 = conv_pool_relu(_pad_batch(cols1, nb1), w1m, params["b1"],
                        n_phase=POOL[0] * POOL[0], nb=nb1)        # (Np, 144, 10)
    y1 = y1[:n].reshape(n, hp1, wp1, 10)

    # ---- conv2 (+Identity dropout2d) + maxpool + relu ----
    nb2 = min(NB_CONV2, _round_up(n, 8))
    cols2, hp2, wp2 = im2col_pool(y1, CONV_K[1], POOL[1], cd)     # (N, 64, 250)
    cols2 = jnp.pad(cols2, ((0, 0), (0, 0), (0, K2_PAD - cols2.shape[-1])))
    w2m = params["w2"].reshape(-1, 20).astype(cd)                 # (250, 20)
    w2m = jnp.pad(w2m, ((0, K2_PAD - w2m.shape[0]), (0, 0)))      # (256, 20)
    y2 = conv_pool_relu(_pad_batch(cols2, nb2), w2m, params["b2"],
                        n_phase=POOL[1] * POOL[1], nb=nb2)        # (Np, 16, 20)

    # ---- flatten: PyTorch NCHW (channel-major) order is folded into a
    #      permutation of the fc1 weight rows, so the activation only needs a
    #      free spatial-major reshape (no transpose, no extra HBM hop). ----
    m2 = hp2 * wp2
    flat = y2[:n].reshape(n, m2 * 20)                             # (N, 320) spatial-major
    w_fc1 = (params["fc1_w"].reshape(20, m2, 50)
             .transpose(1, 0, 2).reshape(m2 * 20, 50))            # rows -> spatial-major

    # ---- fc1 -> relu -> fc2 -> log_softmax (batch-tiled) ----
    nbm = min(NB_MLP, _round_up(n, 8))
    out = mlp_log_softmax(_pad_batch(flat, nbm), w_fc1, params["fc1_b"],
                          params["fc2_w"], params["fc2_b"], nb=nbm)
    return out[:n]


# ---------------------------------------------------------------------------
# Pure-JAX reference (for self-check)
# ---------------------------------------------------------------------------
def reference_forward(x_nchw, params):
    x = jnp.transpose(x_nchw, (0, 2, 3, 1))
    dn = ("NHWC", "HWIO", "NHWC")

    def conv_pool_relu_ref(x, w, b, p):
        y = lax.conv_general_dilated(x, w, (1, 1), "VALID", dimension_numbers=dn)
        y = y + b.reshape(1, 1, 1, -1)
        y = lax.reduce_window(y, -jnp.inf, lax.max, (1, p, p, 1), (1, p, p, 1), "VALID")
        return jnp.maximum(y, 0.0)

    y1 = conv_pool_relu_ref(x, params["w1"], params["b1"], POOL[0])
    y2 = conv_pool_relu_ref(y1, params["w2"], params["b2"], POOL[1])
    flat = jnp.transpose(y2, (0, 3, 1, 2)).reshape(x.shape[0], -1)
    h = jnp.maximum(flat @ params["fc1_w"] + params["fc1_b"], 0.0)
    logits = h @ params["fc2_w"] + params["fc2_b"]
    return jax.nn.log_softmax(logits, axis=-1)


if __name__ == "__main__":
    key = jax.random.PRNGKey(0)
    k_x, k_p = jax.random.split(key)
    x = jax.random.normal(k_x, (2, 1, 28, 28), dtype=jnp.float32)
    params = init_params(k_p)

    out = jax.block_until_ready(forward(x, params))
    ref = jax.block_until_ready(reference_forward(x, params))

    assert out.shape == (2, 10)
    assert jnp.allclose(out, ref, atol=2e-3, rtol=2e-3), "mismatch vs reference"

    print("KERNEL_OK")
</pallas_src>

<mosaic_0001>
module attributes {stable_mosaic.version = 11 : i64} {
  func.func @_conv_pool_relu_kernel(%arg0: i32, %arg1: memref<8x576x25xf32, #tpu.memory_space<vmem>>, %arg2: memref<25x10xf32, #tpu.memory_space<vmem>>, %arg3: memref<1x10xf32, #tpu.memory_space<vmem>>, %arg4: memref<8x144x10xf32, #tpu.memory_space<vmem>>) attributes {dimension_semantics = [#tpu.dimension_semantics<parallel>], iteration_bounds = array<i64: 1>, scalar_prefetch = 0 : i64, scratch_operands = 0 : i64, tpu.core_type = #tpu.core_type<tc>, window_params = [{transform_indices = @transform_0, window_bounds = array<i64: 8, 576, 25>}, {pipeline_mode = #tpu.pipeline_mode<synchronous>, transform_indices = @transform_1, window_bounds = array<i64: 25, 10>}, {pipeline_mode = #tpu.pipeline_mode<synchronous>, transform_indices = @transform_2, window_bounds = array<i64: 1, 10>}, {transform_indices = @transform_3, window_bounds = array<i64: 8, 144, 10>}]} {
    %c0 = arith.constant 0 : index
    %c0_0 = arith.constant 0 : index
    %c0_1 = arith.constant 0 : index
    %0 = vector.load %arg1[%c0, %c0_0, %c0_1] : memref<8x576x25xf32, #tpu.memory_space<vmem>>, vector<8x576x25xf32>
    %1 = vector.shape_cast %0 : vector<8x576x25xf32> to vector<4608x25xf32>
    %c0_2 = arith.constant 0 : index
    %c0_3 = arith.constant 0 : index
    %2 = vector.load %arg2[%c0_2, %c0_3] : memref<25x10xf32, #tpu.memory_space<vmem>>, vector<25x10xf32>
    %cst = arith.constant dense<0.000000e+00> : vector<4608x10xf32>
    %3 = tpu.matmul %1, %2, %cst {dimension_numbers = #tpu.dot_dimension_numbers<[1], [0], [0], [1], [0, 0, 1, 1], [], []>} : vector<4608x25xf32>, vector<25x10xf32>, vector<4608x10xf32> -> vector<4608x10xf32>
    %4 = vector.shape_cast %3 : vector<4608x10xf32> to vector<8x4x144x10xf32>
    %cst_4 = arith.constant dense<0xFF800000> : vector<8x144x10xf32>
    %5 = vector.multi_reduction <maximumf>, %4, %cst_4 [1] : vector<8x4x144x10xf32> to vector<8x144x10xf32>
    %c0_5 = arith.constant 0 : index
    %c0_6 = arith.constant 0 : index
    %6 = vector.load %arg3[%c0_5, %c0_6] : memref<1x10xf32, #tpu.memory_space<vmem>>, vector<1x10xf32>
    %7 = vector.shape_cast %6 : vector<1x10xf32> to vector<1x1x10xf32>
    %8 = vector.broadcast %7 : vector<1x1x10xf32> to vector<8x144x10xf32>
    %9 = arith.addf %5, %8 : vector<8x144x10xf32>
    %cst_7 = arith.constant 0.000000e+00 : f32
    %10 = vector.broadcast %cst_7 : f32 to vector<8x144x10xf32>
    %11 = arith.maximumf %9, %10 : vector<8x144x10xf32>
    %c0_8 = arith.constant 0 : index
    %c0_9 = arith.constant 0 : index
    %c0_10 = arith.constant 0 : index
    %12 = vector.load %arg4[%c0_8, %c0_9, %c0_10] : memref<8x144x10xf32, #tpu.memory_space<vmem>>, vector<8x144x10xf32>
    tpu.vector_store %arg4[%c0_8, %c0_9, %c0_10], %11 {strides = array<i32>} : memref<8x144x10xf32, #tpu.memory_space<vmem>>, vector<8x144x10xf32>,
    return
  }
  func.func @transform_0(%arg0: i32) -> (i32, i32, i32) {
    %c0_i32 = arith.constant 0 : i32
    %c0_i32_0 = arith.constant 0 : i32
    %c0_i32_1 = arith.constant 0 : i32
    return %arg0, %c0_i32, %c0_i32_0 : i32, i32, i32
  }
  func.func @transform_1(%arg0: i32) -> (i32, i32) {
    %c0_i32 = arith.constant 0 : i32
    %c0_i32_0 = arith.constant 0 : i32
    %c0_i32_1 = arith.constant 0 : i32
    return %c0_i32, %c0_i32_0 : i32, i32
  }
  func.func @transform_2(%arg0: i32) -> (i32, i32) {
    %c0_i32 = arith.constant 0 : i32
    %c0_i32_0 = arith.constant 0 : i32
    %c0_i32_1 = arith.constant 0 : i32
    return %c0_i32, %c0_i32_0 : i32, i32
  }
  func.func @transform_3(%arg0: i32) -> (i32, i32, i32) {
    %c0_i32 = arith.constant 0 : i32
    %c0_i32_0 = arith.constant 0 : i32
    %c0_i32_1 = arith.constant 0 : i32
    return %arg0, %c0_i32, %c0_i32_0 : i32, i32, i32
  }
}

module attributes {stable_mosaic.version = 11 : i64} {
  func.func @_conv_pool_relu_kernel(%arg0: i32, %arg1: memref<8x64x256xf32, #tpu.memory_space<vmem>>, %arg2: memref<256x20xf32, #tpu.memory_space<vmem>>, %arg3: memref<1x20xf32, #tpu.memory_space<vmem>>, %arg4: memref<8x16x20xf32, #tpu.memory_space<vmem>>) attributes {dimension_semantics = [#tpu.dimension_semantics<parallel>], iteration_bounds = array<i64: 1>, scalar_prefetch = 0 : i64, scratch_operands = 0 : i64, tpu.core_type = #tpu.core_type<tc>, window_params = [{transform_indices = @transform_0, window_bounds = array<i64: 8, 64, 256>}, {pipeline_mode = #tpu.pipeline_mode<synchronous>, transform_indices = @transform_1, window_bounds = array<i64: 256, 20>}, {pipeline_mode = #tpu.pipeline_mode<synchronous>, transform_indices = @transform_2, window_bounds = array<i64: 1, 20>}, {transform_indices = @transform_3, window_bounds = array<i64: 8, 16, 20>}]} {
    %c0 = arith.constant 0 : index
    %c0_0 = arith.constant 0 : index
    %c0_1 = arith.constant 0 : index
    %0 = vector.load %arg1[%c0, %c0_0, %c0_1] : memref<8x64x256xf32, #tpu.memory_space<vmem>>, vector<8x64x256xf32>
    %1 = vector.shape_cast %0 : vector<8x64x256xf32> to vector<512x256xf32>
    %c0_2 = arith.constant 0 : index
    %c0_3 = arith.constant 0 : index
    %2 = vector.load %arg2[%c0_2, %c0_3] : memref<256x20xf32, #tpu.memory_space<vmem>>, vector<256x20xf32>
    %cst = arith.constant dense<0.000000e+00> : vector<512x20xf32>
    %3 = tpu.matmul %1, %2, %cst {dimension_numbers = #tpu.dot_dimension_numbers<[1], [0], [0], [1], [0, 0, 1, 1], [], []>} : vector<512x256xf32>, vector<256x20xf32>, vector<512x20xf32> -> vector<512x20xf32>
    %4 = vector.shape_cast %3 : vector<512x20xf32> to vector<8x4x16x20xf32>
    %cst_4 = arith.constant dense<0xFF800000> : vector<8x16x20xf32>
    %5 = vector.multi_reduction <maximumf>, %4, %cst_4 [1] : vector<8x4x16x20xf32> to vector<8x16x20xf32>
    %c0_5 = arith.constant 0 : index
    %c0_6 = arith.constant 0 : index
    %6 = vector.load %arg3[%c0_5, %c0_6] : memref<1x20xf32, #tpu.memory_space<vmem>>, vector<1x20xf32>
    %7 = vector.shape_cast %6 : vector<1x20xf32> to vector<1x1x20xf32>
    %8 = vector.broadcast %7 : vector<1x1x20xf32> to vector<8x16x20xf32>
    %9 = arith.addf %5, %8 : vector<8x16x20xf32>
    %cst_7 = arith.constant 0.000000e+00 : f32
    %10 = vector.broadcast %cst_7 : f32 to vector<8x16x20xf32>
    %11 = arith.maximumf %9, %10 : vector<8x16x20xf32>
    %c0_8 = arith.constant 0 : index
    %c0_9 = arith.constant 0 : index
    %c0_10 = arith.constant 0 : index
    %12 = vector.load %arg4[%c0_8, %c0_9, %c0_10] : memref<8x16x20xf32, #tpu.memory_space<vmem>>, vector<8x16x20xf32>
    tpu.vector_store %arg4[%c0_8, %c0_9, %c0_10], %11 {strides = array<i32>} : memref<8x16x20xf32, #tpu.memory_space<vmem>>, vector<8x16x20xf32>,
    return
  }
  func.func @transform_0(%arg0: i32) -> (i32, i32, i32) {
    %c0_i32 = arith.constant 0 : i32
    %c0_i32_0 = arith.constant 0 : i32
    %c0_i32_1 = arith.constant 0 : i32
    return %arg0, %c0_i32, %c0_i32_0 : i32, i32, i32
  }
  func.func @transform_1(%arg0: i32) -> (i32, i32) {
    %c0_i32 = arith.constant 0 : i32
    %c0_i32_0 = arith.constant 0 : i32
    %c0_i32_1 = arith.constant 0 : i32
    return %c0_i32, %c0_i32_0 : i32, i32
  }
  func.func @transform_2(%arg0: i32) -> (i32, i32) {
    %c0_i32 = arith.constant 0 : i32
    %c0_i32_0 = arith.constant 0 : i32
    %c0_i32_1 = arith.constant 0 : i32
    return %c0_i32, %c0_i32_0 : i32, i32
  }
  func.func @transform_3(%arg0: i32) -> (i32, i32, i32) {
    %c0_i32 = arith.constant 0 : i32
    %c0_i32_0 = arith.constant 0 : i32
    %c0_i32_1 = arith.constant 0 : i32
    return %arg0, %c0_i32, %c0_i32_0 : i32, i32, i32
  }
}

module attributes {stable_mosaic.version = 11 : i64} {
  func.func @_mlp_logsoftmax_kernel(%arg0: i32, %arg1: memref<8x320xf32, #tpu.memory_space<vmem>>, %arg2: memref<320x50xf32, #tpu.memory_space<vmem>>, %arg3: memref<1x50xf32, #tpu.memory_space<vmem>>, %arg4: memref<50x10xf32, #tpu.memory_space<vmem>>, %arg5: memref<1x10xf32, #tpu.memory_space<vmem>>, %arg6: memref<8x10xf32, #tpu.memory_space<vmem>>) attributes {dimension_semantics = [#tpu.dimension_semantics<parallel>], iteration_bounds = array<i64: 1>, scalar_prefetch = 0 : i64, scratch_operands = 0 : i64, tpu.core_type = #tpu.core_type<tc>, window_params = [{transform_indices = @transform_0, window_bounds = array<i64: 8, 320>}, {pipeline_mode = #tpu.pipeline_mode<synchronous>, transform_indices = @transform_1, window_bounds = array<i64: 320, 50>}, {pipeline_mode = #tpu.pipeline_mode<synchronous>, transform_indices = @transform_2, window_bounds = array<i64: 1, 50>}, {pipeline_mode = #tpu.pipeline_mode<synchronous>, transform_indices = @transform_3, window_bounds = array<i64: 50, 10>}, {pipeline_mode = #tpu.pipeline_mode<synchronous>, transform_indices = @transform_4, window_bounds = array<i64: 1, 10>}, {transform_indices = @transform_5, window_bounds = array<i64: 8, 10>}]} {
    %c0 = arith.constant 0 : index
    %c0_0 = arith.constant 0 : index
    %0 = vector.load %arg1[%c0, %c0_0] : memref<8x320xf32, #tpu.memory_space<vmem>>, vector<8x320xf32>
    %c0_1 = arith.constant 0 : index
    %c0_2 = arith.constant 0 : index
    %1 = vector.load %arg2[%c0_1, %c0_2] : memref<320x50xf32, #tpu.memory_space<vmem>>, vector<320x50xf32>
    %cst = arith.constant dense<0.000000e+00> : vector<8x50xf32>
    %2 = tpu.matmul %0, %1, %cst {dimension_numbers = #tpu.dot_dimension_numbers<[1], [0], [0], [1], [0, 0, 1, 1], [], []>} : vector<8x320xf32>, vector<320x50xf32>, vector<8x50xf32> -> vector<8x50xf32>
    %c0_3 = arith.constant 0 : index
    %c0_4 = arith.constant 0 : index
    %3 = vector.load %arg3[%c0_3, %c0_4] : memref<1x50xf32, #tpu.memory_space<vmem>>, vector<1x50xf32>
    %4 = vector.broadcast %3 : vector<1x50xf32> to vector<8x50xf32>
    %5 = arith.addf %2, %4 : vector<8x50xf32>
    %cst_5 = arith.constant 0.000000e+00 : f32
    %6 = vector.broadcast %cst_5 : f32 to vector<8x50xf32>
    %7 = arith.maximumf %5, %6 : vector<8x50xf32>
    %c0_6 = arith.constant 0 : index
    %c0_7 = arith.constant 0 : index
    %8 = vector.load %arg4[%c0_6, %c0_7] : memref<50x10xf32, #tpu.memory_space<vmem>>, vector<50x10xf32>
    %cst_8 = arith.constant dense<0.000000e+00> : vector<8x10xf32>
    %9 = tpu.matmul %7, %8, %cst_8 {dimension_numbers = #tpu.dot_dimension_numbers<[1], [0], [0], [1], [0, 0, 1, 1], [], []>} : vector<8x50xf32>, vector<50x10xf32>, vector<8x10xf32> -> vector<8x10xf32>
    %c0_9 = arith.constant 0 : index
    %c0_10 = arith.constant 0 : index
    %10 = vector.load %arg5[%c0_9, %c0_10] : memref<1x10xf32, #tpu.memory_space<vmem>>, vector<1x10xf32>
    %11 = vector.broadcast %10 : vector<1x10xf32> to vector<8x10xf32>
    %12 = arith.addf %9, %11 : vector<8x10xf32>
    %cst_11 = arith.constant dense<0xFF800000> : vector<8xf32>
    %13 = vector.multi_reduction <maximumf>, %12, %cst_11 [1] : vector<8x10xf32> to vector<8xf32>
    %14 = vector.shape_cast %13 : vector<8xf32> to vector<8x1xf32>
    %15 = vector.broadcast %14 : vector<8x1xf32> to vector<8x10xf32>
    %16 = arith.subf %12, %15 : vector<8x10xf32>
    %17 = math.exp %16 : vector<8x10xf32>
    %cst_12 = arith.constant dense<0.000000e+00> : vector<8xf32>
    %18 = vector.multi_reduction <add>, %17, %cst_12 [1] : vector<8x10xf32> to vector<8xf32>
    %19 = vector.shape_cast %18 : vector<8xf32> to vector<8x1xf32>
    %20 = math.log %19 : vector<8x1xf32>
    %21 = vector.broadcast %20 : vector<8x1xf32> to vector<8x10xf32>
    %22 = arith.subf %16, %21 : vector<8x10xf32>
    %c0_13 = arith.constant 0 : index
    %c0_14 = arith.constant 0 : index
    %23 = vector.load %arg6[%c0_13, %c0_14] : memref<8x10xf32, #tpu.memory_space<vmem>>, vector<8x10xf32>
    tpu.vector_store %arg6[%c0_13, %c0_14], %22 {strides = array<i32>} : memref<8x10xf32, #tpu.memory_space<vmem>>, vector<8x10xf32>,
    return
  }
  func.func @transform_0(%arg0: i32) -> (i32, i32) {
    %c0_i32 = arith.constant 0 : i32
    %c0_i32_0 = arith.constant 0 : i32
    return %arg0, %c0_i32 : i32, i32
  }
  func.func @transform_1(%arg0: i32) -> (i32, i32) {
    %c0_i32 = arith.constant 0 : i32
    %c0_i32_0 = arith.constant 0 : i32
    %c0_i32_1 = arith.constant 0 : i32
    return %c0_i32, %c0_i32_0 : i32, i32
  }
  func.func @transform_2(%arg0: i32) -> (i32, i32) {
    %c0_i32 = arith.constant 0 : i32
    %c0_i32_0 = arith.constant 0 : i32
    %c0_i32_1 = arith.constant 0 : i32
    return %c0_i32, %c0_i32_0 : i32, i32
  }
  func.func @transform_3(%arg0: i32) -> (i32, i32) {
    %c0_i32 = arith.constant 0 : i32
    %c0_i32_0 = arith.constant 0 : i32
    %c0_i32_1 = arith.constant 0 : i32
    return %c0_i32, %c0_i32_0 : i32, i32
  }
  func.func @transform_4(%arg0: i32) -> (i32, i32) {
    %c0_i32 = arith.constant 0 : i32
    %c0_i32_0 = arith.constant 0 : i32
    %c0_i32_1 = arith.constant 0 : i32
    return %c0_i32, %c0_i32_0 : i32, i32
  }
  func.func @transform_5(%arg0: i32) -> (i32, i32) {
    %c0_i32 = arith.constant 0 : i32
    %c0_i32_0 = arith.constant 0 : i32
    return %arg0, %c0_i32 : i32, i32
  }
}

</mosaic_0001>

<llo_original>
// kernel: forward.3
$region0: #{forward.3}
  #allocation0 [shape = 'u32[]', space=smem, size = 0x4, offset = 0x4, fixed_abs, tag = 'smem constant byte address 0x4 - core index']
  #allocation1 [shape = 'u32[144,128]{1,0:T(1,128)}', space=vmem, size = 0x12000, scoped, tag = 'internal scratch']
  %s0 = inlined_call_operand.vmem [shape: f32[8,576,25], index: 0, kind: input, shape index: {}]
  %s1 = inlined_call_operand.vmem [shape: f32[25,10], index: 1, kind: input, shape index: {}]
  %s2 = inlined_call_operand.vmem [shape: f32[1,10], index: 2, kind: input, shape index: {}]
  %s3 = inlined_call_operand.vmem [shape: f32[8,144,10], index: 3, kind: output, shape index: {}]
  %s4 = sld [smem:[#allocation0]]
  $region22: #{forward.3} parent=0
    _
  %s6 = ssub.s32 1, %s4
  %s7 = scalar_select 0, %s6, %s4
  // Predicated region
  $region2: #{forward.3} parent=0 // pred_check
    _
  $region3: #{forward.3} parent=0 // pred_check_branch
    %9 = sbr.rel (0) target = $region5
  $region4: #{forward.3} parent=0 // pred_region
    _
  $region5: #{forward.3} parent=0 // pred_fallthru
    _
  // Predicated region
  $region6: #{forward.3} parent=0 // pred_check
    _
  $region7: #{forward.3} parent=0 // pred_check_branch
    %11 = sbr.rel (0) target = $region9
  $region8: #{forward.3} parent=0 // pred_region
    _
  $region9: #{forward.3} parent=0 // pred_fallthru
    _
  // Predicated region
  $region10: #{forward.3} parent=0 // pred_check
    _
  $region11: #{forward.3} parent=0 // pred_check_branch
    %13 = sbr.rel (0) target = $region13
  $region12: #{forward.3} parent=0 // pred_region
    _
  $region13: #{forward.3} parent=0 // pred_fallthru
    _
  %v14 = vld [vmem:[%s0] sm:$0xff]
  %v15 = vld [vmem:[%s0 + $0x8] sm:$0xff]
  %v16 = vld [vmem:[%s0 + $0x10] sm:$0xff]
  %v17 = vld [vmem:[%s0 + $0x18] sm:$0xff]
  %v18 = vld [vmem:[%s0 + $0x20] sm:$0xff]
  %v19 = vld [vmem:[%s0 + $0x28] sm:$0xff]
  %v20 = vld [vmem:[%s0 + $0x30] sm:$0xff]
  %v21 = vld [vmem:[%s0 + $0x38] sm:$0xff]
  %v22 = vld [vmem:[%s0 + $0x40] sm:$0xff]
  %v23 = vld [vmem:[%s0 + $0x48] sm:$0xff]
  %v24 = vld [vmem:[%s0 + $0x50] sm:$0xff]
  %v25 = vld [vmem:[%s0 + $0x58] sm:$0xff]
  %v26 = vld [vmem:[%s0 + $0x60] sm:$0xff]
  %v27 = vld [vmem:[%s0 + $0x68] sm:$0xff]
  %v28 = vld [vmem:[%s0 + $0x70] sm:$0xff]
  %v29 = vld [vmem:[%s0 + $0x78] sm:$0xff]
  %v30 = vld [vmem:[%s0 + $0x80] sm:$0xff]
  %v31 = vld [vmem:[%s0 + $0x88] sm:$0xff]
  %v32 = vld [vmem:[%s0 + $0x90] sm:$0xff]
  %v33 = vld [vmem:[%s0 + $0x98] sm:$0xff]
  %v34 = vld [vmem:[%s0 + $0xa0] sm:$0xff]
  %v35 = vld [vmem:[%s0 + $0xa8] sm:$0xff]
  %v36 = vld [vmem:[%s0 + $0xb0] sm:$0xff]
  %v37 = vld [vmem:[%s0 + $0xb8] sm:$0xff]
  %v38 = vld [vmem:[%s0 + $0xc0] sm:$0xff]
  %v39 = vld [vmem:[%s0 + $0xc8] sm:$0xff]
  %v40 = vld [vmem:[%s0 + $0xd0] sm:$0xff]
  %v41 = vld [vmem:[%s0 + $0xd8] sm:$0xff]
  %v42 = vld [vmem:[%s0 + $0xe0] sm:$0xff]
  %v43 = vld [vmem:[%s0 + $0xe8] sm:$0xff]
  %v44 = vld [vmem:[%s0 + $0xf0] sm:$0xff]
  %v45 = vld [vmem:[%s0 + $0xf8] sm:$0xff]
  %v46 = vld [vmem:[%s0 + $0x100] sm:$0xff]
  %v47 = vld [vmem:[%s0 + $0x108] sm:$0xff]
  %v48 = vld [vmem:[%s0 + $0x110] sm:$0xff]
  %v49 = vld [vmem:[%s0 + $0x118] sm:$0xff]
  %v50 = vld [vmem:[%s0 + $0x120] sm:$0xff]
  %v51 = vld [vmem:[%s0 + $0x128] sm:$0xff]
  %v52 = vld [vmem:[%s0 + $0x130] sm:$0xff]
  %v53 = vld [vmem:[%s0 + $0x138] sm:$0xff]
  %v54 = vld [vmem:[%s0 + $0x140] sm:$0xff]
  %v55 = vld [vmem:[%s0 + $0x148] sm:$0xff]
  %v56 = vld [vmem:[%s0 + $0x150] sm:$0xff]
  %v57 = vld [vmem:[%s0 + $0x158] sm:$0xff]
  %v58 = vld [vmem:[%s0 + $0x160] sm:$0xff]
  %v59 = vld [vmem:[%s0 + $0x168] sm:$0xff]
  %v60 = vld [vmem:[%s0 + $0x170] sm:$0xff]
  %v61 = vld [vmem:[%s0 + $0x178] sm:$0xff]
  %v62 = vld [vmem:[%s0 + $0x180] sm:$0xff]
  %v63 = vld [vmem:[%s0 + $0x188] sm:$0xff]
  %v64 = vld [vmem:[%s0 + $0x190] sm:$0xff]
  %v65 = vld [vmem:[%s0 + $0x198] sm:$0xff]
  %v66 = vld [vmem:[%s0 + $0x1a0] sm:$0xff]
  %v67 = vld [vmem:[%s0 + $0x1a8] sm:$0xff]
  %v68 = vld [vmem:[%s0 + $0x1b0] sm:$0xff]
  %v69 = vld [vmem:[%s0 + $0x1b8] sm:$0xff]
  %v70 = vld [vmem:[%s0 + $0x1c0] sm:$0xff]
  %v71 = vld [vmem:[%s0 + $0x1c8] sm:$0xff]
  %v72 = vld [vmem:[%s0 + $0x1d0] sm:$0xff]
  %v73 = vld [vmem:[%s0 + $0x1d8] sm:$0xff]
  %v74 = vld [vmem:[%s0 + $0x1e0] sm:$0xff]
  %v75 = vld [vmem:[%s0 + $0x1e8] sm:$0xff]
  %v76 = vld [vmem:[%s0 + $0x1f0] sm:$0xff]
  %v77 = vld [vmem:[%s0 + $0x1f8] sm:$0xff]
  %v78 = vld [vmem:[%s0 + $0x200] sm:$0xff]
  %v79 = vld [vmem:[%s0 + $0x208] sm:$0xff]
  %v80 = vld [vmem:[%s0 + $0x210] sm:$0xff]
  %v81 = vld [vmem:[%s0 + $0x218] sm:$0xff]
  %v82 = vld [vmem:[%s0 + $0x220] sm:$0xff]
  %v83 = vld [vmem:[%s0 + $0x228] sm:$0xff]
  %v84 = vld [vmem:[%s0 + $0x230] sm:$0xff]
  %v85 = vld [vmem:[%s0 + $0x238] sm:$0xff]
  %v86 = vld [vmem:[%s0 + $0x240] sm:$0xff]
  %v87 = vld [vmem:[%s0 + $0x248] sm:$0xff]
  %v88 = vld [vmem:[%s0 + $0x250] sm:$0xff]
  %v89 = vld [vmem:[%s0 + $0x258] sm:$0xff]
  %v90 = vld [vmem:[%s0 + $0x260] sm:$0xff]
  %v91 = vld [vmem:[%s0 + $0x268] sm:$0xff]
  %v92 = vld [vmem:[%s0 + $0x270] sm:$0xff]
  %v93 = vld [vmem:[%s0 + $0x278] sm:$0xff]
  %v94 = vld [vmem:[%s0 + $0x280] sm:$0xff]
  %v95 = vld [vmem:[%s0 + $0x288] sm:$0xff]
  %v96 = vld [vmem:[%s0 + $0x290] sm:$0xff]
  %v97 = vld [vmem:[%s0 + $0x298] sm:$0xff]
  %v98 = vld [vmem:[%s0 + $0x2a0] sm:$0xff]
  %v99 = vld [vmem:[%s0 + $0x2a8] sm:$0xff]
  %v100 = vld [vmem:[%s0 + $0x2b0] sm:$0xff]
  %v101 = vld [vmem:[%s0 + $0x2b8] sm:$0xff]
  %v102 = vld [vmem:[%s0 + $0x2c0] sm:$0xff]
  %v103 = vld [vmem:[%s0 + $0x2c8] sm:$0xff]
  %v104 = vld [vmem:[%s0 + $0x2d0] sm:$0xff]
  %v105 = vld [vmem:[%s0 + $0x2d8] sm:$0xff]
  %v106 = vld [vmem:[%s0 + $0x2e0] sm:$0xff]
  %v107 = vld [vmem:[%s0 + $0x2e8] sm:$0xff]
  %v108 = vld [vmem:[%s0 + $0x2f0] sm:$0xff]
  %v109 = vld [vmem:[%s0 + $0x2f8] sm:$0xff]
  %v110 = vld [vmem:[%s0 + $0x300] sm:$0xff]
  %v111 = vld [vmem:[%s0 + $0x308] sm:$0xff]
  %v112 = vld [vmem:[%s0 + $0x310] sm:$0xff]
  %v113 = vld [vmem:[%s0 + $0x318] sm:$0xff]
  %v114 = vld [vmem:[%s0 + $0x320] sm:$0xff]
  %v115 = vld [vmem:[%s0 + $0x328] sm:$0xff]
  %v116 = vld [vmem:[%s0 + $0x330] sm:$0xff]
  %v117 = vld [vmem:[%s0 + $0x338] sm:$0xff]
  %v118 = vld [vmem:[%s0 + $0x340] sm:$0xff]
  %v119 = vld [vmem:[%s0 + $0x348] sm:$0xff]
  %v120 = vld [vmem:[%s0 + $0x350] sm:$0xff]
  %v121 = vld [vmem:[%s0 + $0x358] sm:$0xff]
  %v122 = vld [vmem:[%s0 + $0x360] sm:$0xff]
  %v123 = vld [vmem:[%s0 + $0x368] sm:$0xff]
  %v124 = vld [vmem:[%s0 + $0x370] sm:$0xff]
  %v125 = vld [vmem:[%s0 + $0x378] sm:$0xff]
  %v126 = vld [vmem:[%s0 + $0x380] sm:$0xff]
  %v127 = vld [vmem:[%s0 + $0x388] sm:$0xff]
  %v128 = vld [vmem:[%s0 + $0x390] sm:$0xff]
  %v129 = vld [vmem:[%s0 + $0x398] sm:$0xff]
  %v130 = vld [vmem:[%s0 + $0x3a0] sm:$0xff]
  %v131 = vld [vmem:[%s0 + $0x3a8] sm:$0xff]
  %v132 = vld [vmem:[%s0 + $0x3b0] sm:$0xff]
  %v133 = vld [vmem:[%s0 + $0x3b8] sm:$0xff]
  %v134 = vld [vmem:[%s0 + $0x3c0] sm:$0xff]
  %v135 = vld [vmem:[%s0 + $0x3c8] sm:$0xff]
  %v136 = vld [vmem:[%s0 + $0x3d0] sm:$0xff]
  %v137 = vld [vmem:[%s0 + $0x3d8] sm:$0xff]
  %v138 = vld [vmem:[%s0 + $0x3e0] sm:$0xff]
  %v139 = vld [vmem:[%s0 + $0x3e8] sm:$0xff]
  %v140 = vld [vmem:[%s0 + $0x3f0] sm:$0xff]
  %v141 = vld [vmem:[%s0 + $0x3f8] sm:$0xff]
  %v142 = vld [vmem:[%s0 + $0x400] sm:$0xff]
  %v143 = vld [vmem:[%s0 + $0x408] sm:$0xff]
  %v144 = vld [vmem:[%s0 + $0x410] sm:$0xff]
  %v145 = vld [vmem:[%s0 + $0x418] sm:$0xff]
  %v146 = vld [vmem:[%s0 + $0x420] sm:$0xff]
  %v147 = vld [vmem:[%s0 + $0x428] sm:$0xff]
  %v148 = vld [vmem:[%s0 + $0x430] sm:$0xff]
  %v149 = vld [vmem:[%s0 + $0x438] sm:$0xff]
  %v150 = vld [vmem:[%s0 + $0x440] sm:$0xff]
  %v151 = vld [vmem:[%s0 + $0x448] sm:$0xff]
  %v152 = vld [vmem:[%s0 + $0x450] sm:$0xff]
  %v153 = vld [vmem:[%s0 + $0x458] sm:$0xff]
  %v154 = vld [vmem:[%s0 + $0x460] sm:$0xff]
  %v155 = vld [vmem:[%s0 + $0x468] sm:$0xff]
  %v156 = vld [vmem:[%s0 + $0x470] sm:$0xff]
  %v157 = vld [vmem:[%s0 + $0x478] sm:$0xff]
  %v158 = vld [vmem:[%s0 + $0x480] sm:$0xff]
  %v159 = vld [vmem:[%s0 + $0x488] sm:$0xff]
  %v160 = vld [vmem:[%s0 + $0x490] sm:$0xff]
  %v161 = vld [vmem:[%s0 + $0x498] sm:$0xff]
  %v162 = vld [vmem:[%s0 + $0x4a0] sm:$0xff]
  %v163 = vld [vmem:[%s0 + $0x4a8] sm:$0xff]
  %v164 = vld [vmem:[%s0 + $0x4b0] sm:$0xff]
  %v165 = vld [vmem:[%s0 + $0x4b8] sm:$0xff]
  %v166 = vld [vmem:[%s0 + $0x4c0] sm:$0xff]
  %v167 = vld [vmem:[%s0 + $0x4c8] sm:$0xff]
  %v168 = vld [vmem:[%s0 + $0x4d0] sm:$0xff]
  %v169 = vld [vmem:[%s0 + $0x4d8] sm:$0xff]
  %v170 = vld [vmem:[%s0 + $0x4e0] sm:$0xff]
  %v171 = vld [vmem:[%s0 + $0x4e8] sm:$0xff]
  %v172 = vld [vmem:[%s0 + $0x4f0] sm:$0xff]
  %v173 = vld [vmem:[%s0 + $0x4f8] sm:$0xff]
  %v174 = vld [vmem:[%s0 + $0x500] sm:$0xff]
  %v175 = vld [vmem:[%s0 + $0x508] sm:$0xff]
  %v176 = vld [vmem:[%s0 + $0x510] sm:$0xff]
  %v177 = vld [vmem:[%s0 + $0x518] sm:$0xff]
  %v178 = vld [vmem:[%s0 + $0x520] sm:$0xff]
  %v179 = vld [vmem:[%s0 + $0x528] sm:$0xff]
  %v180 = vld [vmem:[%s0 + $0x530] sm:$0xff]
  %v181 = vld [vmem:[%s0 + $0x538] sm:$0xff]
  %v182 = vld [vmem:[%s0 + $0x540] sm:$0xff]
  %v183 = vld [vmem:[%s0 + $0x548] sm:$0xff]
  %v184 = vld [vmem:[%s0 + $0x550] sm:$0xff]
  %v185 = vld [vmem:[%s0 + $0x558] sm:$0xff]
  %v186 = vld [vmem:[%s0 + $0x560] sm:$0xff]
  %v187 = vld [vmem:[%s0 + $0x568] sm:$0xff]
  %v188 = vld [vmem:[%s0 + $0x570] sm:$0xff]
  %v189 = vld [vmem:[%s0 + $0x578] sm:$0xff]
  %v190 = vld [vmem:[%s0 + $0x580] sm:$0xff]
  %v191 = vld [vmem:[%s0 + $0x588] sm:$0xff]
  %v192 = vld [vmem:[%s0 + $0x590] sm:$0xff]
  %v193 = vld [vmem:[%s0 + $0x598] sm:$0xff]
  %v194 = vld [vmem:[%s0 + $0x5a0] sm:$0xff]
  %v195 = vld [vmem:[%s0 + $0x5a8] sm:$0xff]
  %v196 = vld [vmem:[%s0 + $0x5b0] sm:$0xff]
  %v197 = vld [vmem:[%s0 + $0x5b8] sm:$0xff]
  %v198 = vld [vmem:[%s0 + $0x5c0] sm:$0xff]
  %v199 = vld [vmem:[%s0 + $0x5c8] sm:$0xff]
  %v200 = vld [vmem:[%s0 + $0x5d0] sm:$0xff]
  %v201 = vld [vmem:[%s0 + $0x5d8] sm:$0xff]
  %v202 = vld [vmem:[%s0 + $0x5e0] sm:$0xff]
  %v203 = vld [vmem:[%s0 + $0x5e8] sm:$0xff]
  %v204 = vld [vmem:[%s0 + $0x5f0] sm:$0xff]
  %v205 = vld [vmem:[%s0 + $0x5f8] sm:$0xff]
  %v206 = vld [vmem:[%s0 + $0x600] sm:$0xff]
  %v207 = vld [vmem:[%s0 + $0x608] sm:$0xff]
  %v208 = vld [vmem:[%s0 + $0x610] sm:$0xff]
  %v209 = vld [vmem:[%s0 + $0x618] sm:$0xff]
  %v210 = vld [vmem:[%s0 + $0x620] sm:$0xff]
  %v211 = vld [vmem:[%s0 + $0x628] sm:$0xff]
  %v212 = vld [vmem:[%s0 + $0x630] sm:$0xff]
  %v213 = vld [vmem:[%s0 + $0x638] sm:$0xff]
  %v214 = vld [vmem:[%s0 + $0x640] sm:$0xff]
  %v215 = vld [vmem:[%s0 + $0x648] sm:$0xff]
  %v216 = vld [vmem:[%s0 + $0x650] sm:$0xff]
  %v217 = vld [vmem:[%s0 + $0x658] sm:$0xff]
  %v218 = vld [vmem:[%s0 + $0x660] sm:$0xff]
  %v219 = vld [vmem:[%s0 + $0x668] sm:$0xff]
  %v220 = vld [vmem:[%s0 + $0x670] sm:$0xff]
  %v221 = vld [vmem:[%s0 + $0x678] sm:$0xff]
  %v222 = vld [vmem:[%s0 + $0x680] sm:$0xff]
  %v223 = vld [vmem:[%s0 + $0x688] sm:$0xff]
  %v224 = vld [vmem:[%s0 + $0x690] sm:$0xff]
  %v225 = vld [vmem:[%s0 + $0x698] sm:$0xff]
  %v226 = vld [vmem:[%s0 + $0x6a0] sm:$0xff]
  %v227 = vld [vmem:[%s0 + $0x6a8] sm:$0xff]
  %v228 = vld [vmem:[%s0 + $0x6b0] sm:$0xff]
  %v229 = vld [vmem:[%s0 + $0x6b8] sm:$0xff]
  %v230 = vld [vmem:[%s0 + $0x6c0] sm:$0xff]
  %v231 = vld [vmem:[%s0 + $0x6c8] sm:$0xff]
  %v232 = vld [vmem:[%s0 + $0x6d0] sm:$0xff]
  %v233 = vld [vmem:[%s0 + $0x6d8] sm:$0xff]
  %v234 = vld [vmem:[%s0 + $0x6e0] sm:$0xff]
  %v235 = vld [vmem:[%s0 + $0x6e8] sm:$0xff]
  %v236 = vld [vmem:[%s0 + $0x6f0] sm:$0xff]
  %v237 = vld [vmem:[%s0 + $0x6f8] sm:$0xff]
  %v238 = vld [vmem:[%s0 + $0x700] sm:$0xff]
  %v239 = vld [vmem:[%s0 + $0x708] sm:$0xff]
  %v240 = vld [vmem:[%s0 + $0x710] sm:$0xff]
  %v241 = vld [vmem:[%s0 + $0x718] sm:$0xff]
  %v242 = vld [vmem:[%s0 + $0x720] sm:$0xff]
  %v243 = vld [vmem:[%s0 + $0x728] sm:$0xff]
  %v244 = vld [vmem:[%s0 + $0x730] sm:$0xff]
  %v245 = vld [vmem:[%s0 + $0x738] sm:$0xff]
  %v246 = vld [vmem:[%s0 + $0x740] sm:$0xff]
  %v247 = vld [vmem:[%s0 + $0x748] sm:$0xff]
  %v248 = vld [vmem:[%s0 + $0x750] sm:$0xff]
  %v249 = vld [vmem:[%s0 + $0x758] sm:$0xff]
  %v250 = vld [vmem:[%s0 + $0x760] sm:$0xff]
  %v251 = vld [vmem:[%s0 + $0x768] sm:$0xff]
  %v252 = vld [vmem:[%s0 + $0x770] sm:$0xff]
  %v253 = vld [vmem:[%s0 + $0x778] sm:$0xff]
  %v254 = vld [vmem:[%s0 + $0x780] sm:$0xff]
  %v255 = vld [vmem:[%s0 + $0x788] sm:$0xff]
  %v256 = vld [vmem:[%s0 + $0x790] sm:$0xff]
  %v257 = vld [vmem:[%s0 + $0x798] sm:$0xff]
  %v258 = vld [vmem:[%s0 + $0x7a0] sm:$0xff]
  %v259 = vld [vmem:[%s0 + $0x7a8] sm:$0xff]
  %v260 = vld [vmem:[%s0 + $0x7b0] sm:$0xff]
  %v261 = vld [vmem:[%s0 + $0x7b8] sm:$0xff]
  %v262 = vld [vmem:[%s0 + $0x7c0] sm:$0xff]
  %v263 = vld [vmem:[%s0 + $0x7c8] sm:$0xff]
  %v264 = vld [vmem:[%s0 + $0x7d0] sm:$0xff]
  %v265 = vld [vmem:[%s0 + $0x7d8] sm:$0xff]
  %v266 = vld [vmem:[%s0 + $0x7e0] sm:$0xff]
  %v267 = vld [vmem:[%s0 + $0x7e8] sm:$0xff]
  %v268 = vld [vmem:[%s0 + $0x7f0] sm:$0xff]
  %v269 = vld [vmem:[%s0 + $0x7f8] sm:$0xff]
  %v270 = vld [vmem:[%s0 + $0x800] sm:$0xff]
  %v271 = vld [vmem:[%s0 + $0x808] sm:$0xff]
  %v272 = vld [vmem:[%s0 + $0x810] sm:$0xff]
  %v273 = vld [vmem:[%s0 + $0x818] sm:$0xff]
  %v274 = vld [vmem:[%s0 + $0x820] sm:$0xff]
  %v275 = vld [vmem:[%s0 + $0x828] sm:$0xff]
  %v276 = vld [vmem:[%s0 + $0x830] sm:$0xff]
  %v277 = vld [vmem:[%s0 + $0x838] sm:$0xff]
  %v278 = vld [vmem:[%s0 + $0x840] sm:$0xff]
  %v279 = vld [vmem:[%s0 + $0x848] sm:$0xff]
  %v280 = vld [vmem:[%s0 + $0x850] sm:$0xff]
  %v281 = vld [vmem:[%s0 + $0x858] sm:$0xff]
  %v282 = vld [vmem:[%s0 + $0x860] sm:$0xff]
  %v283 = vld [vmem:[%s0 + $0x868] sm:$0xff]
  %v284 = vld [vmem:[%s0 + $0x870] sm:$0xff]
  %v285 = vld [vmem:[%s0 + $0x878] sm:$0xff]
  %v286 = vld [vmem:[%s0 + $0x880] sm:$0xff]
  %v287 = vld [vmem:[%s0 + $0x888] sm:$0xff]
  %v288 = vld [vmem:[%s0 + $0x890] sm:$0xff]
  %v289 = vld [vmem:[%s0 + $0x898] sm:$0xff]
  %v290 = vld [vmem:[%s0 + $0x8a0] sm:$0xff]
  %v291 = vld [vmem:[%s0 + $0x8a8] sm:$0xff]
  %v292 = vld [vmem:[%s0 + $0x8b0] sm:$0xff]
  %v293 = vld [vmem:[%s0 + $0x8b8] sm:$0xff]
  %v294 = vld [vmem:[%s0 + $0x8c0] sm:$0xff]
  %v295 = vld [vmem:[%s0 + $0x8c8] sm:$0xff]
  %v296 = vld [vmem:[%s0 + $0x8d0] sm:$0xff]
  %v297 = vld [vmem:[%s0 + $0x8d8] sm:$0xff]
  %v298 = vld [vmem:[%s0 + $0x8e0] sm:$0xff]
  %v299 = vld [vmem:[%s0 + $0x8e8] sm:$0xff]
  %v300 = vld [vmem:[%s0 + $0x8f0] sm:$0xff]
  %v301 = vld [vmem:[%s0 + $0x8f8] sm:$0xff]
  %v302 = vld [vmem:[%s0 + $0x900] sm:$0xff]
  %v303 = vld [vmem:[%s0 + $0x908] sm:$0xff]
  %v304 = vld [vmem:[%s0 + $0x910] sm:$0xff]
  %v305 = vld [vmem:[%s0 + $0x918] sm:$0xff]
  %v306 = vld [vmem:[%s0 + $0x920] sm:$0xff]
  %v307 = vld [vmem:[%s0 + $0x928] sm:$0xff]
  %v308 = vld [vmem:[%s0 + $0x930] sm:$0xff]
  %v309 = vld [vmem:[%s0 + $0x938] sm:$0xff]
  %v310 = vld [vmem:[%s0 + $0x940] sm:$0xff]
  %v311 = vld [vmem:[%s0 + $0x948] sm:$0xff]
  %v312 = vld [vmem:[%s0 + $0x950] sm:$0xff]
  %v313 = vld [vmem:[%s0 + $0x958] sm:$0xff]
  %v314 = vld [vmem:[%s0 + $0x960] sm:$0xff]
  %v315 = vld [vmem:[%s0 + $0x968] sm:$0xff]
  %v316 = vld [vmem:[%s0 + $0x970] sm:$0xff]
  %v317 = vld [vmem:[%s0 + $0x978] sm:$0xff]
  %v318 = vld [vmem:[%s0 + $0x980] sm:$0xff]
  %v319 = vld [vmem:[%s0 + $0x988] sm:$0xff]
  %v320 = vld [vmem:[%s0 + $0x990] sm:$0xff]
  %v321 = vld [vmem:[%s0 + $0x998] sm:$0xff]
  %v322 = vld [vmem:[%s0 + $0x9a0] sm:$0xff]
  %v323 = vld [vmem:[%s0 + $0x9a8] sm:$0xff]
  %v324 = vld [vmem:[%s0 + $0x9b0] sm:$0xff]
  %v325 = vld [vmem:[%s0 + $0x9b8] sm:$0xff]
  %v326 = vld [vmem:[%s0 + $0x9c0] sm:$0xff]
  %v327 = vld [vmem:[%s0 + $0x9c8] sm:$0xff]
  %v328 = vld [vmem:[%s0 + $0x9d0] sm:$0xff]
  %v329 = vld [vmem:[%s0 + $0x9d8] sm:$0xff]
  %v330 = vld [vmem:[%s0 + $0x9e0] sm:$0xff]
  %v331 = vld [vmem:[%s0 + $0x9e8] sm:$0xff]
  %v332 = vld [vmem:[%s0 + $0x9f0] sm:$0xff]
  %v333 = vld [vmem:[%s0 + $0x9f8] sm:$0xff]
  %v334 = vld [vmem:[%s0 + $0xa00] sm:$0xff]
  %v335 = vld [vmem:[%s0 + $0xa08] sm:$0xff]
  %v336 = vld [vmem:[%s0 + $0xa10] sm:$0xff]
  %v337 = vld [vmem:[%s0 + $0xa18] sm:$0xff]
  %v338 = vld [vmem:[%s0 + $0xa20] sm:$0xff]
  %v339 = vld [vmem:[%s0 + $0xa28] sm:$0xff]
  %v340 = vld [vmem:[%s0 + $0xa30] sm:$0xff]
  %v341 = vld [vmem:[%s0 + $0xa38] sm:$0xff]
  %v342 = vld [vmem:[%s0 + $0xa40] sm:$0xff]
  %v343 = vld [vmem:[%s0 + $0xa48] sm:$0xff]
  %v344 = vld [vmem:[%s0 + $0xa50] sm:$0xff]
  %v345 = vld [vmem:[%s0 + $0xa58] sm:$0xff]
  %v346 = vld [vmem:[%s0 + $0xa60] sm:$0xff]
  %v347 = vld [vmem:[%s0 + $0xa68] sm:$0xff]
  %v348 = vld [vmem:[%s0 + $0xa70] sm:$0xff]
  %v349 = vld [vmem:[%s0 + $0xa78] sm:$0xff]
  %v350 = vld [vmem:[%s0 + $0xa80] sm:$0xff]
  %v351 = vld [vmem:[%s0 + $0xa88] sm:$0xff]
  %v352 = vld [vmem:[%s0 + $0xa90] sm:$0xff]
  %v353 = vld [vmem:[%s0 + $0xa98] sm:$0xff]
  %v354 = vld [vmem:[%s0 + $0xaa0] sm:$0xff]
  %v355 = vld [vmem:[%s0 + $0xaa8] sm:$0xff]
  %v356 = vld [vmem:[%s0 + $0xab0] sm:$0xff]
  %v357 = vld [vmem:[%s0 + $0xab8] sm:$0xff]
  %v358 = vld [vmem:[%s0 + $0xac0] sm:$0xff]
  %v359 = vld [vmem:[%s0 + $0xac8] sm:$0xff]
  %v360 = vld [vmem:[%s0 + $0xad0] sm:$0xff]
  %v361 = vld [vmem:[%s0 + $0xad8] sm:$0xff]
  %v362 = vld [vmem:[%s0 + $0xae0] sm:$0xff]
  %v363 = vld [vmem:[%s0 + $0xae8] sm:$0xff]
  %v364 = vld [vmem:[%s0 + $0xaf0] sm:$0xff]
  %v365 = vld [vmem:[%s0 + $0xaf8] sm:$0xff]
  %v366 = vld [vmem:[%s0 + $0xb00] sm:$0xff]
  %v367 = vld [vmem:[%s0 + $0xb08] sm:$0xff]
  %v368 = vld [vmem:[%s0 + $0xb10] sm:$0xff]
  %v369 = vld [vmem:[%s0 + $0xb18] sm:$0xff]
  %v370 = vld [vmem:[%s0 + $0xb20] sm:$0xff]
  %v371 = vld [vmem:[%s0 + $0xb28] sm:$0xff]
  %v372 = vld [vmem:[%s0 + $0xb30] sm:$0xff]
  %v373 = vld [vmem:[%s0 + $0xb38] sm:$0xff]
  %v374 = vld [vmem:[%s0 + $0xb40] sm:$0xff]
  %v375 = vld [vmem:[%s0 + $0xb48] sm:$0xff]
  %v376 = vld [vmem:[%s0 + $0xb50] sm:$0xff]
  %v377 = vld [vmem:[%s0 + $0xb58] sm:$0xff]
  %v378 = vld [vmem:[%s0 + $0xb60] sm:$0xff]
  %v379 = vld [vmem:[%s0 + $0xb68] sm:$0xff]
  %v380 = vld [vmem:[%s0 + $0xb70] sm:$0xff]
  %v381 = vld [vmem:[%s0 + $0xb78] sm:$0xff]
  %v382 = vld [vmem:[%s0 + $0xb80] sm:$0xff]
  %v383 = vld [vmem:[%s0 + $0xb88] sm:$0xff]
  %v384 = vld [vmem:[%s0 + $0xb90] sm:$0xff]
  %v385 = vld [vmem:[%s0 + $0xb98] sm:$0xff]
  %v386 = vld [vmem:[%s0 + $0xba0] sm:$0xff]
  %v387 = vld [vmem:[%s0 + $0xba8] sm:$0xff]
  %v388 = vld [vmem:[%s0 + $0xbb0] sm:$0xff]
  %v389 = vld [vmem:[%s0 + $0xbb8] sm:$0xff]
  %v390 = vld [vmem:[%s0 + $0xbc0] sm:$0xff]
  %v391 = vld [vmem:[%s0 + $0xbc8] sm:$0xff]
  %v392 = vld [vmem:[%s0 + $0xbd0] sm:$0xff]
  %v393 = vld [vmem:[%s0 + $0xbd8] sm:$0xff]
  %v394 = vld [vmem:[%s0 + $0xbe0] sm:$0xff]
  %v395 = vld [vmem:[%s0 + $0xbe8] sm:$0xff]
  %v396 = vld [vmem:[%s0 + $0xbf0] sm:$0xff]
  %v397 = vld [vmem:[%s0 + $0xbf8] sm:$0xff]
  %v398 = vld [vmem:[%s0 + $0xc00] sm:$0xff]
  %v399 = vld [vmem:[%s0 + $0xc08] sm:$0xff]
  %v400 = vld [vmem:[%s0 + $0xc10] sm:$0xff]
  %v401 = vld [vmem:[%s0 + $0xc18] sm:$0xff]
  %v402 = vld [vmem:[%s0 + $0xc20] sm:$0xff]
  %v403 = vld [vmem:[%s0 + $0xc28] sm:$0xff]
  %v404 = vld [vmem:[%s0 + $0xc30] sm:$0xff]
  %v405 = vld [vmem:[%s0 + $0xc38] sm:$0xff]
  %v406 = vld [vmem:[%s0 + $0xc40] sm:$0xff]
  %v407 = vld [vmem:[%s0 + $0xc48] sm:$0xff]
  %v408 = vld [vmem:[%s0 + $0xc50] sm:$0xff]
  %v409 = vld [vmem:[%s0 + $0xc58] sm:$0xff]
  %v410 = vld [vmem:[%s0 + $0xc60] sm:$0xff]
  %v411 = vld [vmem:[%s0 + $0xc68] sm:$0xff]
  %v412 = vld [vmem:[%s0 + $0xc70] sm:$0xff]
  %v413 = vld [vmem:[%s0 + $0xc78] sm:$0xff]
  %v414 = vld [vmem:[%s0 + $0xc80] sm:$0xff]
  %v415 = vld [vmem:[%s0 + $0xc88] sm:$0xff]
  %v416 = vld [vmem:[%s0 + $0xc90] sm:$0xff]
  %v417 = vld [vmem:[%s0 + $0xc98] sm:$0xff]
  %v418 = vld [vmem:[%s0 + $0xca0] sm:$0xff]
  %v419 = vld [vmem:[%s0 + $0xca8] sm:$0xff]
  %v420 = vld [vmem:[%s0 + $0xcb0] sm:$0xff]
  %v421 = vld [vmem:[%s0 + $0xcb8] sm:$0xff]
  %v422 = vld [vmem:[%s0 + $0xcc0] sm:$0xff]
  %v423 = vld [vmem:[%s0 + $0xcc8] sm:$0xff]
  %v424 = vld [vmem:[%s0 + $0xcd0] sm:$0xff]
  %v425 = vld [vmem:[%s0 + $0xcd8] sm:$0xff]
  %v426 = vld [vmem:[%s0 + $0xce0] sm:$0xff]
  %v427 = vld [vmem:[%s0 + $0xce8] sm:$0xff]
  %v428 = vld [vmem:[%s0 + $0xcf0] sm:$0xff]
  %v429 = vld [vmem:[%s0 + $0xcf8] sm:$0xff]
  %v430 = vld [vmem:[%s0 + $0xd00] sm:$0xff]
  %v431 = vld [vmem:[%s0 + $0xd08] sm:$0xff]
  %v432 = vld [vmem:[%s0 + $0xd10] sm:$0xff]
  %v433 = vld [vmem:[%s0 + $0xd18] sm:$0xff]
  %v434 = vld [vmem:[%s0 + $0xd20] sm:$0xff]
  %v435 = vld [vmem:[%s0 + $0xd28] sm:$0xff]
  %v436 = vld [vmem:[%s0 + $0xd30] sm:$0xff]
  %v437 = vld [vmem:[%s0 + $0xd38] sm:$0xff]
  %v438 = vld [vmem:[%s0 + $0xd40] sm:$0xff]
  %v439 = vld [vmem:[%s0 + $0xd48] sm:$0xff]
  %v440 = vld [vmem:[%s0 + $0xd50] sm:$0xff]
  %v441 = vld [vmem:[%s0 + $0xd58] sm:$0xff]
  %v442 = vld [vmem:[%s0 + $0xd60] sm:$0xff]
  %v443 = vld [vmem:[%s0 + $0xd68] sm:$0xff]
  %v444 = vld [vmem:[%s0 + $0xd70] sm:$0xff]
  %v445 = vld [vmem:[%s0 + $0xd78] sm:$0xff]
  %v446 = vld [vmem:[%s0 + $0xd80] sm:$0xff]
  %v447 = vld [vmem:[%s0 + $0xd88] sm:$0xff]
  %v448 = vld [vmem:[%s0 + $0xd90] sm:$0xff]
  %v449 = vld [vmem:[%s0 + $0xd98] sm:$0xff]
  %v450 = vld [vmem:[%s0 + $0xda0] sm:$0xff]
  %v451 = vld [vmem:[%s0 + $0xda8] sm:$0xff]
  %v452 = vld [vmem:[%s0 + $0xdb0] sm:$0xff]
  %v453 = vld [vmem:[%s0 + $0xdb8] sm:$0xff]
  %v454 = vld [vmem:[%s0 + $0xdc0] sm:$0xff]
  %v455 = vld [vmem:[%s0 + $0xdc8] sm:$0xff]
  %v456 = vld [vmem:[%s0 + $0xdd0] sm:$0xff]
  %v457 = vld [vmem:[%s0 + $0xdd8] sm:$0xff]
  %v458 = vld [vmem:[%s0 + $0xde0] sm:$0xff]
  %v459 = vld [vmem:[%s0 + $0xde8] sm:$0xff]
  %v460 = vld [vmem:[%s0 + $0xdf0] sm:$0xff]
  %v461 = vld [vmem:[%s0 + $0xdf8] sm:$0xff]
  %v462 = vld [vmem:[%s0 + $0xe00] sm:$0xff]
  %v463 = vld [vmem:[%s0 + $0xe08] sm:$0xff]
  %v464 = vld [vmem:[%s0 + $0xe10] sm:$0xff]
  %v465 = vld [vmem:[%s0 + $0xe18] sm:$0xff]
  %v466 = vld [vmem:[%s0 + $0xe20] sm:$0xff]
  %v467 = vld [vmem:[%s0 + $0xe28] sm:$0xff]
  %v468 = vld [vmem:[%s0 + $0xe30] sm:$0xff]
  %v469 = vld [vmem:[%s0 + $0xe38] sm:$0xff]
  %v470 = vld [vmem:[%s0 + $0xe40] sm:$0xff]
  %v471 = vld [vmem:[%s0 + $0xe48] sm:$0xff]
  %v472 = vld [vmem:[%s0 + $0xe50] sm:$0xff]
  %v473 = vld [vmem:[%s0 + $0xe58] sm:$0xff]
  %v474 = vld [vmem:[%s0 + $0xe60] sm:$0xff]
  %v475 = vld [vmem:[%s0 + $0xe68] sm:$0xff]
  %v476 = vld [vmem:[%s0 + $0xe70] sm:$0xff]
  %v477 = vld [vmem:[%s0 + $0xe78] sm:$0xff]
  %v478 = vld [vmem:[%s0 + $0xe80] sm:$0xff]
  %v479 = vld [vmem:[%s0 + $0xe88] sm:$0xff]
  %v480 = vld [vmem:[%s0 + $0xe90] sm:$0xff]
  %v481 = vld [vmem:[%s0 + $0xe98] sm:$0xff]
  %v482 = vld [vmem:[%s0 + $0xea0] sm:$0xff]
  %v483 = vld [vmem:[%s0 + $0xea8] sm:$0xff]
  %v484 = vld [vmem:[%s0 + $0xeb0] sm:$0xff]
  %v485 = vld [vmem:[%s0 + $0xeb8] sm:$0xff]
  %v486 = vld [vmem:[%s0 + $0xec0] sm:$0xff]
  %v487 = vld [vmem:[%s0 + $0xec8] sm:$0xff]
  %v488 = vld [vmem:[%s0 + $0xed0] sm:$0xff]
  %v489 = vld [vmem:[%s0 + $0xed8] sm:$0xff]
  %v490 = vld [vmem:[%s0 + $0xee0] sm:$0xff]
  %v491 = vld [vmem:[%s0 + $0xee8] sm:$0xff]
  %v492 = vld [vmem:[%s0 + $0xef0] sm:$0xff]
  %v493 = vld [vmem:[%s0 + $0xef8] sm:$0xff]
  %v494 = vld [vmem:[%s0 + $0xf00] sm:$0xff]
  %v495 = vld [vmem:[%s0 + $0xf08] sm:$0xff]
  %v496 = vld [vmem:[%s0 + $0xf10] sm:$0xff]
  %v497 = vld [vmem:[%s0 + $0xf18] sm:$0xff]
  %v498 = vld [vmem:[%s0 + $0xf20] sm:$0xff]
  %v499 = vld [vmem:[%s0 + $0xf28] sm:$0xff]
  %v500 = vld [vmem:[%s0 + $0xf30] sm:$0xff]
  %v501 = vld [vmem:[%s0 + $0xf38] sm:$0xff]
  %v502 = vld [vmem:[%s0 + $0xf40] sm:$0xff]
  %v503 = vld [vmem:[%s0 + $0xf48] sm:$0xff]
  %v504 = vld [vmem:[%s0 + $0xf50] sm:$0xff]
  %v505 = vld [vmem:[%s0 + $0xf58] sm:$0xff]
  %v506 = vld [vmem:[%s0 + $0xf60] sm:$0xff]
  %v507 = vld [vmem:[%s0 + $0xf68] sm:$0xff]
  %v508 = vld [vmem:[%s0 + $0xf70] sm:$0xff]
  %v509 = vld [vmem:[%s0 + $0xf78] sm:$0xff]
  %v510 = vld [vmem:[%s0 + $0xf80] sm:$0xff]
  %v511 = vld [vmem:[%s0 + $0xf88] sm:$0xff]
  %v512 = vld [vmem:[%s0 + $0xf90] sm:$0xff]
  %v513 = vld [vmem:[%s0 + $0xf98] sm:$0xff]
  %v514 = vld [vmem:[%s0 + $0xfa0] sm:$0xff]
  %v515 = vld [vmem:[%s0 + $0xfa8] sm:$0xff]
  %v516 = vld [vmem:[%s0 + $0xfb0] sm:$0xff]
  %v517 = vld [vmem:[%s0 + $0xfb8] sm:$0xff]
  %v518 = vld [vmem:[%s0 + $0xfc0] sm:$0xff]
  %v519 = vld [vmem:[%s0 + $0xfc8] sm:$0xff]
  %v520 = vld [vmem:[%s0 + $0xfd0] sm:$0xff]
  %v521 = vld [vmem:[%s0 + $0xfd8] sm:$0xff]
  %v522 = vld [vmem:[%s0 + $0xfe0] sm:$0xff]
  %v523 = vld [vmem:[%s0 + $0xfe8] sm:$0xff]
  %v524 = vld [vmem:[%s0 + $0xff0] sm:$0xff]
  %v525 = vld [vmem:[%s0 + $0xff8] sm:$0xff]
  %v526 = vld [vmem:[%s0 + $0x1000] sm:$0xff]
  %v527 = vld [vmem:[%s0 + $0x1008] sm:$0xff]
  %v528 = vld [vmem:[%s0 + $0x1010] sm:$0xff]
  %v529 = vld [vmem:[%s0 + $0x1018] sm:$0xff]
  %v530 = vld [vmem:[%s0 + $0x1020] sm:$0xff]
  %v531 = vld [vmem:[%s0 + $0x1028] sm:$0xff]
  %v532 = vld [vmem:[%s0 + $0x1030] sm:$0xff]
  %v533 = vld [vmem:[%s0 + $0x1038] sm:$0xff]
  %v534 = vld [vmem:[%s0 + $0x1040] sm:$0xff]
  %v535 = vld [vmem:[%s0 + $0x1048] sm:$0xff]
  %v536 = vld [vmem:[%s0 + $0x1050] sm:$0xff]
  %v537 = vld [vmem:[%s0 + $0x1058] sm:$0xff]
  %v538 = vld [vmem:[%s0 + $0x1060] sm:$0xff]
  %v539 = vld [vmem:[%s0 + $0x1068] sm:$0xff]
  %v540 = vld [vmem:[%s0 + $0x1070] sm:$0xff]
  %v541 = vld [vmem:[%s0 + $0x1078] sm:$0xff]
  %v542 = vld [vmem:[%s0 + $0x1080] sm:$0xff]
  %v543 = vld [vmem:[%s0 + $0x1088] sm:$0xff]
  %v544 = vld [vmem:[%s0 + $0x1090] sm:$0xff]
  %v545 = vld [vmem:[%s0 + $0x1098] sm:$0xff]
  %v546 = vld [vmem:[%s0 + $0x10a0] sm:$0xff]
  %v547 = vld [vmem:[%s0 + $0x10a8] sm:$0xff]
  %v548 = vld [vmem:[%s0 + $0x10b0] sm:$0xff]
  %v549 = vld [vmem:[%s0 + $0x10b8] sm:$0xff]
  %v550 = vld [vmem:[%s0 + $0x10c0] sm:$0xff]
  %v551 = vld [vmem:[%s0 + $0x10c8] sm:$0xff]
  %v552 = vld [vmem:[%s0 + $0x10d0] sm:$0xff]
  %v553 = vld [vmem:[%s0 + $0x10d8] sm:$0xff]
  %v554 = vld [vmem:[%s0 + $0x10e0] sm:$0xff]
  %v555 = vld [vmem:[%s0 + $0x10e8] sm:$0xff]
  %v556 = vld [vmem:[%s0 + $0x10f0] sm:$0xff]
  %v557 = vld [vmem:[%s0 + $0x10f8] sm:$0xff]
  %v558 = vld [vmem:[%s0 + $0x1100] sm:$0xff]
  %v559 = vld [vmem:[%s0 + $0x1108] sm:$0xff]
  %v560 = vld [vmem:[%s0 + $0x1110] sm:$0xff]
  %v561 = vld [vmem:[%s0 + $0x1118] sm:$0xff]
  %v562 = vld [vmem:[%s0 + $0x1120] sm:$0xff]
  %v563 = vld [vmem:[%s0 + $0x1128] sm:$0xff]
  %v564 = vld [vmem:[%s0 + $0x1130] sm:$0xff]
  %v565 = vld [vmem:[%s0 + $0x1138] sm:$0xff]
  %v566 = vld [vmem:[%s0 + $0x1140] sm:$0xff]
  %v567 = vld [vmem:[%s0 + $0x1148] sm:$0xff]
  %v568 = vld [vmem:[%s0 + $0x1150] sm:$0xff]
  %v569 = vld [vmem:[%s0 + $0x1158] sm:$0xff]
  %v570 = vld [vmem:[%s0 + $0x1160] sm:$0xff]
  %v571 = vld [vmem:[%s0 + $0x1168] sm:$0xff]
  %v572 = vld [vmem:[%s0 + $0x1170] sm:$0xff]
  %v573 = vld [vmem:[%s0 + $0x1178] sm:$0xff]
  %v574 = vld [vmem:[%s0 + $0x1180] sm:$0xff]
  %v575 = vld [vmem:[%s0 + $0x1188] sm:$0xff]
  %v576 = vld [vmem:[%s0 + $0x1190] sm:$0xff]
  %v577 = vld [vmem:[%s0 + $0x1198] sm:$0xff]
  %v578 = vld [vmem:[%s0 + $0x11a0] sm:$0xff]
  %v579 = vld [vmem:[%s0 + $0x11a8] sm:$0xff]
  %v580 = vld [vmem:[%s0 + $0x11b0] sm:$0xff]
  %v581 = vld [vmem:[%s0 + $0x11b8] sm:$0xff]
  %v582 = vld [vmem:[%s0 + $0x11c0] sm:$0xff]
  %v583 = vld [vmem:[%s0 + $0x11c8] sm:$0xff]
  %v584 = vld [vmem:[%s0 + $0x11d0] sm:$0xff]
  %v585 = vld [vmem:[%s0 + $0x11d8] sm:$0xff]
  %v586 = vld [vmem:[%s0 + $0x11e0] sm:$0xff]
  %v587 = vld [vmem:[%s0 + $0x11e8] sm:$0xff]
  %v588 = vld [vmem:[%s0 + $0x11f0] sm:$0xff]
  %v589 = vld [vmem:[%s0 + $0x11f8] sm:$0xff]
  %v590 = vld [vmem:[%s1] sm:$0xff]
  %v591 = vld [vmem:[%s1 + $0x8] sm:$0xff]
  %v592 = vld [vmem:[%s1 + $0x10] sm:$0xff]
  %v593 = vld [vmem:[%s1 + $0x18] sm:$0x1]
  %vm594 = vcmask 203776
  %v596 = vsel %vm594, %v14, 0
  %v599 = vsel %vm594, %v15, 0
  %v602 = vsel %vm594, %v16, 0
  %v605 = vsel %vm594, %v17, 0
  %v608 = vsel %vm594, %v18, 0
  %v611 = vsel %vm594, %v19, 0
  %v614 = vsel %vm594, %v20, 0
  %v617 = vsel %vm594, %v21, 0
  %v620 = vsel %vm594, %v22, 0
  %v623 = vsel %vm594, %v23, 0
  %v626 = vsel %vm594, %v24, 0
  %v629 = vsel %vm594, %v25, 0
  %v632 = vsel %vm594, %v26, 0
  %v635 = vsel %vm594, %v27, 0
  %v638 = vsel %vm594, %v28, 0
  %v641 = vsel %vm594, %v29, 0
  %v644 = vsel %vm594, %v30, 0
  %v647 = vsel %vm594, %v31, 0
  %v650 = vsel %vm594, %v32, 0
  %v653 = vsel %vm594, %v33, 0
  %v656 = vsel %vm594, %v34, 0
  %v659 = vsel %vm594, %v35, 0
  %v662 = vsel %vm594, %v36, 0
  %v665 = vsel %vm594, %v37, 0
  %v668 = vsel %vm594, %v38, 0
  %v671 = vsel %vm594, %v39, 0
  %v674 = vsel %vm594, %v40, 0
  %v677 = vsel %vm594, %v41, 0
  %v680 = vsel %vm594, %v42, 0
  %v683 = vsel %vm594, %v43, 0
  %v686 = vsel %vm594, %v44, 0
  %v689 = vsel %vm594, %v45, 0
  %v692 = vsel %vm594, %v46, 0
  %v695 = vsel %vm594, %v47, 0
  %v698 = vsel %vm594, %v48, 0
  %v701 = vsel %vm594, %v49, 0
  %v704 = vsel %vm594, %v50, 0
  %v707 = vsel %vm594, %v51, 0
  %v710 = vsel %vm594, %v52, 0
  %v713 = vsel %vm594, %v53, 0
  %v716 = vsel %vm594, %v54, 0
  %v719 = vsel %vm594, %v55, 0
  %v722 = vsel %vm594, %v56, 0
  %v725 = vsel %vm594, %v57, 0
  %v728 = vsel %vm594, %v58, 0
  %v731 = vsel %vm594, %v59, 0
  %v734 = vsel %vm594, %v60, 0
  %v737 = vsel %vm594, %v61, 0
  %v740 = vsel %vm594, %v62, 0
  %v743 = vsel %vm594, %v63, 0
  %v746 = vsel %vm594, %v64, 0
  %v749 = vsel %vm594, %v65, 0
  %v752 = vsel %vm594, %v66, 0
  %v755 = vsel %vm594, %v67, 0
  %v758 = vsel %vm594, %v68, 0
  %v761 = vsel %vm594, %v69, 0
  %v764 = vsel %vm594, %v70, 0
  %v767 = vsel %vm594, %v71, 0
  %v770 = vsel %vm594, %v72, 0
  %v773 = vsel %vm594, %v73, 0
  %v776 = vsel %vm594, %v74, 0
  %v779 = vsel %vm594, %v75, 0
  %v782 = vsel %vm594, %v76, 0
  %v785 = vsel %vm594, %v77, 0
  %v788 = vsel %vm594, %v78, 0
  %v791 = vsel %vm594, %v79, 0
  %v794 = vsel %vm594, %v80, 0
  %v797 = vsel %vm594, %v81, 0
  %v800 = vsel %vm594, %v82, 0
  %v803 = vsel %vm594, %v83, 0
  %v806 = vsel %vm594, %v84, 0
  %v809 = vsel %vm594, %v85, 0
  %v812 = vsel %vm594, %v86, 0
  %v815 = vsel %vm594, %v87, 0
  %v818 = vsel %vm594, %v88, 0
  %v821 = vsel %vm594, %v89, 0
  %v824 = vsel %vm594, %v90, 0
  %v827 = vsel %vm594, %v91, 0
  %v830 = vsel %vm594, %v92, 0
  %v833 = vsel %vm594, %v93, 0
  %v836 = vsel %vm594, %v94, 0
  %v839 = vsel %vm594, %v95, 0
  %v842 = vsel %vm594, %v96, 0
  %v845 = vsel %vm594, %v97, 0
  %v848 = vsel %vm594, %v98, 0
  %v851 = vsel %vm594, %v99, 0
  %v854 = vsel %vm594, %v100, 0
  %v857 = vsel %vm594, %v101, 0
  %v860 = vsel %vm594, %v102, 0
  %v863 = vsel %vm594, %v103, 0
  %v866 = vsel %vm594, %v104, 0
  %v869 = vsel %vm594, %v105, 0
  %v872 = vsel %vm594, %v106, 0
  %v875 = vsel %vm594, %v107, 0
  %v878 = vsel %vm594, %v108, 0
  %v881 = vsel %vm594, %v109, 0
  %v884 = vsel %vm594, %v110, 0
  %v887 = vsel %vm594, %v111, 0
  %v890 = vsel %vm594, %v112, 0
  %v893 = vsel %vm594, %v113, 0
  %v896 = vsel %vm594, %v114, 0
  %v899 = vsel %vm594, %v115, 0
  %v902 = vsel %vm594, %v116, 0
  %v905 = vsel %vm594, %v117, 0
  %v908 = vsel %vm594, %v118, 0
  %v911 = vsel %vm594, %v119, 0
  %v914 = vsel %vm594, %v120, 0
  %v917 = vsel %vm594, %v121, 0
  %v920 = vsel %vm594, %v122, 0
  %v923 = vsel %vm594, %v123, 0
  %v926 = vsel %vm594, %v124, 0
  %v929 = vsel %vm594, %v125, 0
  %v932 = vsel %vm594, %v126, 0
  %v935 = vsel %vm594, %v127, 0
  %v938 = vsel %vm594, %v128, 0
  %v941 = vsel %vm594, %v129, 0
  %v944 = vsel %vm594, %v130, 0
  %v947 = vsel %vm594, %v131, 0
  %v950 = vsel %vm594, %v132, 0
  %v953 = vsel %vm594, %v133, 0
  %v956 = vsel %vm594, %v134, 0
  %v959 = vsel %vm594, %v135, 0
  %v962 = vsel %vm594, %v136, 0
  %v965 = vsel %vm594, %v137, 0
  %v968 = vsel %vm594, %v138, 0
  %v971 = vsel %vm594, %v139, 0
  %v974 = vsel %vm594, %v140, 0
  %v977 = vsel %vm594, %v141, 0
  %v980 = vsel %vm594, %v142, 0
  %v983 = vsel %vm594, %v143, 0
  %v986 = vsel %vm594, %v144, 0
  %v989 = vsel %vm594, %v145, 0
  %v992 = vsel %vm594, %v146, 0
  %v995 = vsel %vm594, %v147, 0
  %v998 = vsel %vm594, %v148, 0
  %v1001 = vsel %vm594, %v149, 0
  %v1004 = vsel %vm594, %v150, 0
  %v1007 = vsel %vm594, %v151, 0
  %v1010 = vsel %vm594, %v152, 0
  %v1013 = vsel %vm594, %v153, 0
  %v1016 = vsel %vm594, %v154, 0
  %v1019 = vsel %vm594, %v155, 0
  %v1022 = vsel %vm594, %v156, 0
  %v1025 = vsel %vm594, %v157, 0
  %v1028 = vsel %vm594, %v158, 0
  %v1031 = vsel %vm594, %v159, 0
  %v1034 = vsel %vm594, %v160, 0
  %v1037 = vsel %vm594, %v161, 0
  %v1040 = vsel %vm594, %v162, 0
  %v1043 = vsel %vm594, %v163, 0
  %v1046 = vsel %vm594, %v164, 0
  %v1049 = vsel %vm594, %v165, 0
  %v1052 = vsel %vm594, %v166, 0
  %v1055 = vsel %vm594, %v167, 0
  %v1058 = vsel %vm594, %v168, 0
  %v1061 = vsel %vm594, %v169, 0
  %v1064 = vsel %vm594, %v170, 0
  %v1067 = vsel %vm594, %v171, 0
  %v1070 = vsel %vm594, %v172, 0
  %v1073 = vsel %vm594, %v173, 0
  %v1076 = vsel %vm594, %v174, 0
  %v1079 = vsel %vm594, %v175, 0
  %v1082 = vsel %vm594, %v176, 0
  %v1085 = vsel %vm594, %v177, 0
  %v1088 = vsel %vm594, %v178, 0
  %v1091 = vsel %vm594, %v179, 0
  %v1094 = vsel %vm594, %v180, 0
  %v1097 = vsel %vm594, %v181, 0
  %v1100 = vsel %vm594, %v182, 0
  %v1103 = vsel %vm594, %v183, 0
  %v1106 = vsel %vm594, %v184, 0
  %v1109 = vsel %vm594, %v185, 0
  %v1112 = vsel %vm594, %v186, 0
  %v1115 = vsel %vm594, %v187, 0
  %v1118 = vsel %vm594, %v188, 0
  %v1121 = vsel %vm594, %v189, 0
  %v1124 = vsel %vm594, %v190, 0
  %v1127 = vsel %vm594, %v191, 0
  %v1130 = vsel %vm594, %v192, 0
  %v1133 = vsel %vm594, %v193, 0
  %v1136 = vsel %vm594, %v194, 0
  %v1139 = vsel %vm594, %v195, 0
  %v1142 = vsel %vm594, %v196, 0
  %v1145 = vsel %vm594, %v197, 0
  %v1148 = vsel %vm594, %v198, 0
  %v1151 = vsel %vm594, %v199, 0
  %v1154 = vsel %vm594, %v200, 0
  %v1157 = vsel %vm594, %v201, 0
  %v1160 = vsel %vm594, %v202, 0
  %v1163 = vsel %vm594, %v203, 0
  %v1166 = vsel %vm594, %v204, 0
  %v1169 = vsel %vm594, %v205, 0
  %v1172 = vsel %vm594, %v206, 0
  %v1175 = vsel %vm594, %v207, 0
  %v1178 = vsel %vm594, %v208, 0
  %v1181 = vsel %vm594, %v209, 0
  %v1184 = vsel %vm594, %v210, 0
  %v1187 = vsel %vm594, %v211, 0
  %v1190 = vsel %vm594, %v212, 0
  %v1193 = vsel %vm594, %v213, 0
  %v1196 = vsel %vm594, %v214, 0
  %v1199 = vsel %vm594, %v215, 0
  %v1202 = vsel %vm594, %v216, 0
  %v1205 = vsel %vm594, %v217, 0
  %v1208 = vsel %vm594, %v218, 0
  %v1211 = vsel %vm594, %v219, 0
  %v1214 = vsel %vm594, %v220, 0
  %v1217 = vsel %vm594, %v221, 0
  %v1220 = vsel %vm594, %v222, 0
  %v1223 = vsel %vm594, %v223, 0
  %v1226 = vsel %vm594, %v224, 0
  %v1229 = vsel %vm594, %v225, 0
  %v1232 = vsel %vm594, %v226, 0
  %v1235 = vsel %vm594, %v227, 0
  %v1238 = vsel %vm594, %v228, 0
  %v1241 = vsel %vm594, %v229, 0
  %v1244 = vsel %vm594, %v230, 0
  %v1247 = vsel %vm594, %v231, 0
  %v1250 = vsel %vm594, %v232, 0
  %v1253 = vsel %vm594, %v233, 0
  %v1256 = vsel %vm594, %v234, 0
  %v1259 = vsel %vm594, %v235, 0
  %v1262 = vsel %vm594, %v236, 0
  %v1265 = vsel %vm594, %v237, 0
  %v1268 = vsel %vm594, %v238, 0
  %v1271 = vsel %vm594, %v239, 0
  %v1274 = vsel %vm594, %v240, 0
  %v1277 = vsel %vm594, %v241, 0
  %v1280 = vsel %vm594, %v242, 0
  %v1283 = vsel %vm594, %v243, 0
  %v1286 = vsel %vm594, %v244, 0
  %v1289 = vsel %vm594, %v245, 0
  %v1292 = vsel %vm594, %v246, 0
  %v1295 = vsel %vm594, %v247, 0
  %v1298 = vsel %vm594, %v248, 0
  %v1301 = vsel %vm594, %v249, 0
  %v1304 = vsel %vm594, %v250, 0
  %v1307 = vsel %vm594, %v251, 0
  %v1310 = vsel %vm594, %v252, 0
  %v1313 = vsel %vm594, %v253, 0
  %v1316 = vsel %vm594, %v254, 0
  %v1319 = vsel %vm594, %v255, 0
  %v1322 = vsel %vm594, %v256, 0
  %v1325 = vsel %vm594, %v257, 0
  %v1328 = vsel %vm594, %v258, 0
  %v1331 = vsel %vm594, %v259, 0
  %v1334 = vsel %vm594, %v260, 0
  %v1337 = vsel %vm594, %v261, 0
  %v1340 = vsel %vm594, %v262, 0
  %v1343 = vsel %vm594, %v263, 0
  %v1346 = vsel %vm594, %v264, 0
  %v1349 = vsel %vm594, %v265, 0
  %v1352 = vsel %vm594, %v266, 0
  %v1355 = vsel %vm594, %v267, 0
  %v1358 = vsel %vm594, %v268, 0
  %v1361 = vsel %vm594, %v269, 0
  %v1364 = vsel %vm594, %v270, 0
  %v1367 = vsel %vm594, %v271, 0
  %v1370 = vsel %vm594, %v272, 0
  %v1373 = vsel %vm594, %v273, 0
  %v1376 = vsel %vm594, %v274, 0
  %v1379 = vsel %vm594, %v275, 0
  %v1382 = vsel %vm594, %v276, 0
  %v1385 = vsel %vm594, %v277, 0
  %v1388 = vsel %vm594, %v278, 0
  %v1391 = vsel %vm594, %v279, 0
  %v1394 = vsel %vm594, %v280, 0
  %v1397 = vsel %vm594, %v281, 0
  %v1400 = vsel %vm594, %v282, 0
  %v1403 = vsel %vm594, %v283, 0
  %v1406 = vsel %vm594, %v284, 0
  %v1409 = vsel %vm594, %v285, 0
  %v1412 = vsel %vm594, %v286, 0
  %v1415 = vsel %vm594, %v287, 0
  %v1418 = vsel %vm594, %v288, 0
  %v1421 = vsel %vm594, %v289, 0
  %v1424 = vsel %vm594, %v290, 0
  %v1427 = vsel %vm594, %v291, 0
  %v1430 = vsel %vm594, %v292, 0
  %v1433 = vsel %vm594, %v293, 0
  %v1436 = vsel %vm594, %v294, 0
  %v1439 = vsel %vm594, %v295, 0
  %v1442 = vsel %vm594, %v296, 0
  %v1445 = vsel %vm594, %v297, 0
  %v1448 = vsel %vm594, %v298, 0
  %v1451 = vsel %vm594, %v299, 0
  %v1454 = vsel %vm594, %v300, 0
  %v1457 = vsel %vm594, %v301, 0
  %v1460 = vsel %vm594, %v302, 0
  %v1463 = vsel %vm594, %v303, 0
  %v1466 = vsel %vm594, %v304, 0
  %v1469 = vsel %vm594, %v305, 0
  %v1472 = vsel %vm594, %v306, 0
  %v1475 = vsel %vm594, %v307, 0
  %v1478 = vsel %vm594, %v308, 0
  %v1481 = vsel %vm594, %v309, 0
  %v1484 = vsel %vm594, %v310, 0
  %v1487 = vsel %vm594, %v311, 0
  %v1490 = vsel %vm594, %v312, 0
  %v1493 = vsel %vm594, %v313, 0
  %v1496 = vsel %vm594, %v314, 0
  %v1499 = vsel %vm594, %v315, 0
  %v1502 = vsel %vm594, %v316, 0
  %v1505 = vsel %vm594, %v317, 0
  %v1508 = vsel %vm594, %v318, 0
  %v1511 = vsel %vm594, %v319, 0
  %v1514 = vsel %vm594, %v320, 0
  %v1517 = vsel %vm594, %v321, 0
  %v1520 = vsel %vm594, %v322, 0
  %v1523 = vsel %vm594, %v323, 0
  %v1526 = vsel %vm594, %v324, 0
  %v1529 = vsel %vm594, %v325, 0
  %v1532 = vsel %vm594, %v326, 0
  %v1535 = vsel %vm594, %v327, 0
  %v1538 = vsel %vm594, %v328, 0
  %v1541 = vsel %vm594, %v329, 0
  %v1544 = vsel %vm594, %v330, 0
  %v1547 = vsel %vm594, %v331, 0
  %v1550 = vsel %vm594, %v332, 0
  %v1553 = vsel %vm594, %v333, 0
  %v1556 = vsel %vm594, %v334, 0
  %v1559 = vsel %vm594, %v335, 0
  %v1562 = vsel %vm594, %v336, 0
  %v1565 = vsel %vm594, %v337, 0
  %v1568 = vsel %vm594, %v338, 0
  %v1571 = vsel %vm594, %v339, 0
  %v1574 = vsel %vm594, %v340, 0
  %v1577 = vsel %vm594, %v341, 0
  %v1580 = vsel %vm594, %v342, 0
  %v1583 = vsel %vm594, %v343, 0
  %v1586 = vsel %vm594, %v344, 0
  %v1589 = vsel %vm594, %v345, 0
  %v1592 = vsel %vm594, %v346, 0
  %v1595 = vsel %vm594, %v347, 0
  %v1598 = vsel %vm594, %v348, 0
  %v1601 = vsel %vm594, %v349, 0
  %v1604 = vsel %vm594, %v350, 0
  %v1607 = vsel %vm594, %v351, 0
  %v1610 = vsel %vm594, %v352, 0
  %v1613 = vsel %vm594, %v353, 0
  %v1616 = vsel %vm594, %v354, 0
  %v1619 = vsel %vm594, %v355, 0
  %v1622 = vsel %vm594, %v356, 0
  %v1625 = vsel %vm594, %v357, 0
  %v1628 = vsel %vm594, %v358, 0
  %v1631 = vsel %vm594, %v359, 0
  %v1634 = vsel %vm594, %v360, 0
  %v1637 = vsel %vm594, %v361, 0
  %v1640 = vsel %vm594, %v362, 0
  %v1643 = vsel %vm594, %v363, 0
  %v1646 = vsel %vm594, %v364, 0
  %v1649 = vsel %vm594, %v365, 0
  %v1652 = vsel %vm594, %v366, 0
  %v1655 = vsel %vm594, %v367, 0
  %v1658 = vsel %vm594, %v368, 0
  %v1661 = vsel %vm594, %v369, 0
  %v1664 = vsel %vm594, %v370, 0
  %v1667 = vsel %vm594, %v371, 0
  %v1670 = vsel %vm594, %v372, 0
  %v1673 = vsel %vm594, %v373, 0
  %v1676 = vsel %vm594, %v374, 0
  %v1679 = vsel %vm594, %v375, 0
  %v1682 = vsel %vm594, %v376, 0
  %v1685 = vsel %vm594, %v377, 0
  %v1688 = vsel %vm594, %v378, 0
  %v1691 = vsel %vm594, %v379, 0
  %v1694 = vsel %vm594, %v380, 0
  %v1697 = vsel %vm594, %v381, 0
  %v1700 = vsel %vm594, %v382, 0
  %v1703 = vsel %vm594, %v383, 0
  %v1706 = vsel %vm594, %v384, 0
  %v1709 = vsel %vm594, %v385, 0
  %v1712 = vsel %vm594, %v386, 0
  %v1715 = vsel %vm594, %v387, 0
  %v1718 = vsel %vm594, %v388, 0
  %v1721 = vsel %vm594, %v389, 0
  %v1724 = vsel %vm594, %v390, 0
  %v1727 = vsel %vm594, %v391, 0
  %v1730 = vsel %vm594, %v392, 0
  %v1733 = vsel %vm594, %v393, 0
  %v1736 = vsel %vm594, %v394, 0
  %v1739 = vsel %vm594, %v395, 0
  %v1742 = vsel %vm594, %v396, 0
  %v1745 = vsel %vm594, %v397, 0
  %v1748 = vsel %vm594, %v398, 0
  %v1751 = vsel %vm594, %v399, 0
  %v1754 = vsel %vm594, %v400, 0
  %v1757 = vsel %vm594, %v401, 0
  %v1760 = vsel %vm594, %v402, 0
  %v1763 = vsel %vm594, %v403, 0
  %v1766 = vsel %vm594, %v404, 0
  %v1769 = vsel %vm594, %v405, 0
  %v1772 = vsel %vm594, %v406, 0
  %v1775 = vsel %vm594, %v407, 0
  %v1778 = vsel %vm594, %v408, 0
  %v1781 = vsel %vm594, %v409, 0
  %v1784 = vsel %vm594, %v410, 0
  %v1787 = vsel %vm594, %v411, 0
  %v1790 = vsel %vm594, %v412, 0
  %v1793 = vsel %vm594, %v413, 0
  %v1796 = vsel %vm594, %v414, 0
  %v1799 = vsel %vm594, %v415, 0
  %v1802 = vsel %vm594, %v416, 0
  %v1805 = vsel %vm594, %v417, 0
  %v1808 = vsel %vm594, %v418, 0
  %v1811 = vsel %vm594, %v419, 0
  %v1814 = vsel %vm594, %v420, 0
  %v1817 = vsel %vm594, %v421, 0
  %v1820 = vsel %vm594, %v422, 0
  %v1823 = vsel %vm594, %v423, 0
  %v1826 = vsel %vm594, %v424, 0
  %v1829 = vsel %vm594, %v425, 0
  %v1832 = vsel %vm594, %v426, 0
  %v1835 = vsel %vm594, %v427, 0
  %v1838 = vsel %vm594, %v428, 0
  %v1841 = vsel %vm594, %v429, 0
  %v1844 = vsel %vm594, %v430, 0
  %v1847 = vsel %vm594, %v431, 0
  %v1850 = vsel %vm594, %v432, 0
  %v1853 = vsel %vm594, %v433, 0
  %v1856 = vsel %vm594, %v434, 0
  %v1859 = vsel %vm594, %v435, 0
  %v1862 = vsel %vm594, %v436, 0
  %v1865 = vsel %vm594, %v437, 0
  %v1868 = vsel %vm594, %v438, 0
  %v1871 = vsel %vm594, %v439, 0
  %v1874 = vsel %vm594, %v440, 0
  %v1877 = vsel %vm594, %v441, 0
  %v1880 = vsel %vm594, %v442, 0
  %v1883 = vsel %vm594, %v443, 0
  %v1886 = vsel %vm594, %v444, 0
  %v1889 = vsel %vm594, %v445, 0
  %v1892 = vsel %vm594, %v446, 0
  %v1895 = vsel %vm594, %v447, 0
  %v1898 = vsel %vm594, %v448, 0
  %v1901 = vsel %vm594, %v449, 0
  %v1904 = vsel %vm594, %v450, 0
  %v1907 = vsel %vm594, %v451, 0
  %v1910 = vsel %vm594, %v452, 0
  %v1913 = vsel %vm594, %v453, 0
  %v1916 = vsel %vm594, %v454, 0
  %v1919 = vsel %vm594, %v455, 0
  %v1922 = vsel %vm594, %v456, 0
  %v1925 = vsel %vm594, %v457, 0
  %v1928 = vsel %vm594, %v458, 0
  %v1931 = vsel %vm594, %v459, 0
  %v1934 = vsel %vm594, %v460, 0
  %v1937 = vsel %vm594, %v461, 0
  %v1940 = vsel %vm594, %v462, 0
  %v1943 = vsel %vm594, %v463, 0
  %v1946 = vsel %vm594, %v464, 0
  %v1949 = vsel %vm594, %v465, 0
  %v1952 = vsel %vm594, %v466, 0
  %v1955 = vsel %vm594, %v467, 0
  %v1958 = vsel %vm594, %v468, 0
  %v1961 = vsel %vm594, %v469, 0
  %v1964 = vsel %vm594, %v470, 0
  %v1967 = vsel %vm594, %v471, 0
  %v1970 = vsel %vm594, %v472, 0
  %v1973 = vsel %vm594, %v473, 0
  %v1976 = vsel %vm594, %v474, 0
  %v1979 = vsel %vm594, %v475, 0
  %v1982 = vsel %vm594, %v476, 0
  %v1985 = vsel %vm594, %v477, 0
  %v1988 = vsel %vm594, %v478, 0
  %v1991 = vsel %vm594, %v479, 0
  %v1994 = vsel %vm594, %v480, 0
  %v1997 = vsel %vm594, %v481, 0
  %v2000 = vsel %vm594, %v482, 0
  %v2003 = vsel %vm594, %v483, 0
  %v2006 = vsel %vm594, %v484, 0
  %v2009 = vsel %vm594, %v485, 0
  %v2012 = vsel %vm594, %v486, 0
  %v2015 = vsel %vm594, %v487, 0
  %v2018 = vsel %vm594, %v488, 0
  %v2021 = vsel %vm594, %v489, 0
  %v2024 = vsel %vm594, %v490, 0
  %v2027 = vsel %vm594, %v491, 0
  %v2030 = vsel %vm594, %v492, 0
  %v2033 = vsel %vm594, %v493, 0
  %v2036 = vsel %vm594, %v494, 0
  %v2039 = vsel %vm594, %v495, 0
  %v2042 = vsel %vm594, %v496, 0
  %v2045 = vsel %vm594, %v497, 0
  %v2048 = vsel %vm594, %v498, 0
  %v2051 = vsel %vm594, %v499, 0
  %v2054 = vsel %vm594, %v500, 0
  %v2057 = vsel %vm594, %v501, 0
  %v2060 = vsel %vm594, %v502, 0
  %v2063 = vsel %vm594, %v503, 0
  %v2066 = vsel %vm594, %v504, 0
  %v2069 = vsel %vm594, %v505, 0
  %v2072 = vsel %vm594, %v506, 0
  %v2075 = vsel %vm594, %v507, 0
  %v2078 = vsel %vm594, %v508, 0
  %v2081 = vsel %vm594, %v509, 0
  %v2084 = vsel %vm594, %v510, 0
  %v2087 = vsel %vm594, %v511, 0
  %v2090 = vsel %vm594, %v512, 0
  %v2093 = vsel %vm594, %v513, 0
  %v2096 = vsel %vm594, %v514, 0
  %v2099 = vsel %vm594, %v515, 0
  %v2102 = vsel %vm594, %v516, 0
  %v2105 = vsel %vm594, %v517, 0
  %v2108 = vsel %vm594, %v518, 0
  %v2111 = vsel %vm594, %v519, 0
  %v2114 = vsel %vm594, %v520, 0
  %v2117 = vsel %vm594, %v521, 0
  %v2120 = vsel %vm594, %v522, 0
  %v2123 = vsel %vm594, %v523, 0
  %v2126 = vsel %vm594, %v524, 0
  %v2129 = vsel %vm594, %v525, 0
  %v2132 = vsel %vm594, %v526, 0
  %v2135 = vsel %vm594, %v527, 0
  %v2138 = vsel %vm594, %v528, 0
  %v2141 = vsel %vm594, %v529, 0
  %v2144 = vsel %vm594, %v530, 0
  %v2147 = vsel %vm594, %v531, 0
  %v2150 = vsel %vm594, %v532, 0
  %v2153 = vsel %vm594, %v533, 0
  %v2156 = vsel %vm594, %v534, 0
  %v2159 = vsel %vm594, %v535, 0
  %v2162 = vsel %vm594, %v536, 0
  %v2165 = vsel %vm594, %v537, 0
  %v2168 = vsel %vm594, %v538, 0
  %v2171 = vsel %vm594, %v539, 0
  %v2174 = vsel %vm594, %v540, 0
  %v2177 = vsel %vm594, %v541, 0
  %v2180 = vsel %vm594, %v542, 0
  %v2183 = vsel %vm594, %v543, 0
  %v2186 = vsel %vm594, %v544, 0
  %v2189 = vsel %vm594, %v545, 0
  %v2192 = vsel %vm594, %v546, 0
  %v2195 = vsel %vm594, %v547, 0
  %v2198 = vsel %vm594, %v548, 0
  %v2201 = vsel %vm594, %v549, 0
  %v2204 = vsel %vm594, %v550, 0
  %v2207 = vsel %vm594, %v551, 0
  %v2210 = vsel %vm594, %v552, 0
  %v2213 = vsel %vm594, %v553, 0
  %v2216 = vsel %vm594, %v554, 0
  %v2219 = vsel %vm594, %v555, 0
  %v2222 = vsel %vm594, %v556, 0
  %v2225 = vsel %vm594, %v557, 0
  %v2228 = vsel %vm594, %v558, 0
  %v2231 = vsel %vm594, %v559, 0
  %v2234 = vsel %vm594, %v560, 0
  %v2237 = vsel %vm594, %v561, 0
  %v2240 = vsel %vm594, %v562, 0
  %v2243 = vsel %vm594, %v563, 0
  %v2246 = vsel %vm594, %v564, 0
  %v2249 = vsel %vm594, %v565, 0
  %v2252 = vsel %vm594, %v566, 0
  %v2255 = vsel %vm594, %v567, 0
  %v2258 = vsel %vm594, %v568, 0
  %v2261 = vsel %vm594, %v569, 0
  %v2264 = vsel %vm594, %v570, 0
  %v2267 = vsel %vm594, %v571, 0
  %v2270 = vsel %vm594, %v572, 0
  %v2273 = vsel %vm594, %v573, 0
  %v2276 = vsel %vm594, %v574, 0
  %v2279 = vsel %vm594, %v575, 0
  %v2282 = vsel %vm594, %v576, 0
  %v2285 = vsel %vm594, %v577, 0
  %v2288 = vsel %vm594, %v578, 0
  %v2291 = vsel %vm594, %v579, 0
  %v2294 = vsel %vm594, %v580, 0
  %v2297 = vsel %vm594, %v581, 0
  %v2300 = vsel %vm594, %v582, 0
  %v2303 = vsel %vm594, %v583, 0
  %v2306 = vsel %vm594, %v584, 0
  %v2309 = vsel %vm594, %v585, 0
  %v2312 = vsel %vm594, %v586, 0
  %v2315 = vsel %vm594, %v587, 0
  %v2318 = vsel %vm594, %v588, 0
  %v2321 = vsel %vm594, %v589, 0
  %vm2323 = vcmask 1040384
  %v2325 = vsel %vm2323, %v593, 0
  %2327 = vmatprep.subr.mxu0 0.0
  %2328 = vmatpush1.msra.mxu0 %v590
  %2329 = vmatprep.subr.mxu0 0.0
  %2330 = vmatpush1.msra.mxu0 %v591
  %2331 = vmatprep.subr.mxu0 0.0
  %2332 = vmatpush1.msra.mxu0 %v592
  %2333 = vmatprep.subr.mxu0 0.0
  %2334 = vmatpush1.msra.mxu0 %v2325
  %2335 = vmatprep.subr.mxu0 0.0
  %2336 = vmatpush1.msra.mxu0 0.0
  %2337 = vmatprep.subr.mxu0 0.0
  %2338 = vmatpush1.msra.mxu0 0.0
  %2339 = vmatprep.subr.mxu0 0.0
  %2340 = vmatpush1.msra.mxu0 0.0
  %2341 = vmatprep.subr.mxu0 0.0
  %2342 = vmatpush1.msra.mxu0 0.0
  %2343 = vmatprep.subr.mxu0 0.0
  %2344 = vmatpush1.msra.mxu0 0.0
  %2345 = vmatprep.subr.mxu0 0.0
  %2346 = vmatpush1.msra.mxu0 0.0
  %2347 = vmatprep.subr.mxu0 0.0
  %2348 = vmatpush1.msra.mxu0 0.0
  %2349 = vmatprep.subr.mxu0 0.0
  %2350 = vmatpush1.msra.mxu0 0.0
  %2351 = vmatprep.subr.mxu0 0.0
  %2352 = vmatpush1.msra.mxu0 0.0
  %2353 = vmatprep.subr.mxu0 0.0
  %2354 = vmatpush1.msra.mxu0 0.0
  %2355 = vmatprep.subr.mxu0 0.0
  %2356 = vmatpush1.msra.mxu0 0.0
  %2357 = vmatprep.subr.mxu0 0.0
  %2358 = vmatpush1.msra.mxu0 0.0
  %2359 = vmatprep.subr.mxu0 0.0
  %2360 = vmatpush1.msra.mxu0 0.0
  %2361 = vmatprep.subr.mxu0 0.0
  %2362 = vmatpush1.msra.mxu0 0.0
  %2363 = vmatprep.subr.mxu0 0.0
  %2364 = vmatpush1.msra.mxu0 0.0
  %2365 = vmatprep.subr.mxu0 0.0
  %2366 = vmatpush1.msra.mxu0 0.0
  %2367 = vmatprep.subr.mxu0 0.0
  %2368 = vmatpush1.msra.mxu0 0.0
  %2369 = vmatprep.subr.mxu0 0.0
  %2370 = vmatpush1.msra.mxu0 0.0
  %2371 = vmatprep.subr.mxu0 0.0
  %2372 = vmatpush1.msra.mxu0 0.0
  %2373 = vmatprep.subr.mxu0 0.0
  %2374 = vmatpush1.msra.mxu0 0.0
  %2375 = vmatprep.subr.mxu0 0.0
  %2376 = vmatpush1.msra.mxu0 0.0
  %2377 = vmatprep.subr.mxu0 0.0
  %2378 = vmatpush1.msra.mxu0 0.0
  %2379 = vmatprep.subr.mxu0 0.0
  %2380 = vmatpush1.msra.mxu0 0.0
  %2381 = vmatprep.subr.mxu0 0.0
  %2382 = vmatpush1.msra.mxu0 0.0
  %2383 = vmatprep.subr.mxu0 0.0
  %2384 = vmatpush1.msra.mxu0 0.0
  %2385 = vmatprep.subr.mxu0 0.0
  %2386 = vmatpush1.msra.mxu0 0.0
  %2387 = vmatprep.subr.mxu0 0.0
  %2388 = vmatpush1.msra.mxu0 0.0
  %2389 = vmatprep.subr.mxu0 0.0
  %2390 = vmatpush1.msra.mxu0 0.0
  %2391 = vmatprep.mubr.f32.mxu0 0.0
  %2392 = vmatmul.mubr.f32.gmra.mrb[0].mxu0 %v596
  %v2393 = vpop.f32.mrb[0].mxu0
  %v2394 = vadd.f32 0.0, %v2393
  %v2395 = vpop.f32.mrb[0].mxu0
  %2396 = vmatprep.mubr.f32.mxu0 0.0
  %2397 = vmatmul.mubr.f32.gmra.mrb[0].mxu0 %v599
  %v2398 = vpop.f32.mrb[0].mxu0
  %v2399 = vadd.f32 0.0, %v2398
  %v2400 = vpop.f32.mrb[0].mxu0
  %2401 = vmatprep.mubr.f32.mxu0 0.0
  %2402 = vmatmul.mubr.f32.gmra.mrb[0].mxu0 %v602
  %v2403 = vpop.f32.mrb[0].mxu0
  %v2404 = vadd.f32 0.0, %v2403
  %v2405 = vpop.f32.mrb[0].mxu0
  %2406 = vmatprep.mubr.f32.mxu0 0.0
  %2407 = vmatmul.mubr.f32.gmra.mrb[0].mxu0 %v605
  %v2408 = vpop.f32.mrb[0].mxu0
  %v2409 = vadd.f32 0.0, %v2408
  %v2410 = vpop.f32.mrb[0].mxu0
  %2411 = vmatprep.mubr.f32.mxu0 0.0
  %2412 = vmatmul.mubr.f32.gmra.mrb[0].mxu0 %v608
  %v2413 = vpop.f32.mrb[0].mxu0
  %v2414 = vadd.f32 0.0, %v2413
  %v2415 = vpop.f32.mrb[0].mxu0
  %2416 = vmatprep.mubr.f32.mxu0 0.0
  %2417 = vmatmul.mubr.f32.gmra.mrb[0].mxu0 %v611
  %v2418 = vpop.f32.mrb[0].mxu0
  %v2419 = vadd.f32 0.0, %v2418
  %v2420 = vpop.f32.mrb[0].mxu0
  %2421 = vmatprep.mubr.f32.mxu0 0.0
  %2422 = vmatmul.mubr.f32.gmra.mrb[0].mxu0 %v614
  %v2423 = vpop.f32.mrb[0].mxu0
  %v2424 = vadd.f32 0.0, %v2423
  %v2425 = vpop.f32.mrb[0].mxu0
  %2426 = vmatprep.mubr.f32.mxu0 0.0
  %2427 = vmatmul.mubr.f32.gmra.mrb[0].mxu0 %v617
  %v2428 = vpop.f32.mrb[0].mxu0
  %v2429 = vadd.f32 0.0, %v2428
  %v2430 = vpop.f32.mrb[0].mxu0
  %2431 = vmatprep.mubr.f32.mxu0 0.0
  %2432 = vmatmul.mubr.f32.gmra.mrb[0].mxu0 %v620
  %v2433 = vpop.f32.mrb[0].mxu0
  %v2434 = vadd.f32 0.0, %v2433
  %v2435 = vpop.f32.mrb[0].mxu0
  %2436 = vmatprep.mubr.f32.mxu0 0.0
  %2437 = vmatmul.mubr.f32.gmra.mrb[0].mxu0 %v623
  %v2438 = vpop.f32.mrb[0].mxu0
  %v2439 = vadd.f32 0.0, %v2438
  %v2440 = vpop.f32.mrb[0].mxu0
  %2441 = vmatprep.mubr.f32.mxu0 0.0
  %2442 = vmatmul.mubr.f32.gmra.mrb[0].mxu0 %v626
  %v2443 = vpop.f32.mrb[0].mxu0
  %v2444 = vadd.f32 0.0, %v2443
  %v2445 = vpop.f32.mrb[0].mxu0
  %2446 = vmatprep.mubr.f32.mxu0 0.0
  %2447 = vmatmul.mubr.f32.gmra.mrb[0].mxu0 %v629
  %v2448 = vpop.f32.mrb[0].mxu0
  %v2449 = vadd.f32 0.0, %v2448
  %v2450 = vpop.f32.mrb[0].mxu0
  %2451 = vmatprep.mubr.f32.mxu0 0.0
  %2452 = vmatmul.mubr.f32.gmra.mrb[0].mxu0 %v632
  %v2453 = vpop.f32.mrb[0].mxu0
  %v2454 = vadd.f32 0.0, %v2453
  %v2455 = vpop.f32.mrb[0].mxu0
  %2456 = vmatprep.mubr.f32.mxu0 0.0
  %2457 = vmatmul.mubr.f32.gmra.mrb[0].mxu0 %v635
  %v2458 = vpop.f32.mrb[0].mxu0
  %v2459 = vadd.f32 0.0, %v2458
  %v2460 = vpop.f32.mrb[0].mxu0
  %2461 = vmatprep.mubr.f32.mxu0 0.0
  %2462 = vmatmul.mubr.f32.gmra.mrb[0].mxu0 %v638
  %v2463 = vpop.f32.mrb[0].mxu0
  %v2464 = vadd.f32 0.0, %v2463
  %v2465 = vpop.f32.mrb[0].mxu0
  %2466 = vmatprep.mubr.f32.mxu0 0.0
  %2467 = vmatmul.mubr.f32.gmra.mrb[0].mxu0 %v641
  %v2468 = vpop.f32.mrb[0].mxu0
  %v2469 = vadd.f32 0.0, %v2468
  %v2470 = vpop.f32.mrb[0].mxu0
  %2471 = vmatprep.mubr.f32.mxu0 0.0
  %2472 = vmatmul.mubr.f32.gmra.mrb[0].mxu0 %v644
  %v2473 = vpop.f32.mrb[0].mxu0
  %v2474 = vadd.f32 0.0, %v2473
  %v2475 = vpop.f32.mrb[0].mxu0
  %2476 = vmatprep.mubr.f32.mxu0 0.0
  %2477 = vmatmul.mubr.f32.gmra.mrb[0].mxu0 %v647
  %v2478 = vpop.f32.mrb[0].mxu0
  %v2479 = vadd.f32 0.0, %v2478
  %v2480 = vpop.f32.mrb[0].mxu0
  %2481 = vmatprep.mubr.f32.mxu0 0.0
  %2482 = vmatmul.mubr.f32.gmra.mrb[0].mxu0 %v650
  %v2483 = vpop.f32.mrb[0].mxu0
  %v2484 = vadd.f32 0.0, %v2483
  %v2485 = vpop.f32.mrb[0].mxu0
  %2486 = vmatprep.mubr.f32.mxu0 0.0
  %2487 = vmatmul.mubr.f32.gmra.mrb[0].mxu0 %v653
  %v2488 = vpop.f32.mrb[0].mxu0
  %v2489 = vadd.f32 0.0, %v2488
  %v2490 = vpop.f32.mrb[0].mxu0
  %2491 = vmatprep.mubr.f32.mxu0 0.0
  %2492 = vmatmul.mubr.f32.gmra.mrb[0].mxu0 %v656
  %v2493 = vpop.f32.mrb[0].mxu0
  %v2494 = vadd.f32 0.0, %v2493
  %v2495 = vpop.f32.mrb[0].mxu0
  %2496 = vmatprep.mubr.f32.mxu0 0.0
  %2497 = vmatmul.mubr.f32.gmra.mrb[0].mxu0 %v659
  %v2498 = vpop.f32.mrb[0].mxu0
  %v2499 = vadd.f32 0.0, %v2498
  %v2500 = vpop.f32.mrb[0].mxu0
  %2501 = vmatprep.mubr.f32.mxu0 0.0
  %2502 = vmatmul.mubr.f32.gmra.mrb[0].mxu0 %v662
  %v2503 = vpop.f32.mrb[0].mxu0
  %v2504 = vadd.f32 0.0, %v2503
  %v2505 = vpop.f32.mrb[0].mxu0
  %2506 = vmatprep.mubr.f32.mxu0 0.0
  %2507 = vmatmul.mubr.f32.gmra.mrb[0].mxu0 %v665
  %v2508 = vpop.f32.mrb[0].mxu0
  %v2509 = vadd.f32 0.0, %v2508
  %v2510 = vpop.f32.mrb[0].mxu0
  %2511 = vmatprep.mubr.f32.mxu0 0.0
  %2512 = vmatmul.mubr.f32.gmra.mrb[0].mxu0 %v668
  %v2513 = vpop.f32.mrb[0].mxu0
  %v2514 = vadd.f32 0.0, %v2513
  %v2515 = vpop.f32.mrb[0].mxu0
  %2516 = vmatprep.mubr.f32.mxu0 0.0
  %2517 = vmatmul.mubr.f32.gmra.mrb[0].mxu0 %v671
  %v2518 = vpop.f32.mrb[0].mxu0
  %v2519 = vadd.f32 0.0, %v2518
  %v2520 = vpop.f32.mrb[0].mxu0
  %2521 = vmatprep.mubr.f32.mxu0 0.0
  %2522 = vmatmul.mubr.f32.gmra.mrb[0].mxu0 %v674
  %v2523 = vpop.f32.mrb[0].mxu0
  %v2524 = vadd.f32 0.0, %v2523
  %v2525 = vpop.f32.mrb[0].mxu0
  %2526 = vmatprep.mubr.f32.mxu0 0.0
  %2527 = vmatmul.mubr.f32.gmra.mrb[0].mxu0 %v677
  %v2528 = vpop.f32.mrb[0].mxu0
  %v2529 = vadd.f32 0.0, %v2528
  %v2530 = vpop.f32.mrb[0].mxu0
  %2531 = vmatprep.mubr.f32.mxu0 0.0
  %2532 = vmatmul.mubr.f32.gmra.mrb[0].mxu0 %v680
  %v2533 = vpop.f32.mrb[0].mxu0
  %v2534 = vadd.f32 0.0, %v2533
  %v2535 = vpop.f32.mrb[0].mxu0
  %2536 = vmatprep.mubr.f32.mxu0 0.0
  %2537 = vmatmul.mubr.f32.gmra.mrb[0].mxu0 %v683
  %v2538 = vpop.f32.mrb[0].mxu0
  %v2539 = vadd.f32 0.0, %v2538
  %v2540 = vpop.f32.mrb[0].mxu0
  %2541 = vmatprep.mubr.f32.mxu0 0.0
  %2542 = vmatmul.mubr.f32.gmra.mrb[0].mxu0 %v686
  %v2543 = vpop.f32.mrb[0].mxu0
  %v2544 = vadd.f32 0.0, %v2543
  %v2545 = vpop.f32.mrb[0].mxu0
  %2546 = vmatprep.mubr.f32.mxu0 0.0
  %2547 = vmatmul.mubr.f32.gmra.mrb[0].mxu0 %v689
  %v2548 = vpop.f32.mrb[0].mxu0
  %v2549 = vadd.f32 0.0, %v2548
  %v2550 = vpop.f32.mrb[0].mxu0
  %2551 = vmatprep.mubr.f32.mxu0 0.0
  %2552 = vmatmul.mubr.f32.gmra.mrb[0].mxu0 %v692
  %v2553 = vpop.f32.mrb[0].mxu0
  %v2554 = vadd.f32 0.0, %v2553
  %v2555 = vpop.f32.mrb[0].mxu0
  %2556 = vmatprep.mubr.f32.mxu0 0.0
  %2557 = vmatmul.mubr.f32.gmra.mrb[0].mxu0 %v695
  %v2558 = vpop.f32.mrb[0].mxu0
  %v2559 = vadd.f32 0.0, %v2558
  %v2560 = vpop.f32.mrb[0].mxu0
  %2561 = vmatprep.mubr.f32.mxu0 0.0
  %2562 = vmatmul.mubr.f32.gmra.mrb[0].mxu0 %v698
  %v2563 = vpop.f32.mrb[0].mxu0
  %v2564 = vadd.f32 0.0, %v2563
  %v2565 = vpop.f32.mrb[0].mxu0
  %2566 = vmatprep.mubr.f32.mxu0 0.0
  %2567 = vmatmul.mubr.f32.gmra.mrb[0].mxu0 %v701
  %v2568 = vpop.f32.mrb[0].mxu0
  %v2569 = vadd.f32 0.0, %v2568
  %v2570 = vpop.f32.mrb[0].mxu0
  %2571 = vmatprep.mubr.f32.mxu0 0.0
  %2572 = vmatmul.mubr.f32.gmra.mrb[0].mxu0 %v704
  %v2573 = vpop.f32.mrb[0].mxu0
  %v2574 = vadd.f32 0.0, %v2573
  %v2575 = vpop.f32.mrb[0].mxu0
  %2576 = vmatprep.mubr.f32.mxu0 0.0
  %2577 = vmatmul.mubr.f32.gmra.mrb[0].mxu0 %v707
  %v2578 = vpop.f32.mrb[0].mxu0
  %v2579 = vadd.f32 0.0, %v2578
  %v2580 = vpop.f32.mrb[0].mxu0
  %2581 = vmatprep.mubr.f32.mxu0 0.0
  %2582 = vmatmul.mubr.f32.gmra.mrb[0].mxu0 %v710
  %v2583 = vpop.f32.mrb[0].mxu0
  %v2584 = vadd.f32 0.0, %v2583
  %v2585 = vpop.f32.mrb[0].mxu0
  %2586 = vmatprep.mubr.f32.mxu0 0.0
  %2587 = vmatmul.mubr.f32.gmra.mrb[0].mxu0 %v713
  %v2588 = vpop.f32.mrb[0].mxu0
  %v2589 = vadd.f32 0.0, %v2588
  %v2590 = vpop.f32.mrb[0].mxu0
  %2591 = vmatprep.mubr.f32.mxu0 0.0
  %2592 = vmatmul.mubr.f32.gmra.mrb[0].mxu0 %v716
  %v2593 = vpop.f32.mrb[0].mxu0
  %v2594 = vadd.f32 0.0, %v2593
  %v2595 = vpop.f32.mrb[0].mxu0
  %2596 = vmatprep.mubr.f32.mxu0 0.0
  %2597 = vmatmul.mubr.f32.gmra.mrb[0].mxu0 %v719
  %v2598 = vpop.f32.mrb[0].mxu0
  %v2599 = vadd.f32 0.0, %v2598
  %v2600 = vpop.f32.mrb[0].mxu0
  %2601 = vmatprep.mubr.f32.mxu0 0.0
  %2602 = vmatmul.mubr.f32.gmra.mrb[0].mxu0 %v722
  %v2603 = vpop.f32.mrb[0].mxu0
  %v2604 = vadd.f32 0.0, %v2603
  %v2605 = vpop.f32.mrb[0].mxu0
  %2606 = vmatprep.mubr.f32.mxu0 0.0
  %2607 = vmatmul.mubr.f32.gmra.mrb[0].mxu0 %v725
  %v2608 = vpop.f32.mrb[0].mxu0
  %v2609 = vadd.f32 0.0, %v2608
  %v2610 = vpop.f32.mrb[0].mxu0
  %2611 = vmatprep.mubr.f32.mxu0 0.0
  %2612 = vmatmul.mubr.f32.gmra.mrb[0].mxu0 %v728
  %v2613 = vpop.f32.mrb[0].mxu0
  %v2614 = vadd.f32 0.0, %v2613
  %v2615 = vpop.f32.mrb[0].mxu0
  %2616 = vmatprep.mubr.f32.mxu0 0.0
  %2617 = vmatmul.mubr.f32.gmra.mrb[0].mxu0 %v731
  %v2618 = vpop.f32.mrb[0].mxu0
  %v2619 = vadd.f32 0.0, %v2618
  %v2620 = vpop.f32.mrb[0].mxu0
  %2621 = vmatprep.mubr.f32.mxu0 0.0
  %2622 = vmatmul.mubr.f32.gmra.mrb[0].mxu0 %v734
  %v2623 = vpop.f32.mrb[0].mxu0
  %v2624 = vadd.f32 0.0, %v2623
  %v2625 = vpop.f32.mrb[0].mxu0
  %2626 = vmatprep.mubr.f32.mxu0 0.0
  %2627 = vmatmul.mubr.f32.gmra.mrb[0].mxu0 %v737
  %v2628 = vpop.f32.mrb[0].mxu0
  %v2629 = vadd.f32 0.0, %v2628
  %v2630 = vpop.f32.mrb[0].mxu0
  %2631 = vmatprep.mubr.f32.mxu0 0.0
  %2632 = vmatmul.mubr.f32.gmra.mrb[0].mxu0 %v740
  %v2633 = vpop.f32.mrb[0].mxu0
  %v2634 = vadd.f32 0.0, %v2633
  %v2635 = vpop.f32.mrb[0].mxu0
  %2636 = vmatprep.mubr.f32.mxu0 0.0
  %2637 = vmatmul.mubr.f32.gmra.mrb[0].mxu0 %v743
  %v2638 = vpop.f32.mrb[0].mxu0
  %v2639 = vadd.f32 0.0, %v2638
  %v2640 = vpop.f32.mrb[0].mxu0
  %2641 = vmatprep.mubr.f32.mxu0 0.0
  %2642 = vmatmul.mubr.f32.gmra.mrb[0].mxu0 %v746
  %v2643 = vpop.f32.mrb[0].mxu0
  %v2644 = vadd.f32 0.0, %v2643
  %v2645 = vpop.f32.mrb[0].mxu0
  %2646 = vmatprep.mubr.f32.mxu0 0.0
  %2647 = vmatmul.mubr.f32.gmra.mrb[0].mxu0 %v749
  %v2648 = vpop.f32.mrb[0].mxu0
  %v2649 = vadd.f32 0.0, %v2648
  %v2650 = vpop.f32.mrb[0].mxu0
  %2651 = vmatprep.mubr.f32.mxu0 0.0
  %2652 = vmatmul.mubr.f32.gmra.mrb[0].mxu0 %v752
  %v2653 = vpop.f32.mrb[0].mxu0
  %v2654 = vadd.f32 0.0, %v2653
  %v2655 = vpop.f32.mrb[0].mxu0
  %2656 = vmatprep.mubr.f32.mxu0 0.0
  %2657 = vmatmul.mubr.f32.gmra.mrb[0].mxu0 %v755
  %v2658 = vpop.f32.mrb[0].mxu0
  %v2659 = vadd.f32 0.0, %v2658
  %v2660 = vpop.f32.mrb[0].mxu0
  %2661 = vmatprep.mubr.f32.mxu0 0.0
  %2662 = vmatmul.mubr.f32.gmra.mrb[0].mxu0 %v758
  %v2663 = vpop.f32.mrb[0].mxu0
  %v2664 = vadd.f32 0.0, %v2663
  %v2665 = vpop.f32.mrb[0].mxu0
  %2666 = vmatprep.mubr.f32.mxu0 0.0
  %2667 = vmatmul.mubr.f32.gmra.mrb[0].mxu0 %v761
  %v2668 = vpop.f32.mrb[0].mxu0
  %v2669 = vadd.f32 0.0, %v2668
  %v2670 = vpop.f32.mrb[0].mxu0
  %2671 = vmatprep.mubr.f32.mxu0 0.0
  %2672 = vmatmul.mubr.f32.gmra.mrb[0].mxu0 %v764
  %v2673 = vpop.f32.mrb[0].mxu0
  %v2674 = vadd.f32 0.0, %v2673
  %v2675 = vpop.f32.mrb[0].mxu0
  %2676 = vmatprep.mubr.f32.mxu0 0.0
  %2677 = vmatmul.mubr.f32.gmra.mrb[0].mxu0 %v767
  %v2678 = vpop.f32.mrb[0].mxu0
  %v2679 = vadd.f32 0.0, %v2678
  %v2680 = vpop.f32.mrb[0].mxu0
  %2681 = vmatprep.mubr.f32.mxu0 0.0
  %2682 = vmatmul.mubr.f32.gmra.mrb[0].mxu0 %v770
  %v2683 = vpop.f32.mrb[0].mxu0
  %v2684 = vadd.f32 0.0, %v2683
  %v2685 = vpop.f32.mrb[0].mxu0
  %2686 = vmatprep.mubr.f32.mxu0 0.0
  %2687 = vmatmul.mubr.f32.gmra.mrb[0].mxu0 %v773
  %v2688 = vpop.f32.mrb[0].mxu0
  %v2689 = vadd.f32 0.0, %v2688
  %v2690 = vpop.f32.mrb[0].mxu0
  %2691 = vmatprep.mubr.f32.mxu0 0.0
  %2692 = vmatmul.mubr.f32.gmra.mrb[0].mxu0 %v776
  %v2693 = vpop.f32.mrb[0].mxu0
  %v2694 = vadd.f32 0.0, %v2693
  %v2695 = vpop.f32.mrb[0].mxu0
  %2696 = vmatprep.mubr.f32.mxu0 0.0
  %2697 = vmatmul.mubr.f32.gmra.mrb[0].mxu0 %v779
  %v2698 = vpop.f32.mrb[0].mxu0
  %v2699 = vadd.f32 0.0, %v2698
  %v2700 = vpop.f32.mrb[0].mxu0
  %2701 = vmatprep.mubr.f32.mxu0 0.0
  %2702 = vmatmul.mubr.f32.gmra.mrb[0].mxu0 %v782
  %v2703 = vpop.f32.mrb[0].mxu0
  %v2704 = vadd.f32 0.0, %v2703
  %v2705 = vpop.f32.mrb[0].mxu0
  %2706 = vmatprep.mubr.f32.mxu0 0.0
  %2707 = vmatmul.mubr.f32.gmra.mrb[0].mxu0 %v785
  %v2708 = vpop.f32.mrb[0].mxu0
  %v2709 = vadd.f32 0.0, %v2708
  %v2710 = vpop.f32.mrb[0].mxu0
  %2711 = vmatprep.mubr.f32.mxu0 0.0
  %2712 = vmatmul.mubr.f32.gmra.mrb[0].mxu0 %v788
  %v2713 = vpop.f32.mrb[0].mxu0
  %v2714 = vadd.f32 0.0, %v2713
  %v2715 = vpop.f32.mrb[0].mxu0
  %2716 = vmatprep.mubr.f32.mxu0 0.0
  %2717 = vmatmul.mubr.f32.gmra.mrb[0].mxu0 %v791
  %v2718 = vpop.f32.mrb[0].mxu0
  %v2719 = vadd.f32 0.0, %v2718
  %v2720 = vpop.f32.mrb[0].mxu0
  %2721 = vmatprep.mubr.f32.mxu0 0.0
  %2722 = vmatmul.mubr.f32.gmra.mrb[0].mxu0 %v794
  %v2723 = vpop.f32.mrb[0].mxu0
  %v2724 = vadd.f32 0.0, %v2723
  %v2725 = vpop.f32.mrb[0].mxu0
  %2726 = vmatprep.mubr.f32.mxu0 0.0
  %2727 = vmatmul.mubr.f32.gmra.mrb[0].mxu0 %v797
  %v2728 = vpop.f32.mrb[0].mxu0
  %v2729 = vadd.f32 0.0, %v2728
  %v2730 = vpop.f32.mrb[0].mxu0
  %2731 = vmatprep.mubr.f32.mxu0 0.0
  %2732 = vmatmul.mubr.f32.gmra.mrb[0].mxu0 %v800
  %v2733 = vpop.f32.mrb[0].mxu0
  %v2734 = vadd.f32 0.0, %v2733
  %v2735 = vpop.f32.mrb[0].mxu0
  %2736 = vmatprep.mubr.f32.mxu0 0.0
  %2737 = vmatmul.mubr.f32.gmra.mrb[0].mxu0 %v803
  %v2738 = vpop.f32.mrb[0].mxu0
  %v2739 = vadd.f32 0.0, %v2738
  %v2740 = vpop.f32.mrb[0].mxu0
  %2741 = vmatprep.mubr.f32.mxu0 0.0
  %2742 = vmatmul.mubr.f32.gmra.mrb[0].mxu0 %v806
  %v2743 = vpop.f32.mrb[0].mxu0
  %v2744 = vadd.f32 0.0, %v2743
  %v2745 = vpop.f32.mrb[0].mxu0
  %2746 = vmatprep.mubr.f32.mxu0 0.0
  %2747 = vmatmul.mubr.f32.gmra.mrb[0].mxu0 %v809
  %v2748 = vpop.f32.mrb[0].mxu0
  %v2749 = vadd.f32 0.0, %v2748
  %v2750 = vpop.f32.mrb[0].mxu0
  %2751 = vmatprep.mubr.f32.mxu0 0.0
  %2752 = vmatmul.mubr.f32.gmra.mrb[0].mxu0 %v812
  %v2753 = vpop.f32.mrb[0].mxu0
  %v2754 = vadd.f32 0.0, %v2753
  %v2755 = vpop.f32.mrb[0].mxu0
  %2756 = vmatprep.mubr.f32.mxu0 0.0
  %2757 = vmatmul.mubr.f32.gmra.mrb[0].mxu0 %v815
  %v2758 = vpop.f32.mrb[0].mxu0
  %v2759 = vadd.f32 0.0, %v2758
  %v2760 = vpop.f32.mrb[0].mxu0
  %2761 = vmatprep.mubr.f32.mxu0 0.0
  %2762 = vmatmul.mubr.f32.gmra.mrb[0].mxu0 %v818
  %v2763 = vpop.f32.mrb[0].mxu0
  %v2764 = vadd.f32 0.0, %v2763
  %v2765 = vpop.f32.mrb[0].mxu0
  %2766 = vmatprep.mubr.f32.mxu0 0.0
  %2767 = vmatmul.mubr.f32.gmra.mrb[0].mxu0 %v821
  %v2768 = vpop.f32.mrb[0].mxu0
  %v2769 = vadd.f32 0.0, %v2768
  %v2770 = vpop.f32.mrb[0].mxu0
  %2771 = vmatprep.mubr.f32.mxu0 0.0
  %2772 = vmatmul.mubr.f32.gmra.mrb[0].mxu0 %v824
  %v2773 = vpop.f32.mrb[0].mxu0
  %v2774 = vadd.f32 0.0, %v2773
  %v2775 = vpop.f32.mrb[0].mxu0
  %2776 = vmatprep.mubr.f32.mxu0 0.0
  %2777 = vmatmul.mubr.f32.gmra.mrb[0].mxu0 %v827
  %v2778 = vpop.f32.mrb[0].mxu0
  %v2779 = vadd.f32 0.0, %v2778
  %v2780 = vpop.f32.mrb[0].mxu0
  %2781 = vmatprep.mubr.f32.mxu0 0.0
  %2782 = vmatmul.mubr.f32.gmra.mrb[0].mxu0 %v830
  %v2783 = vpop.f32.mrb[0].mxu0
  %v2784 = vadd.f32 0.0, %v2783
  %v2785 = vpop.f32.mrb[0].mxu0
  %2786 = vmatprep.mubr.f32.mxu0 0.0
  %2787 = vmatmul.mubr.f32.gmra.mrb[0].mxu0 %v833
  %v2788 = vpop.f32.mrb[0].mxu0
  %v2789 = vadd.f32 0.0, %v2788
  %v2790 = vpop.f32.mrb[0].mxu0
  %2791 = vmatprep.mubr.f32.mxu0 0.0
  %2792 = vmatmul.mubr.f32.gmra.mrb[0].mxu0 %v836
  %v2793 = vpop.f32.mrb[0].mxu0
  %v2794 = vadd.f32 0.0, %v2793
  %v2795 = vpop.f32.mrb[0].mxu0
  %2796 = vmatprep.mubr.f32.mxu0 0.0
  %2797 = vmatmul.mubr.f32.gmra.mrb[0].mxu0 %v839
  %v2798 = vpop.f32.mrb[0].mxu0
  %v2799 = vadd.f32 0.0, %v2798
  %v2800 = vpop.f32.mrb[0].mxu0
  %2801 = vmatprep.mubr.f32.mxu0 0.0
  %2802 = vmatmul.mubr.f32.gmra.mrb[0].mxu0 %v842
  %v2803 = vpop.f32.mrb[0].mxu0
  %v2804 = vadd.f32 0.0, %v2803
  %v2805 = vpop.f32.mrb[0].mxu0
  %2806 = vmatprep.mubr.f32.mxu0 0.0
  %2807 = vmatmul.mubr.f32.gmra.mrb[0].mxu0 %v845
  %v2808 = vpop.f32.mrb[0].mxu0
  %v2809 = vadd.f32 0.0, %v2808
  %v2810 = vpop.f32.mrb[0].mxu0
  %2811 = vmatprep.mubr.f32.mxu0 0.0
  %2812 = vmatmul.mubr.f32.gmra.mrb[0].mxu0 %v848
  %v2813 = vpop.f32.mrb[0].mxu0
  %v2814 = vadd.f32 0.0, %v2813
  %v2815 = vpop.f32.mrb[0].mxu0
  %2816 = vmatprep.mubr.f32.mxu0 0.0
  %2817 = vmatmul.mubr.f32.gmra.mrb[0].mxu0 %v851
  %v2818 = vpop.f32.mrb[0].mxu0
  %v2819 = vadd.f32 0.0, %v2818
  %v2820 = vpop.f32.mrb[0].mxu0
  %2821 = vmatprep.mubr.f32.mxu0 0.0
  %2822 = vmatmul.mubr.f32.gmra.mrb[0].mxu0 %v854
  %v2823 = vpop.f32.mrb[0].mxu0
  %v2824 = vadd.f32 0.0, %v2823
  %v2825 = vpop.f32.mrb[0].mxu0
  %2826 = vmatprep.mubr.f32.mxu0 0.0
  %2827 = vmatmul.mubr.f32.gmra.mrb[0].mxu0 %v857
  %v2828 = vpop.f32.mrb[0].mxu0
  %v2829 = vadd.f32 0.0, %v2828
  %v2830 = vpop.f32.mrb[0].mxu0
  %2831 = vmatprep.mubr.f32.mxu0 0.0
  %2832 = vmatmul.mubr.f32.gmra.mrb[0].mxu0 %v860
  %v2833 = vpop.f32.mrb[0].mxu0
  %v2834 = vadd.f32 0.0, %v2833
  %v2835 = vpop.f32.mrb[0].mxu0
  %2836 = vmatprep.mubr.f32.mxu0 0.0
  %2837 = vmatmul.mubr.f32.gmra.mrb[0].mxu0 %v863
  %v2838 = vpop.f32.mrb[0].mxu0
  %v2839 = vadd.f32 0.0, %v2838
  %v2840 = vpop.f32.mrb[0].mxu0
  %2841 = vmatprep.mubr.f32.mxu0 0.0
  %2842 = vmatmul.mubr.f32.gmra.mrb[0].mxu0 %v866
  %v2843 = vpop.f32.mrb[0].mxu0
  %v2844 = vadd.f32 0.0, %v2843
  %v2845 = vpop.f32.mrb[0].mxu0
  %2846 = vmatprep.mubr.f32.mxu0 0.0
  %2847 = vmatmul.mubr.f32.gmra.mrb[0].mxu0 %v869
  %v2848 = vpop.f32.mrb[0].mxu0
  %v2849 = vadd.f32 0.0, %v2848
  %v2850 = vpop.f32.mrb[0].mxu0
  %2851 = vmatprep.mubr.f32.mxu0 0.0
  %2852 = vmatmul.mubr.f32.gmra.mrb[0].mxu0 %v872
  %v2853 = vpop.f32.mrb[0].mxu0
  %v2854 = vadd.f32 0.0, %v2853
  %v2855 = vpop.f32.mrb[0].mxu0
  %2856 = vmatprep.mubr.f32.mxu0 0.0
  %2857 = vmatmul.mubr.f32.gmra.mrb[0].mxu0 %v875
  %v2858 = vpop.f32.mrb[0].mxu0
  %v2859 = vadd.f32 0.0, %v2858
  %v2860 = vpop.f32.mrb[0].mxu0
  %2861 = vmatprep.mubr.f32.mxu0 0.0
  %2862 = vmatmul.mubr.f32.gmra.mrb[0].mxu0 %v878
  %v2863 = vpop.f32.mrb[0].mxu0
  %v2864 = vadd.f32 0.0, %v2863
  %v2865 = vpop.f32.mrb[0].mxu0
  %2866 = vmatprep.mubr.f32.mxu0 0.0
  %2867 = vmatmul.mubr.f32.gmra.mrb[0].mxu0 %v881
  %v2868 = vpop.f32.mrb[0].mxu0
  %v2869 = vadd.f32 0.0, %v2868
  %v2870 = vpop.f32.mrb[0].mxu0
  %2871 = vmatprep.mubr.f32.mxu0 0.0
  %2872 = vmatmul.mubr.f32.gmra.mrb[0].mxu0 %v884
  %v2873 = vpop.f32.mrb[0].mxu0
  %v2874 = vadd.f32 0.0, %v2873
  %v2875 = vpop.f32.mrb[0].mxu0
  %2876 = vmatprep.mubr.f32.mxu0 0.0
  %2877 = vmatmul.mubr.f32.gmra.mrb[0].mxu0 %v887
  %v2878 = vpop.f32.mrb[0].mxu0
  %v2879 = vadd.f32 0.0, %v2878
  %v2880 = vpop.f32.mrb[0].mxu0
  %2881 = vmatprep.mubr.f32.mxu0 0.0
  %2882 = vmatmul.mubr.f32.gmra.mrb[0].mxu0 %v890
  %v2883 = vpop.f32.mrb[0].mxu0
  %v2884 = vadd.f32 0.0, %v2883
  %v2885 = vpop.f32.mrb[0].mxu0
  %2886 = vmatprep.mubr.f32.mxu0 0.0
  %2887 = vmatmul.mubr.f32.gmra.mrb[0].mxu0 %v893
  %v2888 = vpop.f32.mrb[0].mxu0
  %v2889 = vadd.f32 0.0, %v2888
  %v2890 = vpop.f32.mrb[0].mxu0
  %2891 = vmatprep.mubr.f32.mxu0 0.0
  %2892 = vmatmul.mubr.f32.gmra.mrb[0].mxu0 %v896
  %v2893 = vpop.f32.mrb[0].mxu0
  %v2894 = vadd.f32 0.0, %v2893
  %v2895 = vpop.f32.mrb[0].mxu0
  %2896 = vmatprep.mubr.f32.mxu0 0.0
  %2897 = vmatmul.mubr.f32.gmra.mrb[0].mxu0 %v899
  %v2898 = vpop.f32.mrb[0].mxu0
  %v2899 = vadd.f32 0.0, %v2898
  %v2900 = vpop.f32.mrb[0].mxu0
  %2901 = vmatprep.mubr.f32.mxu0 0.0
  %2902 = vmatmul.mubr.f32.gmra.mrb[0].mxu0 %v902
  %v2903 = vpop.f32.mrb[0].mxu0
  %v2904 = vadd.f32 0.0, %v2903
  %v2905 = vpop.f32.mrb[0].mxu0
  %2906 = vmatprep.mubr.f32.mxu0 0.0
  %2907 = vmatmul.mubr.f32.gmra.mrb[0].mxu0 %v905
  %v2908 = vpop.f32.mrb[0].mxu0
  %v2909 = vadd.f32 0.0, %v2908
  %v2910 = vpop.f32.mrb[0].mxu0
  %2911 = vmatprep.mubr.f32.mxu0 0.0
  %2912 = vmatmul.mubr.f32.gmra.mrb[0].mxu0 %v908
  %v2913 = vpop.f32.mrb[0].mxu0
  %v2914 = vadd.f32 0.0, %v2913
  %v2915 = vpop.f32.mrb[0].mxu0
  %2916 = vmatprep.mubr.f32.mxu0 0.0
  %2917 = vmatmul.mubr.f32.gmra.mrb[0].mxu0 %v911
  %v2918 = vpop.f32.mrb[0].mxu0
  %v2919 = vadd.f32 0.0, %v2918
  %v2920 = vpop.f32.mrb[0].mxu0
  %2921 = vmatprep.mubr.f32.mxu0 0.0
  %2922 = vmatmul.mubr.f32.gmra.mrb[0].mxu0 %v914
  %v2923 = vpop.f32.mrb[0].mxu0
  %v2924 = vadd.f32 0.0, %v2923
  %v2925 = vpop.f32.mrb[0].mxu0
  %2926 = vmatprep.mubr.f32.mxu0 0.0
  %2927 = vmatmul.mubr.f32.gmra.mrb[0].mxu0 %v917
  %v2928 = vpop.f32.mrb[0].mxu0
  %v2929 = vadd.f32 0.0, %v2928
  %v2930 = vpop.f32.mrb[0].mxu0
  %2931 = vmatprep.mubr.f32.mxu0 0.0
  %2932 = vmatmul.mubr.f32.gmra.mrb[0].mxu0 %v920
  %v2933 = vpop.f32.mrb[0].mxu0
  %v2934 = vadd.f32 0.0, %v2933
  %v2935 = vpop.f32.mrb[0].mxu0
  %2936 = vmatprep.mubr.f32.mxu0 0.0
  %2937 = vmatmul.mubr.f32.gmra.mrb[0].mxu0 %v923
  %v2938 = vpop.f32.mrb[0].mxu0
  %v2939 = vadd.f32 0.0, %v2938
  %v2940 = vpop.f32.mrb[0].mxu0
  %2941 = vmatprep.mubr.f32.mxu0 0.0
  %2942 = vmatmul.mubr.f32.gmra.mrb[0].mxu0 %v926
  %v2943 = vpop.f32.mrb[0].mxu0
  %v2944 = vadd.f32 0.0, %v2943
  %v2945 = vpop.f32.mrb[0].mxu0
  %2946 = vmatprep.mubr.f32.mxu0 0.0
  %2947 = vmatmul.mubr.f32.gmra.mrb[0].mxu0 %v929
  %v2948 = vpop.f32.mrb[0].mxu0
  %v2949 = vadd.f32 0.0, %v2948
  %v2950 = vpop.f32.mrb[0].mxu0
  %2951 = vmatprep.mubr.f32.mxu0 0.0
  %2952 = vmatmul.mubr.f32.gmra.mrb[0].mxu0 %v932
  %v2953 = vpop.f32.mrb[0].mxu0
  %v2954 = vadd.f32 0.0, %v2953
  %v2955 = vpop.f32.mrb[0].mxu0
  %2956 = vmatprep.mubr.f32.mxu0 0.0
  %2957 = vmatmul.mubr.f32.gmra.mrb[0].mxu0 %v935
  %v2958 = vpop.f32.mrb[0].mxu0
  %v2959 = vadd.f32 0.0, %v2958
  %v2960 = vpop.f32.mrb[0].mxu0
  %2961 = vmatprep.mubr.f32.mxu0 0.0
  %2962 = vmatmul.mubr.f32.gmra.mrb[0].mxu0 %v938
  %v2963 = vpop.f32.mrb[0].mxu0
  %v2964 = vadd.f32 0.0, %v2963
  %v2965 = vpop.f32.mrb[0].mxu0
  %2966 = vmatprep.mubr.f32.mxu0 0.0
  %2967 = vmatmul.mubr.f32.gmra.mrb[0].mxu0 %v941
  %v2968 = vpop.f32.mrb[0].mxu0
  %v2969 = vadd.f32 0.0, %v2968
  %v2970 = vpop.f32.mrb[0].mxu0
  %2971 = vmatprep.mubr.f32.mxu0 0.0
  %2972 = vmatmul.mubr.f32.gmra.mrb[0].mxu0 %v944
  %v2973 = vpop.f32.mrb[0].mxu0
  %v2974 = vadd.f32 0.0, %v2973
  %v2975 = vpop.f32.mrb[0].mxu0
  %2976 = vmatprep.mubr.f32.mxu0 0.0
  %2977 = vmatmul.mubr.f32.gmra.mrb[0].mxu0 %v947
  %v2978 = vpop.f32.mrb[0].mxu0
  %v2979 = vadd.f32 0.0, %v2978
  %v2980 = vpop.f32.mrb[0].mxu0
  %2981 = vmatprep.mubr.f32.mxu0 0.0
  %2982 = vmatmul.mubr.f32.gmra.mrb[0].mxu0 %v950
  %v2983 = vpop.f32.mrb[0].mxu0
  %v2984 = vadd.f32 0.0, %v2983
  %v2985 = vpop.f32.mrb[0].mxu0
  %2986 = vmatprep.mubr.f32.mxu0 0.0
  %2987 = vmatmul.mubr.f32.gmra.mrb[0].mxu0 %v953
  %v2988 = vpop.f32.mrb[0].mxu0
  %v2989 = vadd.f32 0.0, %v2988
  %v2990 = vpop.f32.mrb[0].mxu0
  %2991 = vmatprep.mubr.f32.mxu0 0.0
  %2992 = vmatmul.mubr.f32.gmra.mrb[0].mxu0 %v956
  %v2993 = vpop.f32.mrb[0].mxu0
  %v2994 = vadd.f32 0.0, %v2993
  %v2995 = vpop.f32.mrb[0].mxu0
  %2996 = vmatprep.mubr.f32.mxu0 0.0
  %2997 = vmatmul.mubr.f32.gmra.mrb[0].mxu0 %v959
  %v2998 = vpop.f32.mrb[0].mxu0
  %v2999 = vadd.f32 0.0, %v2998
  %v3000 = vpop.f32.mrb[0].mxu0
  %3001 = vmatprep.mubr.f32.mxu0 0.0
  %3002 = vmatmul.mubr.f32.gmra.mrb[0].mxu0 %v962
  %v3003 = vpop.f32.mrb[0].mxu0
  %v3004 = vadd.f32 0.0, %v3003
  %v3005 = vpop.f32.mrb[0].mxu0
  %3006 = vmatprep.mubr.f32.mxu0 0.0
  %3007 = vmatmul.mubr.f32.gmra.mrb[0].mxu0 %v965
  %v3008 = vpop.f32.mrb[0].mxu0
  %v3009 = vadd.f32 0.0, %v3008
  %v3010 = vpop.f32.mrb[0].mxu0
  %3011 = vmatprep.mubr.f32.mxu0 0.0
  %3012 = vmatmul.mubr.f32.gmra.mrb[0].mxu0 %v968
  %v3013 = vpop.f32.mrb[0].mxu0
  %v3014 = vadd.f32 0.0, %v3013
  %v3015 = vpop.f32.mrb[0].mxu0
  %3016 = vmatprep.mubr.f32.mxu0 0.0
  %3017 = vmatmul.mubr.f32.gmra.mrb[0].mxu0 %v971
  %v3018 = vpop.f32.mrb[0].mxu0
  %v3019 = vadd.f32 0.0, %v3018
  %v3020 = vpop.f32.mrb[0].mxu0
  %3021 = vmatprep.mubr.f32.mxu0 0.0
  %3022 = vmatmul.mubr.f32.gmra.mrb[0].mxu0 %v974
  %v3023 = vpop.f32.mrb[0].mxu0
  %v3024 = vadd.f32 0.0, %v3023
  %v3025 = vpop.f32.mrb[0].mxu0
  %3026 = vmatprep.mubr.f32.mxu0 0.0
  %3027 = vmatmul.mubr.f32.gmra.mrb[0].mxu0 %v977
  %v3028 = vpop.f32.mrb[0].mxu0
  %v3029 = vadd.f32 0.0, %v3028
  %v3030 = vpop.f32.mrb[0].mxu0
  %3031 = vmatprep.mubr.f32.mxu0 0.0
  %3032 = vmatmul.mubr.f32.gmra.mrb[0].mxu0 %v980
  %v3033 = vpop.f32.mrb[0].mxu0
  %v3034 = vadd.f32 0.0, %v3033
  %v3035 = vpop.f32.mrb[0].mxu0
  %3036 = vmatprep.mubr.f32.mxu0 0.0
  %3037 = vmatmul.mubr.f32.gmra.mrb[0].mxu0 %v983
  %v3038 = vpop.f32.mrb[0].mxu0
  %v3039 = vadd.f32 0.0, %v3038
  %v3040 = vpop.f32.mrb[0].mxu0
  %3041 = vmatprep.mubr.f32.mxu0 0.0
  %3042 = vmatmul.mubr.f32.gmra.mrb[0].mxu0 %v986
  %v3043 = vpop.f32.mrb[0].mxu0
  %v3044 = vadd.f32 0.0, %v3043
  %v3045 = vpop.f32.mrb[0].mxu0
  %3046 = vmatprep.mubr.f32.mxu0 0.0
  %3047 = vmatmul.mubr.f32.gmra.mrb[0].mxu0 %v989
  %v3048 = vpop.f32.mrb[0].mxu0
  %v3049 = vadd.f32 0.0, %v3048
  %v3050 = vpop.f32.mrb[0].mxu0
  %3051 = vmatprep.mubr.f32.mxu0 0.0
  %3052 = vmatmul.mubr.f32.gmra.mrb[0].mxu0 %v992
  %v3053 = vpop.f32.mrb[0].mxu0
  %v3054 = vadd.f32 0.0, %v3053
  %v3055 = vpop.f32.mrb[0].mxu0
  %3056 = vmatprep.mubr.f32.mxu0 0.0
  %3057 = vmatmul.mubr.f32.gmra.mrb[0].mxu0 %v995
  %v3058 = vpop.f32.mrb[0].mxu0
  %v3059 = vadd.f32 0.0, %v3058
  %v3060 = vpop.f32.mrb[0].mxu0
  %3061 = vmatprep.mubr.f32.mxu0 0.0
  %3062 = vmatmul.mubr.f32.gmra.mrb[0].mxu0 %v998
  %v3063 = vpop.f32.mrb[0].mxu0
  %v3064 = vadd.f32 0.0, %v3063
  %v3065 = vpop.f32.mrb[0].mxu0
  %3066 = vmatprep.mubr.f32.mxu0 0.0
  %3067 = vmatmul.mubr.f32.gmra.mrb[0].mxu0 %v1001
  %v3068 = vpop.f32.mrb[0].mxu0
  %v3069 = vadd.f32 0.0, %v3068
  %v3070 = vpop.f32.mrb[0].mxu0
  %3071 = vmatprep.mubr.f32.mxu0 0.0
  %3072 = vmatmul.mubr.f32.gmra.mrb[0].mxu0 %v1004
  %v3073 = vpop.f32.mrb[0].mxu0
  %v3074 = vadd.f32 0.0, %v3073
  %v3075 = vpop.f32.mrb[0].mxu0
  %3076 = vmatprep.mubr.f32.mxu0 0.0
  %3077 = vmatmul.mubr.f32.gmra.mrb[0].mxu0 %v1007
  %v3078 = vpop.f32.mrb[0].mxu0
  %v3079 = vadd.f32 0.0, %v3078
  %v3080 = vpop.f32.mrb[0].mxu0
  %3081 = vmatprep.mubr.f32.mxu0 0.0
  %3082 = vmatmul.mubr.f32.gmra.mrb[0].mxu0 %v1010
  %v3083 = vpop.f32.mrb[0].mxu0
  %v3084 = vadd.f32 0.0, %v3083
  %v3085 = vpop.f32.mrb[0].mxu0
  %3086 = vmatprep.mubr.f32.mxu0 0.0
  %3087 = vmatmul.mubr.f32.gmra.mrb[0].mxu0 %v1013
  %v3088 = vpop.f32.mrb[0].mxu0
  %v3089 = vadd.f32 0.0, %v3088
  %v3090 = vpop.f32.mrb[0].mxu0
  %3091 = vmatprep.mubr.f32.mxu0 0.0
  %3092 = vmatmul.mubr.f32.gmra.mrb[0].mxu0 %v1016
  %v3093 = vpop.f32.mrb[0].mxu0
  %v3094 = vadd.f32 0.0, %v3093
  %v3095 = vpop.f32.mrb[0].mxu0
  %3096 = vmatprep.mubr.f32.mxu0 0.0
  %3097 = vmatmul.mubr.f32.gmra.mrb[0].mxu0 %v1019
  %v3098 = vpop.f32.mrb[0].mxu0
  %v3099 = vadd.f32 0.0, %v3098
  %v3100 = vpop.f32.mrb[0].mxu0
  %3101 = vmatprep.mubr.f32.mxu0 0.0
  %3102 = vmatmul.mubr.f32.gmra.mrb[0].mxu0 %v1022
  %v3103 = vpop.f32.mrb[0].mxu0
  %v3104 = vadd.f32 0.0, %v3103
  %v3105 = vpop.f32.mrb[0].mxu0
  %3106 = vmatprep.mubr.f32.mxu0 0.0
  %3107 = vmatmul.mubr.f32.gmra.mrb[0].mxu0 %v1025
  %v3108 = vpop.f32.mrb[0].mxu0
  %v3109 = vadd.f32 0.0, %v3108
  %v3110 = vpop.f32.mrb[0].mxu0
  %3111 = vmatprep.mubr.f32.mxu0 0.0
  %3112 = vmatmul.mubr.f32.gmra.mrb[0].mxu0 %v1028
  %v3113 = vpop.f32.mrb[0].mxu0
  %v3114 = vadd.f32 0.0, %v3113
  %v3115 = vpop.f32.mrb[0].mxu0
  %3116 = vmatprep.mubr.f32.mxu0 0.0
  %3117 = vmatmul.mubr.f32.gmra.mrb[0].mxu0 %v1031
  %v3118 = vpop.f32.mrb[0].mxu0
  %v3119 = vadd.f32 0.0, %v3118
  %v3120 = vpop.f32.mrb[0].mxu0
  %3121 = vmatprep.mubr.f32.mxu0 0.0
  %3122 = vmatmul.mubr.f32.gmra.mrb[0].mxu0 %v1034
  %v3123 = vpop.f32.mrb[0].mxu0
  %v3124 = vadd.f32 0.0, %v3123
  %v3125 = vpop.f32.mrb[0].mxu0
  %3126 = vmatprep.mubr.f32.mxu0 0.0
  %3127 = vmatmul.mubr.f32.gmra.mrb[0].mxu0 %v1037
  %v3128 = vpop.f32.mrb[0].mxu0
  %v3129 = vadd.f32 0.0, %v3128
  %v3130 = vpop.f32.mrb[0].mxu0
  %3131 = vmatprep.mubr.f32.mxu0 0.0
  %3132 = vmatmul.mubr.f32.gmra.mrb[0].mxu0 %v1040
  %v3133 = vpop.f32.mrb[0].mxu0
  %v3134 = vadd.f32 0.0, %v3133
  %v3135 = vpop.f32.mrb[0].mxu0
  %3136 = vmatprep.mubr.f32.mxu0 0.0
  %3137 = vmatmul.mubr.f32.gmra.mrb[0].mxu0 %v1043
  %v3138 = vpop.f32.mrb[0].mxu0
  %v3139 = vadd.f32 0.0, %v3138
  %v3140 = vpop.f32.mrb[0].mxu0
  %3141 = vmatprep.mubr.f32.mxu0 0.0
  %3142 = vmatmul.mubr.f32.gmra.mrb[0].mxu0 %v1046
  %v3143 = vpop.f32.mrb[0].mxu0
  %v3144 = vadd.f32 0.0, %v3143
  %v3145 = vpop.f32.mrb[0].mxu0
  %3146 = vmatprep.mubr.f32.mxu0 0.0
  %3147 = vmatmul.mubr.f32.gmra.mrb[0].mxu0 %v1049
  %v3148 = vpop.f32.mrb[0].mxu0
  %v3149 = vadd.f32 0.0, %v3148
  %v3150 = vpop.f32.mrb[0].mxu0
  %3151 = vmatprep.mubr.f32.mxu0 0.0
  %3152 = vmatmul.mubr.f32.gmra.mrb[0].mxu0 %v1052
  %v3153 = vpop.f32.mrb[0].mxu0
  %v3154 = vadd.f32 0.0, %v3153
  %v3155 = vpop.f32.mrb[0].mxu0
  %3156 = vmatprep.mubr.f32.mxu0 0.0
  %3157 = vmatmul.mubr.f32.gmra.mrb[0].mxu0 %v1055
  %v3158 = vpop.f32.mrb[0].mxu0
  %v3159 = vadd.f32 0.0, %v3158
  %v3160 = vpop.f32.mrb[0].mxu0
  %3161 = vmatprep.mubr.f32.mxu0 0.0
  %3162 = vmatmul.mubr.f32.gmra.mrb[0].mxu0 %v1058
  %v3163 = vpop.f32.mrb[0].mxu0
  %v3164 = vadd.f32 0.0, %v3163
  %v3165 = vpop.f32.mrb[0].mxu0
  %3166 = vmatprep.mubr.f32.mxu0 0.0
  %3167 = vmatmul.mubr.f32.gmra.mrb[0].mxu0 %v1061
  %v3168 = vpop.f32.mrb[0].mxu0
  %v3169 = vadd.f32 0.0, %v3168
  %v3170 = vpop.f32.mrb[0].mxu0
  %3171 = vmatprep.mubr.f32.mxu0 0.0
  %3172 = vmatmul.mubr.f32.gmra.mrb[0].mxu0 %v1064
  %v3173 = vpop.f32.mrb[0].mxu0
  %v3174 = vadd.f32 0.0, %v3173
  %v3175 = vpop.f32.mrb[0].mxu0
  %3176 = vmatprep.mubr.f32.mxu0 0.0
  %3177 = vmatmul.mubr.f32.gmra.mrb[0].mxu0 %v1067
  %v3178 = vpop.f32.mrb[0].mxu0
  %v3179 = vadd.f32 0.0, %v3178
  %v3180 = vpop.f32.mrb[0].mxu0
  %3181 = vmatprep.mubr.f32.mxu0 0.0
  %3182 = vmatmul.mubr.f32.gmra.mrb[0].mxu0 %v1070
  %v3183 = vpop.f32.mrb[0].mxu0
  %v3184 = vadd.f32 0.0, %v3183
  %v3185 = vpop.f32.mrb[0].mxu0
  %3186 = vmatprep.mubr.f32.mxu0 0.0
  %3187 = vmatmul.mubr.f32.gmra.mrb[0].mxu0 %v1073
  %v3188 = vpop.f32.mrb[0].mxu0
  %v3189 = vadd.f32 0.0, %v3188
  %v3190 = vpop.f32.mrb[0].mxu0
  %3191 = vmatprep.mubr.f32.mxu0 0.0
  %3192 = vmatmul.mubr.f32.gmra.mrb[0].mxu0 %v1076
  %v3193 = vpop.f32.mrb[0].mxu0
  %v3194 = vadd.f32 0.0, %v3193
  %v3195 = vpop.f32.mrb[0].mxu0
  %3196 = vmatprep.mubr.f32.mxu0 0.0
  %3197 = vmatmul.mubr.f32.gmra.mrb[0].mxu0 %v1079
  %v3198 = vpop.f32.mrb[0].mxu0
  %v3199 = vadd.f32 0.0, %v3198
  %v3200 = vpop.f32.mrb[0].mxu0
  %3201 = vmatprep.mubr.f32.mxu0 0.0
  %3202 = vmatmul.mubr.f32.gmra.mrb[0].mxu0 %v1082
  %v3203 = vpop.f32.mrb[0].mxu0
  %v3204 = vadd.f32 0.0, %v3203
  %v3205 = vpop.f32.mrb[0].mxu0
  %3206 = vmatprep.mubr.f32.mxu0 0.0
  %3207 = vmatmul.mubr.f32.gmra.mrb[0].mxu0 %v1085
  %v3208 = vpop.f32.mrb[0].mxu0
  %v3209 = vadd.f32 0.0, %v3208
  %v3210 = vpop.f32.mrb[0].mxu0
  %3211 = vmatprep.mubr.f32.mxu0 0.0
  %3212 = vmatmul.mubr.f32.gmra.mrb[0].mxu0 %v1088
  %v3213 = vpop.f32.mrb[0].mxu0
  %v3214 = vadd.f32 0.0, %v3213
  %v3215 = vpop.f32.mrb[0].mxu0
  %3216 = vmatprep.mubr.f32.mxu0 0.0
  %3217 = vmatmul.mubr.f32.gmra.mrb[0].mxu0 %v1091
  %v3218 = vpop.f32.mrb[0].mxu0
  %v3219 = vadd.f32 0.0, %v3218
  %v3220 = vpop.f32.mrb[0].mxu0
  %3221 = vmatprep.mubr.f32.mxu0 0.0
  %3222 = vmatmul.mubr.f32.gmra.mrb[0].mxu0 %v1094
  %v3223 = vpop.f32.mrb[0].mxu0
  %v3224 = vadd.f32 0.0, %v3223
  %v3225 = vpop.f32.mrb[0].mxu0
  %3226 = vmatprep.mubr.f32.mxu0 0.0
  %3227 = vmatmul.mubr.f32.gmra.mrb[0].mxu0 %v1097
  %v3228 = vpop.f32.mrb[0].mxu0
  %v3229 = vadd.f32 0.0, %v3228
  %v3230 = vpop.f32.mrb[0].mxu0
  %3231 = vmatprep.mubr.f32.mxu0 0.0
  %3232 = vmatmul.mubr.f32.gmra.mrb[0].mxu0 %v1100
  %v3233 = vpop.f32.mrb[0].mxu0
  %v3234 = vadd.f32 0.0, %v3233
  %v3235 = vpop.f32.mrb[0].mxu0
  %3236 = vmatprep.mubr.f32.mxu0 0.0
  %3237 = vmatmul.mubr.f32.gmra.mrb[0].mxu0 %v1103
  %v3238 = vpop.f32.mrb[0].mxu0
  %v3239 = vadd.f32 0.0, %v3238
  %v3240 = vpop.f32.mrb[0].mxu0
  %3241 = vmatprep.mubr.f32.mxu0 0.0
  %3242 = vmatmul.mubr.f32.gmra.mrb[0].mxu0 %v1106
  %v3243 = vpop.f32.mrb[0].mxu0
  %v3244 = vadd.f32 0.0, %v3243
  %v3245 = vpop.f32.mrb[0].mxu0
  %3246 = vmatprep.mubr.f32.mxu0 0.0
  %3247 = vmatmul.mubr.f32.gmra.mrb[0].mxu0 %v1109
  %v3248 = vpop.f32.mrb[0].mxu0
  %v3249 = vadd.f32 0.0, %v3248
  %v3250 = vpop.f32.mrb[0].mxu0
  %3251 = vmatprep.mubr.f32.mxu0 0.0
  %3252 = vmatmul.mubr.f32.gmra.mrb[0].mxu0 %v1112
  %v3253 = vpop.f32.mrb[0].mxu0
  %v3254 = vadd.f32 0.0, %v3253
  %v3255 = vpop.f32.mrb[0].mxu0
  %3256 = vmatprep.mubr.f32.mxu0 0.0
  %3257 = vmatmul.mubr.f32.gmra.mrb[0].mxu0 %v1115
  %v3258 = vpop.f32.mrb[0].mxu0
  %v3259 = vadd.f32 0.0, %v3258
  %v3260 = vpop.f32.mrb[0].mxu0
  %3261 = vmatprep.mubr.f32.mxu0 0.0
  %3262 = vmatmul.mubr.f32.gmra.mrb[0].mxu0 %v1118
  %v3263 = vpop.f32.mrb[0].mxu0
  %v3264 = vadd.f32 0.0, %v3263
  %v3265 = vpop.f32.mrb[0].mxu0
  %3266 = vmatprep.mubr.f32.mxu0 0.0
  %3267 = vmatmul.mubr.f32.gmra.mrb[0].mxu0 %v1121
  %v3268 = vpop.f32.mrb[0].mxu0
  %v3269 = vadd.f32 0.0, %v3268
  %v3270 = vpop.f32.mrb[0].mxu0
  %3271 = vmatprep.mubr.f32.mxu0 0.0
  %3272 = vmatmul.mubr.f32.gmra.mrb[0].mxu0 %v1124
  %v3273 = vpop.f32.mrb[0].mxu0
  %v3274 = vadd.f32 0.0, %v3273
  %v3275 = vpop.f32.mrb[0].mxu0
  %3276 = vmatprep.mubr.f32.mxu0 0.0
  %3277 = vmatmul.mubr.f32.gmra.mrb[0].mxu0 %v1127
  %v3278 = vpop.f32.mrb[0].mxu0
  %v3279 = vadd.f32 0.0, %v3278
  %v3280 = vpop.f32.mrb[0].mxu0
  %3281 = vmatprep.mubr.f32.mxu0 0.0
  %3282 = vmatmul.mubr.f32.gmra.mrb[0].mxu0 %v1130
  %v3283 = vpop.f32.mrb[0].mxu0
  %v3284 = vadd.f32 0.0, %v3283
  %v3285 = vpop.f32.mrb[0].mxu0
  %3286 = vmatprep.mubr.f32.mxu0 0.0
  %3287 = vmatmul.mubr.f32.gmra.mrb[0].mxu0 %v1133
  %v3288 = vpop.f32.mrb[0].mxu0
  %v3289 = vadd.f32 0.0, %v3288
  %v3290 = vpop.f32.mrb[0].mxu0
  %3291 = vmatprep.mubr.f32.mxu0 0.0
  %3292 = vmatmul.mubr.f32.gmra.mrb[0].mxu0 %v1136
  %v3293 = vpop.f32.mrb[0].mxu0
  %v3294 = vadd.f32 0.0, %v3293
  %v3295 = vpop.f32.mrb[0].mxu0
  %3296 = vmatprep.mubr.f32.mxu0 0.0
  %3297 = vmatmul.mubr.f32.gmra.mrb[0].mxu0 %v1139
  %v3298 = vpop.f32.mrb[0].mxu0
  %v3299 = vadd.f32 0.0, %v3298
  %v3300 = vpop.f32.mrb[0].mxu0
  %3301 = vmatprep.mubr.f32.mxu0 0.0
  %3302 = vmatmul.mubr.f32.gmra.mrb[0].mxu0 %v1142
  %v3303 = vpop.f32.mrb[0].mxu0
  %v3304 = vadd.f32 0.0, %v3303
  %v3305 = vpop.f32.mrb[0].mxu0
  %3306 = vmatprep.mubr.f32.mxu0 0.0
  %3307 = vmatmul.mubr.f32.gmra.mrb[0].mxu0 %v1145
  %v3308 = vpop.f32.mrb[0].mxu0
  %v3309 = vadd.f32 0.0, %v3308
  %v3310 = vpop.f32.mrb[0].mxu0
  %3311 = vmatprep.mubr.f32.mxu0 0.0
  %3312 = vmatmul.mubr.f32.gmra.mrb[0].mxu0 %v1148
  %v3313 = vpop.f32.mrb[0].mxu0
  %v3314 = vadd.f32 0.0, %v3313
  %v3315 = vpop.f32.mrb[0].mxu0
  %3316 = vmatprep.mubr.f32.mxu0 0.0
  %3317 = vmatmul.mubr.f32.gmra.mrb[0].mxu0 %v1151
  %v3318 = vpop.f32.mrb[0].mxu0
  %v3319 = vadd.f32 0.0, %v3318
  %v3320 = vpop.f32.mrb[0].mxu0
  %3321 = vmatprep.mubr.f32.mxu0 0.0
  %3322 = vmatmul.mubr.f32.gmra.mrb[0].mxu0 %v1154
  %v3323 = vpop.f32.mrb[0].mxu0
  %v3324 = vadd.f32 0.0, %v3323
  %v3325 = vpop.f32.mrb[0].mxu0
  %3326 = vmatprep.mubr.f32.mxu0 0.0
  %3327 = vmatmul.mubr.f32.gmra.mrb[0].mxu0 %v1157
  %v3328 = vpop.f32.mrb[0].mxu0
  %v3329 = vadd.f32 0.0, %v3328
  %v3330 = vpop.f32.mrb[0].mxu0
  %3331 = vmatprep.mubr.f32.mxu0 0.0
  %3332 = vmatmul.mubr.f32.gmra.mrb[0].mxu0 %v1160
  %v3333 = vpop.f32.mrb[0].mxu0
  %v3334 = vadd.f32 0.0, %v3333
  %v3335 = vpop.f32.mrb[0].mxu0
  %3336 = vmatprep.mubr.f32.mxu0 0.0
  %3337 = vmatmul.mubr.f32.gmra.mrb[0].mxu0 %v1163
  %v3338 = vpop.f32.mrb[0].mxu0
  %v3339 = vadd.f32 0.0, %v3338
  %v3340 = vpop.f32.mrb[0].mxu0
  %3341 = vmatprep.mubr.f32.mxu0 0.0
  %3342 = vmatmul.mubr.f32.gmra.mrb[0].mxu0 %v1166
  %v3343 = vpop.f32.mrb[0].mxu0
  %v3344 = vadd.f32 0.0, %v3343
  %v3345 = vpop.f32.mrb[0].mxu0
  %3346 = vmatprep.mubr.f32.mxu0 0.0
  %3347 = vmatmul.mubr.f32.gmra.mrb[0].mxu0 %v1169
  %v3348 = vpop.f32.mrb[0].mxu0
  %v3349 = vadd.f32 0.0, %v3348
  %v3350 = vpop.f32.mrb[0].mxu0
  %3351 = vmatprep.mubr.f32.mxu0 0.0
  %3352 = vmatmul.mubr.f32.gmra.mrb[0].mxu0 %v1172
  %v3353 = vpop.f32.mrb[0].mxu0
  %v3354 = vadd.f32 0.0, %v3353
  %v3355 = vpop.f32.mrb[0].mxu0
  %3356 = vmatprep.mubr.f32.mxu0 0.0
  %3357 = vmatmul.mubr.f32.gmra.mrb[0].mxu0 %v1175
  %v3358 = vpop.f32.mrb[0].mxu0
  %v3359 = vadd.f32 0.0, %v3358
  %v3360 = vpop.f32.mrb[0].mxu0
  %3361 = vmatprep.mubr.f32.mxu0 0.0
  %3362 = vmatmul.mubr.f32.gmra.mrb[0].mxu0 %v1178
  %v3363 = vpop.f32.mrb[0].mxu0
  %v3364 = vadd.f32 0.0, %v3363
  %v3365 = vpop.f32.mrb[0].mxu0
  %3366 = vmatprep.mubr.f32.mxu0 0.0
  %3367 = vmatmul.mubr.f32.gmra.mrb[0].mxu0 %v1181
  %v3368 = vpop.f32.mrb[0].mxu0
  %v3369 = vadd.f32 0.0, %v3368
  %v3370 = vpop.f32.mrb[0].mxu0
  %3371 = vmatprep.mubr.f32.mxu0 0.0
  %3372 = vmatmul.mubr.f32.gmra.mrb[0].mxu0 %v1184
  %v3373 = vpop.f32.mrb[0].mxu0
  %v3374 = vadd.f32 0.0, %v3373
  %v3375 = vpop.f32.mrb[0].mxu0
  %3376 = vmatprep.mubr.f32.mxu0 0.0
  %3377 = vmatmul.mubr.f32.gmra.mrb[0].mxu0 %v1187
  %v3378 = vpop.f32.mrb[0].mxu0
  %v3379 = vadd.f32 0.0, %v3378
  %v3380 = vpop.f32.mrb[0].mxu0
  %3381 = vmatprep.mubr.f32.mxu0 0.0
  %3382 = vmatmul.mubr.f32.gmra.mrb[0].mxu0 %v1190
  %v3383 = vpop.f32.mrb[0].mxu0
  %v3384 = vadd.f32 0.0, %v3383
  %v3385 = vpop.f32.mrb[0].mxu0
  %3386 = vmatprep.mubr.f32.mxu0 0.0
  %3387 = vmatmul.mubr.f32.gmra.mrb[0].mxu0 %v1193
  %v3388 = vpop.f32.mrb[0].mxu0
  %v3389 = vadd.f32 0.0, %v3388
  %v3390 = vpop.f32.mrb[0].mxu0
  %3391 = vmatprep.mubr.f32.mxu0 0.0
  %3392 = vmatmul.mubr.f32.gmra.mrb[0].mxu0 %v1196
  %v3393 = vpop.f32.mrb[0].mxu0
  %v3394 = vadd.f32 0.0, %v3393
  %v3395 = vpop.f32.mrb[0].mxu0
  %3396 = vmatprep.mubr.f32.mxu0 0.0
  %3397 = vmatmul.mubr.f32.gmra.mrb[0].mxu0 %v1199
  %v3398 = vpop.f32.mrb[0].mxu0
  %v3399 = vadd.f32 0.0, %v3398
  %v3400 = vpop.f32.mrb[0].mxu0
  %3401 = vmatprep.mubr.f32.mxu0 0.0
  %3402 = vmatmul.mubr.f32.gmra.mrb[0].mxu0 %v1202
  %v3403 = vpop.f32.mrb[0].mxu0
  %v3404 = vadd.f32 0.0, %v3403
  %v3405 = vpop.f32.mrb[0].mxu0
  %3406 = vmatprep.mubr.f32.mxu0 0.0
  %3407 = vmatmul.mubr.f32.gmra.mrb[0].mxu0 %v1205
  %v3408 = vpop.f32.mrb[0].mxu0
  %v3409 = vadd.f32 0.0, %v3408
  %v3410 = vpop.f32.mrb[0].mxu0
  %3411 = vmatprep.mubr.f32.mxu0 0.0
  %3412 = vmatmul.mubr.f32.gmra.mrb[0].mxu0 %v1208
  %v3413 = vpop.f32.mrb[0].mxu0
  %v3414 = vadd.f32 0.0, %v3413
  %v3415 = vpop.f32.mrb[0].mxu0
  %3416 = vmatprep.mubr.f32.mxu0 0.0
  %3417 = vmatmul.mubr.f32.gmra.mrb[0].mxu0 %v1211
  %v3418 = vpop.f32.mrb[0].mxu0
  %v3419 = vadd.f32 0.0, %v3418
  %v3420 = vpop.f32.mrb[0].mxu0
  %3421 = vmatprep.mubr.f32.mxu0 0.0
  %3422 = vmatmul.mubr.f32.gmra.mrb[0].mxu0 %v1214
  %v3423 = vpop.f32.mrb[0].mxu0
  %v3424 = vadd.f32 0.0, %v3423
  %v3425 = vpop.f32.mrb[0].mxu0
  %3426 = vmatprep.mubr.f32.mxu0 0.0
  %3427 = vmatmul.mubr.f32.gmra.mrb[0].mxu0 %v1217
  %v3428 = vpop.f32.mrb[0].mxu0
  %v3429 = vadd.f32 0.0, %v3428
  %v3430 = vpop.f32.mrb[0].mxu0
  %3431 = vmatprep.mubr.f32.mxu0 0.0
  %3432 = vmatmul.mubr.f32.gmra.mrb[0].mxu0 %v1220
  %v3433 = vpop.f32.mrb[0].mxu0
  %v3434 = vadd.f32 0.0, %v3433
  %v3435 = vpop.f32.mrb[0].mxu0
  %3436 = vmatprep.mubr.f32.mxu0 0.0
  %3437 = vmatmul.mubr.f32.gmra.mrb[0].mxu0 %v1223
  %v3438 = vpop.f32.mrb[0].mxu0
  %v3439 = vadd.f32 0.0, %v3438
  %v3440 = vpop.f32.mrb[0].mxu0
  %3441 = vmatprep.mubr.f32.mxu0 0.0
  %3442 = vmatmul.mubr.f32.gmra.mrb[0].mxu0 %v1226
  %v3443 = vpop.f32.mrb[0].mxu0
  %v3444 = vadd.f32 0.0, %v3443
  %v3445 = vpop.f32.mrb[0].mxu0
  %3446 = vmatprep.mubr.f32.mxu0 0.0
  %3447 = vmatmul.mubr.f32.gmra.mrb[0].mxu0 %v1229
  %v3448 = vpop.f32.mrb[0].mxu0
  %v3449 = vadd.f32 0.0, %v3448
  %v3450 = vpop.f32.mrb[0].mxu0
  %3451 = vmatprep.mubr.f32.mxu0 0.0
  %3452 = vmatmul.mubr.f32.gmra.mrb[0].mxu0 %v1232
  %v3453 = vpop.f32.mrb[0].mxu0
  %v3454 = vadd.f32 0.0, %v3453
  %v3455 = vpop.f32.mrb[0].mxu0
  %3456 = vmatprep.mubr.f32.mxu0 0.0
  %3457 = vmatmul.mubr.f32.gmra.mrb[0].mxu0 %v1235
  %v3458 = vpop.f32.mrb[0].mxu0
  %v3459 = vadd.f32 0.0, %v3458
  %v3460 = vpop.f32.mrb[0].mxu0
  %3461 = vmatprep.mubr.f32.mxu0 0.0
  %3462 = vmatmul.mubr.f32.gmra.mrb[0].mxu0 %v1238
  %v3463 = vpop.f32.mrb[0].mxu0
  %v3464 = vadd.f32 0.0, %v3463
  %v3465 = vpop.f32.mrb[0].mxu0
  %3466 = vmatprep.mubr.f32.mxu0 0.0
  %3467 = vmatmul.mubr.f32.gmra.mrb[0].mxu0 %v1241
  %v3468 = vpop.f32.mrb[0].mxu0
  %v3469 = vadd.f32 0.0, %v3468
  %v3470 = vpop.f32.mrb[0].mxu0
  %3471 = vmatprep.mubr.f32.mxu0 0.0
  %3472 = vmatmul.mubr.f32.gmra.mrb[0].mxu0 %v1244
  %v3473 = vpop.f32.mrb[0].mxu0
  %v3474 = vadd.f32 0.0, %v3473
  %v3475 = vpop.f32.mrb[0].mxu0
  %3476 = vmatprep.mubr.f32.mxu0 0.0
  %3477 = vmatmul.mubr.f32.gmra.mrb[0].mxu0 %v1247
  %v3478 = vpop.f32.mrb[0].mxu0
  %v3479 = vadd.f32 0.0, %v3478
  %v3480 = vpop.f32.mrb[0].mxu0
  %3481 = vmatprep.mubr.f32.mxu0 0.0
  %3482 = vmatmul.mubr.f32.gmra.mrb[0].mxu0 %v1250
  %v3483 = vpop.f32.mrb[0].mxu0
  %v3484 = vadd.f32 0.0, %v3483
  %v3485 = vpop.f32.mrb[0].mxu0
  %3486 = vmatprep.mubr.f32.mxu0 0.0
  %3487 = vmatmul.mubr.f32.gmra.mrb[0].mxu0 %v1253
  %v3488 = vpop.f32.mrb[0].mxu0
  %v3489 = vadd.f32 0.0, %v3488
  %v3490 = vpop.f32.mrb[0].mxu0
  %3491 = vmatprep.mubr.f32.mxu0 0.0
  %3492 = vmatmul.mubr.f32.gmra.mrb[0].mxu0 %v1256
  %v3493 = vpop.f32.mrb[0].mxu0
  %v3494 = vadd.f32 0.0, %v3493
  %v3495 = vpop.f32.mrb[0].mxu0
  %3496 = vmatprep.mubr.f32.mxu0 0.0
  %3497 = vmatmul.mubr.f32.gmra.mrb[0].mxu0 %v1259
  %v3498 = vpop.f32.mrb[0].mxu0
  %v3499 = vadd.f32 0.0, %v3498
  %v3500 = vpop.f32.mrb[0].mxu0
  %3501 = vmatprep.mubr.f32.mxu0 0.0
  %3502 = vmatmul.mubr.f32.gmra.mrb[0].mxu0 %v1262
  %v3503 = vpop.f32.mrb[0].mxu0
  %v3504 = vadd.f32 0.0, %v3503
  %v3505 = vpop.f32.mrb[0].mxu0
  %3506 = vmatprep.mubr.f32.mxu0 0.0
  %3507 = vmatmul.mubr.f32.gmra.mrb[0].mxu0 %v1265
  %v3508 = vpop.f32.mrb[0].mxu0
  %v3509 = vadd.f32 0.0, %v3508
  %v3510 = vpop.f32.mrb[0].mxu0
  %3511 = vmatprep.mubr.f32.mxu0 0.0
  %3512 = vmatmul.mubr.f32.gmra.mrb[0].mxu0 %v1268
  %v3513 = vpop.f32.mrb[0].mxu0
  %v3514 = vadd.f32 0.0, %v3513
  %v3515 = vpop.f32.mrb[0].mxu0
  %3516 = vmatprep.mubr.f32.mxu0 0.0
  %3517 = vmatmul.mubr.f32.gmra.mrb[0].mxu0 %v1271
  %v3518 = vpop.f32.mrb[0].mxu0
  %v3519 = vadd.f32 0.0, %v3518
  %v3520 = vpop.f32.mrb[0].mxu0
  %3521 = vmatprep.mubr.f32.mxu0 0.0
  %3522 = vmatmul.mubr.f32.gmra.mrb[0].mxu0 %v1274
  %v3523 = vpop.f32.mrb[0].mxu0
  %v3524 = vadd.f32 0.0, %v3523
  %v3525 = vpop.f32.mrb[0].mxu0
  %3526 = vmatprep.mubr.f32.mxu0 0.0
  %3527 = vmatmul.mubr.f32.gmra.mrb[0].mxu0 %v1277
  %v3528 = vpop.f32.mrb[0].mxu0
  %v3529 = vadd.f32 0.0, %v3528
  %v3530 = vpop.f32.mrb[0].mxu0
  %3531 = vmatprep.mubr.f32.mxu0 0.0
  %3532 = vmatmul.mubr.f32.gmra.mrb[0].mxu0 %v1280
  %v3533 = vpop.f32.mrb[0].mxu0
  %v3534 = vadd.f32 0.0, %v3533
  %v3535 = vpop.f32.mrb[0].mxu0
  %3536 = vmatprep.mubr.f32.mxu0 0.0
  %3537 = vmatmul.mubr.f32.gmra.mrb[0].mxu0 %v1283
  %v3538 = vpop.f32.mrb[0].mxu0
  %v3539 = vadd.f32 0.0, %v3538
  %v3540 = vpop.f32.mrb[0].mxu0
  %3541 = vmatprep.mubr.f32.mxu0 0.0
  %3542 = vmatmul.mubr.f32.gmra.mrb[0].mxu0 %v1286
  %v3543 = vpop.f32.mrb[0].mxu0
  %v3544 = vadd.f32 0.0, %v3543
  %v3545 = vpop.f32.mrb[0].mxu0
  %3546 = vmatprep.mubr.f32.mxu0 0.0
  %3547 = vmatmul.mubr.f32.gmra.mrb[0].mxu0 %v1289
  %v3548 = vpop.f32.mrb[0].mxu0
  %v3549 = vadd.f32 0.0, %v3548
  %v3550 = vpop.f32.mrb[0].mxu0
  %3551 = vmatprep.mubr.f32.mxu0 0.0
  %3552 = vmatmul.mubr.f32.gmra.mrb[0].mxu0 %v1292
  %v3553 = vpop.f32.mrb[0].mxu0
  %v3554 = vadd.f32 0.0, %v3553
  %v3555 = vpop.f32.mrb[0].mxu0
  %3556 = vmatprep.mubr.f32.mxu0 0.0
  %3557 = vmatmul.mubr.f32.gmra.mrb[0].mxu0 %v1295
  %v3558 = vpop.f32.mrb[0].mxu0
  %v3559 = vadd.f32 0.0, %v3558
  %v3560 = vpop.f32.mrb[0].mxu0
  %3561 = vmatprep.mubr.f32.mxu0 0.0
  %3562 = vmatmul.mubr.f32.gmra.mrb[0].mxu0 %v1298
  %v3563 = vpop.f32.mrb[0].mxu0
  %v3564 = vadd.f32 0.0, %v3563
  %v3565 = vpop.f32.mrb[0].mxu0
  %3566 = vmatprep.mubr.f32.mxu0 0.0
  %3567 = vmatmul.mubr.f32.gmra.mrb[0].mxu0 %v1301
  %v3568 = vpop.f32.mrb[0].mxu0
  %v3569 = vadd.f32 0.0, %v3568
  %v3570 = vpop.f32.mrb[0].mxu0
  %3571 = vmatprep.mubr.f32.mxu0 0.0
  %3572 = vmatmul.mubr.f32.gmra.mrb[0].mxu0 %v1304
  %v3573 = vpop.f32.mrb[0].mxu0
  %v3574 = vadd.f32 0.0, %v3573
  %v3575 = vpop.f32.mrb[0].mxu0
  %3576 = vmatprep.mubr.f32.mxu0 0.0
  %3577 = vmatmul.mubr.f32.gmra.mrb[0].mxu0 %v1307
  %v3578 = vpop.f32.mrb[0].mxu0
  %v3579 = vadd.f32 0.0, %v3578
  %v3580 = vpop.f32.mrb[0].mxu0
  %3581 = vmatprep.mubr.f32.mxu0 0.0
  %3582 = vmatmul.mubr.f32.gmra.mrb[0].mxu0 %v1310
  %v3583 = vpop.f32.mrb[0].mxu0
  %v3584 = vadd.f32 0.0, %v3583
  %v3585 = vpop.f32.mrb[0].mxu0
  %3586 = vmatprep.mubr.f32.mxu0 0.0
  %3587 = vmatmul.mubr.f32.gmra.mrb[0].mxu0 %v1313
  %v3588 = vpop.f32.mrb[0].mxu0
  %v3589 = vadd.f32 0.0, %v3588
  %v3590 = vpop.f32.mrb[0].mxu0
  %3591 = vmatprep.mubr.f32.mxu0 0.0
  %3592 = vmatmul.mubr.f32.gmra.mrb[0].mxu0 %v1316
  %v3593 = vpop.f32.mrb[0].mxu0
  %v3594 = vadd.f32 0.0, %v3593
  %v3595 = vpop.f32.mrb[0].mxu0
  %3596 = vmatprep.mubr.f32.mxu0 0.0
  %3597 = vmatmul.mubr.f32.gmra.mrb[0].mxu0 %v1319
  %v3598 = vpop.f32.mrb[0].mxu0
  %v3599 = vadd.f32 0.0, %v3598
  %v3600 = vpop.f32.mrb[0].mxu0
  %3601 = vmatprep.mubr.f32.mxu0 0.0
  %3602 = vmatmul.mubr.f32.gmra.mrb[0].mxu0 %v1322
  %v3603 = vpop.f32.mrb[0].mxu0
  %v3604 = vadd.f32 0.0, %v3603
  %v3605 = vpop.f32.mrb[0].mxu0
  %3606 = vmatprep.mubr.f32.mxu0 0.0
  %3607 = vmatmul.mubr.f32.gmra.mrb[0].mxu0 %v1325
  %v3608 = vpop.f32.mrb[0].mxu0
  %v3609 = vadd.f32 0.0, %v3608
  %v3610 = vpop.f32.mrb[0].mxu0
  %3611 = vmatprep.mubr.f32.mxu0 0.0
  %3612 = vmatmul.mubr.f32.gmra.mrb[0].mxu0 %v1328
  %v3613 = vpop.f32.mrb[0].mxu0
  %v3614 = vadd.f32 0.0, %v3613
  %v3615 = vpop.f32.mrb[0].mxu0
  %3616 = vmatprep.mubr.f32.mxu0 0.0
  %3617 = vmatmul.mubr.f32.gmra.mrb[0].mxu0 %v1331
  %v3618 = vpop.f32.mrb[0].mxu0
  %v3619 = vadd.f32 0.0, %v3618
  %v3620 = vpop.f32.mrb[0].mxu0
  %3621 = vmatprep.mubr.f32.mxu0 0.0
  %3622 = vmatmul.mubr.f32.gmra.mrb[0].mxu0 %v1334
  %v3623 = vpop.f32.mrb[0].mxu0
  %v3624 = vadd.f32 0.0, %v3623
  %v3625 = vpop.f32.mrb[0].mxu0
  %3626 = vmatprep.mubr.f32.mxu0 0.0
  %3627 = vmatmul.mubr.f32.gmra.mrb[0].mxu0 %v1337
  %v3628 = vpop.f32.mrb[0].mxu0
  %v3629 = vadd.f32 0.0, %v3628
  %v3630 = vpop.f32.mrb[0].mxu0
  %3631 = vmatprep.mubr.f32.mxu0 0.0
  %3632 = vmatmul.mubr.f32.gmra.mrb[0].mxu0 %v1340
  %v3633 = vpop.f32.mrb[0].mxu0
  %v3634 = vadd.f32 0.0, %v3633
  %v3635 = vpop.f32.mrb[0].mxu0
  %3636 = vmatprep.mubr.f32.mxu0 0.0
  %3637 = vmatmul.mubr.f32.gmra.mrb[0].mxu0 %v1343
  %v3638 = vpop.f32.mrb[0].mxu0
  %v3639 = vadd.f32 0.0, %v3638
  %v3640 = vpop.f32.mrb[0].mxu0
  %3641 = vmatprep.mubr.f32.mxu0 0.0
  %3642 = vmatmul.mubr.f32.gmra.mrb[0].mxu0 %v1346
  %v3643 = vpop.f32.mrb[0].mxu0
  %v3644 = vadd.f32 0.0, %v3643
  %v3645 = vpop.f32.mrb[0].mxu0
  %3646 = vmatprep.mubr.f32.mxu0 0.0
  %3647 = vmatmul.mubr.f32.gmra.mrb[0].mxu0 %v1349
  %v3648 = vpop.f32.mrb[0].mxu0
  %v3649 = vadd.f32 0.0, %v3648
  %v3650 = vpop.f32.mrb[0].mxu0
  %3651 = vmatprep.mubr.f32.mxu0 0.0
  %3652 = vmatmul.mubr.f32.gmra.mrb[0].mxu0 %v1352
  %v3653 = vpop.f32.mrb[0].mxu0
  %v3654 = vadd.f32 0.0, %v3653
  %v3655 = vpop.f32.mrb[0].mxu0
  %3656 = vmatprep.mubr.f32.mxu0 0.0
  %3657 = vmatmul.mubr.f32.gmra.mrb[0].mxu0 %v1355
  %v3658 = vpop.f32.mrb[0].mxu0
  %v3659 = vadd.f32 0.0, %v3658
  %v3660 = vpop.f32.mrb[0].mxu0
  %3661 = vmatprep.mubr.f32.mxu0 0.0
  %3662 = vmatmul.mubr.f32.gmra.mrb[0].mxu0 %v1358
  %v3663 = vpop.f32.mrb[0].mxu0
  %v3664 = vadd.f32 0.0, %v3663
  %v3665 = vpop.f32.mrb[0].mxu0
  %3666 = vmatprep.mubr.f32.mxu0 0.0
  %3667 = vmatmul.mubr.f32.gmra.mrb[0].mxu0 %v1361
  %v3668 = vpop.f32.mrb[0].mxu0
  %v3669 = vadd.f32 0.0, %v3668
  %v3670 = vpop.f32.mrb[0].mxu0
  %3671 = vmatprep.mubr.f32.mxu0 0.0
  %3672 = vmatmul.mubr.f32.gmra.mrb[0].mxu0 %v1364
  %v3673 = vpop.f32.mrb[0].mxu0
  %v3674 = vadd.f32 0.0, %v3673
  %v3675 = vpop.f32.mrb[0].mxu0
  %3676 = vmatprep.mubr.f32.mxu0 0.0
  %3677 = vmatmul.mubr.f32.gmra.mrb[0].mxu0 %v1367
  %v3678 = vpop.f32.mrb[0].mxu0
  %v3679 = vadd.f32 0.0, %v3678
  %v3680 = vpop.f32.mrb[0].mxu0
  %3681 = vmatprep.mubr.f32.mxu0 0.0
  %3682 = vmatmul.mubr.f32.gmra.mrb[0].mxu0 %v1370
  %v3683 = vpop.f32.mrb[0].mxu0
  %v3684 = vadd.f32 0.0, %v3683
  %v3685 = vpop.f32.mrb[0].mxu0
  %3686 = vmatprep.mubr.f32.mxu0 0.0
  %3687 = vmatmul.mubr.f32.gmra.mrb[0].mxu0 %v1373
  %v3688 = vpop.f32.mrb[0].mxu0
  %v3689 = vadd.f32 0.0, %v3688
  %v3690 = vpop.f32.mrb[0].mxu0
  %3691 = vmatprep.mubr.f32.mxu0 0.0
  %3692 = vmatmul.mubr.f32.gmra.mrb[0].mxu0 %v1376
  %v3693 = vpop.f32.mrb[0].mxu0
  %v3694 = vadd.f32 0.0, %v3693
  %v3695 = vpop.f32.mrb[0].mxu0
  %3696 = vmatprep.mubr.f32.mxu0 0.0
  %3697 = vmatmul.mubr.f32.gmra.mrb[0].mxu0 %v1379
  %v3698 = vpop.f32.mrb[0].mxu0
  %v3699 = vadd.f32 0.0, %v3698
  %v3700 = vpop.f32.mrb[0].mxu0
  %3701 = vmatprep.mubr.f32.mxu0 0.0
  %3702 = vmatmul.mubr.f32.gmra.mrb[0].mxu0 %v1382
  %v3703 = vpop.f32.mrb[0].mxu0
  %v3704 = vadd.f32 0.0, %v3703
  %v3705 = vpop.f32.mrb[0].mxu0
  %3706 = vmatprep.mubr.f32.mxu0 0.0
  %3707 = vmatmul.mubr.f32.gmra.mrb[0].mxu0 %v1385
  %v3708 = vpop.f32.mrb[0].mxu0
  %v3709 = vadd.f32 0.0, %v3708
  %v3710 = vpop.f32.mrb[0].mxu0
  %3711 = vmatprep.mubr.f32.mxu0 0.0
  %3712 = vmatmul.mubr.f32.gmra.mrb[0].mxu0 %v1388
  %v3713 = vpop.f32.mrb[0].mxu0
  %v3714 = vadd.f32 0.0, %v3713
  %v3715 = vpop.f32.mrb[0].mxu0
  %3716 = vmatprep.mubr.f32.mxu0 0.0
  %3717 = vmatmul.mubr.f32.gmra.mrb[0].mxu0 %v1391
  %v3718 = vpop.f32.mrb[0].mxu0
  %v3719 = vadd.f32 0.0, %v3718
  %v3720 = vpop.f32.mrb[0].mxu0
  %3721 = vmatprep.mubr.f32.mxu0 0.0
  %3722 = vmatmul.mubr.f32.gmra.mrb[0].mxu0 %v1394
  %v3723 = vpop.f32.mrb[0].mxu0
  %v3724 = vadd.f32 0.0, %v3723
  %v3725 = vpop.f32.mrb[0].mxu0
  %3726 = vmatprep.mubr.f32.mxu0 0.0
  %3727 = vmatmul.mubr.f32.gmra.mrb[0].mxu0 %v1397
  %v3728 = vpop.f32.mrb[0].mxu0
  %v3729 = vadd.f32 0.0, %v3728
  %v3730 = vpop.f32.mrb[0].mxu0
  %3731 = vmatprep.mubr.f32.mxu0 0.0
  %3732 = vmatmul.mubr.f32.gmra.mrb[0].mxu0 %v1400
  %v3733 = vpop.f32.mrb[0].mxu0
  %v3734 = vadd.f32 0.0, %v3733
  %v3735 = vpop.f32.mrb[0].mxu0
  %3736 = vmatprep.mubr.f32.mxu0 0.0
  %3737 = vmatmul.mubr.f32.gmra.mrb[0].mxu0 %v1403
  %v3738 = vpop.f32.mrb[0].mxu0
  %v3739 = vadd.f32 0.0, %v3738
  %v3740 = vpop.f32.mrb[0].mxu0
  %3741 = vmatprep.mubr.f32.mxu0 0.0
  %3742 = vmatmul.mubr.f32.gmra.mrb[0].mxu0 %v1406
  %v3743 = vpop.f32.mrb[0].mxu0
  %v3744 = vadd.f32 0.0, %v3743
  %v3745 = vpop.f32.mrb[0].mxu0
  %3746 = vmatprep.mubr.f32.mxu0 0.0
  %3747 = vmatmul.mubr.f32.gmra.mrb[0].mxu0 %v1409
  %v3748 = vpop.f32.mrb[0].mxu0
  %v3749 = vadd.f32 0.0, %v3748
  %v3750 = vpop.f32.mrb[0].mxu0
  %3751 = vmatprep.mubr.f32.mxu0 0.0
  %3752 = vmatmul.mubr.f32.gmra.mrb[0].mxu0 %v1412
  %v3753 = vpop.f32.mrb[0].mxu0
  %v3754 = vadd.f32 0.0, %v3753
  %v3755 = vpop.f32.mrb[0].mxu0
  %3756 = vmatprep.mubr.f32.mxu0 0.0
  %3757 = vmatmul.mubr.f32.gmra.mrb[0].mxu0 %v1415
  %v3758 = vpop.f32.mrb[0].mxu0
  %v3759 = vadd.f32 0.0, %v3758
  %v3760 = vpop.f32.mrb[0].mxu0
  %3761 = vmatprep.mubr.f32.mxu0 0.0
  %3762 = vmatmul.mubr.f32.gmra.mrb[0].mxu0 %v1418
  %v3763 = vpop.f32.mrb[0].mxu0
  %v3764 = vadd.f32 0.0, %v3763
  %v3765 = vpop.f32.mrb[0].mxu0
  %3766 = vmatprep.mubr.f32.mxu0 0.0
  %3767 = vmatmul.mubr.f32.gmra.mrb[0].mxu0 %v1421
  %v3768 = vpop.f32.mrb[0].mxu0
  %v3769 = vadd.f32 0.0, %v3768
  %v3770 = vpop.f32.mrb[0].mxu0
  %3771 = vmatprep.mubr.f32.mxu0 0.0
  %3772 = vmatmul.mubr.f32.gmra.mrb[0].mxu0 %v1424
  %v3773 = vpop.f32.mrb[0].mxu0
  %v3774 = vadd.f32 0.0, %v3773
  %v3775 = vpop.f32.mrb[0].mxu0
  %3776 = vmatprep.mubr.f32.mxu0 0.0
  %3777 = vmatmul.mubr.f32.gmra.mrb[0].mxu0 %v1427
  %v3778 = vpop.f32.mrb[0].mxu0
  %v3779 = vadd.f32 0.0, %v3778
  %v3780 = vpop.f32.mrb[0].mxu0
  %3781 = vmatprep.mubr.f32.mxu0 0.0
  %3782 = vmatmul.mubr.f32.gmra.mrb[0].mxu0 %v1430
  %v3783 = vpop.f32.mrb[0].mxu0
  %v3784 = vadd.f32 0.0, %v3783
  %v3785 = vpop.f32.mrb[0].mxu0
  %3786 = vmatprep.mubr.f32.mxu0 0.0
  %3787 = vmatmul.mubr.f32.gmra.mrb[0].mxu0 %v1433
  %v3788 = vpop.f32.mrb[0].mxu0
  %v3789 = vadd.f32 0.0, %v3788
  %v3790 = vpop.f32.mrb[0].mxu0
  %3791 = vmatprep.mubr.f32.mxu0 0.0
  %3792 = vmatmul.mubr.f32.gmra.mrb[0].mxu0 %v1436
  %v3793 = vpop.f32.mrb[0].mxu0
  %v3794 = vadd.f32 0.0, %v3793
  %v3795 = vpop.f32.mrb[0].mxu0
  %3796 = vmatprep.mubr.f32.mxu0 0.0
  %3797 = vmatmul.mubr.f32.gmra.mrb[0].mxu0 %v1439
  %v3798 = vpop.f32.mrb[0].mxu0
  %v3799 = vadd.f32 0.0, %v3798
  %v3800 = vpop.f32.mrb[0].mxu0
  %3801 = vmatprep.mubr.f32.mxu0 0.0
  %3802 = vmatmul.mubr.f32.gmra.mrb[0].mxu0 %v1442
  %v3803 = vpop.f32.mrb[0].mxu0
  %v3804 = vadd.f32 0.0, %v3803
  %v3805 = vpop.f32.mrb[0].mxu0
  %3806 = vmatprep.mubr.f32.mxu0 0.0
  %3807 = vmatmul.mubr.f32.gmra.mrb[0].mxu0 %v1445
  %v3808 = vpop.f32.mrb[0].mxu0
  %v3809 = vadd.f32 0.0, %v3808
  %v3810 = vpop.f32.mrb[0].mxu0
  %3811 = vmatprep.mubr.f32.mxu0 0.0
  %3812 = vmatmul.mubr.f32.gmra.mrb[0].mxu0 %v1448
  %v3813 = vpop.f32.mrb[0].mxu0
  %v3814 = vadd.f32 0.0, %v3813
  %v3815 = vpop.f32.mrb[0].mxu0
  %3816 = vmatprep.mubr.f32.mxu0 0.0
  %3817 = vmatmul.mubr.f32.gmra.mrb[0].mxu0 %v1451
  %v3818 = vpop.f32.mrb[0].mxu0
  %v3819 = vadd.f32 0.0, %v3818
  %v3820 = vpop.f32.mrb[0].mxu0
  %3821 = vmatprep.mubr.f32.mxu0 0.0
  %3822 = vmatmul.mubr.f32.gmra.mrb[0].mxu0 %v1454
  %v3823 = vpop.f32.mrb[0].mxu0
  %v3824 = vadd.f32 0.0, %v3823
  %v3825 = vpop.f32.mrb[0].mxu0
  %3826 = vmatprep.mubr.f32.mxu0 0.0
  %3827 = vmatmul.mubr.f32.gmra.mrb[0].mxu0 %v1457
  %v3828 = vpop.f32.mrb[0].mxu0
  %v3829 = vadd.f32 0.0, %v3828
  %v3830 = vpop.f32.mrb[0].mxu0
  %3831 = vmatprep.mubr.f32.mxu0 0.0
  %3832 = vmatmul.mubr.f32.gmra.mrb[0].mxu0 %v1460
  %v3833 = vpop.f32.mrb[0].mxu0
  %v3834 = vadd.f32 0.0, %v3833
  %v3835 = vpop.f32.mrb[0].mxu0
  %3836 = vmatprep.mubr.f32.mxu0 0.0
  %3837 = vmatmul.mubr.f32.gmra.mrb[0].mxu0 %v1463
  %v3838 = vpop.f32.mrb[0].mxu0
  %v3839 = vadd.f32 0.0, %v3838
  %v3840 = vpop.f32.mrb[0].mxu0
  %3841 = vmatprep.mubr.f32.mxu0 0.0
  %3842 = vmatmul.mubr.f32.gmra.mrb[0].mxu0 %v1466
  %v3843 = vpop.f32.mrb[0].mxu0
  %v3844 = vadd.f32 0.0, %v3843
  %v3845 = vpop.f32.mrb[0].mxu0
  %3846 = vmatprep.mubr.f32.mxu0 0.0
  %3847 = vmatmul.mubr.f32.gmra.mrb[0].mxu0 %v1469
  %v3848 = vpop.f32.mrb[0].mxu0
  %v3849 = vadd.f32 0.0, %v3848
  %v3850 = vpop.f32.mrb[0].mxu0
  %3851 = vmatprep.mubr.f32.mxu0 0.0
  %3852 = vmatmul.mubr.f32.gmra.mrb[0].mxu0 %v1472
  %v3853 = vpop.f32.mrb[0].mxu0
  %v3854 = vadd.f32 0.0, %v3853
  %v3855 = vpop.f32.mrb[0].mxu0
  %3856 = vmatprep.mubr.f32.mxu0 0.0
  %3857 = vmatmul.mubr.f32.gmra.mrb[0].mxu0 %v1475
  %v3858 = vpop.f32.mrb[0].mxu0
  %v3859 = vadd.f32 0.0, %v3858
  %v3860 = vpop.f32.mrb[0].mxu0
  %3861 = vmatprep.mubr.f32.mxu0 0.0
  %3862 = vmatmul.mubr.f32.gmra.mrb[0].mxu0 %v1478
  %v3863 = vpop.f32.mrb[0].mxu0
  %v3864 = vadd.f32 0.0, %v3863
  %v3865 = vpop.f32.mrb[0].mxu0
  %3866 = vmatprep.mubr.f32.mxu0 0.0
  %3867 = vmatmul.mubr.f32.gmra.mrb[0].mxu0 %v1481
  %v3868 = vpop.f32.mrb[0].mxu0
  %v3869 = vadd.f32 0.0, %v3868
  %v3870 = vpop.f32.mrb[0].mxu0
  %3871 = vmatprep.mubr.f32.mxu0 0.0
  %3872 = vmatmul.mubr.f32.gmra.mrb[0].mxu0 %v1484
  %v3873 = vpop.f32.mrb[0].mxu0
  %v3874 = vadd.f32 0.0, %v3873
  %v3875 = vpop.f32.mrb[0].mxu0
  %3876 = vmatprep.mubr.f32.mxu0 0.0
  %3877 = vmatmul.mubr.f32.gmra.mrb[0].mxu0 %v1487
  %v3878 = vpop.f32.mrb[0].mxu0
  %v3879 = vadd.f32 0.0, %v3878
  %v3880 = vpop.f32.mrb[0].mxu0
  %3881 = vmatprep.mubr.f32.mxu0 0.0
  %3882 = vmatmul.mubr.f32.gmra.mrb[0].mxu0 %v1490
  %v3883 = vpop.f32.mrb[0].mxu0
  %v3884 = vadd.f32 0.0, %v3883
  %v3885 = vpop.f32.mrb[0].mxu0
  %3886 = vmatprep.mubr.f32.mxu0 0.0
  %3887 = vmatmul.mubr.f32.gmra.mrb[0].mxu0 %v1493
  %v3888 = vpop.f32.mrb[0].mxu0
  %v3889 = vadd.f32 0.0, %v3888
  %v3890 = vpop.f32.mrb[0].mxu0
  %3891 = vmatprep.mubr.f32.mxu0 0.0
  %3892 = vmatmul.mubr.f32.gmra.mrb[0].mxu0 %v1496
  %v3893 = vpop.f32.mrb[0].mxu0
  %v3894 = vadd.f32 0.0, %v3893
  %v3895 = vpop.f32.mrb[0].mxu0
  %3896 = vmatprep.mubr.f32.mxu0 0.0
  %3897 = vmatmul.mubr.f32.gmra.mrb[0].mxu0 %v1499
  %v3898 = vpop.f32.mrb[0].mxu0
  %v3899 = vadd.f32 0.0, %v3898
  %v3900 = vpop.f32.mrb[0].mxu0
  %3901 = vmatprep.mubr.f32.mxu0 0.0
  %3902 = vmatmul.mubr.f32.gmra.mrb[0].mxu0 %v1502
  %v3903 = vpop.f32.mrb[0].mxu0
  %v3904 = vadd.f32 0.0, %v3903
  %v3905 = vpop.f32.mrb[0].mxu0
  %3906 = vmatprep.mubr.f32.mxu0 0.0
  %3907 = vmatmul.mubr.f32.gmra.mrb[0].mxu0 %v1505
  %v3908 = vpop.f32.mrb[0].mxu0
  %v3909 = vadd.f32 0.0, %v3908
  %v3910 = vpop.f32.mrb[0].mxu0
  %3911 = vmatprep.mubr.f32.mxu0 0.0
  %3912 = vmatmul.mubr.f32.gmra.mrb[0].mxu0 %v1508
  %v3913 = vpop.f32.mrb[0].mxu0
  %v3914 = vadd.f32 0.0, %v3913
  %v3915 = vpop.f32.mrb[0].mxu0
  %3916 = vmatprep.mubr.f32.mxu0 0.0
  %3917 = vmatmul.mubr.f32.gmra.mrb[0].mxu0 %v1511
  %v3918 = vpop.f32.mrb[0].mxu0
  %v3919 = vadd.f32 0.0, %v3918
  %v3920 = vpop.f32.mrb[0].mxu0
  %3921 = vmatprep.mubr.f32.mxu0 0.0
  %3922 = vmatmul.mubr.f32.gmra.mrb[0].mxu0 %v1514
  %v3923 = vpop.f32.mrb[0].mxu0
  %v3924 = vadd.f32 0.0, %v3923
  %v3925 = vpop.f32.mrb[0].mxu0
  %3926 = vmatprep.mubr.f32.mxu0 0.0
  %3927 = vmatmul.mubr.f32.gmra.mrb[0].mxu0 %v1517
  %v3928 = vpop.f32.mrb[0].mxu0
  %v3929 = vadd.f32 0.0, %v3928
  %v3930 = vpop.f32.mrb[0].mxu0
  %3931 = vmatprep.mubr.f32.mxu0 0.0
  %3932 = vmatmul.mubr.f32.gmra.mrb[0].mxu0 %v1520
  %v3933 = vpop.f32.mrb[0].mxu0
  %v3934 = vadd.f32 0.0, %v3933
  %v3935 = vpop.f32.mrb[0].mxu0
  %3936 = vmatprep.mubr.f32.mxu0 0.0
  %3937 = vmatmul.mubr.f32.gmra.mrb[0].mxu0 %v1523
  %v3938 = vpop.f32.mrb[0].mxu0
  %v3939 = vadd.f32 0.0, %v3938
  %v3940 = vpop.f32.mrb[0].mxu0
  %3941 = vmatprep.mubr.f32.mxu0 0.0
  %3942 = vmatmul.mubr.f32.gmra.mrb[0].mxu0 %v1526
  %v3943 = vpop.f32.mrb[0].mxu0
  %v3944 = vadd.f32 0.0, %v3943
  %v3945 = vpop.f32.mrb[0].mxu0
  %3946 = vmatprep.mubr.f32.mxu0 0.0
  %3947 = vmatmul.mubr.f32.gmra.mrb[0].mxu0 %v1529
  %v3948 = vpop.f32.mrb[0].mxu0
  %v3949 = vadd.f32 0.0, %v3948
  %v3950 = vpop.f32.mrb[0].mxu0
  %3951 = vmatprep.mubr.f32.mxu0 0.0
  %3952 = vmatmul.mubr.f32.gmra.mrb[0].mxu0 %v1532
  %v3953 = vpop.f32.mrb[0].mxu0
  %v3954 = vadd.f32 0.0, %v3953
  %v3955 = vpop.f32.mrb[0].mxu0
  %3956 = vmatprep.mubr.f32.mxu0 0.0
  %3957 = vmatmul.mubr.f32.gmra.mrb[0].mxu0 %v1535
  %v3958 = vpop.f32.mrb[0].mxu0
  %v3959 = vadd.f32 0.0, %v3958
  %v3960 = vpop.f32.mrb[0].mxu0
  %3961 = vmatprep.mubr.f32.mxu0 0.0
  %3962 = vmatmul.mubr.f32.gmra.mrb[0].mxu0 %v1538
  %v3963 = vpop.f32.mrb[0].mxu0
  %v3964 = vadd.f32 0.0, %v3963
  %v3965 = vpop.f32.mrb[0].mxu0
  %3966 = vmatprep.mubr.f32.mxu0 0.0
  %3967 = vmatmul.mubr.f32.gmra.mrb[0].mxu0 %v1541
  %v3968 = vpop.f32.mrb[0].mxu0
  %v3969 = vadd.f32 0.0, %v3968
  %v3970 = vpop.f32.mrb[0].mxu0
  %3971 = vmatprep.mubr.f32.mxu0 0.0
  %3972 = vmatmul.mubr.f32.gmra.mrb[0].mxu0 %v1544
  %v3973 = vpop.f32.mrb[0].mxu0
  %v3974 = vadd.f32 0.0, %v3973
  %v3975 = vpop.f32.mrb[0].mxu0
  %3976 = vmatprep.mubr.f32.mxu0 0.0
  %3977 = vmatmul.mubr.f32.gmra.mrb[0].mxu0 %v1547
  %v3978 = vpop.f32.mrb[0].mxu0
  %v3979 = vadd.f32 0.0, %v3978
  %v3980 = vpop.f32.mrb[0].mxu0
  %3981 = vmatprep.mubr.f32.mxu0 0.0
  %3982 = vmatmul.mubr.f32.gmra.mrb[0].mxu0 %v1550
  %v3983 = vpop.f32.mrb[0].mxu0
  %v3984 = vadd.f32 0.0, %v3983
  %v3985 = vpop.f32.mrb[0].mxu0
  %3986 = vmatprep.mubr.f32.mxu0 0.0
  %3987 = vmatmul.mubr.f32.gmra.mrb[0].mxu0 %v1553
  %v3988 = vpop.f32.mrb[0].mxu0
  %v3989 = vadd.f32 0.0, %v3988
  %v3990 = vpop.f32.mrb[0].mxu0
  %3991 = vmatprep.mubr.f32.mxu0 0.0
  %3992 = vmatmul.mubr.f32.gmra.mrb[0].mxu0 %v1556
  %v3993 = vpop.f32.mrb[0].mxu0
  %v3994 = vadd.f32 0.0, %v3993
  %v3995 = vpop.f32.mrb[0].mxu0
  %3996 = vmatprep.mubr.f32.mxu0 0.0
  %3997 = vmatmul.mubr.f32.gmra.mrb[0].mxu0 %v1559
  %v3998 = vpop.f32.mrb[0].mxu0
  %v3999 = vadd.f32 0.0, %v3998
  %v4000 = vpop.f32.mrb[0].mxu0
  %4001 = vmatprep.mubr.f32.mxu0 0.0
  %4002 = vmatmul.mubr.f32.gmra.mrb[0].mxu0 %v1562
  %v4003 = vpop.f32.mrb[0].mxu0
  %v4004 = vadd.f32 0.0, %v4003
  %v4005 = vpop.f32.mrb[0].mxu0
  %4006 = vmatprep.mubr.f32.mxu0 0.0
  %4007 = vmatmul.mubr.f32.gmra.mrb[0].mxu0 %v1565
  %v4008 = vpop.f32.mrb[0].mxu0
  %v4009 = vadd.f32 0.0, %v4008
  %v4010 = vpop.f32.mrb[0].mxu0
  %4011 = vmatprep.mubr.f32.mxu0 0.0
  %4012 = vmatmul.mubr.f32.gmra.mrb[0].mxu0 %v1568
  %v4013 = vpop.f32.mrb[0].mxu0
  %v4014 = vadd.f32 0.0, %v4013
  %v4015 = vpop.f32.mrb[0].mxu0
  %4016 = vmatprep.mubr.f32.mxu0 0.0
  %4017 = vmatmul.mubr.f32.gmra.mrb[0].mxu0 %v1571
  %v4018 = vpop.f32.mrb[0].mxu0
  %v4019 = vadd.f32 0.0, %v4018
  %v4020 = vpop.f32.mrb[0].mxu0
  %4021 = vmatprep.mubr.f32.mxu0 0.0
  %4022 = vmatmul.mubr.f32.gmra.mrb[0].mxu0 %v1574
  %v4023 = vpop.f32.mrb[0].mxu0
  %v4024 = vadd.f32 0.0, %v4023
  %v4025 = vpop.f32.mrb[0].mxu0
  %4026 = vmatprep.mubr.f32.mxu0 0.0
  %4027 = vmatmul.mubr.f32.gmra.mrb[0].mxu0 %v1577
  %v4028 = vpop.f32.mrb[0].mxu0
  %v4029 = vadd.f32 0.0, %v4028
  %v4030 = vpop.f32.mrb[0].mxu0
  %4031 = vmatprep.mubr.f32.mxu0 0.0
  %4032 = vmatmul.mubr.f32.gmra.mrb[0].mxu0 %v1580
  %v4033 = vpop.f32.mrb[0].mxu0
  %v4034 = vadd.f32 0.0, %v4033
  %v4035 = vpop.f32.mrb[0].mxu0
  %4036 = vmatprep.mubr.f32.mxu0 0.0
  %4037 = vmatmul.mubr.f32.gmra.mrb[0].mxu0 %v1583
  %v4038 = vpop.f32.mrb[0].mxu0
  %v4039 = vadd.f32 0.0, %v4038
  %v4040 = vpop.f32.mrb[0].mxu0
  %4041 = vmatprep.mubr.f32.mxu0 0.0
  %4042 = vmatmul.mubr.f32.gmra.mrb[0].mxu0 %v1586
  %v4043 = vpop.f32.mrb[0].mxu0
  %v4044 = vadd.f32 0.0, %v4043
  %v4045 = vpop.f32.mrb[0].mxu0
  %4046 = vmatprep.mubr.f32.mxu0 0.0
  %4047 = vmatmul.mubr.f32.gmra.mrb[0].mxu0 %v1589
  %v4048 = vpop.f32.mrb[0].mxu0
  %v4049 = vadd.f32 0.0, %v4048
  %v4050 = vpop.f32.mrb[0].mxu0
  %4051 = vmatprep.mubr.f32.mxu0 0.0
  %4052 = vmatmul.mubr.f32.gmra.mrb[0].mxu0 %v1592
  %v4053 = vpop.f32.mrb[0].mxu0
  %v4054 = vadd.f32 0.0, %v4053
  %v4055 = vpop.f32.mrb[0].mxu0
  %4056 = vmatprep.mubr.f32.mxu0 0.0
  %4057 = vmatmul.mubr.f32.gmra.mrb[0].mxu0 %v1595
  %v4058 = vpop.f32.mrb[0].mxu0
  %v4059 = vadd.f32 0.0, %v4058
  %v4060 = vpop.f32.mrb[0].mxu0
  %4061 = vmatprep.mubr.f32.mxu0 0.0
  %4062 = vmatmul.mubr.f32.gmra.mrb[0].mxu0 %v1598
  %v4063 = vpop.f32.mrb[0].mxu0
  %v4064 = vadd.f32 0.0, %v4063
  %v4065 = vpop.f32.mrb[0].mxu0
  %4066 = vmatprep.mubr.f32.mxu0 0.0
  %4067 = vmatmul.mubr.f32.gmra.mrb[0].mxu0 %v1601
  %v4068 = vpop.f32.mrb[0].mxu0
  %v4069 = vadd.f32 0.0, %v4068
  %v4070 = vpop.f32.mrb[0].mxu0
  %4071 = vmatprep.mubr.f32.mxu0 0.0
  %4072 = vmatmul.mubr.f32.gmra.mrb[0].mxu0 %v1604
  %v4073 = vpop.f32.mrb[0].mxu0
  %v4074 = vadd.f32 0.0, %v4073
  %v4075 = vpop.f32.mrb[0].mxu0
  %4076 = vmatprep.mubr.f32.mxu0 0.0
  %4077 = vmatmul.mubr.f32.gmra.mrb[0].mxu0 %v1607
  %v4078 = vpop.f32.mrb[0].mxu0
  %v4079 = vadd.f32 0.0, %v4078
  %v4080 = vpop.f32.mrb[0].mxu0
  %4081 = vmatprep.mubr.f32.mxu0 0.0
  %4082 = vmatmul.mubr.f32.gmra.mrb[0].mxu0 %v1610
  %v4083 = vpop.f32.mrb[0].mxu0
  %v4084 = vadd.f32 0.0, %v4083
  %v4085 = vpop.f32.mrb[0].mxu0
  %4086 = vmatprep.mubr.f32.mxu0 0.0
  %4087 = vmatmul.mubr.f32.gmra.mrb[0].mxu0 %v1613
  %v4088 = vpop.f32.mrb[0].mxu0
  %v4089 = vadd.f32 0.0, %v4088
  %v4090 = vpop.f32.mrb[0].mxu0
  %4091 = vmatprep.mubr.f32.mxu0 0.0
  %4092 = vmatmul.mubr.f32.gmra.mrb[0].mxu0 %v1616
  %v4093 = vpop.f32.mrb[0].mxu0
  %v4094 = vadd.f32 0.0, %v4093
  %v4095 = vpop.f32.mrb[0].mxu0
  %4096 = vmatprep.mubr.f32.mxu0 0.0
  %4097 = vmatmul.mubr.f32.gmra.mrb[0].mxu0 %v1619
  %v4098 = vpop.f32.mrb[0].mxu0
  %v4099 = vadd.f32 0.0, %v4098
  %v4100 = vpop.f32.mrb[0].mxu0
  %4101 = vmatprep.mubr.f32.mxu0 0.0
  %4102 = vmatmul.mubr.f32.gmra.mrb[0].mxu0 %v1622
  %v4103 = vpop.f32.mrb[0].mxu0
  %v4104 = vadd.f32 0.0, %v4103
  %v4105 = vpop.f32.mrb[0].mxu0
  %4106 = vmatprep.mubr.f32.mxu0 0.0
  %4107 = vmatmul.mubr.f32.gmra.mrb[0].mxu0 %v1625
  %v4108 = vpop.f32.mrb[0].mxu0
  %v4109 = vadd.f32 0.0, %v4108
  %v4110 = vpop.f32.mrb[0].mxu0
  %4111 = vmatprep.mubr.f32.mxu0 0.0
  %4112 = vmatmul.mubr.f32.gmra.mrb[0].mxu0 %v1628
  %v4113 = vpop.f32.mrb[0].mxu0
  %v4114 = vadd.f32 0.0, %v4113
  %v4115 = vpop.f32.mrb[0].mxu0
  %4116 = vmatprep.mubr.f32.mxu0 0.0
  %4117 = vmatmul.mubr.f32.gmra.mrb[0].mxu0 %v1631
  %v4118 = vpop.f32.mrb[0].mxu0
  %v4119 = vadd.f32 0.0, %v4118
  %v4120 = vpop.f32.mrb[0].mxu0
  %4121 = vmatprep.mubr.f32.mxu0 0.0
  %4122 = vmatmul.mubr.f32.gmra.mrb[0].mxu0 %v1634
  %v4123 = vpop.f32.mrb[0].mxu0
  %v4124 = vadd.f32 0.0, %v4123
  %v4125 = vpop.f32.mrb[0].mxu0
  %4126 = vmatprep.mubr.f32.mxu0 0.0
  %4127 = vmatmul.mubr.f32.gmra.mrb[0].mxu0 %v1637
  %v4128 = vpop.f32.mrb[0].mxu0
  %v4129 = vadd.f32 0.0, %v4128
  %v4130 = vpop.f32.mrb[0].mxu0
  %4131 = vmatprep.mubr.f32.mxu0 0.0
  %4132 = vmatmul.mubr.f32.gmra.mrb[0].mxu0 %v1640
  %v4133 = vpop.f32.mrb[0].mxu0
  %v4134 = vadd.f32 0.0, %v4133
  %v4135 = vpop.f32.mrb[0].mxu0
  %4136 = vmatprep.mubr.f32.mxu0 0.0
  %4137 = vmatmul.mubr.f32.gmra.mrb[0].mxu0 %v1643
  %v4138 = vpop.f32.mrb[0].mxu0
  %v4139 = vadd.f32 0.0, %v4138
  %v4140 = vpop.f32.mrb[0].mxu0
  %4141 = vmatprep.mubr.f32.mxu0 0.0
  %4142 = vmatmul.mubr.f32.gmra.mrb[0].mxu0 %v1646
  %v4143 = vpop.f32.mrb[0].mxu0
  %v4144 = vadd.f32 0.0, %v4143
  %v4145 = vpop.f32.mrb[0].mxu0
  %4146 = vmatprep.mubr.f32.mxu0 0.0
  %4147 = vmatmul.mubr.f32.gmra.mrb[0].mxu0 %v1649
  %v4148 = vpop.f32.mrb[0].mxu0
  %v4149 = vadd.f32 0.0, %v4148
  %v4150 = vpop.f32.mrb[0].mxu0
  %4151 = vmatprep.mubr.f32.mxu0 0.0
  %4152 = vmatmul.mubr.f32.gmra.mrb[0].mxu0 %v1652
  %v4153 = vpop.f32.mrb[0].mxu0
  %v4154 = vadd.f32 0.0, %v4153
  %v4155 = vpop.f32.mrb[0].mxu0
  %4156 = vmatprep.mubr.f32.mxu0 0.0
  %4157 = vmatmul.mubr.f32.gmra.mrb[0].mxu0 %v1655
  %v4158 = vpop.f32.mrb[0].mxu0
  %v4159 = vadd.f32 0.0, %v4158
  %v4160 = vpop.f32.mrb[0].mxu0
  %4161 = vmatprep.mubr.f32.mxu0 0.0
  %4162 = vmatmul.mubr.f32.gmra.mrb[0].mxu0 %v1658
  %v4163 = vpop.f32.mrb[0].mxu0
  %v4164 = vadd.f32 0.0, %v4163
  %v4165 = vpop.f32.mrb[0].mxu0
  %4166 = vmatprep.mubr.f32.mxu0 0.0
  %4167 = vmatmul.mubr.f32.gmra.mrb[0].mxu0 %v1661
  %v4168 = vpop.f32.mrb[0].mxu0
  %v4169 = vadd.f32 0.0, %v4168
  %v4170 = vpop.f32.mrb[0].mxu0
  %4171 = vmatprep.mubr.f32.mxu0 0.0
  %4172 = vmatmul.mubr.f32.gmra.mrb[0].mxu0 %v1664
  %v4173 = vpop.f32.mrb[0].mxu0
  %v4174 = vadd.f32 0.0, %v4173
  %v4175 = vpop.f32.mrb[0].mxu0
  %4176 = vmatprep.mubr.f32.mxu0 0.0
  %4177 = vmatmul.mubr.f32.gmra.mrb[0].mxu0 %v1667
  %v4178 = vpop.f32.mrb[0].mxu0
  %v4179 = vadd.f32 0.0, %v4178
  %v4180 = vpop.f32.mrb[0].mxu0
  %4181 = vmatprep.mubr.f32.mxu0 0.0
  %4182 = vmatmul.mubr.f32.gmra.mrb[0].mxu0 %v1670
  %v4183 = vpop.f32.mrb[0].mxu0
  %v4184 = vadd.f32 0.0, %v4183
  %v4185 = vpop.f32.mrb[0].mxu0
  %4186 = vmatprep.mubr.f32.mxu0 0.0
  %4187 = vmatmul.mubr.f32.gmra.mrb[0].mxu0 %v1673
  %v4188 = vpop.f32.mrb[0].mxu0
  %v4189 = vadd.f32 0.0, %v4188
  %v4190 = vpop.f32.mrb[0].mxu0
  %4191 = vmatprep.mubr.f32.mxu0 0.0
  %4192 = vmatmul.mubr.f32.gmra.mrb[0].mxu0 %v1676
  %v4193 = vpop.f32.mrb[0].mxu0
  %v4194 = vadd.f32 0.0, %v4193
  %v4195 = vpop.f32.mrb[0].mxu0
  %4196 = vmatprep.mubr.f32.mxu0 0.0
  %4197 = vmatmul.mubr.f32.gmra.mrb[0].mxu0 %v1679
  %v4198 = vpop.f32.mrb[0].mxu0
  %v4199 = vadd.f32 0.0, %v4198
  %v4200 = vpop.f32.mrb[0].mxu0
  %4201 = vmatprep.mubr.f32.mxu0 0.0
  %4202 = vmatmul.mubr.f32.gmra.mrb[0].mxu0 %v1682
  %v4203 = vpop.f32.mrb[0].mxu0
  %v4204 = vadd.f32 0.0, %v4203
  %v4205 = vpop.f32.mrb[0].mxu0
  %4206 = vmatprep.mubr.f32.mxu0 0.0
  %4207 = vmatmul.mubr.f32.gmra.mrb[0].mxu0 %v1685
  %v4208 = vpop.f32.mrb[0].mxu0
  %v4209 = vadd.f32 0.0, %v4208
  %v4210 = vpop.f32.mrb[0].mxu0
  %4211 = vmatprep.mubr.f32.mxu0 0.0
  %4212 = vmatmul.mubr.f32.gmra.mrb[0].mxu0 %v1688
  %v4213 = vpop.f32.mrb[0].mxu0
  %v4214 = vadd.f32 0.0, %v4213
  %v4215 = vpop.f32.mrb[0].mxu0
  %4216 = vmatprep.mubr.f32.mxu0 0.0
  %4217 = vmatmul.mubr.f32.gmra.mrb[0].mxu0 %v1691
  %v4218 = vpop.f32.mrb[0].mxu0
  %v4219 = vadd.f32 0.0, %v4218
  %v4220 = vpop.f32.mrb[0].mxu0
  %4221 = vmatprep.mubr.f32.mxu0 0.0
  %4222 = vmatmul.mubr.f32.gmra.mrb[0].mxu0 %v1694
  %v4223 = vpop.f32.mrb[0].mxu0
  %v4224 = vadd.f32 0.0, %v4223
  %v4225 = vpop.f32.mrb[0].mxu0
  %4226 = vmatprep.mubr.f32.mxu0 0.0
  %4227 = vmatmul.mubr.f32.gmra.mrb[0].mxu0 %v1697
  %v4228 = vpop.f32.mrb[0].mxu0
  %v4229 = vadd.f32 0.0, %v4228
  %v4230 = vpop.f32.mrb[0].mxu0
  %4231 = vmatprep.mubr.f32.mxu0 0.0
  %4232 = vmatmul.mubr.f32.gmra.mrb[0].mxu0 %v1700
  %v4233 = vpop.f32.mrb[0].mxu0
  %v4234 = vadd.f32 0.0, %v4233
  %v4235 = vpop.f32.mrb[0].mxu0
  %4236 = vmatprep.mubr.f32.mxu0 0.0
  %4237 = vmatmul.mubr.f32.gmra.mrb[0].mxu0 %v1703
  %v4238 = vpop.f32.mrb[0].mxu0
  %v4239 = vadd.f32 0.0, %v4238
  %v4240 = vpop.f32.mrb[0].mxu0
  %4241 = vmatprep.mubr.f32.mxu0 0.0
  %4242 = vmatmul.mubr.f32.gmra.mrb[0].mxu0 %v1706
  %v4243 = vpop.f32.mrb[0].mxu0
  %v4244 = vadd.f32 0.0, %v4243
  %v4245 = vpop.f32.mrb[0].mxu0
  %4246 = vmatprep.mubr.f32.mxu0 0.0
  %4247 = vmatmul.mubr.f32.gmra.mrb[0].mxu0 %v1709
  %v4248 = vpop.f32.mrb[0].mxu0
  %v4249 = vadd.f32 0.0, %v4248
  %v4250 = vpop.f32.mrb[0].mxu0
  %4251 = vmatprep.mubr.f32.mxu0 0.0
  %4252 = vmatmul.mubr.f32.gmra.mrb[0].mxu0 %v1712
  %v4253 = vpop.f32.mrb[0].mxu0
  %v4254 = vadd.f32 0.0, %v4253
  %v4255 = vpop.f32.mrb[0].mxu0
  %4256 = vmatprep.mubr.f32.mxu0 0.0
  %4257 = vmatmul.mubr.f32.gmra.mrb[0].mxu0 %v1715
  %v4258 = vpop.f32.mrb[0].mxu0
  %v4259 = vadd.f32 0.0, %v4258
  %v4260 = vpop.f32.mrb[0].mxu0
  %4261 = vmatprep.mubr.f32.mxu0 0.0
  %4262 = vmatmul.mubr.f32.gmra.mrb[0].mxu0 %v1718
  %v4263 = vpop.f32.mrb[0].mxu0
  %v4264 = vadd.f32 0.0, %v4263
  %v4265 = vpop.f32.mrb[0].mxu0
  %4266 = vmatprep.mubr.f32.mxu0 0.0
  %4267 = vmatmul.mubr.f32.gmra.mrb[0].mxu0 %v1721
  %v4268 = vpop.f32.mrb[0].mxu0
  %v4269 = vadd.f32 0.0, %v4268
  %v4270 = vpop.f32.mrb[0].mxu0
  %4271 = vmatprep.mubr.f32.mxu0 0.0
  %4272 = vmatmul.mubr.f32.gmra.mrb[0].mxu0 %v1724
  %v4273 = vpop.f32.mrb[0].mxu0
  %v4274 = vadd.f32 0.0, %v4273
  %v4275 = vpop.f32.mrb[0].mxu0
  %4276 = vmatprep.mubr.f32.mxu0 0.0
  %4277 = vmatmul.mubr.f32.gmra.mrb[0].mxu0 %v1727
  %v4278 = vpop.f32.mrb[0].mxu0
  %v4279 = vadd.f32 0.0, %v4278
  %v4280 = vpop.f32.mrb[0].mxu0
  %4281 = vmatprep.mubr.f32.mxu0 0.0
  %4282 = vmatmul.mubr.f32.gmra.mrb[0].mxu0 %v1730
  %v4283 = vpop.f32.mrb[0].mxu0
  %v4284 = vadd.f32 0.0, %v4283
  %v4285 = vpop.f32.mrb[0].mxu0
  %4286 = vmatprep.mubr.f32.mxu0 0.0
  %4287 = vmatmul.mubr.f32.gmra.mrb[0].mxu0 %v1733
  %v4288 = vpop.f32.mrb[0].mxu0
  %v4289 = vadd.f32 0.0, %v4288
  %v4290 = vpop.f32.mrb[0].mxu0
  %4291 = vmatprep.mubr.f32.mxu0 0.0
  %4292 = vmatmul.mubr.f32.gmra.mrb[0].mxu0 %v1736
  %v4293 = vpop.f32.mrb[0].mxu0
  %v4294 = vadd.f32 0.0, %v4293
  %v4295 = vpop.f32.mrb[0].mxu0
  %4296 = vmatprep.mubr.f32.mxu0 0.0
  %4297 = vmatmul.mubr.f32.gmra.mrb[0].mxu0 %v1739
  %v4298 = vpop.f32.mrb[0].mxu0
  %v4299 = vadd.f32 0.0, %v4298
  %v4300 = vpop.f32.mrb[0].mxu0
  %4301 = vmatprep.mubr.f32.mxu0 0.0
  %4302 = vmatmul.mubr.f32.gmra.mrb[0].mxu0 %v1742
  %v4303 = vpop.f32.mrb[0].mxu0
  %v4304 = vadd.f32 0.0, %v4303
  %v4305 = vpop.f32.mrb[0].mxu0
  %4306 = vmatprep.mubr.f32.mxu0 0.0
  %4307 = vmatmul.mubr.f32.gmra.mrb[0].mxu0 %v1745
  %v4308 = vpop.f32.mrb[0].mxu0
  %v4309 = vadd.f32 0.0, %v4308
  %v4310 = vpop.f32.mrb[0].mxu0
  %4311 = vmatprep.mubr.f32.mxu0 0.0
  %4312 = vmatmul.mubr.f32.gmra.mrb[0].mxu0 %v1748
  %v4313 = vpop.f32.mrb[0].mxu0
  %v4314 = vadd.f32 0.0, %v4313
  %v4315 = vpop.f32.mrb[0].mxu0
  %4316 = vmatprep.mubr.f32.mxu0 0.0
  %4317 = vmatmul.mubr.f32.gmra.mrb[0].mxu0 %v1751
  %v4318 = vpop.f32.mrb[0].mxu0
  %v4319 = vadd.f32 0.0, %v4318
  %v4320 = vpop.f32.mrb[0].mxu0
  %4321 = vmatprep.mubr.f32.mxu0 0.0
  %4322 = vmatmul.mubr.f32.gmra.mrb[0].mxu0 %v1754
  %v4323 = vpop.f32.mrb[0].mxu0
  %v4324 = vadd.f32 0.0, %v4323
  %v4325 = vpop.f32.mrb[0].mxu0
  %4326 = vmatprep.mubr.f32.mxu0 0.0
  %4327 = vmatmul.mubr.f32.gmra.mrb[0].mxu0 %v1757
  %v4328 = vpop.f32.mrb[0].mxu0
  %v4329 = vadd.f32 0.0, %v4328
  %v4330 = vpop.f32.mrb[0].mxu0
  %4331 = vmatprep.mubr.f32.mxu0 0.0
  %4332 = vmatmul.mubr.f32.gmra.mrb[0].mxu0 %v1760
  %v4333 = vpop.f32.mrb[0].mxu0
  %v4334 = vadd.f32 0.0, %v4333
  %v4335 = vpop.f32.mrb[0].mxu0
  %4336 = vmatprep.mubr.f32.mxu0 0.0
  %4337 = vmatmul.mubr.f32.gmra.mrb[0].mxu0 %v1763
  %v4338 = vpop.f32.mrb[0].mxu0
  %v4339 = vadd.f32 0.0, %v4338
  %v4340 = vpop.f32.mrb[0].mxu0
  %4341 = vmatprep.mubr.f32.mxu0 0.0
  %4342 = vmatmul.mubr.f32.gmra.mrb[0].mxu0 %v1766
  %v4343 = vpop.f32.mrb[0].mxu0
  %v4344 = vadd.f32 0.0, %v4343
  %v4345 = vpop.f32.mrb[0].mxu0
  %4346 = vmatprep.mubr.f32.mxu0 0.0
  %4347 = vmatmul.mubr.f32.gmra.mrb[0].mxu0 %v1769
  %v4348 = vpop.f32.mrb[0].mxu0
  %v4349 = vadd.f32 0.0, %v4348
  %v4350 = vpop.f32.mrb[0].mxu0
  %4351 = vmatprep.mubr.f32.mxu0 0.0
  %4352 = vmatmul.mubr.f32.gmra.mrb[0].mxu0 %v1772
  %v4353 = vpop.f32.mrb[0].mxu0
  %v4354 = vadd.f32 0.0, %v4353
  %v4355 = vpop.f32.mrb[0].mxu0
  %4356 = vmatprep.mubr.f32.mxu0 0.0
  %4357 = vmatmul.mubr.f32.gmra.mrb[0].mxu0 %v1775
  %v4358 = vpop.f32.mrb[0].mxu0
  %v4359 = vadd.f32 0.0, %v4358
  %v4360 = vpop.f32.mrb[0].mxu0
  %4361 = vmatprep.mubr.f32.mxu0 0.0
  %4362 = vmatmul.mubr.f32.gmra.mrb[0].mxu0 %v1778
  %v4363 = vpop.f32.mrb[0].mxu0
  %v4364 = vadd.f32 0.0, %v4363
  %v4365 = vpop.f32.mrb[0].mxu0
  %4366 = vmatprep.mubr.f32.mxu0 0.0
  %4367 = vmatmul.mubr.f32.gmra.mrb[0].mxu0 %v1781
  %v4368 = vpop.f32.mrb[0].mxu0
  %v4369 = vadd.f32 0.0, %v4368
  %v4370 = vpop.f32.mrb[0].mxu0
  %4371 = vmatprep.mubr.f32.mxu0 0.0
  %4372 = vmatmul.mubr.f32.gmra.mrb[0].mxu0 %v1784
  %v4373 = vpop.f32.mrb[0].mxu0
  %v4374 = vadd.f32 0.0, %v4373
  %v4375 = vpop.f32.mrb[0].mxu0
  %4376 = vmatprep.mubr.f32.mxu0 0.0
  %4377 = vmatmul.mubr.f32.gmra.mrb[0].mxu0 %v1787
  %v4378 = vpop.f32.mrb[0].mxu0
  %v4379 = vadd.f32 0.0, %v4378
  %v4380 = vpop.f32.mrb[0].mxu0
  %4381 = vmatprep.mubr.f32.mxu0 0.0
  %4382 = vmatmul.mubr.f32.gmra.mrb[0].mxu0 %v1790
  %v4383 = vpop.f32.mrb[0].mxu0
  %v4384 = vadd.f32 0.0, %v4383
  %v4385 = vpop.f32.mrb[0].mxu0
  %4386 = vmatprep.mubr.f32.mxu0 0.0
  %4387 = vmatmul.mubr.f32.gmra.mrb[0].mxu0 %v1793
  %v4388 = vpop.f32.mrb[0].mxu0
  %v4389 = vadd.f32 0.0, %v4388
  %v4390 = vpop.f32.mrb[0].mxu0
  %4391 = vmatprep.mubr.f32.mxu0 0.0
  %4392 = vmatmul.mubr.f32.gmra.mrb[0].mxu0 %v1796
  %v4393 = vpop.f32.mrb[0].mxu0
  %v4394 = vadd.f32 0.0, %v4393
  %v4395 = vpop.f32.mrb[0].mxu0
  %4396 = vmatprep.mubr.f32.mxu0 0.0
  %4397 = vmatmul.mubr.f32.gmra.mrb[0].mxu0 %v1799
  %v4398 = vpop.f32.mrb[0].mxu0
  %v4399 = vadd.f32 0.0, %v4398
  %v4400 = vpop.f32.mrb[0].mxu0
  %4401 = vmatprep.mubr.f32.mxu0 0.0
  %4402 = vmatmul.mubr.f32.gmra.mrb[0].mxu0 %v1802
  %v4403 = vpop.f32.mrb[0].mxu0
  %v4404 = vadd.f32 0.0, %v4403
  %v4405 = vpop.f32.mrb[0].mxu0
  %4406 = vmatprep.mubr.f32.mxu0 0.0
  %4407 = vmatmul.mubr.f32.gmra.mrb[0].mxu0 %v1805
  %v4408 = vpop.f32.mrb[0].mxu0
  %v4409 = vadd.f32 0.0, %v4408
  %v4410 = vpop.f32.mrb[0].mxu0
  %4411 = vmatprep.mubr.f32.mxu0 0.0
  %4412 = vmatmul.mubr.f32.gmra.mrb[0].mxu0 %v1808
  %v4413 = vpop.f32.mrb[0].mxu0
  %v4414 = vadd.f32 0.0, %v4413
  %v4415 = vpop.f32.mrb[0].mxu0
  %4416 = vmatprep.mubr.f32.mxu0 0.0
  %4417 = vmatmul.mubr.f32.gmra.mrb[0].mxu0 %v1811
  %v4418 = vpop.f32.mrb[0].mxu0
  %v4419 = vadd.f32 0.0, %v4418
  %v4420 = vpop.f32.mrb[0].mxu0
  %4421 = vmatprep.mubr.f32.mxu0 0.0
  %4422 = vmatmul.mubr.f32.gmra.mrb[0].mxu0 %v1814
  %v4423 = vpop.f32.mrb[0].mxu0
  %v4424 = vadd.f32 0.0, %v4423
  %v4425 = vpop.f32.mrb[0].mxu0
  %4426 = vmatprep.mubr.f32.mxu0 0.0
  %4427 = vmatmul.mubr.f32.gmra.mrb[0].mxu0 %v1817
  %v4428 = vpop.f32.mrb[0].mxu0
  %v4429 = vadd.f32 0.0, %v4428
  %v4430 = vpop.f32.mrb[0].mxu0
  %4431 = vmatprep.mubr.f32.mxu0 0.0
  %4432 = vmatmul.mubr.f32.gmra.mrb[0].mxu0 %v1820
  %v4433 = vpop.f32.mrb[0].mxu0
  %v4434 = vadd.f32 0.0, %v4433
  %v4435 = vpop.f32.mrb[0].mxu0
  %4436 = vmatprep.mubr.f32.mxu0 0.0
  %4437 = vmatmul.mubr.f32.gmra.mrb[0].mxu0 %v1823
  %v4438 = vpop.f32.mrb[0].mxu0
  %v4439 = vadd.f32 0.0, %v4438
  %v4440 = vpop.f32.mrb[0].mxu0
  %4441 = vmatprep.mubr.f32.mxu0 0.0
  %4442 = vmatmul.mubr.f32.gmra.mrb[0].mxu0 %v1826
  %v4443 = vpop.f32.mrb[0].mxu0
  %v4444 = vadd.f32 0.0, %v4443
  %v4445 = vpop.f32.mrb[0].mxu0
  %4446 = vmatprep.mubr.f32.mxu0 0.0
  %4447 = vmatmul.mubr.f32.gmra.mrb[0].mxu0 %v1829
  %v4448 = vpop.f32.mrb[0].mxu0
  %v4449 = vadd.f32 0.0, %v4448
  %v4450 = vpop.f32.mrb[0].mxu0
  %4451 = vmatprep.mubr.f32.mxu0 0.0
  %4452 = vmatmul.mubr.f32.gmra.mrb[0].mxu0 %v1832
  %v4453 = vpop.f32.mrb[0].mxu0
  %v4454 = vadd.f32 0.0, %v4453
  %v4455 = vpop.f32.mrb[0].mxu0
  %4456 = vmatprep.mubr.f32.mxu0 0.0
  %4457 = vmatmul.mubr.f32.gmra.mrb[0].mxu0 %v1835
  %v4458 = vpop.f32.mrb[0].mxu0
  %v4459 = vadd.f32 0.0, %v4458
  %v4460 = vpop.f32.mrb[0].mxu0
  %4461 = vmatprep.mubr.f32.mxu0 0.0
  %4462 = vmatmul.mubr.f32.gmra.mrb[0].mxu0 %v1838
  %v4463 = vpop.f32.mrb[0].mxu0
  %v4464 = vadd.f32 0.0, %v4463
  %v4465 = vpop.f32.mrb[0].mxu0
  %4466 = vmatprep.mubr.f32.mxu0 0.0
  %4467 = vmatmul.mubr.f32.gmra.mrb[0].mxu0 %v1841
  %v4468 = vpop.f32.mrb[0].mxu0
  %v4469 = vadd.f32 0.0, %v4468
  %v4470 = vpop.f32.mrb[0].mxu0
  %4471 = vmatprep.mubr.f32.mxu0 0.0
  %4472 = vmatmul.mubr.f32.gmra.mrb[0].mxu0 %v1844
  %v4473 = vpop.f32.mrb[0].mxu0
  %v4474 = vadd.f32 0.0, %v4473
  %v4475 = vpop.f32.mrb[0].mxu0
  %4476 = vmatprep.mubr.f32.mxu0 0.0
  %4477 = vmatmul.mubr.f32.gmra.mrb[0].mxu0 %v1847
  %v4478 = vpop.f32.mrb[0].mxu0
  %v4479 = vadd.f32 0.0, %v4478
  %v4480 = vpop.f32.mrb[0].mxu0
  %4481 = vmatprep.mubr.f32.mxu0 0.0
  %4482 = vmatmul.mubr.f32.gmra.mrb[0].mxu0 %v1850
  %v4483 = vpop.f32.mrb[0].mxu0
  %v4484 = vadd.f32 0.0, %v4483
  %v4485 = vpop.f32.mrb[0].mxu0
  %4486 = vmatprep.mubr.f32.mxu0 0.0
  %4487 = vmatmul.mubr.f32.gmra.mrb[0].mxu0 %v1853
  %v4488 = vpop.f32.mrb[0].mxu0
  %v4489 = vadd.f32 0.0, %v4488
  %v4490 = vpop.f32.mrb[0].mxu0
  %4491 = vmatprep.mubr.f32.mxu0 0.0
  %4492 = vmatmul.mubr.f32.gmra.mrb[0].mxu0 %v1856
  %v4493 = vpop.f32.mrb[0].mxu0
  %v4494 = vadd.f32 0.0, %v4493
  %v4495 = vpop.f32.mrb[0].mxu0
  %4496 = vmatprep.mubr.f32.mxu0 0.0
  %4497 = vmatmul.mubr.f32.gmra.mrb[0].mxu0 %v1859
  %v4498 = vpop.f32.mrb[0].mxu0
  %v4499 = vadd.f32 0.0, %v4498
  %v4500 = vpop.f32.mrb[0].mxu0
  %4501 = vmatprep.mubr.f32.mxu0 0.0
  %4502 = vmatmul.mubr.f32.gmra.mrb[0].mxu0 %v1862
  %v4503 = vpop.f32.mrb[0].mxu0
  %v4504 = vadd.f32 0.0, %v4503
  %v4505 = vpop.f32.mrb[0].mxu0
  %4506 = vmatprep.mubr.f32.mxu0 0.0
  %4507 = vmatmul.mubr.f32.gmra.mrb[0].mxu0 %v1865
  %v4508 = vpop.f32.mrb[0].mxu0
  %v4509 = vadd.f32 0.0, %v4508
  %v4510 = vpop.f32.mrb[0].mxu0
  %4511 = vmatprep.mubr.f32.mxu0 0.0
  %4512 = vmatmul.mubr.f32.gmra.mrb[0].mxu0 %v1868
  %v4513 = vpop.f32.mrb[0].mxu0
  %v4514 = vadd.f32 0.0, %v4513
  %v4515 = vpop.f32.mrb[0].mxu0
  %4516 = vmatprep.mubr.f32.mxu0 0.0
  %4517 = vmatmul.mubr.f32.gmra.mrb[0].mxu0 %v1871
  %v4518 = vpop.f32.mrb[0].mxu0
  %v4519 = vadd.f32 0.0, %v4518
  %v4520 = vpop.f32.mrb[0].mxu0
  %4521 = vmatprep.mubr.f32.mxu0 0.0
  %4522 = vmatmul.mubr.f32.gmra.mrb[0].mxu0 %v1874
  %v4523 = vpop.f32.mrb[0].mxu0
  %v4524 = vadd.f32 0.0, %v4523
  %v4525 = vpop.f32.mrb[0].mxu0
  %4526 = vmatprep.mubr.f32.mxu0 0.0
  %4527 = vmatmul.mubr.f32.gmra.mrb[0].mxu0 %v1877
  %v4528 = vpop.f32.mrb[0].mxu0
  %v4529 = vadd.f32 0.0, %v4528
  %v4530 = vpop.f32.mrb[0].mxu0
  %4531 = vmatprep.mubr.f32.mxu0 0.0
  %4532 = vmatmul.mubr.f32.gmra.mrb[0].mxu0 %v1880
  %v4533 = vpop.f32.mrb[0].mxu0
  %v4534 = vadd.f32 0.0, %v4533
  %v4535 = vpop.f32.mrb[0].mxu0
  %4536 = vmatprep.mubr.f32.mxu0 0.0
  %4537 = vmatmul.mubr.f32.gmra.mrb[0].mxu0 %v1883
  %v4538 = vpop.f32.mrb[0].mxu0
  %v4539 = vadd.f32 0.0, %v4538
  %v4540 = vpop.f32.mrb[0].mxu0
  %4541 = vmatprep.mubr.f32.mxu0 0.0
  %4542 = vmatmul.mubr.f32.gmra.mrb[0].mxu0 %v1886
  %v4543 = vpop.f32.mrb[0].mxu0
  %v4544 = vadd.f32 0.0, %v4543
  %v4545 = vpop.f32.mrb[0].mxu0
  %4546 = vmatprep.mubr.f32.mxu0 0.0
  %4547 = vmatmul.mubr.f32.gmra.mrb[0].mxu0 %v1889
  %v4548 = vpop.f32.mrb[0].mxu0
  %v4549 = vadd.f32 0.0, %v4548
  %v4550 = vpop.f32.mrb[0].mxu0
  %4551 = vmatprep.mubr.f32.mxu0 0.0
  %4552 = vmatmul.mubr.f32.gmra.mrb[0].mxu0 %v1892
  %v4553 = vpop.f32.mrb[0].mxu0
  %v4554 = vadd.f32 0.0, %v4553
  %v4555 = vpop.f32.mrb[0].mxu0
  %4556 = vmatprep.mubr.f32.mxu0 0.0
  %4557 = vmatmul.mubr.f32.gmra.mrb[0].mxu0 %v1895
  %v4558 = vpop.f32.mrb[0].mxu0
  %v4559 = vadd.f32 0.0, %v4558
  %v4560 = vpop.f32.mrb[0].mxu0
  %4561 = vmatprep.mubr.f32.mxu0 0.0
  %4562 = vmatmul.mubr.f32.gmra.mrb[0].mxu0 %v1898
  %v4563 = vpop.f32.mrb[0].mxu0
  %v4564 = vadd.f32 0.0, %v4563
  %v4565 = vpop.f32.mrb[0].mxu0
  %4566 = vmatprep.mubr.f32.mxu0 0.0
  %4567 = vmatmul.mubr.f32.gmra.mrb[0].mxu0 %v1901
  %v4568 = vpop.f32.mrb[0].mxu0
  %v4569 = vadd.f32 0.0, %v4568
  %v4570 = vpop.f32.mrb[0].mxu0
  %4571 = vmatprep.mubr.f32.mxu0 0.0
  %4572 = vmatmul.mubr.f32.gmra.mrb[0].mxu0 %v1904
  %v4573 = vpop.f32.mrb[0].mxu0
  %v4574 = vadd.f32 0.0, %v4573
  %v4575 = vpop.f32.mrb[0].mxu0
  %4576 = vmatprep.mubr.f32.mxu0 0.0
  %4577 = vmatmul.mubr.f32.gmra.mrb[0].mxu0 %v1907
  %v4578 = vpop.f32.mrb[0].mxu0
  %v4579 = vadd.f32 0.0, %v4578
  %v4580 = vpop.f32.mrb[0].mxu0
  %4581 = vmatprep.mubr.f32.mxu0 0.0
  %4582 = vmatmul.mubr.f32.gmra.mrb[0].mxu0 %v1910
  %v4583 = vpop.f32.mrb[0].mxu0
  %v4584 = vadd.f32 0.0, %v4583
  %v4585 = vpop.f32.mrb[0].mxu0
  %4586 = vmatprep.mubr.f32.mxu0 0.0
  %4587 = vmatmul.mubr.f32.gmra.mrb[0].mxu0 %v1913
  %v4588 = vpop.f32.mrb[0].mxu0
  %v4589 = vadd.f32 0.0, %v4588
  %v4590 = vpop.f32.mrb[0].mxu0
  %4591 = vmatprep.mubr.f32.mxu0 0.0
  %4592 = vmatmul.mubr.f32.gmra.mrb[0].mxu0 %v1916
  %v4593 = vpop.f32.mrb[0].mxu0
  %v4594 = vadd.f32 0.0, %v4593
  %v4595 = vpop.f32.mrb[0].mxu0
  %4596 = vmatprep.mubr.f32.mxu0 0.0
  %4597 = vmatmul.mubr.f32.gmra.mrb[0].mxu0 %v1919
  %v4598 = vpop.f32.mrb[0].mxu0
  %v4599 = vadd.f32 0.0, %v4598
  %v4600 = vpop.f32.mrb[0].mxu0
  %4601 = vmatprep.mubr.f32.mxu0 0.0
  %4602 = vmatmul.mubr.f32.gmra.mrb[0].mxu0 %v1922
  %v4603 = vpop.f32.mrb[0].mxu0
  %v4604 = vadd.f32 0.0, %v4603
  %v4605 = vpop.f32.mrb[0].mxu0
  %4606 = vmatprep.mubr.f32.mxu0 0.0
  %4607 = vmatmul.mubr.f32.gmra.mrb[0].mxu0 %v1925
  %v4608 = vpop.f32.mrb[0].mxu0
  %v4609 = vadd.f32 0.0, %v4608
  %v4610 = vpop.f32.mrb[0].mxu0
  %4611 = vmatprep.mubr.f32.mxu0 0.0
  %4612 = vmatmul.mubr.f32.gmra.mrb[0].mxu0 %v1928
  %v4613 = vpop.f32.mrb[0].mxu0
  %v4614 = vadd.f32 0.0, %v4613
  %v4615 = vpop.f32.mrb[0].mxu0
  %4616 = vmatprep.mubr.f32.mxu0 0.0
  %4617 = vmatmul.mubr.f32.gmra.mrb[0].mxu0 %v1931
  %v4618 = vpop.f32.mrb[0].mxu0
  %v4619 = vadd.f32 0.0, %v4618
  %v4620 = vpop.f32.mrb[0].mxu0
  %4621 = vmatprep.mubr.f32.mxu0 0.0
  %4622 = vmatmul.mubr.f32.gmra.mrb[0].mxu0 %v1934
  %v4623 = vpop.f32.mrb[0].mxu0
  %v4624 = vadd.f32 0.0, %v4623
  %v4625 = vpop.f32.mrb[0].mxu0
  %4626 = vmatprep.mubr.f32.mxu0 0.0
  %4627 = vmatmul.mubr.f32.gmra.mrb[0].mxu0 %v1937
  %v4628 = vpop.f32.mrb[0].mxu0
  %v4629 = vadd.f32 0.0, %v4628
  %v4630 = vpop.f32.mrb[0].mxu0
  %4631 = vmatprep.mubr.f32.mxu0 0.0
  %4632 = vmatmul.mubr.f32.gmra.mrb[0].mxu0 %v1940
  %v4633 = vpop.f32.mrb[0].mxu0
  %v4634 = vadd.f32 0.0, %v4633
  %v4635 = vpop.f32.mrb[0].mxu0
  %4636 = vmatprep.mubr.f32.mxu0 0.0
  %4637 = vmatmul.mubr.f32.gmra.mrb[0].mxu0 %v1943
  %v4638 = vpop.f32.mrb[0].mxu0
  %v4639 = vadd.f32 0.0, %v4638
  %v4640 = vpop.f32.mrb[0].mxu0
  %4641 = vmatprep.mubr.f32.mxu0 0.0
  %4642 = vmatmul.mubr.f32.gmra.mrb[0].mxu0 %v1946
  %v4643 = vpop.f32.mrb[0].mxu0
  %v4644 = vadd.f32 0.0, %v4643
  %v4645 = vpop.f32.mrb[0].mxu0
  %4646 = vmatprep.mubr.f32.mxu0 0.0
  %4647 = vmatmul.mubr.f32.gmra.mrb[0].mxu0 %v1949
  %v4648 = vpop.f32.mrb[0].mxu0
  %v4649 = vadd.f32 0.0, %v4648
  %v4650 = vpop.f32.mrb[0].mxu0
  %4651 = vmatprep.mubr.f32.mxu0 0.0
  %4652 = vmatmul.mubr.f32.gmra.mrb[0].mxu0 %v1952
  %v4653 = vpop.f32.mrb[0].mxu0
  %v4654 = vadd.f32 0.0, %v4653
  %v4655 = vpop.f32.mrb[0].mxu0
  %4656 = vmatprep.mubr.f32.mxu0 0.0
  %4657 = vmatmul.mubr.f32.gmra.mrb[0].mxu0 %v1955
  %v4658 = vpop.f32.mrb[0].mxu0
  %v4659 = vadd.f32 0.0, %v4658
  %v4660 = vpop.f32.mrb[0].mxu0
  %4661 = vmatprep.mubr.f32.mxu0 0.0
  %4662 = vmatmul.mubr.f32.gmra.mrb[0].mxu0 %v1958
  %v4663 = vpop.f32.mrb[0].mxu0
  %v4664 = vadd.f32 0.0, %v4663
  %v4665 = vpop.f32.mrb[0].mxu0
  %4666 = vmatprep.mubr.f32.mxu0 0.0
  %4667 = vmatmul.mubr.f32.gmra.mrb[0].mxu0 %v1961
  %v4668 = vpop.f32.mrb[0].mxu0
  %v4669 = vadd.f32 0.0, %v4668
  %v4670 = vpop.f32.mrb[0].mxu0
  %4671 = vmatprep.mubr.f32.mxu0 0.0
  %4672 = vmatmul.mubr.f32.gmra.mrb[0].mxu0 %v1964
  %v4673 = vpop.f32.mrb[0].mxu0
  %v4674 = vadd.f32 0.0, %v4673
  %v4675 = vpop.f32.mrb[0].mxu0
  %4676 = vmatprep.mubr.f32.mxu0 0.0
  %4677 = vmatmul.mubr.f32.gmra.mrb[0].mxu0 %v1967
  %v4678 = vpop.f32.mrb[0].mxu0
  %v4679 = vadd.f32 0.0, %v4678
  %v4680 = vpop.f32.mrb[0].mxu0
  %4681 = vmatprep.mubr.f32.mxu0 0.0
  %4682 = vmatmul.mubr.f32.gmra.mrb[0].mxu0 %v1970
  %v4683 = vpop.f32.mrb[0].mxu0
  %v4684 = vadd.f32 0.0, %v4683
  %v4685 = vpop.f32.mrb[0].mxu0
  %4686 = vmatprep.mubr.f32.mxu0 0.0
  %4687 = vmatmul.mubr.f32.gmra.mrb[0].mxu0 %v1973
  %v4688 = vpop.f32.mrb[0].mxu0
  %v4689 = vadd.f32 0.0, %v4688
  %v4690 = vpop.f32.mrb[0].mxu0
  %4691 = vmatprep.mubr.f32.mxu0 0.0
  %4692 = vmatmul.mubr.f32.gmra.mrb[0].mxu0 %v1976
  %v4693 = vpop.f32.mrb[0].mxu0
  %v4694 = vadd.f32 0.0, %v4693
  %v4695 = vpop.f32.mrb[0].mxu0
  %4696 = vmatprep.mubr.f32.mxu0 0.0
  %4697 = vmatmul.mubr.f32.gmra.mrb[0].mxu0 %v1979
  %v4698 = vpop.f32.mrb[0].mxu0
  %v4699 = vadd.f32 0.0, %v4698
  %v4700 = vpop.f32.mrb[0].mxu0
  %4701 = vmatprep.mubr.f32.mxu0 0.0
  %4702 = vmatmul.mubr.f32.gmra.mrb[0].mxu0 %v1982
  %v4703 = vpop.f32.mrb[0].mxu0
  %v4704 = vadd.f32 0.0, %v4703
  %v4705 = vpop.f32.mrb[0].mxu0
  %4706 = vmatprep.mubr.f32.mxu0 0.0
  %4707 = vmatmul.mubr.f32.gmra.mrb[0].mxu0 %v1985
  %v4708 = vpop.f32.mrb[0].mxu0
  %v4709 = vadd.f32 0.0, %v4708
  %v4710 = vpop.f32.mrb[0].mxu0
  %4711 = vmatprep.mubr.f32.mxu0 0.0
  %4712 = vmatmul.mubr.f32.gmra.mrb[0].mxu0 %v1988
  %v4713 = vpop.f32.mrb[0].mxu0
  %v4714 = vadd.f32 0.0, %v4713
  %v4715 = vpop.f32.mrb[0].mxu0
  %4716 = vmatprep.mubr.f32.mxu0 0.0
  %4717 = vmatmul.mubr.f32.gmra.mrb[0].mxu0 %v1991
  %v4718 = vpop.f32.mrb[0].mxu0
  %v4719 = vadd.f32 0.0, %v4718
  %v4720 = vpop.f32.mrb[0].mxu0
  %4721 = vmatprep.mubr.f32.mxu0 0.0
  %4722 = vmatmul.mubr.f32.gmra.mrb[0].mxu0 %v1994
  %v4723 = vpop.f32.mrb[0].mxu0
  %v4724 = vadd.f32 0.0, %v4723
  %v4725 = vpop.f32.mrb[0].mxu0
  %4726 = vmatprep.mubr.f32.mxu0 0.0
  %4727 = vmatmul.mubr.f32.gmra.mrb[0].mxu0 %v1997
  %v4728 = vpop.f32.mrb[0].mxu0
  %v4729 = vadd.f32 0.0, %v4728
  %v4730 = vpop.f32.mrb[0].mxu0
  %4731 = vmatprep.mubr.f32.mxu0 0.0
  %4732 = vmatmul.mubr.f32.gmra.mrb[0].mxu0 %v2000
  %v4733 = vpop.f32.mrb[0].mxu0
  %v4734 = vadd.f32 0.0, %v4733
  %v4735 = vpop.f32.mrb[0].mxu0
  %4736 = vmatprep.mubr.f32.mxu0 0.0
  %4737 = vmatmul.mubr.f32.gmra.mrb[0].mxu0 %v2003
  %v4738 = vpop.f32.mrb[0].mxu0
  %v4739 = vadd.f32 0.0, %v4738
  %v4740 = vpop.f32.mrb[0].mxu0
  %4741 = vmatprep.mubr.f32.mxu0 0.0
  %4742 = vmatmul.mubr.f32.gmra.mrb[0].mxu0 %v2006
  %v4743 = vpop.f32.mrb[0].mxu0
  %v4744 = vadd.f32 0.0, %v4743
  %v4745 = vpop.f32.mrb[0].mxu0
  %4746 = vmatprep.mubr.f32.mxu0 0.0
  %4747 = vmatmul.mubr.f32.gmra.mrb[0].mxu0 %v2009
  %v4748 = vpop.f32.mrb[0].mxu0
  %v4749 = vadd.f32 0.0, %v4748
  %v4750 = vpop.f32.mrb[0].mxu0
  %4751 = vmatprep.mubr.f32.mxu0 0.0
  %4752 = vmatmul.mubr.f32.gmra.mrb[0].mxu0 %v2012
  %v4753 = vpop.f32.mrb[0].mxu0
  %v4754 = vadd.f32 0.0, %v4753
  %v4755 = vpop.f32.mrb[0].mxu0
  %4756 = vmatprep.mubr.f32.mxu0 0.0
  %4757 = vmatmul.mubr.f32.gmra.mrb[0].mxu0 %v2015
  %v4758 = vpop.f32.mrb[0].mxu0
  %v4759 = vadd.f32 0.0, %v4758
  %v4760 = vpop.f32.mrb[0].mxu0
  %4761 = vmatprep.mubr.f32.mxu0 0.0
  %4762 = vmatmul.mubr.f32.gmra.mrb[0].mxu0 %v2018
  %v4763 = vpop.f32.mrb[0].mxu0
  %v4764 = vadd.f32 0.0, %v4763
  %v4765 = vpop.f32.mrb[0].mxu0
  %4766 = vmatprep.mubr.f32.mxu0 0.0
  %4767 = vmatmul.mubr.f32.gmra.mrb[0].mxu0 %v2021
  %v4768 = vpop.f32.mrb[0].mxu0
  %v4769 = vadd.f32 0.0, %v4768
  %v4770 = vpop.f32.mrb[0].mxu0
  %4771 = vmatprep.mubr.f32.mxu0 0.0
  %4772 = vmatmul.mubr.f32.gmra.mrb[0].mxu0 %v2024
  %v4773 = vpop.f32.mrb[0].mxu0
  %v4774 = vadd.f32 0.0, %v4773
  %v4775 = vpop.f32.mrb[0].mxu0
  %4776 = vmatprep.mubr.f32.mxu0 0.0
  %4777 = vmatmul.mubr.f32.gmra.mrb[0].mxu0 %v2027
  %v4778 = vpop.f32.mrb[0].mxu0
  %v4779 = vadd.f32 0.0, %v4778
  %v4780 = vpop.f32.mrb[0].mxu0
  %4781 = vmatprep.mubr.f32.mxu0 0.0
  %4782 = vmatmul.mubr.f32.gmra.mrb[0].mxu0 %v2030
  %v4783 = vpop.f32.mrb[0].mxu0
  %v4784 = vadd.f32 0.0, %v4783
  %v4785 = vpop.f32.mrb[0].mxu0
  %4786 = vmatprep.mubr.f32.mxu0 0.0
  %4787 = vmatmul.mubr.f32.gmra.mrb[0].mxu0 %v2033
  %v4788 = vpop.f32.mrb[0].mxu0
  %v4789 = vadd.f32 0.0, %v4788
  %v4790 = vpop.f32.mrb[0].mxu0
  %4791 = vmatprep.mubr.f32.mxu0 0.0
  %4792 = vmatmul.mubr.f32.gmra.mrb[0].mxu0 %v2036
  %v4793 = vpop.f32.mrb[0].mxu0
  %v4794 = vadd.f32 0.0, %v4793
  %v4795 = vpop.f32.mrb[0].mxu0
  %4796 = vmatprep.mubr.f32.mxu0 0.0
  %4797 = vmatmul.mubr.f32.gmra.mrb[0].mxu0 %v2039
  %v4798 = vpop.f32.mrb[0].mxu0
  %v4799 = vadd.f32 0.0, %v4798
  %v4800 = vpop.f32.mrb[0].mxu0
  %4801 = vmatprep.mubr.f32.mxu0 0.0
  %4802 = vmatmul.mubr.f32.gmra.mrb[0].mxu0 %v2042
  %v4803 = vpop.f32.mrb[0].mxu0
  %v4804 = vadd.f32 0.0, %v4803
  %v4805 = vpop.f32.mrb[0].mxu0
  %4806 = vmatprep.mubr.f32.mxu0 0.0
  %4807 = vmatmul.mubr.f32.gmra.mrb[0].mxu0 %v2045
  %v4808 = vpop.f32.mrb[0].mxu0
  %v4809 = vadd.f32 0.0, %v4808
  %v4810 = vpop.f32.mrb[0].mxu0
  %4811 = vmatprep.mubr.f32.mxu0 0.0
  %4812 = vmatmul.mubr.f32.gmra.mrb[0].mxu0 %v2048
  %v4813 = vpop.f32.mrb[0].mxu0
  %v4814 = vadd.f32 0.0, %v4813
  %v4815 = vpop.f32.mrb[0].mxu0
  %4816 = vmatprep.mubr.f32.mxu0 0.0
  %4817 = vmatmul.mubr.f32.gmra.mrb[0].mxu0 %v2051
  %v4818 = vpop.f32.mrb[0].mxu0
  %v4819 = vadd.f32 0.0, %v4818
  %v4820 = vpop.f32.mrb[0].mxu0
  %4821 = vmatprep.mubr.f32.mxu0 0.0
  %4822 = vmatmul.mubr.f32.gmra.mrb[0].mxu0 %v2054
  %v4823 = vpop.f32.mrb[0].mxu0
  %v4824 = vadd.f32 0.0, %v4823
  %v4825 = vpop.f32.mrb[0].mxu0
  %4826 = vmatprep.mubr.f32.mxu0 0.0
  %4827 = vmatmul.mubr.f32.gmra.mrb[0].mxu0 %v2057
  %v4828 = vpop.f32.mrb[0].mxu0
  %v4829 = vadd.f32 0.0, %v4828
  %v4830 = vpop.f32.mrb[0].mxu0
  %4831 = vmatprep.mubr.f32.mxu0 0.0
  %4832 = vmatmul.mubr.f32.gmra.mrb[0].mxu0 %v2060
  %v4833 = vpop.f32.mrb[0].mxu0
  %v4834 = vadd.f32 0.0, %v4833
  %v4835 = vpop.f32.mrb[0].mxu0
  %4836 = vmatprep.mubr.f32.mxu0 0.0
  %4837 = vmatmul.mubr.f32.gmra.mrb[0].mxu0 %v2063
  %v4838 = vpop.f32.mrb[0].mxu0
  %v4839 = vadd.f32 0.0, %v4838
  %v4840 = vpop.f32.mrb[0].mxu0
  %4841 = vmatprep.mubr.f32.mxu0 0.0
  %4842 = vmatmul.mubr.f32.gmra.mrb[0].mxu0 %v2066
  %v4843 = vpop.f32.mrb[0].mxu0
  %v4844 = vadd.f32 0.0, %v4843
  %v4845 = vpop.f32.mrb[0].mxu0
  %4846 = vmatprep.mubr.f32.mxu0 0.0
  %4847 = vmatmul.mubr.f32.gmra.mrb[0].mxu0 %v2069
  %v4848 = vpop.f32.mrb[0].mxu0
  %v4849 = vadd.f32 0.0, %v4848
  %v4850 = vpop.f32.mrb[0].mxu0
  %4851 = vmatprep.mubr.f32.mxu0 0.0
  %4852 = vmatmul.mubr.f32.gmra.mrb[0].mxu0 %v2072
  %v4853 = vpop.f32.mrb[0].mxu0
  %v4854 = vadd.f32 0.0, %v4853
  %v4855 = vpop.f32.mrb[0].mxu0
  %4856 = vmatprep.mubr.f32.mxu0 0.0
  %4857 = vmatmul.mubr.f32.gmra.mrb[0].mxu0 %v2075
  %v4858 = vpop.f32.mrb[0].mxu0
  %v4859 = vadd.f32 0.0, %v4858
  %v4860 = vpop.f32.mrb[0].mxu0
  %4861 = vmatprep.mubr.f32.mxu0 0.0
  %4862 = vmatmul.mubr.f32.gmra.mrb[0].mxu0 %v2078
  %v4863 = vpop.f32.mrb[0].mxu0
  %v4864 = vadd.f32 0.0, %v4863
  %v4865 = vpop.f32.mrb[0].mxu0
  %4866 = vmatprep.mubr.f32.mxu0 0.0
  %4867 = vmatmul.mubr.f32.gmra.mrb[0].mxu0 %v2081
  %v4868 = vpop.f32.mrb[0].mxu0
  %v4869 = vadd.f32 0.0, %v4868
  %v4870 = vpop.f32.mrb[0].mxu0
  %4871 = vmatprep.mubr.f32.mxu0 0.0
  %4872 = vmatmul.mubr.f32.gmra.mrb[0].mxu0 %v2084
  %v4873 = vpop.f32.mrb[0].mxu0
  %v4874 = vadd.f32 0.0, %v4873
  %v4875 = vpop.f32.mrb[0].mxu0
  %4876 = vmatprep.mubr.f32.mxu0 0.0
  %4877 = vmatmul.mubr.f32.gmra.mrb[0].mxu0 %v2087
  %v4878 = vpop.f32.mrb[0].mxu0
  %v4879 = vadd.f32 0.0, %v4878
  %v4880 = vpop.f32.mrb[0].mxu0
  %4881 = vmatprep.mubr.f32.mxu0 0.0
  %4882 = vmatmul.mubr.f32.gmra.mrb[0].mxu0 %v2090
  %v4883 = vpop.f32.mrb[0].mxu0
  %v4884 = vadd.f32 0.0, %v4883
  %v4885 = vpop.f32.mrb[0].mxu0
  %4886 = vmatprep.mubr.f32.mxu0 0.0
  %4887 = vmatmul.mubr.f32.gmra.mrb[0].mxu0 %v2093
  %v4888 = vpop.f32.mrb[0].mxu0
  %v4889 = vadd.f32 0.0, %v4888
  %v4890 = vpop.f32.mrb[0].mxu0
  %4891 = vmatprep.mubr.f32.mxu0 0.0
  %4892 = vmatmul.mubr.f32.gmra.mrb[0].mxu0 %v2096
  %v4893 = vpop.f32.mrb[0].mxu0
  %v4894 = vadd.f32 0.0, %v4893
  %v4895 = vpop.f32.mrb[0].mxu0
  %4896 = vmatprep.mubr.f32.mxu0 0.0
  %4897 = vmatmul.mubr.f32.gmra.mrb[0].mxu0 %v2099
  %v4898 = vpop.f32.mrb[0].mxu0
  %v4899 = vadd.f32 0.0, %v4898
  %v4900 = vpop.f32.mrb[0].mxu0
  %4901 = vmatprep.mubr.f32.mxu0 0.0
  %4902 = vmatmul.mubr.f32.gmra.mrb[0].mxu0 %v2102
  %v4903 = vpop.f32.mrb[0].mxu0
  %v4904 = vadd.f32 0.0, %v4903
  %v4905 = vpop.f32.mrb[0].mxu0
  %4906 = vmatprep.mubr.f32.mxu0 0.0
  %4907 = vmatmul.mubr.f32.gmra.mrb[0].mxu0 %v2105
  %v4908 = vpop.f32.mrb[0].mxu0
  %v4909 = vadd.f32 0.0, %v4908
  %v4910 = vpop.f32.mrb[0].mxu0
  %4911 = vmatprep.mubr.f32.mxu0 0.0
  %4912 = vmatmul.mubr.f32.gmra.mrb[0].mxu0 %v2108
  %v4913 = vpop.f32.mrb[0].mxu0
  %v4914 = vadd.f32 0.0, %v4913
  %v4915 = vpop.f32.mrb[0].mxu0
  %4916 = vmatprep.mubr.f32.mxu0 0.0
  %4917 = vmatmul.mubr.f32.gmra.mrb[0].mxu0 %v2111
  %v4918 = vpop.f32.mrb[0].mxu0
  %v4919 = vadd.f32 0.0, %v4918
  %v4920 = vpop.f32.mrb[0].mxu0
  %4921 = vmatprep.mubr.f32.mxu0 0.0
  %4922 = vmatmul.mubr.f32.gmra.mrb[0].mxu0 %v2114
  %v4923 = vpop.f32.mrb[0].mxu0
  %v4924 = vadd.f32 0.0, %v4923
  %v4925 = vpop.f32.mrb[0].mxu0
  %4926 = vmatprep.mubr.f32.mxu0 0.0
  %4927 = vmatmul.mubr.f32.gmra.mrb[0].mxu0 %v2117
  %v4928 = vpop.f32.mrb[0].mxu0
  %v4929 = vadd.f32 0.0, %v4928
  %v4930 = vpop.f32.mrb[0].mxu0
  %4931 = vmatprep.mubr.f32.mxu0 0.0
  %4932 = vmatmul.mubr.f32.gmra.mrb[0].mxu0 %v2120
  %v4933 = vpop.f32.mrb[0].mxu0
  %v4934 = vadd.f32 0.0, %v4933
  %v4935 = vpop.f32.mrb[0].mxu0
  %4936 = vmatprep.mubr.f32.mxu0 0.0
  %4937 = vmatmul.mubr.f32.gmra.mrb[0].mxu0 %v2123
  %v4938 = vpop.f32.mrb[0].mxu0
  %v4939 = vadd.f32 0.0, %v4938
  %v4940 = vpop.f32.mrb[0].mxu0
  %4941 = vmatprep.mubr.f32.mxu0 0.0
  %4942 = vmatmul.mubr.f32.gmra.mrb[0].mxu0 %v2126
  %v4943 = vpop.f32.mrb[0].mxu0
  %v4944 = vadd.f32 0.0, %v4943
  %v4945 = vpop.f32.mrb[0].mxu0
  %4946 = vmatprep.mubr.f32.mxu0 0.0
  %4947 = vmatmul.mubr.f32.gmra.mrb[0].mxu0 %v2129
  %v4948 = vpop.f32.mrb[0].mxu0
  %v4949 = vadd.f32 0.0, %v4948
  %v4950 = vpop.f32.mrb[0].mxu0
  %4951 = vmatprep.mubr.f32.mxu0 0.0
  %4952 = vmatmul.mubr.f32.gmra.mrb[0].mxu0 %v2132
  %v4953 = vpop.f32.mrb[0].mxu0
  %v4954 = vadd.f32 0.0, %v4953
  %v4955 = vpop.f32.mrb[0].mxu0
  %4956 = vmatprep.mubr.f32.mxu0 0.0
  %4957 = vmatmul.mubr.f32.gmra.mrb[0].mxu0 %v2135
  %v4958 = vpop.f32.mrb[0].mxu0
  %v4959 = vadd.f32 0.0, %v4958
  %v4960 = vpop.f32.mrb[0].mxu0
  %4961 = vmatprep.mubr.f32.mxu0 0.0
  %4962 = vmatmul.mubr.f32.gmra.mrb[0].mxu0 %v2138
  %v4963 = vpop.f32.mrb[0].mxu0
  %v4964 = vadd.f32 0.0, %v4963
  %v4965 = vpop.f32.mrb[0].mxu0
  %4966 = vmatprep.mubr.f32.mxu0 0.0
  %4967 = vmatmul.mubr.f32.gmra.mrb[0].mxu0 %v2141
  %v4968 = vpop.f32.mrb[0].mxu0
  %v4969 = vadd.f32 0.0, %v4968
  %v4970 = vpop.f32.mrb[0].mxu0
  %4971 = vmatprep.mubr.f32.mxu0 0.0
  %4972 = vmatmul.mubr.f32.gmra.mrb[0].mxu0 %v2144
  %v4973 = vpop.f32.mrb[0].mxu0
  %v4974 = vadd.f32 0.0, %v4973
  %v4975 = vpop.f32.mrb[0].mxu0
  %4976 = vmatprep.mubr.f32.mxu0 0.0
  %4977 = vmatmul.mubr.f32.gmra.mrb[0].mxu0 %v2147
  %v4978 = vpop.f32.mrb[0].mxu0
  %v4979 = vadd.f32 0.0, %v4978
  %v4980 = vpop.f32.mrb[0].mxu0
  %4981 = vmatprep.mubr.f32.mxu0 0.0
  %4982 = vmatmul.mubr.f32.gmra.mrb[0].mxu0 %v2150
  %v4983 = vpop.f32.mrb[0].mxu0
  %v4984 = vadd.f32 0.0, %v4983
  %v4985 = vpop.f32.mrb[0].mxu0
  %4986 = vmatprep.mubr.f32.mxu0 0.0
  %4987 = vmatmul.mubr.f32.gmra.mrb[0].mxu0 %v2153
  %v4988 = vpop.f32.mrb[0].mxu0
  %v4989 = vadd.f32 0.0, %v4988
  %v4990 = vpop.f32.mrb[0].mxu0
  %4991 = vmatprep.mubr.f32.mxu0 0.0
  %4992 = vmatmul.mubr.f32.gmra.mrb[0].mxu0 %v2156
  %v4993 = vpop.f32.mrb[0].mxu0
  %v4994 = vadd.f32 0.0, %v4993
  %v4995 = vpop.f32.mrb[0].mxu0
  %4996 = vmatprep.mubr.f32.mxu0 0.0
  %4997 = vmatmul.mubr.f32.gmra.mrb[0].mxu0 %v2159
  %v4998 = vpop.f32.mrb[0].mxu0
  %v4999 = vadd.f32 0.0, %v4998
  %v5000 = vpop.f32.mrb[0].mxu0
  %5001 = vmatprep.mubr.f32.mxu0 0.0
  %5002 = vmatmul.mubr.f32.gmra.mrb[0].mxu0 %v2162
  %v5003 = vpop.f32.mrb[0].mxu0
  %v5004 = vadd.f32 0.0, %v5003
  %v5005 = vpop.f32.mrb[0].mxu0
  %5006 = vmatprep.mubr.f32.mxu0 0.0
  %5007 = vmatmul.mubr.f32.gmra.mrb[0].mxu0 %v2165
  %v5008 = vpop.f32.mrb[0].mxu0
  %v5009 = vadd.f32 0.0, %v5008
  %v5010 = vpop.f32.mrb[0].mxu0
  %5011 = vmatprep.mubr.f32.mxu0 0.0
  %5012 = vmatmul.mubr.f32.gmra.mrb[0].mxu0 %v2168
  %v5013 = vpop.f32.mrb[0].mxu0
  %v5014 = vadd.f32 0.0, %v5013
  %v5015 = vpop.f32.mrb[0].mxu0
  %5016 = vmatprep.mubr.f32.mxu0 0.0
  %5017 = vmatmul.mubr.f32.gmra.mrb[0].mxu0 %v2171
  %v5018 = vpop.f32.mrb[0].mxu0
  %v5019 = vadd.f32 0.0, %v5018
  %v5020 = vpop.f32.mrb[0].mxu0
  %5021 = vmatprep.mubr.f32.mxu0 0.0
  %5022 = vmatmul.mubr.f32.gmra.mrb[0].mxu0 %v2174
  %v5023 = vpop.f32.mrb[0].mxu0
  %v5024 = vadd.f32 0.0, %v5023
  %v5025 = vpop.f32.mrb[0].mxu0
  %5026 = vmatprep.mubr.f32.mxu0 0.0
  %5027 = vmatmul.mubr.f32.gmra.mrb[0].mxu0 %v2177
  %v5028 = vpop.f32.mrb[0].mxu0
  %v5029 = vadd.f32 0.0, %v5028
  %v5030 = vpop.f32.mrb[0].mxu0
  %5031 = vmatprep.mubr.f32.mxu0 0.0
  %5032 = vmatmul.mubr.f32.gmra.mrb[0].mxu0 %v2180
  %v5033 = vpop.f32.mrb[0].mxu0
  %v5034 = vadd.f32 0.0, %v5033
  %v5035 = vpop.f32.mrb[0].mxu0
  %5036 = vmatprep.mubr.f32.mxu0 0.0
  %5037 = vmatmul.mubr.f32.gmra.mrb[0].mxu0 %v2183
  %v5038 = vpop.f32.mrb[0].mxu0
  %v5039 = vadd.f32 0.0, %v5038
  %v5040 = vpop.f32.mrb[0].mxu0
  %5041 = vmatprep.mubr.f32.mxu0 0.0
  %5042 = vmatmul.mubr.f32.gmra.mrb[0].mxu0 %v2186
  %v5043 = vpop.f32.mrb[0].mxu0
  %v5044 = vadd.f32 0.0, %v5043
  %v5045 = vpop.f32.mrb[0].mxu0
  %5046 = vmatprep.mubr.f32.mxu0 0.0
  %5047 = vmatmul.mubr.f32.gmra.mrb[0].mxu0 %v2189
  %v5048 = vpop.f32.mrb[0].mxu0
  %v5049 = vadd.f32 0.0, %v5048
  %v5050 = vpop.f32.mrb[0].mxu0
  %5051 = vmatprep.mubr.f32.mxu0 0.0
  %5052 = vmatmul.mubr.f32.gmra.mrb[0].mxu0 %v2192
  %v5053 = vpop.f32.mrb[0].mxu0
  %v5054 = vadd.f32 0.0, %v5053
  %v5055 = vpop.f32.mrb[0].mxu0
  %5056 = vmatprep.mubr.f32.mxu0 0.0
  %5057 = vmatmul.mubr.f32.gmra.mrb[0].mxu0 %v2195
  %v5058 = vpop.f32.mrb[0].mxu0
  %v5059 = vadd.f32 0.0, %v5058
  %v5060 = vpop.f32.mrb[0].mxu0
  %5061 = vmatprep.mubr.f32.mxu0 0.0
  %5062 = vmatmul.mubr.f32.gmra.mrb[0].mxu0 %v2198
  %v5063 = vpop.f32.mrb[0].mxu0
  %v5064 = vadd.f32 0.0, %v5063
  %v5065 = vpop.f32.mrb[0].mxu0
  %5066 = vmatprep.mubr.f32.mxu0 0.0
  %5067 = vmatmul.mubr.f32.gmra.mrb[0].mxu0 %v2201
  %v5068 = vpop.f32.mrb[0].mxu0
  %v5069 = vadd.f32 0.0, %v5068
  %v5070 = vpop.f32.mrb[0].mxu0
  %5071 = vmatprep.mubr.f32.mxu0 0.0
  %5072 = vmatmul.mubr.f32.gmra.mrb[0].mxu0 %v2204
  %v5073 = vpop.f32.mrb[0].mxu0
  %v5074 = vadd.f32 0.0, %v5073
  %v5075 = vpop.f32.mrb[0].mxu0
  %5076 = vmatprep.mubr.f32.mxu0 0.0
  %5077 = vmatmul.mubr.f32.gmra.mrb[0].mxu0 %v2207
  %v5078 = vpop.f32.mrb[0].mxu0
  %v5079 = vadd.f32 0.0, %v5078
  %v5080 = vpop.f32.mrb[0].mxu0
  %5081 = vmatprep.mubr.f32.mxu0 0.0
  %5082 = vmatmul.mubr.f32.gmra.mrb[0].mxu0 %v2210
  %v5083 = vpop.f32.mrb[0].mxu0
  %v5084 = vadd.f32 0.0, %v5083
  %v5085 = vpop.f32.mrb[0].mxu0
  %5086 = vmatprep.mubr.f32.mxu0 0.0
  %5087 = vmatmul.mubr.f32.gmra.mrb[0].mxu0 %v2213
  %v5088 = vpop.f32.mrb[0].mxu0
  %v5089 = vadd.f32 0.0, %v5088
  %v5090 = vpop.f32.mrb[0].mxu0
  %5091 = vmatprep.mubr.f32.mxu0 0.0
  %5092 = vmatmul.mubr.f32.gmra.mrb[0].mxu0 %v2216
  %v5093 = vpop.f32.mrb[0].mxu0
  %v5094 = vadd.f32 0.0, %v5093
  %v5095 = vpop.f32.mrb[0].mxu0
  %5096 = vmatprep.mubr.f32.mxu0 0.0
  %5097 = vmatmul.mubr.f32.gmra.mrb[0].mxu0 %v2219
  %v5098 = vpop.f32.mrb[0].mxu0
  %v5099 = vadd.f32 0.0, %v5098
  %v5100 = vpop.f32.mrb[0].mxu0
  %5101 = vmatprep.mubr.f32.mxu0 0.0
  %5102 = vmatmul.mubr.f32.gmra.mrb[0].mxu0 %v2222
  %v5103 = vpop.f32.mrb[0].mxu0
  %v5104 = vadd.f32 0.0, %v5103
  %v5105 = vpop.f32.mrb[0].mxu0
  %5106 = vmatprep.mubr.f32.mxu0 0.0
  %5107 = vmatmul.mubr.f32.gmra.mrb[0].mxu0 %v2225
  %v5108 = vpop.f32.mrb[0].mxu0
  %v5109 = vadd.f32 0.0, %v5108
  %v5110 = vpop.f32.mrb[0].mxu0
  %5111 = vmatprep.mubr.f32.mxu0 0.0
  %5112 = vmatmul.mubr.f32.gmra.mrb[0].mxu0 %v2228
  %v5113 = vpop.f32.mrb[0].mxu0
  %v5114 = vadd.f32 0.0, %v5113
  %v5115 = vpop.f32.mrb[0].mxu0
  %5116 = vmatprep.mubr.f32.mxu0 0.0
  %5117 = vmatmul.mubr.f32.gmra.mrb[0].mxu0 %v2231
  %v5118 = vpop.f32.mrb[0].mxu0
  %v5119 = vadd.f32 0.0, %v5118
  %v5120 = vpop.f32.mrb[0].mxu0
  %5121 = vmatprep.mubr.f32.mxu0 0.0
  %5122 = vmatmul.mubr.f32.gmra.mrb[0].mxu0 %v2234
  %v5123 = vpop.f32.mrb[0].mxu0
  %v5124 = vadd.f32 0.0, %v5123
  %v5125 = vpop.f32.mrb[0].mxu0
  %5126 = vmatprep.mubr.f32.mxu0 0.0
  %5127 = vmatmul.mubr.f32.gmra.mrb[0].mxu0 %v2237
  %v5128 = vpop.f32.mrb[0].mxu0
  %v5129 = vadd.f32 0.0, %v5128
  %v5130 = vpop.f32.mrb[0].mxu0
  %5131 = vmatprep.mubr.f32.mxu0 0.0
  %5132 = vmatmul.mubr.f32.gmra.mrb[0].mxu0 %v2240
  %v5133 = vpop.f32.mrb[0].mxu0
  %v5134 = vadd.f32 0.0, %v5133
  %v5135 = vpop.f32.mrb[0].mxu0
  %5136 = vmatprep.mubr.f32.mxu0 0.0
  %5137 = vmatmul.mubr.f32.gmra.mrb[0].mxu0 %v2243
  %v5138 = vpop.f32.mrb[0].mxu0
  %v5139 = vadd.f32 0.0, %v5138
  %v5140 = vpop.f32.mrb[0].mxu0
  %5141 = vmatprep.mubr.f32.mxu0 0.0
  %5142 = vmatmul.mubr.f32.gmra.mrb[0].mxu0 %v2246
  %v5143 = vpop.f32.mrb[0].mxu0
  %v5144 = vadd.f32 0.0, %v5143
  %v5145 = vpop.f32.mrb[0].mxu0
  %5146 = vmatprep.mubr.f32.mxu0 0.0
  %5147 = vmatmul.mubr.f32.gmra.mrb[0].mxu0 %v2249
  %v5148 = vpop.f32.mrb[0].mxu0
  %v5149 = vadd.f32 0.0, %v5148
  %v5150 = vpop.f32.mrb[0].mxu0
  %5151 = vmatprep.mubr.f32.mxu0 0.0
  %5152 = vmatmul.mubr.f32.gmra.mrb[0].mxu0 %v2252
  %v5153 = vpop.f32.mrb[0].mxu0
  %v5154 = vadd.f32 0.0, %v5153
  %v5155 = vpop.f32.mrb[0].mxu0
  %5156 = vmatprep.mubr.f32.mxu0 0.0
  %5157 = vmatmul.mubr.f32.gmra.mrb[0].mxu0 %v2255
  %v5158 = vpop.f32.mrb[0].mxu0
  %v5159 = vadd.f32 0.0, %v5158
  %v5160 = vpop.f32.mrb[0].mxu0
  %5161 = vmatprep.mubr.f32.mxu0 0.0
  %5162 = vmatmul.mubr.f32.gmra.mrb[0].mxu0 %v2258
  %v5163 = vpop.f32.mrb[0].mxu0
  %v5164 = vadd.f32 0.0, %v5163
  %v5165 = vpop.f32.mrb[0].mxu0
  %5166 = vmatprep.mubr.f32.mxu0 0.0
  %5167 = vmatmul.mubr.f32.gmra.mrb[0].mxu0 %v2261
  %v5168 = vpop.f32.mrb[0].mxu0
  %v5169 = vadd.f32 0.0, %v5168
  %v5170 = vpop.f32.mrb[0].mxu0
  %5171 = vmatprep.mubr.f32.mxu0 0.0
  %5172 = vmatmul.mubr.f32.gmra.mrb[0].mxu0 %v2264
  %v5173 = vpop.f32.mrb[0].mxu0
  %v5174 = vadd.f32 0.0, %v5173
  %v5175 = vpop.f32.mrb[0].mxu0
  %5176 = vmatprep.mubr.f32.mxu0 0.0
  %5177 = vmatmul.mubr.f32.gmra.mrb[0].mxu0 %v2267
  %v5178 = vpop.f32.mrb[0].mxu0
  %v5179 = vadd.f32 0.0, %v5178
  %v5180 = vpop.f32.mrb[0].mxu0
  %5181 = vmatprep.mubr.f32.mxu0 0.0
  %5182 = vmatmul.mubr.f32.gmra.mrb[0].mxu0 %v2270
  %v5183 = vpop.f32.mrb[0].mxu0
  %v5184 = vadd.f32 0.0, %v5183
  %v5185 = vpop.f32.mrb[0].mxu0
  %5186 = vmatprep.mubr.f32.mxu0 0.0
  %5187 = vmatmul.mubr.f32.gmra.mrb[0].mxu0 %v2273
  %v5188 = vpop.f32.mrb[0].mxu0
  %v5189 = vadd.f32 0.0, %v5188
  %v5190 = vpop.f32.mrb[0].mxu0
  %5191 = vmatprep.mubr.f32.mxu0 0.0
  %5192 = vmatmul.mubr.f32.gmra.mrb[0].mxu0 %v2276
  %v5193 = vpop.f32.mrb[0].mxu0
  %v5194 = vadd.f32 0.0, %v5193
  %v5195 = vpop.f32.mrb[0].mxu0
  %5196 = vmatprep.mubr.f32.mxu0 0.0
  %5197 = vmatmul.mubr.f32.gmra.mrb[0].mxu0 %v2279
  %v5198 = vpop.f32.mrb[0].mxu0
  %v5199 = vadd.f32 0.0, %v5198
  %v5200 = vpop.f32.mrb[0].mxu0
  %5201 = vmatprep.mubr.f32.mxu0 0.0
  %5202 = vmatmul.mubr.f32.gmra.mrb[0].mxu0 %v2282
  %v5203 = vpop.f32.mrb[0].mxu0
  %v5204 = vadd.f32 0.0, %v5203
  %v5205 = vpop.f32.mrb[0].mxu0
  %5206 = vmatprep.mubr.f32.mxu0 0.0
  %5207 = vmatmul.mubr.f32.gmra.mrb[0].mxu0 %v2285
  %v5208 = vpop.f32.mrb[0].mxu0
  %v5209 = vadd.f32 0.0, %v5208
  %v5210 = vpop.f32.mrb[0].mxu0
  %5211 = vmatprep.mubr.f32.mxu0 0.0
  %5212 = vmatmul.mubr.f32.gmra.mrb[0].mxu0 %v2288
  %v5213 = vpop.f32.mrb[0].mxu0
  %v5214 = vadd.f32 0.0, %v5213
  %v5215 = vpop.f32.mrb[0].mxu0
  %5216 = vmatprep.mubr.f32.mxu0 0.0
  %5217 = vmatmul.mubr.f32.gmra.mrb[0].mxu0 %v2291
  %v5218 = vpop.f32.mrb[0].mxu0
  %v5219 = vadd.f32 0.0, %v5218
  %v5220 = vpop.f32.mrb[0].mxu0
  %5221 = vmatprep.mubr.f32.mxu0 0.0
  %5222 = vmatmul.mubr.f32.gmra.mrb[0].mxu0 %v2294
  %v5223 = vpop.f32.mrb[0].mxu0
  %v5224 = vadd.f32 0.0, %v5223
  %v5225 = vpop.f32.mrb[0].mxu0
  %5226 = vmatprep.mubr.f32.mxu0 0.0
  %5227 = vmatmul.mubr.f32.gmra.mrb[0].mxu0 %v2297
  %v5228 = vpop.f32.mrb[0].mxu0
  %v5229 = vadd.f32 0.0, %v5228
  %v5230 = vpop.f32.mrb[0].mxu0
  %5231 = vmatprep.mubr.f32.mxu0 0.0
  %5232 = vmatmul.mubr.f32.gmra.mrb[0].mxu0 %v2300
  %v5233 = vpop.f32.mrb[0].mxu0
  %v5234 = vadd.f32 0.0, %v5233
  %v5235 = vpop.f32.mrb[0].mxu0
  %5236 = vmatprep.mubr.f32.mxu0 0.0
  %5237 = vmatmul.mubr.f32.gmra.mrb[0].mxu0 %v2303
  %v5238 = vpop.f32.mrb[0].mxu0
  %v5239 = vadd.f32 0.0, %v5238
  %v5240 = vpop.f32.mrb[0].mxu0
  %5241 = vmatprep.mubr.f32.mxu0 0.0
  %5242 = vmatmul.mubr.f32.gmra.mrb[0].mxu0 %v2306
  %v5243 = vpop.f32.mrb[0].mxu0
  %v5244 = vadd.f32 0.0, %v5243
  %v5245 = vpop.f32.mrb[0].mxu0
  %5246 = vmatprep.mubr.f32.mxu0 0.0
  %5247 = vmatmul.mubr.f32.gmra.mrb[0].mxu0 %v2309
  %v5248 = vpop.f32.mrb[0].mxu0
  %v5249 = vadd.f32 0.0, %v5248
  %v5250 = vpop.f32.mrb[0].mxu0
  %5251 = vmatprep.mubr.f32.mxu0 0.0
  %5252 = vmatmul.mubr.f32.gmra.mrb[0].mxu0 %v2312
  %v5253 = vpop.f32.mrb[0].mxu0
  %v5254 = vadd.f32 0.0, %v5253
  %v5255 = vpop.f32.mrb[0].mxu0
  %5256 = vmatprep.mubr.f32.mxu0 0.0
  %5257 = vmatmul.mubr.f32.gmra.mrb[0].mxu0 %v2315
  %v5258 = vpop.f32.mrb[0].mxu0
  %v5259 = vadd.f32 0.0, %v5258
  %v5260 = vpop.f32.mrb[0].mxu0
  %5261 = vmatprep.mubr.f32.mxu0 0.0
  %5262 = vmatmul.mubr.f32.gmra.mrb[0].mxu0 %v2318
  %v5263 = vpop.f32.mrb[0].mxu0
  %v5264 = vadd.f32 0.0, %v5263
  %v5265 = vpop.f32.mrb[0].mxu0
  %5266 = vmatprep.mubr.f32.mxu0 0.0
  %5267 = vmatmul.mubr.f32.gmra.mrb[0].mxu0 %v2321
  %v5268 = vpop.f32.mrb[0].mxu0
  %v5269 = vadd.f32 0.0, %v5268
  %v5270 = vpop.f32.mrb[0].mxu0
  %5271 = vdwg.mxu0
  %vm5272 = vcmask 80896
  %v5273 = vsel %vm5272, %v2394, -inf
  %v5274 = vsel %vm5272, %v2484, -inf
  %v5275 = vmax.f32 %v5273, %v5274
  %v5276 = vsel %vm5272, %v2574, -inf
  %v5277 = vmax.f32 %v5275, %v5276
  %v5278 = vsel %vm5272, %v2664, -inf
  %v5279 = vmax.f32 %v5277, %v5278
  %v5280 = vsel %vm5272, %v2399, -inf
  %v5281 = vsel %vm5272, %v2489, -inf
  %v5282 = vmax.f32 %v5280, %v5281
  %v5283 = vsel %vm5272, %v2579, -inf
  %v5284 = vmax.f32 %v5282, %v5283
  %v5285 = vsel %vm5272, %v2669, -inf
  %v5286 = vmax.f32 %v5284, %v5285
  %v5287 = vsel %vm5272, %v2404, -inf
  %v5288 = vsel %vm5272, %v2494, -inf
  %v5289 = vmax.f32 %v5287, %v5288
  %v5290 = vsel %vm5272, %v2584, -inf
  %v5291 = vmax.f32 %v5289, %v5290
  %v5292 = vsel %vm5272, %v2674, -inf
  %v5293 = vmax.f32 %v5291, %v5292
  %v5294 = vsel %vm5272, %v2409, -inf
  %v5295 = vsel %vm5272, %v2499, -inf
  %v5296 = vmax.f32 %v5294, %v5295
  %v5297 = vsel %vm5272, %v2589, -inf
  %v5298 = vmax.f32 %v5296, %v5297
  %v5299 = vsel %vm5272, %v2679, -inf
  %v5300 = vmax.f32 %v5298, %v5299
  %v5301 = vsel %vm5272, %v2414, -inf
  %v5302 = vsel %vm5272, %v2504, -inf
  %v5303 = vmax.f32 %v5301, %v5302
  %v5304 = vsel %vm5272, %v2594, -inf
  %v5305 = vmax.f32 %v5303, %v5304
  %v5306 = vsel %vm5272, %v2684, -inf
  %v5307 = vmax.f32 %v5305, %v5306
  %v5308 = vsel %vm5272, %v2419, -inf
  %v5309 = vsel %vm5272, %v2509, -inf
  %v5310 = vmax.f32 %v5308, %v5309
  %v5311 = vsel %vm5272, %v2599, -inf
  %v5312 = vmax.f32 %v5310, %v5311
  %v5313 = vsel %vm5272, %v2689, -inf
  %v5314 = vmax.f32 %v5312, %v5313
  %v5315 = vsel %vm5272, %v2424, -inf
  %v5316 = vsel %vm5272, %v2514, -inf
  %v5317 = vmax.f32 %v5315, %v5316
  %v5318 = vsel %vm5272, %v2604, -inf
  %v5319 = vmax.f32 %v5317, %v5318
  %v5320 = vsel %vm5272, %v2694, -inf
  %v5321 = vmax.f32 %v5319, %v5320
  %v5322 = vsel %vm5272, %v2429, -inf
  %v5323 = vsel %vm5272, %v2519, -inf
  %v5324 = vmax.f32 %v5322, %v5323
  %v5325 = vsel %vm5272, %v2609, -inf
  %v5326 = vmax.f32 %v5324, %v5325
  %v5327 = vsel %vm5272, %v2699, -inf
  %v5328 = vmax.f32 %v5326, %v5327
  %v5329 = vsel %vm5272, %v2434, -inf
  %v5330 = vsel %vm5272, %v2524, -inf
  %v5331 = vmax.f32 %v5329, %v5330
  %v5332 = vsel %vm5272, %v2614, -inf
  %v5333 = vmax.f32 %v5331, %v5332
  %v5334 = vsel %vm5272, %v2704, -inf
  %v5335 = vmax.f32 %v5333, %v5334
  %v5336 = vsel %vm5272, %v2439, -inf
  %v5337 = vsel %vm5272, %v2529, -inf
  %v5338 = vmax.f32 %v5336, %v5337
  %v5339 = vsel %vm5272, %v2619, -inf
  %v5340 = vmax.f32 %v5338, %v5339
  %v5341 = vsel %vm5272, %v2709, -inf
  %v5342 = vmax.f32 %v5340, %v5341
  %v5343 = vsel %vm5272, %v2444, -inf
  %v5344 = vsel %vm5272, %v2534, -inf
  %v5345 = vmax.f32 %v5343, %v5344
  %v5346 = vsel %vm5272, %v2624, -inf
  %v5347 = vmax.f32 %v5345, %v5346
  %v5348 = vsel %vm5272, %v2714, -inf
  %v5349 = vmax.f32 %v5347, %v5348
  %v5350 = vsel %vm5272, %v2449, -inf
  %v5351 = vsel %vm5272, %v2539, -inf
  %v5352 = vmax.f32 %v5350, %v5351
  %v5353 = vsel %vm5272, %v2629, -inf
  %v5354 = vmax.f32 %v5352, %v5353
  %v5355 = vsel %vm5272, %v2719, -inf
  %v5356 = vmax.f32 %v5354, %v5355
  %v5357 = vsel %vm5272, %v2454, -inf
  %v5358 = vsel %vm5272, %v2544, -inf
  %v5359 = vmax.f32 %v5357, %v5358
  %v5360 = vsel %vm5272, %v2634, -inf
  %v5361 = vmax.f32 %v5359, %v5360
  %v5362 = vsel %vm5272, %v2724, -inf
  %v5363 = vmax.f32 %v5361, %v5362
  %v5364 = vsel %vm5272, %v2459, -inf
  %v5365 = vsel %vm5272, %v2549, -inf
  %v5366 = vmax.f32 %v5364, %v5365
  %v5367 = vsel %vm5272, %v2639, -inf
  %v5368 = vmax.f32 %v5366, %v5367
  %v5369 = vsel %vm5272, %v2729, -inf
  %v5370 = vmax.f32 %v5368, %v5369
  %v5371 = vsel %vm5272, %v2464, -inf
  %v5372 = vsel %vm5272, %v2554, -inf
  %v5373 = vmax.f32 %v5371, %v5372
  %v5374 = vsel %vm5272, %v2644, -inf
  %v5375 = vmax.f32 %v5373, %v5374
  %v5376 = vsel %vm5272, %v2734, -inf
  %v5377 = vmax.f32 %v5375, %v5376
  %v5378 = vsel %vm5272, %v2469, -inf
  %v5379 = vsel %vm5272, %v2559, -inf
  %v5380 = vmax.f32 %v5378, %v5379
  %v5381 = vsel %vm5272, %v2649, -inf
  %v5382 = vmax.f32 %v5380, %v5381
  %v5383 = vsel %vm5272, %v2739, -inf
  %v5384 = vmax.f32 %v5382, %v5383
  %v5385 = vsel %vm5272, %v2474, -inf
  %v5386 = vsel %vm5272, %v2564, -inf
  %v5387 = vmax.f32 %v5385, %v5386
  %v5388 = vsel %vm5272, %v2654, -inf
  %v5389 = vmax.f32 %v5387, %v5388
  %v5390 = vsel %vm5272, %v2744, -inf
  %v5391 = vmax.f32 %v5389, %v5390
  %v5392 = vsel %vm5272, %v2479, -inf
  %v5393 = vsel %vm5272, %v2569, -inf
  %v5394 = vmax.f32 %v5392, %v5393
  %v5395 = vsel %vm5272, %v2659, -inf
  %v5396 = vmax.f32 %v5394, %v5395
  %v5397 = vsel %vm5272, %v2749, -inf
  %v5398 = vmax.f32 %v5396, %v5397
  %v5399 = vsel %vm5272, %v2754, -inf
  %v5400 = vsel %vm5272, %v2844, -inf
  %v5401 = vmax.f32 %v5399, %v5400
  %v5402 = vsel %vm5272, %v2934, -inf
  %v5403 = vmax.f32 %v5401, %v5402
  %v5404 = vsel %vm5272, %v3024, -inf
  %v5405 = vmax.f32 %v5403, %v5404
  %v5406 = vsel %vm5272, %v2759, -inf
  %v5407 = vsel %vm5272, %v2849, -inf
  %v5408 = vmax.f32 %v5406, %v5407
  %v5409 = vsel %vm5272, %v2939, -inf
  %v5410 = vmax.f32 %v5408, %v5409
  %v5411 = vsel %vm5272, %v3029, -inf
  %v5412 = vmax.f32 %v5410, %v5411
  %v5413 = vsel %vm5272, %v2764, -inf
  %v5414 = vsel %vm5272, %v2854, -inf
  %v5415 = vmax.f32 %v5413, %v5414
  %v5416 = vsel %vm5272, %v2944, -inf
  %v5417 = vmax.f32 %v5415, %v5416
  %v5418 = vsel %vm5272, %v3034, -inf
  %v5419 = vmax.f32 %v5417, %v5418
  %v5420 = vsel %vm5272, %v2769, -inf
  %v5421 = vsel %vm5272, %v2859, -inf
  %v5422 = vmax.f32 %v5420, %v5421
  %v5423 = vsel %vm5272, %v2949, -inf
  %v5424 = vmax.f32 %v5422, %v5423
  %v5425 = vsel %vm5272, %v3039, -inf
  %v5426 = vmax.f32 %v5424, %v5425
  %v5427 = vsel %vm5272, %v2774, -inf
  %v5428 = vsel %vm5272, %v2864, -inf
  %v5429 = vmax.f32 %v5427, %v5428
  %v5430 = vsel %vm5272, %v2954, -inf
  %v5431 = vmax.f32 %v5429, %v5430
  %v5432 = vsel %vm5272, %v3044, -inf
  %v5433 = vmax.f32 %v5431, %v5432
  %v5434 = vsel %vm5272, %v2779, -inf
  %v5435 = vsel %vm5272, %v2869, -inf
  %v5436 = vmax.f32 %v5434, %v5435
  %v5437 = vsel %vm5272, %v2959, -inf
  %v5438 = vmax.f32 %v5436, %v5437
  %v5439 = vsel %vm5272, %v3049, -inf
  %v5440 = vmax.f32 %v5438, %v5439
  %v5441 = vsel %vm5272, %v2784, -inf
  %v5442 = vsel %vm5272, %v2874, -inf
  %v5443 = vmax.f32 %v5441, %v5442
  %v5444 = vsel %vm5272, %v2964, -inf
  %v5445 = vmax.f32 %v5443, %v5444
  %v5446 = vsel %vm5272, %v3054, -inf
  %v5447 = vmax.f32 %v5445, %v5446
  %v5448 = vsel %vm5272, %v2789, -inf
  %v5449 = vsel %vm5272, %v2879, -inf
  %v5450 = vmax.f32 %v5448, %v5449
  %v5451 = vsel %vm5272, %v2969, -inf
  %v5452 = vmax.f32 %v5450, %v5451
  %v5453 = vsel %vm5272, %v3059, -inf
  %v5454 = vmax.f32 %v5452, %v5453
  %v5455 = vsel %vm5272, %v2794, -inf
  %v5456 = vsel %vm5272, %v2884, -inf
  %v5457 = vmax.f32 %v5455, %v5456
  %v5458 = vsel %vm5272, %v2974, -inf
  %v5459 = vmax.f32 %v5457, %v5458
  %v5460 = vsel %vm5272, %v3064, -inf
  %v5461 = vmax.f32 %v5459, %v5460
  %v5462 = vsel %vm5272, %v2799, -inf
  %v5463 = vsel %vm5272, %v2889, -inf
  %v5464 = vmax.f32 %v5462, %v5463
  %v5465 = vsel %vm5272, %v2979, -inf
  %v5466 = vmax.f32 %v5464, %v5465
  %v5467 = vsel %vm5272, %v3069, -inf
  %v5468 = vmax.f32 %v5466, %v5467
  %v5469 = vsel %vm5272, %v2804, -inf
  %v5470 = vsel %vm5272, %v2894, -inf
  %v5471 = vmax.f32 %v5469, %v5470
  %v5472 = vsel %vm5272, %v2984, -inf
  %v5473 = vmax.f32 %v5471, %v5472
  %v5474 = vsel %vm5272, %v3074, -inf
  %v5475 = vmax.f32 %v5473, %v5474
  %v5476 = vsel %vm5272, %v2809, -inf
  %v5477 = vsel %vm5272, %v2899, -inf
  %v5478 = vmax.f32 %v5476, %v5477
  %v5479 = vsel %vm5272, %v2989, -inf
  %v5480 = vmax.f32 %v5478, %v5479
  %v5481 = vsel %vm5272, %v3079, -inf
  %v5482 = vmax.f32 %v5480, %v5481
  %v5483 = vsel %vm5272, %v2814, -inf
  %v5484 = vsel %vm5272, %v2904, -inf
  %v5485 = vmax.f32 %v5483, %v5484
  %v5486 = vsel %vm5272, %v2994, -inf
  %v5487 = vmax.f32 %v5485, %v5486
  %v5488 = vsel %vm5272, %v3084, -inf
  %v5489 = vmax.f32 %v5487, %v5488
  %v5490 = vsel %vm5272, %v2819, -inf
  %v5491 = vsel %vm5272, %v2909, -inf
  %v5492 = vmax.f32 %v5490, %v5491
  %v5493 = vsel %vm5272, %v2999, -inf
  %v5494 = vmax.f32 %v5492, %v5493
  %v5495 = vsel %vm5272, %v3089, -inf
  %v5496 = vmax.f32 %v5494, %v5495
  %v5497 = vsel %vm5272, %v2824, -inf
  %v5498 = vsel %vm5272, %v2914, -inf
  %v5499 = vmax.f32 %v5497, %v5498
  %v5500 = vsel %vm5272, %v3004, -inf
  %v5501 = vmax.f32 %v5499, %v5500
  %v5502 = vsel %vm5272, %v3094, -inf
  %v5503 = vmax.f32 %v5501, %v5502
  %v5504 = vsel %vm5272, %v2829, -inf
  %v5505 = vsel %vm5272, %v2919, -inf
  %v5506 = vmax.f32 %v5504, %v5505
  %v5507 = vsel %vm5272, %v3009, -inf
  %v5508 = vmax.f32 %v5506, %v5507
  %v5509 = vsel %vm5272, %v3099, -inf
  %v5510 = vmax.f32 %v5508, %v5509
  %v5511 = vsel %vm5272, %v2834, -inf
  %v5512 = vsel %vm5272, %v2924, -inf
  %v5513 = vmax.f32 %v5511, %v5512
  %v5514 = vsel %vm5272, %v3014, -inf
  %v5515 = vmax.f32 %v5513, %v5514
  %v5516 = vsel %vm5272, %v3104, -inf
  %v5517 = vmax.f32 %v5515, %v5516
  %v5518 = vsel %vm5272, %v2839, -inf
  %v5519 = vsel %vm5272, %v2929, -inf
  %v5520 = vmax.f32 %v5518, %v5519
  %v5521 = vsel %vm5272, %v3019, -inf
  %v5522 = vmax.f32 %v5520, %v5521
  %v5523 = vsel %vm5272, %v3109, -inf
  %v5524 = vmax.f32 %v5522, %v5523
  %v5525 = vsel %vm5272, %v3114, -inf
  %v5526 = vsel %vm5272, %v3204, -inf
  %v5527 = vmax.f32 %v5525, %v5526
  %v5528 = vsel %vm5272, %v3294, -inf
  %v5529 = vmax.f32 %v5527, %v5528
  %v5530 = vsel %vm5272, %v3384, -inf
  %v5531 = vmax.f32 %v5529, %v5530
  %v5532 = vsel %vm5272, %v3119, -inf
  %v5533 = vsel %vm5272, %v3209, -inf
  %v5534 = vmax.f32 %v5532, %v5533
  %v5535 = vsel %vm5272, %v3299, -inf
  %v5536 = vmax.f32 %v5534, %v5535
  %v5537 = vsel %vm5272, %v3389, -inf
  %v5538 = vmax.f32 %v5536, %v5537
  %v5539 = vsel %vm5272, %v3124, -inf
  %v5540 = vsel %vm5272, %v3214, -inf
  %v5541 = vmax.f32 %v5539, %v5540
  %v5542 = vsel %vm5272, %v3304, -inf
  %v5543 = vmax.f32 %v5541, %v5542
  %v5544 = vsel %vm5272, %v3394, -inf
  %v5545 = vmax.f32 %v5543, %v5544
  %v5546 = vsel %vm5272, %v3129, -inf
  %v5547 = vsel %vm5272, %v3219, -inf
  %v5548 = vmax.f32 %v5546, %v5547
  %v5549 = vsel %vm5272, %v3309, -inf
  %v5550 = vmax.f32 %v5548, %v5549
  %v5551 = vsel %vm5272, %v3399, -inf
  %v5552 = vmax.f32 %v5550, %v5551
  %v5553 = vsel %vm5272, %v3134, -inf
  %v5554 = vsel %vm5272, %v3224, -inf
  %v5555 = vmax.f32 %v5553, %v5554
  %v5556 = vsel %vm5272, %v3314, -inf
  %v5557 = vmax.f32 %v5555, %v5556
  %v5558 = vsel %vm5272, %v3404, -inf
  %v5559 = vmax.f32 %v5557, %v5558
  %v5560 = vsel %vm5272, %v3139, -inf
  %v5561 = vsel %vm5272, %v3229, -inf
  %v5562 = vmax.f32 %v5560, %v5561
  %v5563 = vsel %vm5272, %v3319, -inf
  %v5564 = vmax.f32 %v5562, %v5563
  %v5565 = vsel %vm5272, %v3409, -inf
  %v5566 = vmax.f32 %v5564, %v5565
  %v5567 = vsel %vm5272, %v3144, -inf
  %v5568 = vsel %vm5272, %v3234, -inf
  %v5569 = vmax.f32 %v5567, %v5568
  %v5570 = vsel %vm5272, %v3324, -inf
  %v5571 = vmax.f32 %v5569, %v5570
  %v5572 = vsel %vm5272, %v3414, -inf
  %v5573 = vmax.f32 %v5571, %v5572
  %v5574 = vsel %vm5272, %v3149, -inf
  %v5575 = vsel %vm5272, %v3239, -inf
  %v5576 = vmax.f32 %v5574, %v5575
  %v5577 = vsel %vm5272, %v3329, -inf
  %v5578 = vmax.f32 %v5576, %v5577
  %v5579 = vsel %vm5272, %v3419, -inf
  %v5580 = vmax.f32 %v5578, %v5579
  %v5581 = vsel %vm5272, %v3154, -inf
  %v5582 = vsel %vm5272, %v3244, -inf
  %v5583 = vmax.f32 %v5581, %v5582
  %v5584 = vsel %vm5272, %v3334, -inf
  %v5585 = vmax.f32 %v5583, %v5584
  %v5586 = vsel %vm5272, %v3424, -inf
  %v5587 = vmax.f32 %v5585, %v5586
  %v5588 = vsel %vm5272, %v3159, -inf
  %v5589 = vsel %vm5272, %v3249, -inf
  %v5590 = vmax.f32 %v5588, %v5589
  %v5591 = vsel %vm5272, %v3339, -inf
  %v5592 = vmax.f32 %v5590, %v5591
  %v5593 = vsel %vm5272, %v3429, -inf
  %v5594 = vmax.f32 %v5592, %v5593
  %v5595 = vsel %vm5272, %v3164, -inf
  %v5596 = vsel %vm5272, %v3254, -inf
  %v5597 = vmax.f32 %v5595, %v5596
  %v5598 = vsel %vm5272, %v3344, -inf
  %v5599 = vmax.f32 %v5597, %v5598
  %v5600 = vsel %vm5272, %v3434, -inf
  %v5601 = vmax.f32 %v5599, %v5600
  %v5602 = vsel %vm5272, %v3169, -inf
  %v5603 = vsel %vm5272, %v3259, -inf
  %v5604 = vmax.f32 %v5602, %v5603
  %v5605 = vsel %vm5272, %v3349, -inf
  %v5606 = vmax.f32 %v5604, %v5605
  %v5607 = vsel %vm5272, %v3439, -inf
  %v5608 = vmax.f32 %v5606, %v5607
  %v5609 = vsel %vm5272, %v3174, -inf
  %v5610 = vsel %vm5272, %v3264, -inf
  %v5611 = vmax.f32 %v5609, %v5610
  %v5612 = vsel %vm5272, %v3354, -inf
  %v5613 = vmax.f32 %v5611, %v5612
  %v5614 = vsel %vm5272, %v3444, -inf
  %v5615 = vmax.f32 %v5613, %v5614
  %v5616 = vsel %vm5272, %v3179, -inf
  %v5617 = vsel %vm5272, %v3269, -inf
  %v5618 = vmax.f32 %v5616, %v5617
  %v5619 = vsel %vm5272, %v3359, -inf
  %v5620 = vmax.f32 %v5618, %v5619
  %v5621 = vsel %vm5272, %v3449, -inf
  %v5622 = vmax.f32 %v5620, %v5621
  %v5623 = vsel %vm5272, %v3184, -inf
  %v5624 = vsel %vm5272, %v3274, -inf
  %v5625 = vmax.f32 %v5623, %v5624
  %v5626 = vsel %vm5272, %v3364, -inf
  %v5627 = vmax.f32 %v5625, %v5626
  %v5628 = vsel %vm5272, %v3454, -inf
  %v5629 = vmax.f32 %v5627, %v5628
  %v5630 = vsel %vm5272, %v3189, -inf
  %v5631 = vsel %vm5272, %v3279, -inf
  %v5632 = vmax.f32 %v5630, %v5631
  %v5633 = vsel %vm5272, %v3369, -inf
  %v5634 = vmax.f32 %v5632, %v5633
  %v5635 = vsel %vm5272, %v3459, -inf
  %v5636 = vmax.f32 %v5634, %v5635
  %v5637 = vsel %vm5272, %v3194, -inf
  %v5638 = vsel %vm5272, %v3284, -inf
  %v5639 = vmax.f32 %v5637, %v5638
  %v5640 = vsel %vm5272, %v3374, -inf
  %v5641 = vmax.f32 %v5639, %v5640
  %v5642 = vsel %vm5272, %v3464, -inf
  %v5643 = vmax.f32 %v5641, %v5642
  %v5644 = vsel %vm5272, %v3199, -inf
  %v5645 = vsel %vm5272, %v3289, -inf
  %v5646 = vmax.f32 %v5644, %v5645
  %v5647 = vsel %vm5272, %v3379, -inf
  %v5648 = vmax.f32 %v5646, %v5647
  %v5649 = vsel %vm5272, %v3469, -inf
  %v5650 = vmax.f32 %v5648, %v5649
  %v5651 = vsel %vm5272, %v3474, -inf
  %v5652 = vsel %vm5272, %v3564, -inf
  %v5653 = vmax.f32 %v5651, %v5652
  %v5654 = vsel %vm5272, %v3654, -inf
  %v5655 = vmax.f32 %v5653, %v5654
  %v5656 = vsel %vm5272, %v3744, -inf
  %v5657 = vmax.f32 %v5655, %v5656
  %v5658 = vsel %vm5272, %v3479, -inf
  %v5659 = vsel %vm5272, %v3569, -inf
  %v5660 = vmax.f32 %v5658, %v5659
  %v5661 = vsel %vm5272, %v3659, -inf
  %v5662 = vmax.f32 %v5660, %v5661
  %v5663 = vsel %vm5272, %v3749, -inf
  %v5664 = vmax.f32 %v5662, %v5663
  %v5665 = vsel %vm5272, %v3484, -inf
  %v5666 = vsel %vm5272, %v3574, -inf
  %v5667 = vmax.f32 %v5665, %v5666
  %v5668 = vsel %vm5272, %v3664, -inf
  %v5669 = vmax.f32 %v5667, %v5668
  %v5670 = vsel %vm5272, %v3754, -inf
  %v5671 = vmax.f32 %v5669, %v5670
  %v5672 = vsel %vm5272, %v3489, -inf
  %v5673 = vsel %vm5272, %v3579, -inf
  %v5674 = vmax.f32 %v5672, %v5673
  %v5675 = vsel %vm5272, %v3669, -inf
  %v5676 = vmax.f32 %v5674, %v5675
  %v5677 = vsel %vm5272, %v3759, -inf
  %v5678 = vmax.f32 %v5676, %v5677
  %v5679 = vsel %vm5272, %v3494, -inf
  %v5680 = vsel %vm5272, %v3584, -inf
  %v5681 = vmax.f32 %v5679, %v5680
  %v5682 = vsel %vm5272, %v3674, -inf
  %v5683 = vmax.f32 %v5681, %v5682
  %v5684 = vsel %vm5272, %v3764, -inf
  %v5685 = vmax.f32 %v5683, %v5684
  %v5686 = vsel %vm5272, %v3499, -inf
  %v5687 = vsel %vm5272, %v3589, -inf
  %v5688 = vmax.f32 %v5686, %v5687
  %v5689 = vsel %vm5272, %v3679, -inf
  %v5690 = vmax.f32 %v5688, %v5689
  %v5691 = vsel %vm5272, %v3769, -inf
  %v5692 = vmax.f32 %v5690, %v5691
  %v5693 = vsel %vm5272, %v3504, -inf
  %v5694 = vsel %vm5272, %v3594, -inf
  %v5695 = vmax.f32 %v5693, %v5694
  %v5696 = vsel %vm5272, %v3684, -inf
  %v5697 = vmax.f32 %v5695, %v5696
  %v5698 = vsel %vm5272, %v3774, -inf
  %v5699 = vmax.f32 %v5697, %v5698
  %v5700 = vsel %vm5272, %v3509, -inf
  %v5701 = vsel %vm5272, %v3599, -inf
  %v5702 = vmax.f32 %v5700, %v5701
  %v5703 = vsel %vm5272, %v3689, -inf
  %v5704 = vmax.f32 %v5702, %v5703
  %v5705 = vsel %vm5272, %v3779, -inf
  %v5706 = vmax.f32 %v5704, %v5705
  %v5707 = vsel %vm5272, %v3514, -inf
  %v5708 = vsel %vm5272, %v3604, -inf
  %v5709 = vmax.f32 %v5707, %v5708
  %v5710 = vsel %vm5272, %v3694, -inf
  %v5711 = vmax.f32 %v5709, %v5710
  %v5712 = vsel %vm5272, %v3784, -inf
  %v5713 = vmax.f32 %v5711, %v5712
  %v5714 = vsel %vm5272, %v3519, -inf
  %v5715 = vsel %vm5272, %v3609, -inf
  %v5716 = vmax.f32 %v5714, %v5715
  %v5717 = vsel %vm5272, %v3699, -inf
  %v5718 = vmax.f32 %v5716, %v5717
  %v5719 = vsel %vm5272, %v3789, -inf
  %v5720 = vmax.f32 %v5718, %v5719
  %v5721 = vsel %vm5272, %v3524, -inf
  %v5722 = vsel %vm5272, %v3614, -inf
  %v5723 = vmax.f32 %v5721, %v5722
  %v5724 = vsel %vm5272, %v3704, -inf
  %v5725 = vmax.f32 %v5723, %v5724
  %v5726 = vsel %vm5272, %v3794, -inf
  %v5727 = vmax.f32 %v5725, %v5726
  %v5728 = vsel %vm5272, %v3529, -inf
  %v5729 = vsel %vm5272, %v3619, -inf
  %v5730 = vmax.f32 %v5728, %v5729
  %v5731 = vsel %vm5272, %v3709, -inf
  %v5732 = vmax.f32 %v5730, %v5731
  %v5733 = vsel %vm5272, %v3799, -inf
  %v5734 = vmax.f32 %v5732, %v5733
  %v5735 = vsel %vm5272, %v3534, -inf
  %v5736 = vsel %vm5272, %v3624, -inf
  %v5737 = vmax.f32 %v5735, %v5736
  %v5738 = vsel %vm5272, %v3714, -inf
  %v5739 = vmax.f32 %v5737, %v5738
  %v5740 = vsel %vm5272, %v3804, -inf
  %v5741 = vmax.f32 %v5739, %v5740
  %v5742 = vsel %vm5272, %v3539, -inf
  %v5743 = vsel %vm5272, %v3629, -inf
  %v5744 = vmax.f32 %v5742, %v5743
  %v5745 = vsel %vm5272, %v3719, -inf
  %v5746 = vmax.f32 %v5744, %v5745
  %v5747 = vsel %vm5272, %v3809, -inf
  %v5748 = vmax.f32 %v5746, %v5747
  %v5749 = vsel %vm5272, %v3544, -inf
  %v5750 = vsel %vm5272, %v3634, -inf
  %v5751 = vmax.f32 %v5749, %v5750
  %v5752 = vsel %vm5272, %v3724, -inf
  %v5753 = vmax.f32 %v5751, %v5752
  %v5754 = vsel %vm5272, %v3814, -inf
  %v5755 = vmax.f32 %v5753, %v5754
  %v5756 = vsel %vm5272, %v3549, -inf
  %v5757 = vsel %vm5272, %v3639, -inf
  %v5758 = vmax.f32 %v5756, %v5757
  %v5759 = vsel %vm5272, %v3729, -inf
  %v5760 = vmax.f32 %v5758, %v5759
  %v5761 = vsel %vm5272, %v3819, -inf
  %v5762 = vmax.f32 %v5760, %v5761
  %v5763 = vsel %vm5272, %v3554, -inf
  %v5764 = vsel %vm5272, %v3644, -inf
  %v5765 = vmax.f32 %v5763, %v5764
  %v5766 = vsel %vm5272, %v3734, -inf
  %v5767 = vmax.f32 %v5765, %v5766
  %v5768 = vsel %vm5272, %v3824, -inf
  %v5769 = vmax.f32 %v5767, %v5768
  %v5770 = vsel %vm5272, %v3559, -inf
  %v5771 = vsel %vm5272, %v3649, -inf
  %v5772 = vmax.f32 %v5770, %v5771
  %v5773 = vsel %vm5272, %v3739, -inf
  %v5774 = vmax.f32 %v5772, %v5773
  %v5775 = vsel %vm5272, %v3829, -inf
  %v5776 = vmax.f32 %v5774, %v5775
  %v5777 = vsel %vm5272, %v3834, -inf
  %v5778 = vsel %vm5272, %v3924, -inf
  %v5779 = vmax.f32 %v5777, %v5778
  %v5780 = vsel %vm5272, %v4014, -inf
  %v5781 = vmax.f32 %v5779, %v5780
  %v5782 = vsel %vm5272, %v4104, -inf
  %v5783 = vmax.f32 %v5781, %v5782
  %v5784 = vsel %vm5272, %v3839, -inf
  %v5785 = vsel %vm5272, %v3929, -inf
  %v5786 = vmax.f32 %v5784, %v5785
  %v5787 = vsel %vm5272, %v4019, -inf
  %v5788 = vmax.f32 %v5786, %v5787
  %v5789 = vsel %vm5272, %v4109, -inf
  %v5790 = vmax.f32 %v5788, %v5789
  %v5791 = vsel %vm5272, %v3844, -inf
  %v5792 = vsel %vm5272, %v3934, -inf
  %v5793 = vmax.f32 %v5791, %v5792
  %v5794 = vsel %vm5272, %v4024, -inf
  %v5795 = vmax.f32 %v5793, %v5794
  %v5796 = vsel %vm5272, %v4114, -inf
  %v5797 = vmax.f32 %v5795, %v5796
  %v5798 = vsel %vm5272, %v3849, -inf
  %v5799 = vsel %vm5272, %v3939, -inf
  %v5800 = vmax.f32 %v5798, %v5799
  %v5801 = vsel %vm5272, %v4029, -inf
  %v5802 = vmax.f32 %v5800, %v5801
  %v5803 = vsel %vm5272, %v4119, -inf
  %v5804 = vmax.f32 %v5802, %v5803
  %v5805 = vsel %vm5272, %v3854, -inf
  %v5806 = vsel %vm5272, %v3944, -inf
  %v5807 = vmax.f32 %v5805, %v5806
  %v5808 = vsel %vm5272, %v4034, -inf
  %v5809 = vmax.f32 %v5807, %v5808
  %v5810 = vsel %vm5272, %v4124, -inf
  %v5811 = vmax.f32 %v5809, %v5810
  %v5812 = vsel %vm5272, %v3859, -inf
  %v5813 = vsel %vm5272, %v3949, -inf
  %v5814 = vmax.f32 %v5812, %v5813
  %v5815 = vsel %vm5272, %v4039, -inf
  %v5816 = vmax.f32 %v5814, %v5815
  %v5817 = vsel %vm5272, %v4129, -inf
  %v5818 = vmax.f32 %v5816, %v5817
  %v5819 = vsel %vm5272, %v3864, -inf
  %v5820 = vsel %vm5272, %v3954, -inf
  %v5821 = vmax.f32 %v5819, %v5820
  %v5822 = vsel %vm5272, %v4044, -inf
  %v5823 = vmax.f32 %v5821, %v5822
  %v5824 = vsel %vm5272, %v4134, -inf
  %v5825 = vmax.f32 %v5823, %v5824
  %v5826 = vsel %vm5272, %v3869, -inf
  %v5827 = vsel %vm5272, %v3959, -inf
  %v5828 = vmax.f32 %v5826, %v5827
  %v5829 = vsel %vm5272, %v4049, -inf
  %v5830 = vmax.f32 %v5828, %v5829
  %v5831 = vsel %vm5272, %v4139, -inf
  %v5832 = vmax.f32 %v5830, %v5831
  %v5833 = vsel %vm5272, %v3874, -inf
  %v5834 = vsel %vm5272, %v3964, -inf
  %v5835 = vmax.f32 %v5833, %v5834
  %v5836 = vsel %vm5272, %v4054, -inf
  %v5837 = vmax.f32 %v5835, %v5836
  %v5838 = vsel %vm5272, %v4144, -inf
  %v5839 = vmax.f32 %v5837, %v5838
  %v5840 = vsel %vm5272, %v3879, -inf
  %v5841 = vsel %vm5272, %v3969, -inf
  %v5842 = vmax.f32 %v5840, %v5841
  %v5843 = vsel %vm5272, %v4059, -inf
  %v5844 = vmax.f32 %v5842, %v5843
  %v5845 = vsel %vm5272, %v4149, -inf
  %v5846 = vmax.f32 %v5844, %v5845
  %v5847 = vsel %vm5272, %v3884, -inf
  %v5848 = vsel %vm5272, %v3974, -inf
  %v5849 = vmax.f32 %v5847, %v5848
  %v5850 = vsel %vm5272, %v4064, -inf
  %v5851 = vmax.f32 %v5849, %v5850
  %v5852 = vsel %vm5272, %v4154, -inf
  %v5853 = vmax.f32 %v5851, %v5852
  %v5854 = vsel %vm5272, %v3889, -inf
  %v5855 = vsel %vm5272, %v3979, -inf
  %v5856 = vmax.f32 %v5854, %v5855
  %v5857 = vsel %vm5272, %v4069, -inf
  %v5858 = vmax.f32 %v5856, %v5857
  %v5859 = vsel %vm5272, %v4159, -inf
  %v5860 = vmax.f32 %v5858, %v5859
  %v5861 = vsel %vm5272, %v3894, -inf
  %v5862 = vsel %vm5272, %v3984, -inf
  %v5863 = vmax.f32 %v5861, %v5862
  %v5864 = vsel %vm5272, %v4074, -inf
  %v5865 = vmax.f32 %v5863, %v5864
  %v5866 = vsel %vm5272, %v4164, -inf
  %v5867 = vmax.f32 %v5865, %v5866
  %v5868 = vsel %vm5272, %v3899, -inf
  %v5869 = vsel %vm5272, %v3989, -inf
  %v5870 = vmax.f32 %v5868, %v5869
  %v5871 = vsel %vm5272, %v4079, -inf
  %v5872 = vmax.f32 %v5870, %v5871
  %v5873 = vsel %vm5272, %v4169, -inf
  %v5874 = vmax.f32 %v5872, %v5873
  %v5875 = vsel %vm5272, %v3904, -inf
  %v5876 = vsel %vm5272, %v3994, -inf
  %v5877 = vmax.f32 %v5875, %v5876
  %v5878 = vsel %vm5272, %v4084, -inf
  %v5879 = vmax.f32 %v5877, %v5878
  %v5880 = vsel %vm5272, %v4174, -inf
  %v5881 = vmax.f32 %v5879, %v5880
  %v5882 = vsel %vm5272, %v3909, -inf
  %v5883 = vsel %vm5272, %v3999, -inf
  %v5884 = vmax.f32 %v5882, %v5883
  %v5885 = vsel %vm5272, %v4089, -inf
  %v5886 = vmax.f32 %v5884, %v5885
  %v5887 = vsel %vm5272, %v4179, -inf
  %v5888 = vmax.f32 %v5886, %v5887
  %v5889 = vsel %vm5272, %v3914, -inf
  %v5890 = vsel %vm5272, %v4004, -inf
  %v5891 = vmax.f32 %v5889, %v5890
  %v5892 = vsel %vm5272, %v4094, -inf
  %v5893 = vmax.f32 %v5891, %v5892
  %v5894 = vsel %vm5272, %v4184, -inf
  %v5895 = vmax.f32 %v5893, %v5894
  %v5896 = vsel %vm5272, %v3919, -inf
  %v5897 = vsel %vm5272, %v4009, -inf
  %v5898 = vmax.f32 %v5896, %v5897
  %v5899 = vsel %vm5272, %v4099, -inf
  %v5900 = vmax.f32 %v5898, %v5899
  %v5901 = vsel %vm5272, %v4189, -inf
  %v5902 = vmax.f32 %v5900, %v5901
  %v5903 = vsel %vm5272, %v4194, -inf
  %v5904 = vsel %vm5272, %v4284, -inf
  %v5905 = vmax.f32 %v5903, %v5904
  %v5906 = vsel %vm5272, %v4374, -inf
  %v5907 = vmax.f32 %v5905, %v5906
  %v5908 = vsel %vm5272, %v4464, -inf
  %v5909 = vmax.f32 %v5907, %v5908
  %v5910 = vsel %vm5272, %v4199, -inf
  %v5911 = vsel %vm5272, %v4289, -inf
  %v5912 = vmax.f32 %v5910, %v5911
  %v5913 = vsel %vm5272, %v4379, -inf
  %v5914 = vmax.f32 %v5912, %v5913
  %v5915 = vsel %vm5272, %v4469, -inf
  %v5916 = vmax.f32 %v5914, %v5915
  %v5917 = vsel %vm5272, %v4204, -inf
  %v5918 = vsel %vm5272, %v4294, -inf
  %v5919 = vmax.f32 %v5917, %v5918
  %v5920 = vsel %vm5272, %v4384, -inf
  %v5921 = vmax.f32 %v5919, %v5920
  %v5922 = vsel %vm5272, %v4474, -inf
  %v5923 = vmax.f32 %v5921, %v5922
  %v5924 = vsel %vm5272, %v4209, -inf
  %v5925 = vsel %vm5272, %v4299, -inf
  %v5926 = vmax.f32 %v5924, %v5925
  %v5927 = vsel %vm5272, %v4389, -inf
  %v5928 = vmax.f32 %v5926, %v5927
  %v5929 = vsel %vm5272, %v4479, -inf
  %v5930 = vmax.f32 %v5928, %v5929
  %v5931 = vsel %vm5272, %v4214, -inf
  %v5932 = vsel %vm5272, %v4304, -inf
  %v5933 = vmax.f32 %v5931, %v5932
  %v5934 = vsel %vm5272, %v4394, -inf
  %v5935 = vmax.f32 %v5933, %v5934
  %v5936 = vsel %vm5272, %v4484, -inf
  %v5937 = vmax.f32 %v5935, %v5936
  %v5938 = vsel %vm5272, %v4219, -inf
  %v5939 = vsel %vm5272, %v4309, -inf
  %v5940 = vmax.f32 %v5938, %v5939
  %v5941 = vsel %vm5272, %v4399, -inf
  %v5942 = vmax.f32 %v5940, %v5941
  %v5943 = vsel %vm5272, %v4489, -inf
  %v5944 = vmax.f32 %v5942, %v5943
  %v5945 = vsel %vm5272, %v4224, -inf
  %v5946 = vsel %vm5272, %v4314, -inf
  %v5947 = vmax.f32 %v5945, %v5946
  %v5948 = vsel %vm5272, %v4404, -inf
  %v5949 = vmax.f32 %v5947, %v5948
  %v5950 = vsel %vm5272, %v4494, -inf
  %v5951 = vmax.f32 %v5949, %v5950
  %v5952 = vsel %vm5272, %v4229, -inf
  %v5953 = vsel %vm5272, %v4319, -inf
  %v5954 = vmax.f32 %v5952, %v5953
  %v5955 = vsel %vm5272, %v4409, -inf
  %v5956 = vmax.f32 %v5954, %v5955
  %v5957 = vsel %vm5272, %v4499, -inf
  %v5958 = vmax.f32 %v5956, %v5957
  %v5959 = vsel %vm5272, %v4234, -inf
  %v5960 = vsel %vm5272, %v4324, -inf
  %v5961 = vmax.f32 %v5959, %v5960
  %v5962 = vsel %vm5272, %v4414, -inf
  %v5963 = vmax.f32 %v5961, %v5962
  %v5964 = vsel %vm5272, %v4504, -inf
  %v5965 = vmax.f32 %v5963, %v5964
  %v5966 = vsel %vm5272, %v4239, -inf
  %v5967 = vsel %vm5272, %v4329, -inf
  %v5968 = vmax.f32 %v5966, %v5967
  %v5969 = vsel %vm5272, %v4419, -inf
  %v5970 = vmax.f32 %v5968, %v5969
  %v5971 = vsel %vm5272, %v4509, -inf
  %v5972 = vmax.f32 %v5970, %v5971
  %v5973 = vsel %vm5272, %v4244, -inf
  %v5974 = vsel %vm5272, %v4334, -inf
  %v5975 = vmax.f32 %v5973, %v5974
  %v5976 = vsel %vm5272, %v4424, -inf
  %v5977 = vmax.f32 %v5975, %v5976
  %v5978 = vsel %vm5272, %v4514, -inf
  %v5979 = vmax.f32 %v5977, %v5978
  %v5980 = vsel %vm5272, %v4249, -inf
  %v5981 = vsel %vm5272, %v4339, -inf
  %v5982 = vmax.f32 %v5980, %v5981
  %v5983 = vsel %vm5272, %v4429, -inf
  %v5984 = vmax.f32 %v5982, %v5983
  %v5985 = vsel %vm5272, %v4519, -inf
  %v5986 = vmax.f32 %v5984, %v5985
  %v5987 = vsel %vm5272, %v4254, -inf
  %v5988 = vsel %vm5272, %v4344, -inf
  %v5989 = vmax.f32 %v5987, %v5988
  %v5990 = vsel %vm5272, %v4434, -inf
  %v5991 = vmax.f32 %v5989, %v5990
  %v5992 = vsel %vm5272, %v4524, -inf
  %v5993 = vmax.f32 %v5991, %v5992
  %v5994 = vsel %vm5272, %v4259, -inf
  %v5995 = vsel %vm5272, %v4349, -inf
  %v5996 = vmax.f32 %v5994, %v5995
  %v5997 = vsel %vm5272, %v4439, -inf
  %v5998 = vmax.f32 %v5996, %v5997
  %v5999 = vsel %vm5272, %v4529, -inf
  %v6000 = vmax.f32 %v5998, %v5999
  %v6001 = vsel %vm5272, %v4264, -inf
  %v6002 = vsel %vm5272, %v4354, -inf
  %v6003 = vmax.f32 %v6001, %v6002
  %v6004 = vsel %vm5272, %v4444, -inf
  %v6005 = vmax.f32 %v6003, %v6004
  %v6006 = vsel %vm5272, %v4534, -inf
  %v6007 = vmax.f32 %v6005, %v6006
  %v6008 = vsel %vm5272, %v4269, -inf
  %v6009 = vsel %vm5272, %v4359, -inf
  %v6010 = vmax.f32 %v6008, %v6009
  %v6011 = vsel %vm5272, %v4449, -inf
  %v6012 = vmax.f32 %v6010, %v6011
  %v6013 = vsel %vm5272, %v4539, -inf
  %v6014 = vmax.f32 %v6012, %v6013
  %v6015 = vsel %vm5272, %v4274, -inf
  %v6016 = vsel %vm5272, %v4364, -inf
  %v6017 = vmax.f32 %v6015, %v6016
  %v6018 = vsel %vm5272, %v4454, -inf
  %v6019 = vmax.f32 %v6017, %v6018
  %v6020 = vsel %vm5272, %v4544, -inf
  %v6021 = vmax.f32 %v6019, %v6020
  %v6022 = vsel %vm5272, %v4279, -inf
  %v6023 = vsel %vm5272, %v4369, -inf
  %v6024 = vmax.f32 %v6022, %v6023
  %v6025 = vsel %vm5272, %v4459, -inf
  %v6026 = vmax.f32 %v6024, %v6025
  %v6027 = vsel %vm5272, %v4549, -inf
  %v6028 = vmax.f32 %v6026, %v6027
  %v6029 = vsel %vm5272, %v4554, -inf
  %v6030 = vsel %vm5272, %v4644, -inf
  %v6031 = vmax.f32 %v6029, %v6030
  %v6032 = vsel %vm5272, %v4734, -inf
  %v6033 = vmax.f32 %v6031, %v6032
  %v6034 = vsel %vm5272, %v4824, -inf
  %v6035 = vmax.f32 %v6033, %v6034
  %v6036 = vsel %vm5272, %v4559, -inf
  %v6037 = vsel %vm5272, %v4649, -inf
  %v6038 = vmax.f32 %v6036, %v6037
  %v6039 = vsel %vm5272, %v4739, -inf
  %v6040 = vmax.f32 %v6038, %v6039
  %v6041 = vsel %vm5272, %v4829, -inf
  %v6042 = vmax.f32 %v6040, %v6041
  %v6043 = vsel %vm5272, %v4564, -inf
  %v6044 = vsel %vm5272, %v4654, -inf
  %v6045 = vmax.f32 %v6043, %v6044
  %v6046 = vsel %vm5272, %v4744, -inf
  %v6047 = vmax.f32 %v6045, %v6046
  %v6048 = vsel %vm5272, %v4834, -inf
  %v6049 = vmax.f32 %v6047, %v6048
  %v6050 = vsel %vm5272, %v4569, -inf
  %v6051 = vsel %vm5272, %v4659, -inf
  %v6052 = vmax.f32 %v6050, %v6051
  %v6053 = vsel %vm5272, %v4749, -inf
  %v6054 = vmax.f32 %v6052, %v6053
  %v6055 = vsel %vm5272, %v4839, -inf
  %v6056 = vmax.f32 %v6054, %v6055
  %v6057 = vsel %vm5272, %v4574, -inf
  %v6058 = vsel %vm5272, %v4664, -inf
  %v6059 = vmax.f32 %v6057, %v6058
  %v6060 = vsel %vm5272, %v4754, -inf
  %v6061 = vmax.f32 %v6059, %v6060
  %v6062 = vsel %vm5272, %v4844, -inf
  %v6063 = vmax.f32 %v6061, %v6062
  %v6064 = vsel %vm5272, %v4579, -inf
  %v6065 = vsel %vm5272, %v4669, -inf
  %v6066 = vmax.f32 %v6064, %v6065
  %v6067 = vsel %vm5272, %v4759, -inf
  %v6068 = vmax.f32 %v6066, %v6067
  %v6069 = vsel %vm5272, %v4849, -inf
  %v6070 = vmax.f32 %v6068, %v6069
  %v6071 = vsel %vm5272, %v4584, -inf
  %v6072 = vsel %vm5272, %v4674, -inf
  %v6073 = vmax.f32 %v6071, %v6072
  %v6074 = vsel %vm5272, %v4764, -inf
  %v6075 = vmax.f32 %v6073, %v6074
  %v6076 = vsel %vm5272, %v4854, -inf
  %v6077 = vmax.f32 %v6075, %v6076
  %v6078 = vsel %vm5272, %v4589, -inf
  %v6079 = vsel %vm5272, %v4679, -inf
  %v6080 = vmax.f32 %v6078, %v6079
  %v6081 = vsel %vm5272, %v4769, -inf
  %v6082 = vmax.f32 %v6080, %v6081
  %v6083 = vsel %vm5272, %v4859, -inf
  %v6084 = vmax.f32 %v6082, %v6083
  %v6085 = vsel %vm5272, %v4594, -inf
  %v6086 = vsel %vm5272, %v4684, -inf
  %v6087 = vmax.f32 %v6085, %v6086
  %v6088 = vsel %vm5272, %v4774, -inf
  %v6089 = vmax.f32 %v6087, %v6088
  %v6090 = vsel %vm5272, %v4864, -inf
  %v6091 = vmax.f32 %v6089, %v6090
  %v6092 = vsel %vm5272, %v4599, -inf
  %v6093 = vsel %vm5272, %v4689, -inf
  %v6094 = vmax.f32 %v6092, %v6093
  %v6095 = vsel %vm5272, %v4779, -inf
  %v6096 = vmax.f32 %v6094, %v6095
  %v6097 = vsel %vm5272, %v4869, -inf
  %v6098 = vmax.f32 %v6096, %v6097
  %v6099 = vsel %vm5272, %v4604, -inf
  %v6100 = vsel %vm5272, %v4694, -inf
  %v6101 = vmax.f32 %v6099, %v6100
  %v6102 = vsel %vm5272, %v4784, -inf
  %v6103 = vmax.f32 %v6101, %v6102
  %v6104 = vsel %vm5272, %v4874, -inf
  %v6105 = vmax.f32 %v6103, %v6104
  %v6106 = vsel %vm5272, %v4609, -inf
  %v6107 = vsel %vm5272, %v4699, -inf
  %v6108 = vmax.f32 %v6106, %v6107
  %v6109 = vsel %vm5272, %v4789, -inf
  %v6110 = vmax.f32 %v6108, %v6109
  %v6111 = vsel %vm5272, %v4879, -inf
  %v6112 = vmax.f32 %v6110, %v6111
  %v6113 = vsel %vm5272, %v4614, -inf
  %v6114 = vsel %vm5272, %v4704, -inf
  %v6115 = vmax.f32 %v6113, %v6114
  %v6116 = vsel %vm5272, %v4794, -inf
  %v6117 = vmax.f32 %v6115, %v6116
  %v6118 = vsel %vm5272, %v4884, -inf
  %v6119 = vmax.f32 %v6117, %v6118
  %v6120 = vsel %vm5272, %v4619, -inf
  %v6121 = vsel %vm5272, %v4709, -inf
  %v6122 = vmax.f32 %v6120, %v6121
  %v6123 = vsel %vm5272, %v4799, -inf
  %v6124 = vmax.f32 %v6122, %v6123
  %v6125 = vsel %vm5272, %v4889, -inf
  %v6126 = vmax.f32 %v6124, %v6125
  %v6127 = vsel %vm5272, %v4624, -inf
  %v6128 = vsel %vm5272, %v4714, -inf
  %v6129 = vmax.f32 %v6127, %v6128
  %v6130 = vsel %vm5272, %v4804, -inf
  %v6131 = vmax.f32 %v6129, %v6130
  %v6132 = vsel %vm5272, %v4894, -inf
  %v6133 = vmax.f32 %v6131, %v6132
  %v6134 = vsel %vm5272, %v4629, -inf
  %v6135 = vsel %vm5272, %v4719, -inf
  %v6136 = vmax.f32 %v6134, %v6135
  %v6137 = vsel %vm5272, %v4809, -inf
  %v6138 = vmax.f32 %v6136, %v6137
  %v6139 = vsel %vm5272, %v4899, -inf
  %v6140 = vmax.f32 %v6138, %v6139
  %v6141 = vsel %vm5272, %v4634, -inf
  %v6142 = vsel %vm5272, %v4724, -inf
  %v6143 = vmax.f32 %v6141, %v6142
  %v6144 = vsel %vm5272, %v4814, -inf
  %v6145 = vmax.f32 %v6143, %v6144
  %v6146 = vsel %vm5272, %v4904, -inf
  %v6147 = vmax.f32 %v6145, %v6146
  %v6148 = vsel %vm5272, %v4639, -inf
  %v6149 = vsel %vm5272, %v4729, -inf
  %v6150 = vmax.f32 %v6148, %v6149
  %v6151 = vsel %vm5272, %v4819, -inf
  %v6152 = vmax.f32 %v6150, %v6151
  %v6153 = vsel %vm5272, %v4909, -inf
  %v6154 = vmax.f32 %v6152, %v6153
  %v6155 = vsel %vm5272, %v4914, -inf
  %v6156 = vsel %vm5272, %v5004, -inf
  %v6157 = vmax.f32 %v6155, %v6156
  %v6158 = vsel %vm5272, %v5094, -inf
  %v6159 = vmax.f32 %v6157, %v6158
  %v6160 = vsel %vm5272, %v5184, -inf
  %v6161 = vmax.f32 %v6159, %v6160
  %v6162 = vsel %vm5272, %v4919, -inf
  %v6163 = vsel %vm5272, %v5009, -inf
  %v6164 = vmax.f32 %v6162, %v6163
  %v6165 = vsel %vm5272, %v5099, -inf
  %v6166 = vmax.f32 %v6164, %v6165
  %v6167 = vsel %vm5272, %v5189, -inf
  %v6168 = vmax.f32 %v6166, %v6167
  %v6169 = vsel %vm5272, %v4924, -inf
  %v6170 = vsel %vm5272, %v5014, -inf
  %v6171 = vmax.f32 %v6169, %v6170
  %v6172 = vsel %vm5272, %v5104, -inf
  %v6173 = vmax.f32 %v6171, %v6172
  %v6174 = vsel %vm5272, %v5194, -inf
  %v6175 = vmax.f32 %v6173, %v6174
  %v6176 = vsel %vm5272, %v4929, -inf
  %v6177 = vsel %vm5272, %v5019, -inf
  %v6178 = vmax.f32 %v6176, %v6177
  %v6179 = vsel %vm5272, %v5109, -inf
  %v6180 = vmax.f32 %v6178, %v6179
  %v6181 = vsel %vm5272, %v5199, -inf
  %v6182 = vmax.f32 %v6180, %v6181
  %v6183 = vsel %vm5272, %v4934, -inf
  %v6184 = vsel %vm5272, %v5024, -inf
  %v6185 = vmax.f32 %v6183, %v6184
  %v6186 = vsel %vm5272, %v5114, -inf
  %v6187 = vmax.f32 %v6185, %v6186
  %v6188 = vsel %vm5272, %v5204, -inf
  %v6189 = vmax.f32 %v6187, %v6188
  %v6190 = vsel %vm5272, %v4939, -inf
  %v6191 = vsel %vm5272, %v5029, -inf
  %v6192 = vmax.f32 %v6190, %v6191
  %v6193 = vsel %vm5272, %v5119, -inf
  %v6194 = vmax.f32 %v6192, %v6193
  %v6195 = vsel %vm5272, %v5209, -inf
  %v6196 = vmax.f32 %v6194, %v6195
  %v6197 = vsel %vm5272, %v4944, -inf
  %v6198 = vsel %vm5272, %v5034, -inf
  %v6199 = vmax.f32 %v6197, %v6198
  %v6200 = vsel %vm5272, %v5124, -inf
  %v6201 = vmax.f32 %v6199, %v6200
  %v6202 = vsel %vm5272, %v5214, -inf
  %v6203 = vmax.f32 %v6201, %v6202
  %v6204 = vsel %vm5272, %v4949, -inf
  %v6205 = vsel %vm5272, %v5039, -inf
  %v6206 = vmax.f32 %v6204, %v6205
  %v6207 = vsel %vm5272, %v5129, -inf
  %v6208 = vmax.f32 %v6206, %v6207
  %v6209 = vsel %vm5272, %v5219, -inf
  %v6210 = vmax.f32 %v6208, %v6209
  %v6211 = vsel %vm5272, %v4954, -inf
  %v6212 = vsel %vm5272, %v5044, -inf
  %v6213 = vmax.f32 %v6211, %v6212
  %v6214 = vsel %vm5272, %v5134, -inf
  %v6215 = vmax.f32 %v6213, %v6214
  %v6216 = vsel %vm5272, %v5224, -inf
  %v6217 = vmax.f32 %v6215, %v6216
  %v6218 = vsel %vm5272, %v4959, -inf
  %v6219 = vsel %vm5272, %v5049, -inf
  %v6220 = vmax.f32 %v6218, %v6219
  %v6221 = vsel %vm5272, %v5139, -inf
  %v6222 = vmax.f32 %v6220, %v6221
  %v6223 = vsel %vm5272, %v5229, -inf
  %v6224 = vmax.f32 %v6222, %v6223
  %v6225 = vsel %vm5272, %v4964, -inf
  %v6226 = vsel %vm5272, %v5054, -inf
  %v6227 = vmax.f32 %v6225, %v6226
  %v6228 = vsel %vm5272, %v5144, -inf
  %v6229 = vmax.f32 %v6227, %v6228
  %v6230 = vsel %vm5272, %v5234, -inf
  %v6231 = vmax.f32 %v6229, %v6230
  %v6232 = vsel %vm5272, %v4969, -inf
  %v6233 = vsel %vm5272, %v5059, -inf
  %v6234 = vmax.f32 %v6232, %v6233
  %v6235 = vsel %vm5272, %v5149, -inf
  %v6236 = vmax.f32 %v6234, %v6235
  %v6237 = vsel %vm5272, %v5239, -inf
  %v6238 = vmax.f32 %v6236, %v6237
  %v6239 = vsel %vm5272, %v4974, -inf
  %v6240 = vsel %vm5272, %v5064, -inf
  %v6241 = vmax.f32 %v6239, %v6240
  %v6242 = vsel %vm5272, %v5154, -inf
  %v6243 = vmax.f32 %v6241, %v6242
  %v6244 = vsel %vm5272, %v5244, -inf
  %v6245 = vmax.f32 %v6243, %v6244
  %v6246 = vsel %vm5272, %v4979, -inf
  %v6247 = vsel %vm5272, %v5069, -inf
  %v6248 = vmax.f32 %v6246, %v6247
  %v6249 = vsel %vm5272, %v5159, -inf
  %v6250 = vmax.f32 %v6248, %v6249
  %v6251 = vsel %vm5272, %v5249, -inf
  %v6252 = vmax.f32 %v6250, %v6251
  %v6253 = vsel %vm5272, %v4984, -inf
  %v6254 = vsel %vm5272, %v5074, -inf
  %v6255 = vmax.f32 %v6253, %v6254
  %v6256 = vsel %vm5272, %v5164, -inf
  %v6257 = vmax.f32 %v6255, %v6256
  %v6258 = vsel %vm5272, %v5254, -inf
  %v6259 = vmax.f32 %v6257, %v6258
  %v6260 = vsel %vm5272, %v4989, -inf
  %v6261 = vsel %vm5272, %v5079, -inf
  %v6262 = vmax.f32 %v6260, %v6261
  %v6263 = vsel %vm5272, %v5169, -inf
  %v6264 = vmax.f32 %v6262, %v6263
  %v6265 = vsel %vm5272, %v5259, -inf
  %v6266 = vmax.f32 %v6264, %v6265
  %v6267 = vsel %vm5272, %v4994, -inf
  %v6268 = vsel %vm5272, %v5084, -inf
  %v6269 = vmax.f32 %v6267, %v6268
  %v6270 = vsel %vm5272, %v5174, -inf
  %v6271 = vmax.f32 %v6269, %v6270
  %v6272 = vsel %vm5272, %v5264, -inf
  %v6273 = vmax.f32 %v6271, %v6272
  %v6274 = vsel %vm5272, %v4999, -inf
  %v6275 = vsel %vm5272, %v5089, -inf
  %v6276 = vmax.f32 %v6274, %v6275
  %v6277 = vsel %vm5272, %v5179, -inf
  %v6278 = vmax.f32 %v6276, %v6277
  %v6279 = vsel %vm5272, %v5269, -inf
  %v6280 = vmax.f32 %v6278, %v6279
  %v6281 = vld [vmem:[%s2] sm:$0x1]
  %v6283 = vlaneseq
  %v6284 = vshrl.u32 %v6283, 7
  %v6285 = vsub.s32 0, %v6284
  %v6286 = vrot.slane %v6281, %v6285
  %v6288 = vadd.f32 %v5279, %v6286
  %v6289 = vadd.f32 %v5286, %v6286
  %v6290 = vadd.f32 %v5293, %v6286
  %v6291 = vadd.f32 %v5300, %v6286
  %v6292 = vadd.f32 %v5307, %v6286
  %v6293 = vadd.f32 %v5314, %v6286
  %v6294 = vadd.f32 %v5321, %v6286
  %v6295 = vadd.f32 %v5328, %v6286
  %v6296 = vadd.f32 %v5335, %v6286
  %v6297 = vadd.f32 %v5342, %v6286
  %v6298 = vadd.f32 %v5349, %v6286
  %v6299 = vadd.f32 %v5356, %v6286
  %v6300 = vadd.f32 %v5363, %v6286
  %v6301 = vadd.f32 %v5370, %v6286
  %v6302 = vadd.f32 %v5377, %v6286
  %v6303 = vadd.f32 %v5384, %v6286
  %v6304 = vadd.f32 %v5391, %v6286
  %v6305 = vadd.f32 %v5398, %v6286
  %v6306 = vadd.f32 %v5405, %v6286
  %v6307 = vadd.f32 %v5412, %v6286
  %v6308 = vadd.f32 %v5419, %v6286
  %v6309 = vadd.f32 %v5426, %v6286
  %v6310 = vadd.f32 %v5433, %v6286
  %v6311 = vadd.f32 %v5440, %v6286
  %v6312 = vadd.f32 %v5447, %v6286
  %v6313 = vadd.f32 %v5454, %v6286
  %v6314 = vadd.f32 %v5461, %v6286
  %v6315 = vadd.f32 %v5468, %v6286
  %v6316 = vadd.f32 %v5475, %v6286
  %v6317 = vadd.f32 %v5482, %v6286
  %v6318 = vadd.f32 %v5489, %v6286
  %v6319 = vadd.f32 %v5496, %v6286
  %v6320 = vadd.f32 %v5503, %v6286
  %v6321 = vadd.f32 %v5510, %v6286
  %v6322 = vadd.f32 %v5517, %v6286
  %v6323 = vadd.f32 %v5524, %v6286
  %v6324 = vadd.f32 %v5531, %v6286
  %v6325 = vadd.f32 %v5538, %v6286
  %v6326 = vadd.f32 %v5545, %v6286
  %v6327 = vadd.f32 %v5552, %v6286
  %v6328 = vadd.f32 %v5559, %v6286
  %v6329 = vadd.f32 %v5566, %v6286
  %v6330 = vadd.f32 %v5573, %v6286
  %v6331 = vadd.f32 %v5580, %v6286
  %v6332 = vadd.f32 %v5587, %v6286
  %v6333 = vadd.f32 %v5594, %v6286
  %v6334 = vadd.f32 %v5601, %v6286
  %v6335 = vadd.f32 %v5608, %v6286
  %v6336 = vadd.f32 %v5615, %v6286
  %v6337 = vadd.f32 %v5622, %v6286
  %v6338 = vadd.f32 %v5629, %v6286
  %v6339 = vadd.f32 %v5636, %v6286
  %v6340 = vadd.f32 %v5643, %v6286
  %v6341 = vadd.f32 %v5650, %v6286
  %v6342 = vadd.f32 %v5657, %v6286
  %v6343 = vadd.f32 %v5664, %v6286
  %v6344 = vadd.f32 %v5671, %v6286
  %v6345 = vadd.f32 %v5678, %v6286
  %v6346 = vadd.f32 %v5685, %v6286
  %v6347 = vadd.f32 %v5692, %v6286
  %v6348 = vadd.f32 %v5699, %v6286
  %v6349 = vadd.f32 %v5706, %v6286
  %v6350 = vadd.f32 %v5713, %v6286
  %v6351 = vadd.f32 %v5720, %v6286
  %v6352 = vadd.f32 %v5727, %v6286
  %v6353 = vadd.f32 %v5734, %v6286
  %v6354 = vadd.f32 %v5741, %v6286
  %v6355 = vadd.f32 %v5748, %v6286
  %v6356 = vadd.f32 %v5755, %v6286
  %v6357 = vadd.f32 %v5762, %v6286
  %v6358 = vadd.f32 %v5769, %v6286
  %v6359 = vadd.f32 %v5776, %v6286
  %v6360 = vadd.f32 %v5783, %v6286
  %v6361 = vadd.f32 %v5790, %v6286
  %v6362 = vadd.f32 %v5797, %v6286
  %v6363 = vadd.f32 %v5804, %v6286
  %v6364 = vadd.f32 %v5811, %v6286
  %v6365 = vadd.f32 %v5818, %v6286
  %v6366 = vadd.f32 %v5825, %v6286
  %v6367 = vadd.f32 %v5832, %v6286
  %v6368 = vadd.f32 %v5839, %v6286
  %v6369 = vadd.f32 %v5846, %v6286
  %v6370 = vadd.f32 %v5853, %v6286
  %v6371 = vadd.f32 %v5860, %v6286
  %v6372 = vadd.f32 %v5867, %v6286
  %v6373 = vadd.f32 %v5874, %v6286
  %v6374 = vadd.f32 %v5881, %v6286
  %v6375 = vadd.f32 %v5888, %v6286
  %v6376 = vadd.f32 %v5895, %v6286
  %v6377 = vadd.f32 %v5902, %v6286
  %v6378 = vadd.f32 %v5909, %v6286
  %v6379 = vadd.f32 %v5916, %v6286
  %v6380 = vadd.f32 %v5923, %v6286
  %v6381 = vadd.f32 %v5930, %v6286
  %v6382 = vadd.f32 %v5937, %v6286
  %v6383 = vadd.f32 %v5944, %v6286
  %v6384 = vadd.f32 %v5951, %v6286
  %v6385 = vadd.f32 %v5958, %v6286
  %v6386 = vadd.f32 %v5965, %v6286
  %v6387 = vadd.f32 %v5972, %v6286
  %v6388 = vadd.f32 %v5979, %v6286
  %v6389 = vadd.f32 %v5986, %v6286
  %v6390 = vadd.f32 %v5993, %v6286
  %v6391 = vadd.f32 %v6000, %v6286
  %v6392 = vadd.f32 %v6007, %v6286
  %v6393 = vadd.f32 %v6014, %v6286
  %v6394 = vadd.f32 %v6021, %v6286
  %v6395 = vadd.f32 %v6028, %v6286
  %v6396 = vadd.f32 %v6035, %v6286
  %v6397 = vadd.f32 %v6042, %v6286
  %v6398 = vadd.f32 %v6049, %v6286
  %v6399 = vadd.f32 %v6056, %v6286
  %v6400 = vadd.f32 %v6063, %v6286
  %v6401 = vadd.f32 %v6070, %v6286
  %v6402 = vadd.f32 %v6077, %v6286
  %v6403 = vadd.f32 %v6084, %v6286
  %v6404 = vadd.f32 %v6091, %v6286
  %v6405 = vadd.f32 %v6098, %v6286
  %v6406 = vadd.f32 %v6105, %v6286
  %v6407 = vadd.f32 %v6112, %v6286
  %v6408 = vadd.f32 %v6119, %v6286
  %v6409 = vadd.f32 %v6126, %v6286
  %v6410 = vadd.f32 %v6133, %v6286
  %v6411 = vadd.f32 %v6140, %v6286
  %v6412 = vadd.f32 %v6147, %v6286
  %v6413 = vadd.f32 %v6154, %v6286
  %v6414 = vadd.f32 %v6161, %v6286
  %v6415 = vadd.f32 %v6168, %v6286
  %v6416 = vadd.f32 %v6175, %v6286
  %v6417 = vadd.f32 %v6182, %v6286
  %v6418 = vadd.f32 %v6189, %v6286
  %v6419 = vadd.f32 %v6196, %v6286
  %v6420 = vadd.f32 %v6203, %v6286
  %v6421 = vadd.f32 %v6210, %v6286
  %v6422 = vadd.f32 %v6217, %v6286
  %v6423 = vadd.f32 %v6224, %v6286
  %v6424 = vadd.f32 %v6231, %v6286
  %v6425 = vadd.f32 %v6238, %v6286
  %v6426 = vadd.f32 %v6245, %v6286
  %v6427 = vadd.f32 %v6252, %v6286
  %v6428 = vadd.f32 %v6259, %v6286
  %v6429 = vadd.f32 %v6266, %v6286
  %v6430 = vadd.f32 %v6273, %v6286
  %v6431 = vadd.f32 %v6280, %v6286
  %v6432 = vmax.f32 %v6288, 0.0
  %v6433 = vmax.f32 %v6289, 0.0
  %v6434 = vmax.f32 %v6290, 0.0
  %v6435 = vmax.f32 %v6291, 0.0
  %v6436 = vmax.f32 %v6292, 0.0
  %v6437 = vmax.f32 %v6293, 0.0
  %v6438 = vmax.f32 %v6294, 0.0
  %v6439 = vmax.f32 %v6295, 0.0
  %v6440 = vmax.f32 %v6296, 0.0
  %v6441 = vmax.f32 %v6297, 0.0
  %v6442 = vmax.f32 %v6298, 0.0
  %v6443 = vmax.f32 %v6299, 0.0
  %v6444 = vmax.f32 %v6300, 0.0
  %v6445 = vmax.f32 %v6301, 0.0
  %v6446 = vmax.f32 %v6302, 0.0
  %v6447 = vmax.f32 %v6303, 0.0
  %v6448 = vmax.f32 %v6304, 0.0
  %v6449 = vmax.f32 %v6305, 0.0
  %v6450 = vmax.f32 %v6306, 0.0
  %v6451 = vmax.f32 %v6307, 0.0
  %v6452 = vmax.f32 %v6308, 0.0
  %v6453 = vmax.f32 %v6309, 0.0
  %v6454 = vmax.f32 %v6310, 0.0
  %v6455 = vmax.f32 %v6311, 0.0
  %v6456 = vmax.f32 %v6312, 0.0
  %v6457 = vmax.f32 %v6313, 0.0
  %v6458 = vmax.f32 %v6314, 0.0
  %v6459 = vmax.f32 %v6315, 0.0
  %v6460 = vmax.f32 %v6316, 0.0
  %v6461 = vmax.f32 %v6317, 0.0
  %v6462 = vmax.f32 %v6318, 0.0
  %v6463 = vmax.f32 %v6319, 0.0
  %v6464 = vmax.f32 %v6320, 0.0
  %v6465 = vmax.f32 %v6321, 0.0
  %v6466 = vmax.f32 %v6322, 0.0
  %v6467 = vmax.f32 %v6323, 0.0
  %v6468 = vmax.f32 %v6324, 0.0
  %v6469 = vmax.f32 %v6325, 0.0
  %v6470 = vmax.f32 %v6326, 0.0
  %v6471 = vmax.f32 %v6327, 0.0
  %v6472 = vmax.f32 %v6328, 0.0
  %v6473 = vmax.f32 %v6329, 0.0
  %v6474 = vmax.f32 %v6330, 0.0
  %v6475 = vmax.f32 %v6331, 0.0
  %v6476 = vmax.f32 %v6332, 0.0
  %v6477 = vmax.f32 %v6333, 0.0
  %v6478 = vmax.f32 %v6334, 0.0
  %v6479 = vmax.f32 %v6335, 0.0
  %v6480 = vmax.f32 %v6336, 0.0
  %v6481 = vmax.f32 %v6337, 0.0
  %v6482 = vmax.f32 %v6338, 0.0
  %v6483 = vmax.f32 %v6339, 0.0
  %v6484 = vmax.f32 %v6340, 0.0
  %v6485 = vmax.f32 %v6341, 0.0
  %v6486 = vmax.f32 %v6342, 0.0
  %v6487 = vmax.f32 %v6343, 0.0
  %v6488 = vmax.f32 %v6344, 0.0
  %v6489 = vmax.f32 %v6345, 0.0
  %v6490 = vmax.f32 %v6346, 0.0
  %v6491 = vmax.f32 %v6347, 0.0
  %v6492 = vmax.f32 %v6348, 0.0
  %v6493 = vmax.f32 %v6349, 0.0
  %v6494 = vmax.f32 %v6350, 0.0
  %v6495 = vmax.f32 %v6351, 0.0
  %v6496 = vmax.f32 %v6352, 0.0
  %v6497 = vmax.f32 %v6353, 0.0
  %v6498 = vmax.f32 %v6354, 0.0
  %v6499 = vmax.f32 %v6355, 0.0
  %v6500 = vmax.f32 %v6356, 0.0
  %v6501 = vmax.f32 %v6357, 0.0
  %v6502 = vmax.f32 %v6358, 0.0
  %v6503 = vmax.f32 %v6359, 0.0
  %v6504 = vmax.f32 %v6360, 0.0
  %v6505 = vmax.f32 %v6361, 0.0
  %v6506 = vmax.f32 %v6362, 0.0
  %v6507 = vmax.f32 %v6363, 0.0
  %v6508 = vmax.f32 %v6364, 0.0
  %v6509 = vmax.f32 %v6365, 0.0
  %v6510 = vmax.f32 %v6366, 0.0
  %v6511 = vmax.f32 %v6367, 0.0
  %v6512 = vmax.f32 %v6368, 0.0
  %v6513 = vmax.f32 %v6369, 0.0
  %v6514 = vmax.f32 %v6370, 0.0
  %v6515 = vmax.f32 %v6371, 0.0
  %v6516 = vmax.f32 %v6372, 0.0
  %v6517 = vmax.f32 %v6373, 0.0
  %v6518 = vmax.f32 %v6374, 0.0
  %v6519 = vmax.f32 %v6375, 0.0
  %v6520 = vmax.f32 %v6376, 0.0
  %v6521 = vmax.f32 %v6377, 0.0
  %v6522 = vmax.f32 %v6378, 0.0
  %v6523 = vmax.f32 %v6379, 0.0
  %v6524 = vmax.f32 %v6380, 0.0
  %v6525 = vmax.f32 %v6381, 0.0
  %v6526 = vmax.f32 %v6382, 0.0
  %v6527 = vmax.f32 %v6383, 0.0
  %v6528 = vmax.f32 %v6384, 0.0
  %v6529 = vmax.f32 %v6385, 0.0
  %v6530 = vmax.f32 %v6386, 0.0
  %v6531 = vmax.f32 %v6387, 0.0
  %v6532 = vmax.f32 %v6388, 0.0
  %v6533 = vmax.f32 %v6389, 0.0
  %v6534 = vmax.f32 %v6390, 0.0
  %v6535 = vmax.f32 %v6391, 0.0
  %v6536 = vmax.f32 %v6392, 0.0
  %v6537 = vmax.f32 %v6393, 0.0
  %v6538 = vmax.f32 %v6394, 0.0
  %v6539 = vmax.f32 %v6395, 0.0
  %v6540 = vmax.f32 %v6396, 0.0
  %v6541 = vmax.f32 %v6397, 0.0
  %v6542 = vmax.f32 %v6398, 0.0
  %v6543 = vmax.f32 %v6399, 0.0
  %v6544 = vmax.f32 %v6400, 0.0
  %v6545 = vmax.f32 %v6401, 0.0
  %v6546 = vmax.f32 %v6402, 0.0
  %v6547 = vmax.f32 %v6403, 0.0
  %v6548 = vmax.f32 %v6404, 0.0
  %v6549 = vmax.f32 %v6405, 0.0
  %v6550 = vmax.f32 %v6406, 0.0
  %v6551 = vmax.f32 %v6407, 0.0
  %v6552 = vmax.f32 %v6408, 0.0
  %v6553 = vmax.f32 %v6409, 0.0
  %v6554 = vmax.f32 %v6410, 0.0
  %v6555 = vmax.f32 %v6411, 0.0
  %v6556 = vmax.f32 %v6412, 0.0
  %v6557 = vmax.f32 %v6413, 0.0
  %v6558 = vmax.f32 %v6414, 0.0
  %v6559 = vmax.f32 %v6415, 0.0
  %v6560 = vmax.f32 %v6416, 0.0
  %v6561 = vmax.f32 %v6417, 0.0
  %v6562 = vmax.f32 %v6418, 0.0
  %v6563 = vmax.f32 %v6419, 0.0
  %v6564 = vmax.f32 %v6420, 0.0
  %v6565 = vmax.f32 %v6421, 0.0
  %v6566 = vmax.f32 %v6422, 0.0
  %v6567 = vmax.f32 %v6423, 0.0
  %v6568 = vmax.f32 %v6424, 0.0
  %v6569 = vmax.f32 %v6425, 0.0
  %v6570 = vmax.f32 %v6426, 0.0
  %v6571 = vmax.f32 %v6427, 0.0
  %v6572 = vmax.f32 %v6428, 0.0
  %v6573 = vmax.f32 %v6429, 0.0
  %v6574 = vmax.f32 %v6430, 0.0
  %v6575 = vmax.f32 %v6431, 0.0
  %6576 = vst.msk [vmem:[%s3] sm:$0xff] %vm5272, %v6432
  %6577 = vst.msk [vmem:[%s3 + $0x8] sm:$0xff] %vm5272, %v6433
  %6578 = vst.msk [vmem:[%s3 + $0x10] sm:$0xff] %vm5272, %v6434
  %6579 = vst.msk [vmem:[%s3 + $0x18] sm:$0xff] %vm5272, %v6435
  %6580 = vst.msk [vmem:[%s3 + $0x20] sm:$0xff] %vm5272, %v6436
  %6581 = vst.msk [vmem:[%s3 + $0x28] sm:$0xff] %vm5272, %v6437
  %6582 = vst.msk [vmem:[%s3 + $0x30] sm:$0xff] %vm5272, %v6438
  %6583 = vst.msk [vmem:[%s3 + $0x38] sm:$0xff] %vm5272, %v6439
  %6584 = vst.msk [vmem:[%s3 + $0x40] sm:$0xff] %vm5272, %v6440
  %6585 = vst.msk [vmem:[%s3 + $0x48] sm:$0xff] %vm5272, %v6441
  %6586 = vst.msk [vmem:[%s3 + $0x50] sm:$0xff] %vm5272, %v6442
  %6587 = vst.msk [vmem:[%s3 + $0x58] sm:$0xff] %vm5272, %v6443
  %6588 = vst.msk [vmem:[%s3 + $0x60] sm:$0xff] %vm5272, %v6444
  %6589 = vst.msk [vmem:[%s3 + $0x68] sm:$0xff] %vm5272, %v6445
  %6590 = vst.msk [vmem:[%s3 + $0x70] sm:$0xff] %vm5272, %v6446
  %6591 = vst.msk [vmem:[%s3 + $0x78] sm:$0xff] %vm5272, %v6447
  %6592 = vst.msk [vmem:[%s3 + $0x80] sm:$0xff] %vm5272, %v6448
  %6593 = vst.msk [vmem:[%s3 + $0x88] sm:$0xff] %vm5272, %v6449
  %6594 = vst.msk [vmem:[%s3 + $0x90] sm:$0xff] %vm5272, %v6450
  %6595 = vst.msk [vmem:[%s3 + $0x98] sm:$0xff] %vm5272, %v6451
  %6596 = vst.msk [vmem:[%s3 + $0xa0] sm:$0xff] %vm5272, %v6452
  %6597 = vst.msk [vmem:[%s3 + $0xa8] sm:$0xff] %vm5272, %v6453
  %6598 = vst.msk [vmem:[%s3 + $0xb0] sm:$0xff] %vm5272, %v6454
  %6599 = vst.msk [vmem:[%s3 + $0xb8] sm:$0xff] %vm5272, %v6455
  %6600 = vst.msk [vmem:[%s3 + $0xc0] sm:$0xff] %vm5272, %v6456
  %6601 = vst.msk [vmem:[%s3 + $0xc8] sm:$0xff] %vm5272, %v6457
  %6602 = vst.msk [vmem:[%s3 + $0xd0] sm:$0xff] %vm5272, %v6458
  %6603 = vst.msk [vmem:[%s3 + $0xd8] sm:$0xff] %vm5272, %v6459
  %6604 = vst.msk [vmem:[%s3 + $0xe0] sm:$0xff] %vm5272, %v6460
  %6605 = vst.msk [vmem:[%s3 + $0xe8] sm:$0xff] %vm5272, %v6461
  %6606 = vst.msk [vmem:[%s3 + $0xf0] sm:$0xff] %vm5272, %v6462
  %6607 = vst.msk [vmem:[%s3 + $0xf8] sm:$0xff] %vm5272, %v6463
  %6608 = vst.msk [vmem:[%s3 + $0x100] sm:$0xff] %vm5272, %v6464
  %6609 = vst.msk [vmem:[%s3 + $0x108] sm:$0xff] %vm5272, %v6465
  %6610 = vst.msk [vmem:[%s3 + $0x110] sm:$0xff] %vm5272, %v6466
  %6611 = vst.msk [vmem:[%s3 + $0x118] sm:$0xff] %vm5272, %v6467
  %6612 = vst.msk [vmem:[%s3 + $0x120] sm:$0xff] %vm5272, %v6468
  %6613 = vst.msk [vmem:[%s3 + $0x128] sm:$0xff] %vm5272, %v6469
  %6614 = vst.msk [vmem:[%s3 + $0x130] sm:$0xff] %vm5272, %v6470
  %6615 = vst.msk [vmem:[%s3 + $0x138] sm:$0xff] %vm5272, %v6471
  %6616 = vst.msk [vmem:[%s3 + $0x140] sm:$0xff] %vm5272, %v6472
  %6617 = vst.msk [vmem:[%s3 + $0x148] sm:$0xff] %vm5272, %v6473
  %6618 = vst.msk [vmem:[%s3 + $0x150] sm:$0xff] %vm5272, %v6474
  %6619 = vst.msk [vmem:[%s3 + $0x158] sm:$0xff] %vm5272, %v6475
  %6620 = vst.msk [vmem:[%s3 + $0x160] sm:$0xff] %vm5272, %v6476
  %6621 = vst.msk [vmem:[%s3 + $0x168] sm:$0xff] %vm5272, %v6477
  %6622 = vst.msk [vmem:[%s3 + $0x170] sm:$0xff] %vm5272, %v6478
  %6623 = vst.msk [vmem:[%s3 + $0x178] sm:$0xff] %vm5272, %v6479
  %6624 = vst.msk [vmem:[%s3 + $0x180] sm:$0xff] %vm5272, %v6480
  %6625 = vst.msk [vmem:[%s3 + $0x188] sm:$0xff] %vm5272, %v6481
  %6626 = vst.msk [vmem:[%s3 + $0x190] sm:$0xff] %vm5272, %v6482
  %6627 = vst.msk [vmem:[%s3 + $0x198] sm:$0xff] %vm5272, %v6483
  %6628 = vst.msk [vmem:[%s3 + $0x1a0] sm:$0xff] %vm5272, %v6484
  %6629 = vst.msk [vmem:[%s3 + $0x1a8] sm:$0xff] %vm5272, %v6485
  %6630 = vst.msk [vmem:[%s3 + $0x1b0] sm:$0xff] %vm5272, %v6486
  %6631 = vst.msk [vmem:[%s3 + $0x1b8] sm:$0xff] %vm5272, %v6487
  %6632 = vst.msk [vmem:[%s3 + $0x1c0] sm:$0xff] %vm5272, %v6488
  %6633 = vst.msk [vmem:[%s3 + $0x1c8] sm:$0xff] %vm5272, %v6489
  %6634 = vst.msk [vmem:[%s3 + $0x1d0] sm:$0xff] %vm5272, %v6490
  %6635 = vst.msk [vmem:[%s3 + $0x1d8] sm:$0xff] %vm5272, %v6491
  %6636 = vst.msk [vmem:[%s3 + $0x1e0] sm:$0xff] %vm5272, %v6492
  %6637 = vst.msk [vmem:[%s3 + $0x1e8] sm:$0xff] %vm5272, %v6493
  %6638 = vst.msk [vmem:[%s3 + $0x1f0] sm:$0xff] %vm5272, %v6494
  %6639 = vst.msk [vmem:[%s3 + $0x1f8] sm:$0xff] %vm5272, %v6495
  %6640 = vst.msk [vmem:[%s3 + $0x200] sm:$0xff] %vm5272, %v6496
  %6641 = vst.msk [vmem:[%s3 + $0x208] sm:$0xff] %vm5272, %v6497
  %6642 = vst.msk [vmem:[%s3 + $0x210] sm:$0xff] %vm5272, %v6498
  %6643 = vst.msk [vmem:[%s3 + $0x218] sm:$0xff] %vm5272, %v6499
  %6644 = vst.msk [vmem:[%s3 + $0x220] sm:$0xff] %vm5272, %v6500
  %6645 = vst.msk [vmem:[%s3 + $0x228] sm:$0xff] %vm5272, %v6501
  %6646 = vst.msk [vmem:[%s3 + $0x230] sm:$0xff] %vm5272, %v6502
  %6647 = vst.msk [vmem:[%s3 + $0x238] sm:$0xff] %vm5272, %v6503
  %6648 = vst.msk [vmem:[%s3 + $0x240] sm:$0xff] %vm5272, %v6504
  %6649 = vst.msk [vmem:[%s3 + $0x248] sm:$0xff] %vm5272, %v6505
  %6650 = vst.msk [vmem:[%s3 + $0x250] sm:$0xff] %vm5272, %v6506
  %6651 = vst.msk [vmem:[%s3 + $0x258] sm:$0xff] %vm5272, %v6507
  %6652 = vst.msk [vmem:[%s3 + $0x260] sm:$0xff] %vm5272, %v6508
  %6653 = vst.msk [vmem:[%s3 + $0x268] sm:$0xff] %vm5272, %v6509
  %6654 = vst.msk [vmem:[%s3 + $0x270] sm:$0xff] %vm5272, %v6510
  %6655 = vst.msk [vmem:[%s3 + $0x278] sm:$0xff] %vm5272, %v6511
  %6656 = vst.msk [vmem:[%s3 + $0x280] sm:$0xff] %vm5272, %v6512
  %6657 = vst.msk [vmem:[%s3 + $0x288] sm:$0xff] %vm5272, %v6513
  %6658 = vst.msk [vmem:[%s3 + $0x290] sm:$0xff] %vm5272, %v6514
  %6659 = vst.msk [vmem:[%s3 + $0x298] sm:$0xff] %vm5272, %v6515
  %6660 = vst.msk [vmem:[%s3 + $0x2a0] sm:$0xff] %vm5272, %v6516
  %6661 = vst.msk [vmem:[%s3 + $0x2a8] sm:$0xff] %vm5272, %v6517
  %6662 = vst.msk [vmem:[%s3 + $0x2b0] sm:$0xff] %vm5272, %v6518
  %6663 = vst.msk [vmem:[%s3 + $0x2b8] sm:$0xff] %vm5272, %v6519
  %6664 = vst.msk [vmem:[%s3 + $0x2c0] sm:$0xff] %vm5272, %v6520
  %6665 = vst.msk [vmem:[%s3 + $0x2c8] sm:$0xff] %vm5272, %v6521
  %6666 = vst.msk [vmem:[%s3 + $0x2d0] sm:$0xff] %vm5272, %v6522
  %6667 = vst.msk [vmem:[%s3 + $0x2d8] sm:$0xff] %vm5272, %v6523
  %6668 = vst.msk [vmem:[%s3 + $0x2e0] sm:$0xff] %vm5272, %v6524
  %6669 = vst.msk [vmem:[%s3 + $0x2e8] sm:$0xff] %vm5272, %v6525
  %6670 = vst.msk [vmem:[%s3 + $0x2f0] sm:$0xff] %vm5272, %v6526
  %6671 = vst.msk [vmem:[%s3 + $0x2f8] sm:$0xff] %vm5272, %v6527
  %6672 = vst.msk [vmem:[%s3 + $0x300] sm:$0xff] %vm5272, %v6528
  %6673 = vst.msk [vmem:[%s3 + $0x308] sm:$0xff] %vm5272, %v6529
  %6674 = vst.msk [vmem:[%s3 + $0x310] sm:$0xff] %vm5272, %v6530
  %6675 = vst.msk [vmem:[%s3 + $0x318] sm:$0xff] %vm5272, %v6531
  %6676 = vst.msk [vmem:[%s3 + $0x320] sm:$0xff] %vm5272, %v6532
  %6677 = vst.msk [vmem:[%s3 + $0x328] sm:$0xff] %vm5272, %v6533
  %6678 = vst.msk [vmem:[%s3 + $0x330] sm:$0xff] %vm5272, %v6534
  %6679 = vst.msk [vmem:[%s3 + $0x338] sm:$0xff] %vm5272, %v6535
  %6680 = vst.msk [vmem:[%s3 + $0x340] sm:$0xff] %vm5272, %v6536
  %6681 = vst.msk [vmem:[%s3 + $0x348] sm:$0xff] %vm5272, %v6537
  %6682 = vst.msk [vmem:[%s3 + $0x350] sm:$0xff] %vm5272, %v6538
  %6683 = vst.msk [vmem:[%s3 + $0x358] sm:$0xff] %vm5272, %v6539
  %6684 = vst.msk [vmem:[%s3 + $0x360] sm:$0xff] %vm5272, %v6540
  %6685 = vst.msk [vmem:[%s3 + $0x368] sm:$0xff] %vm5272, %v6541
  %6686 = vst.msk [vmem:[%s3 + $0x370] sm:$0xff] %vm5272, %v6542
  %6687 = vst.msk [vmem:[%s3 + $0x378] sm:$0xff] %vm5272, %v6543
  %6688 = vst.msk [vmem:[%s3 + $0x380] sm:$0xff] %vm5272, %v6544
  %6689 = vst.msk [vmem:[%s3 + $0x388] sm:$0xff] %vm5272, %v6545
  %6690 = vst.msk [vmem:[%s3 + $0x390] sm:$0xff] %vm5272, %v6546
  %6691 = vst.msk [vmem:[%s3 + $0x398] sm:$0xff] %vm5272, %v6547
  %6692 = vst.msk [vmem:[%s3 + $0x3a0] sm:$0xff] %vm5272, %v6548
  %6693 = vst.msk [vmem:[%s3 + $0x3a8] sm:$0xff] %vm5272, %v6549
  %6694 = vst.msk [vmem:[%s3 + $0x3b0] sm:$0xff] %vm5272, %v6550
  %6695 = vst.msk [vmem:[%s3 + $0x3b8] sm:$0xff] %vm5272, %v6551
  %6696 = vst.msk [vmem:[%s3 + $0x3c0] sm:$0xff] %vm5272, %v6552
  %6697 = vst.msk [vmem:[%s3 + $0x3c8] sm:$0xff] %vm5272, %v6553
  %6698 = vst.msk [vmem:[%s3 + $0x3d0] sm:$0xff] %vm5272, %v6554
  %6699 = vst.msk [vmem:[%s3 + $0x3d8] sm:$0xff] %vm5272, %v6555
  %6700 = vst.msk [vmem:[%s3 + $0x3e0] sm:$0xff] %vm5272, %v6556
  %6701 = vst.msk [vmem:[%s3 + $0x3e8] sm:$0xff] %vm5272, %v6557
  %6702 = vst.msk [vmem:[%s3 + $0x3f0] sm:$0xff] %vm5272, %v6558
  %6703 = vst.msk [vmem:[%s3 + $0x3f8] sm:$0xff] %vm5272, %v6559
  %6704 = vst.msk [vmem:[%s3 + $0x400] sm:$0xff] %vm5272, %v6560
  %6705 = vst.msk [vmem:[%s3 + $0x408] sm:$0xff] %vm5272, %v6561
  %6706 = vst.msk [vmem:[%s3 + $0x410] sm:$0xff] %vm5272, %v6562
  %6707 = vst.msk [vmem:[%s3 + $0x418] sm:$0xff] %vm5272, %v6563
  %6708 = vst.msk [vmem:[%s3 + $0x420] sm:$0xff] %vm5272, %v6564
  %6709 = vst.msk [vmem:[%s3 + $0x428] sm:$0xff] %vm5272, %v6565
  %6710 = vst.msk [vmem:[%s3 + $0x430] sm:$0xff] %vm5272, %v6566
  %6711 = vst.msk [vmem:[%s3 + $0x438] sm:$0xff] %vm5272, %v6567
  %6712 = vst.msk [vmem:[%s3 + $0x440] sm:$0xff] %vm5272, %v6568
  %6713 = vst.msk [vmem:[%s3 + $0x448] sm:$0xff] %vm5272, %v6569
  %6714 = vst.msk [vmem:[%s3 + $0x450] sm:$0xff] %vm5272, %v6570
  %6715 = vst.msk [vmem:[%s3 + $0x458] sm:$0xff] %vm5272, %v6571
  %6716 = vst.msk [vmem:[%s3 + $0x460] sm:$0xff] %vm5272, %v6572
  %6717 = vst.msk [vmem:[%s3 + $0x468] sm:$0xff] %vm5272, %v6573
  %6718 = vst.msk [vmem:[%s3 + $0x470] sm:$0xff] %vm5272, %v6574
  %6719 = vst.msk [vmem:[%s3 + $0x478] sm:$0xff] %vm5272, %v6575
  // Predicated region
  $region14: #{forward.3} parent=0 // pred_check
    _
  $region15: #{forward.3} parent=0 // pred_check_branch
    %6721 = sbr.rel (0) target = $region17
  $region16: #{forward.3} parent=0 // pred_region
    _
  $region17: #{forward.3} parent=0 // pred_fallthru
    _
  // Predicated region
  $region18: #{forward.3} parent=0 // pred_check
    _
  $region19: #{forward.3} parent=0 // pred_check_branch
    %6723 = sbr.rel (0) target = $region21
  $region20: #{forward.3} parent=0 // pred_region
    _
  $region21: #{forward.3} parent=0 // pred_fallthru
    _

// kernel: forward.4
$region0: #{forward.4}
  #allocation0 [shape = 'u32[]', space=smem, size = 0x4, offset = 0x4, fixed_abs, tag = 'smem constant byte address 0x4 - core index']
  #allocation1 [shape = 'u32[144,128]{1,0:T(1,128)}', space=vmem, size = 0x12000, scoped, tag = 'internal scratch']
  %s0 = inlined_call_operand.vmem [shape: f32[8,64,256], index: 0, kind: input, shape index: {}]
  %s1 = inlined_call_operand.vmem [shape: f32[256,20], index: 1, kind: input, shape index: {}]
  %s2 = inlined_call_operand.vmem [shape: f32[1,20], index: 2, kind: input, shape index: {}]
  %s3 = inlined_call_operand.vmem [shape: f32[8,16,20], index: 3, kind: output, shape index: {}]
  %s4 = sld [smem:[#allocation0]]
  $region22: #{forward.4} parent=0
    _
  %s6 = ssub.s32 1, %s4
  %s7 = scalar_select 0, %s6, %s4
  // Predicated region
  $region2: #{forward.4} parent=0 // pred_check
    _
  $region3: #{forward.4} parent=0 // pred_check_branch
    %9 = sbr.rel (0) target = $region5
  $region4: #{forward.4} parent=0 // pred_region
    _
  $region5: #{forward.4} parent=0 // pred_fallthru
    _
  // Predicated region
  $region6: #{forward.4} parent=0 // pred_check
    _
  $region7: #{forward.4} parent=0 // pred_check_branch
    %11 = sbr.rel (0) target = $region9
  $region8: #{forward.4} parent=0 // pred_region
    _
  $region9: #{forward.4} parent=0 // pred_fallthru
    _
  // Predicated region
  $region10: #{forward.4} parent=0 // pred_check
    _
  $region11: #{forward.4} parent=0 // pred_check_branch
    %13 = sbr.rel (0) target = $region13
  $region12: #{forward.4} parent=0 // pred_region
    _
  $region13: #{forward.4} parent=0 // pred_fallthru
    _
  %v14 = vld [vmem:[%s0] sm:$0xff]
  %v15 = vld [vmem:[%s0 + $0x8] sm:$0xff]
  %v16 = vld [vmem:[%s0 + $0x10] sm:$0xff]
  %v17 = vld [vmem:[%s0 + $0x18] sm:$0xff]
  %v18 = vld [vmem:[%s0 + $0x20] sm:$0xff]
  %v19 = vld [vmem:[%s0 + $0x28] sm:$0xff]
  %v20 = vld [vmem:[%s0 + $0x30] sm:$0xff]
  %v21 = vld [vmem:[%s0 + $0x38] sm:$0xff]
  %v22 = vld [vmem:[%s0 + $0x40] sm:$0xff]
  %v23 = vld [vmem:[%s0 + $0x48] sm:$0xff]
  %v24 = vld [vmem:[%s0 + $0x50] sm:$0xff]
  %v25 = vld [vmem:[%s0 + $0x58] sm:$0xff]
  %v26 = vld [vmem:[%s0 + $0x60] sm:$0xff]
  %v27 = vld [vmem:[%s0 + $0x68] sm:$0xff]
  %v28 = vld [vmem:[%s0 + $0x70] sm:$0xff]
  %v29 = vld [vmem:[%s0 + $0x78] sm:$0xff]
  %v30 = vld [vmem:[%s0 + $0x80] sm:$0xff]
  %v31 = vld [vmem:[%s0 + $0x88] sm:$0xff]
  %v32 = vld [vmem:[%s0 + $0x90] sm:$0xff]
  %v33 = vld [vmem:[%s0 + $0x98] sm:$0xff]
  %v34 = vld [vmem:[%s0 + $0xa0] sm:$0xff]
  %v35 = vld [vmem:[%s0 + $0xa8] sm:$0xff]
  %v36 = vld [vmem:[%s0 + $0xb0] sm:$0xff]
  %v37 = vld [vmem:[%s0 + $0xb8] sm:$0xff]
  %v38 = vld [vmem:[%s0 + $0xc0] sm:$0xff]
  %v39 = vld [vmem:[%s0 + $0xc8] sm:$0xff]
  %v40 = vld [vmem:[%s0 + $0xd0] sm:$0xff]
  %v41 = vld [vmem:[%s0 + $0xd8] sm:$0xff]
  %v42 = vld [vmem:[%s0 + $0xe0] sm:$0xff]
  %v43 = vld [vmem:[%s0 + $0xe8] sm:$0xff]
  %v44 = vld [vmem:[%s0 + $0xf0] sm:$0xff]
  %v45 = vld [vmem:[%s0 + $0xf8] sm:$0xff]
  %v46 = vld [vmem:[%s0 + $0x100] sm:$0xff]
  %v47 = vld [vmem:[%s0 + $0x108] sm:$0xff]
  %v48 = vld [vmem:[%s0 + $0x110] sm:$0xff]
  %v49 = vld [vmem:[%s0 + $0x118] sm:$0xff]
  %v50 = vld [vmem:[%s0 + $0x120] sm:$0xff]
  %v51 = vld [vmem:[%s0 + $0x128] sm:$0xff]
  %v52 = vld [vmem:[%s0 + $0x130] sm:$0xff]
  %v53 = vld [vmem:[%s0 + $0x138] sm:$0xff]
  %v54 = vld [vmem:[%s0 + $0x140] sm:$0xff]
  %v55 = vld [vmem:[%s0 + $0x148] sm:$0xff]
  %v56 = vld [vmem:[%s0 + $0x150] sm:$0xff]
  %v57 = vld [vmem:[%s0 + $0x158] sm:$0xff]
  %v58 = vld [vmem:[%s0 + $0x160] sm:$0xff]
  %v59 = vld [vmem:[%s0 + $0x168] sm:$0xff]
  %v60 = vld [vmem:[%s0 + $0x170] sm:$0xff]
  %v61 = vld [vmem:[%s0 + $0x178] sm:$0xff]
  %v62 = vld [vmem:[%s0 + $0x180] sm:$0xff]
  %v63 = vld [vmem:[%s0 + $0x188] sm:$0xff]
  %v64 = vld [vmem:[%s0 + $0x190] sm:$0xff]
  %v65 = vld [vmem:[%s0 + $0x198] sm:$0xff]
  %v66 = vld [vmem:[%s0 + $0x1a0] sm:$0xff]
  %v67 = vld [vmem:[%s0 + $0x1a8] sm:$0xff]
  %v68 = vld [vmem:[%s0 + $0x1b0] sm:$0xff]
  %v69 = vld [vmem:[%s0 + $0x1b8] sm:$0xff]
  %v70 = vld [vmem:[%s0 + $0x1c0] sm:$0xff]
  %v71 = vld [vmem:[%s0 + $0x1c8] sm:$0xff]
  %v72 = vld [vmem:[%s0 + $0x1d0] sm:$0xff]
  %v73 = vld [vmem:[%s0 + $0x1d8] sm:$0xff]
  %v74 = vld [vmem:[%s0 + $0x1e0] sm:$0xff]
  %v75 = vld [vmem:[%s0 + $0x1e8] sm:$0xff]
  %v76 = vld [vmem:[%s0 + $0x1f0] sm:$0xff]
  %v77 = vld [vmem:[%s0 + $0x1f8] sm:$0xff]
  %v78 = vld [vmem:[%s0 + $0x200] sm:$0xff]
  %v79 = vld [vmem:[%s0 + $0x208] sm:$0xff]
  %v80 = vld [vmem:[%s0 + $0x210] sm:$0xff]
  %v81 = vld [vmem:[%s0 + $0x218] sm:$0xff]
  %v82 = vld [vmem:[%s0 + $0x220] sm:$0xff]
  %v83 = vld [vmem:[%s0 + $0x228] sm:$0xff]
  %v84 = vld [vmem:[%s0 + $0x230] sm:$0xff]
  %v85 = vld [vmem:[%s0 + $0x238] sm:$0xff]
  %v86 = vld [vmem:[%s0 + $0x240] sm:$0xff]
  %v87 = vld [vmem:[%s0 + $0x248] sm:$0xff]
  %v88 = vld [vmem:[%s0 + $0x250] sm:$0xff]
  %v89 = vld [vmem:[%s0 + $0x258] sm:$0xff]
  %v90 = vld [vmem:[%s0 + $0x260] sm:$0xff]
  %v91 = vld [vmem:[%s0 + $0x268] sm:$0xff]
  %v92 = vld [vmem:[%s0 + $0x270] sm:$0xff]
  %v93 = vld [vmem:[%s0 + $0x278] sm:$0xff]
  %v94 = vld [vmem:[%s0 + $0x280] sm:$0xff]
  %v95 = vld [vmem:[%s0 + $0x288] sm:$0xff]
  %v96 = vld [vmem:[%s0 + $0x290] sm:$0xff]
  %v97 = vld [vmem:[%s0 + $0x298] sm:$0xff]
  %v98 = vld [vmem:[%s0 + $0x2a0] sm:$0xff]
  %v99 = vld [vmem:[%s0 + $0x2a8] sm:$0xff]
  %v100 = vld [vmem:[%s0 + $0x2b0] sm:$0xff]
  %v101 = vld [vmem:[%s0 + $0x2b8] sm:$0xff]
  %v102 = vld [vmem:[%s0 + $0x2c0] sm:$0xff]
  %v103 = vld [vmem:[%s0 + $0x2c8] sm:$0xff]
  %v104 = vld [vmem:[%s0 + $0x2d0] sm:$0xff]
  %v105 = vld [vmem:[%s0 + $0x2d8] sm:$0xff]
  %v106 = vld [vmem:[%s0 + $0x2e0] sm:$0xff]
  %v107 = vld [vmem:[%s0 + $0x2e8] sm:$0xff]
  %v108 = vld [vmem:[%s0 + $0x2f0] sm:$0xff]
  %v109 = vld [vmem:[%s0 + $0x2f8] sm:$0xff]
  %v110 = vld [vmem:[%s0 + $0x300] sm:$0xff]
  %v111 = vld [vmem:[%s0 + $0x308] sm:$0xff]
  %v112 = vld [vmem:[%s0 + $0x310] sm:$0xff]
  %v113 = vld [vmem:[%s0 + $0x318] sm:$0xff]
  %v114 = vld [vmem:[%s0 + $0x320] sm:$0xff]
  %v115 = vld [vmem:[%s0 + $0x328] sm:$0xff]
  %v116 = vld [vmem:[%s0 + $0x330] sm:$0xff]
  %v117 = vld [vmem:[%s0 + $0x338] sm:$0xff]
  %v118 = vld [vmem:[%s0 + $0x340] sm:$0xff]
  %v119 = vld [vmem:[%s0 + $0x348] sm:$0xff]
  %v120 = vld [vmem:[%s0 + $0x350] sm:$0xff]
  %v121 = vld [vmem:[%s0 + $0x358] sm:$0xff]
  %v122 = vld [vmem:[%s0 + $0x360] sm:$0xff]
  %v123 = vld [vmem:[%s0 + $0x368] sm:$0xff]
  %v124 = vld [vmem:[%s0 + $0x370] sm:$0xff]
  %v125 = vld [vmem:[%s0 + $0x378] sm:$0xff]
  %v126 = vld [vmem:[%s0 + $0x380] sm:$0xff]
  %v127 = vld [vmem:[%s0 + $0x388] sm:$0xff]
  %v128 = vld [vmem:[%s0 + $0x390] sm:$0xff]
  %v129 = vld [vmem:[%s0 + $0x398] sm:$0xff]
  %v130 = vld [vmem:[%s0 + $0x3a0] sm:$0xff]
  %v131 = vld [vmem:[%s0 + $0x3a8] sm:$0xff]
  %v132 = vld [vmem:[%s0 + $0x3b0] sm:$0xff]
  %v133 = vld [vmem:[%s0 + $0x3b8] sm:$0xff]
  %v134 = vld [vmem:[%s0 + $0x3c0] sm:$0xff]
  %v135 = vld [vmem:[%s0 + $0x3c8] sm:$0xff]
  %v136 = vld [vmem:[%s0 + $0x3d0] sm:$0xff]
  %v137 = vld [vmem:[%s0 + $0x3d8] sm:$0xff]
  %v138 = vld [vmem:[%s0 + $0x3e0] sm:$0xff]
  %v139 = vld [vmem:[%s0 + $0x3e8] sm:$0xff]
  %v140 = vld [vmem:[%s0 + $0x3f0] sm:$0xff]
  %v141 = vld [vmem:[%s0 + $0x3f8] sm:$0xff]
  %v142 = vld [vmem:[%s1] sm:$0xff]
  %v143 = vld [vmem:[%s1 + $0x8] sm:$0xff]
  %v144 = vld [vmem:[%s1 + $0x10] sm:$0xff]
  %v145 = vld [vmem:[%s1 + $0x18] sm:$0xff]
  %v146 = vld [vmem:[%s1 + $0x20] sm:$0xff]
  %v147 = vld [vmem:[%s1 + $0x28] sm:$0xff]
  %v148 = vld [vmem:[%s1 + $0x30] sm:$0xff]
  %v149 = vld [vmem:[%s1 + $0x38] sm:$0xff]
  %v150 = vld [vmem:[%s1 + $0x40] sm:$0xff]
  %v151 = vld [vmem:[%s1 + $0x48] sm:$0xff]
  %v152 = vld [vmem:[%s1 + $0x50] sm:$0xff]
  %v153 = vld [vmem:[%s1 + $0x58] sm:$0xff]
  %v154 = vld [vmem:[%s1 + $0x60] sm:$0xff]
  %v155 = vld [vmem:[%s1 + $0x68] sm:$0xff]
  %v156 = vld [vmem:[%s1 + $0x70] sm:$0xff]
  %v157 = vld [vmem:[%s1 + $0x78] sm:$0xff]
  %v158 = vld [vmem:[%s1 + $0x80] sm:$0xff]
  %v159 = vld [vmem:[%s1 + $0x88] sm:$0xff]
  %v160 = vld [vmem:[%s1 + $0x90] sm:$0xff]
  %v161 = vld [vmem:[%s1 + $0x98] sm:$0xff]
  %v162 = vld [vmem:[%s1 + $0xa0] sm:$0xff]
  %v163 = vld [vmem:[%s1 + $0xa8] sm:$0xff]
  %v164 = vld [vmem:[%s1 + $0xb0] sm:$0xff]
  %v165 = vld [vmem:[%s1 + $0xb8] sm:$0xff]
  %v166 = vld [vmem:[%s1 + $0xc0] sm:$0xff]
  %v167 = vld [vmem:[%s1 + $0xc8] sm:$0xff]
  %v168 = vld [vmem:[%s1 + $0xd0] sm:$0xff]
  %v169 = vld [vmem:[%s1 + $0xd8] sm:$0xff]
  %v170 = vld [vmem:[%s1 + $0xe0] sm:$0xff]
  %v171 = vld [vmem:[%s1 + $0xe8] sm:$0xff]
  %v172 = vld [vmem:[%s1 + $0xf0] sm:$0xff]
  %v173 = vld [vmem:[%s1 + $0xf8] sm:$0xff]
  %174 = vmatprep.subr.mxu0 0.0
  %175 = vmatpush1.msra.mxu0 %v142
  %176 = vmatprep.subr.mxu0 0.0
  %177 = vmatpush1.msra.mxu0 %v143
  %178 = vmatprep.subr.mxu0 0.0
  %179 = vmatpush1.msra.mxu0 %v144
  %180 = vmatprep.subr.mxu0 0.0
  %181 = vmatpush1.msra.mxu0 %v145
  %182 = vmatprep.subr.mxu0 0.0
  %183 = vmatpush1.msra.mxu0 %v146
  %184 = vmatprep.subr.mxu0 0.0
  %185 = vmatpush1.msra.mxu0 %v147
  %186 = vmatprep.subr.mxu0 0.0
  %187 = vmatpush1.msra.mxu0 %v148
  %188 = vmatprep.subr.mxu0 0.0
  %189 = vmatpush1.msra.mxu0 %v149
  %190 = vmatprep.subr.mxu0 0.0
  %191 = vmatpush1.msra.mxu0 %v150
  %192 = vmatprep.subr.mxu0 0.0
  %193 = vmatpush1.msra.mxu0 %v151
  %194 = vmatprep.subr.mxu0 0.0
  %195 = vmatpush1.msra.mxu0 %v152
  %196 = vmatprep.subr.mxu0 0.0
  %197 = vmatpush1.msra.mxu0 %v153
  %198 = vmatprep.subr.mxu0 0.0
  %199 = vmatpush1.msra.mxu0 %v154
  %200 = vmatprep.subr.mxu0 0.0
  %201 = vmatpush1.msra.mxu0 %v155
  %202 = vmatprep.subr.mxu0 0.0
  %203 = vmatpush1.msra.mxu0 %v156
  %204 = vmatprep.subr.mxu0 0.0
  %205 = vmatpush1.msra.mxu0 %v157
  %206 = vmatprep.subr.mxu0 0.0
  %207 = vmatpush1.msra.mxu0 %v158
  %208 = vmatprep.subr.mxu0 0.0
  %209 = vmatpush1.msra.mxu0 %v159
  %210 = vmatprep.subr.mxu0 0.0
  %211 = vmatpush1.msra.mxu0 %v160
  %212 = vmatprep.subr.mxu0 0.0
  %213 = vmatpush1.msra.mxu0 %v161
  %214 = vmatprep.subr.mxu0 0.0
  %215 = vmatpush1.msra.mxu0 %v162
  %216 = vmatprep.subr.mxu0 0.0
  %217 = vmatpush1.msra.mxu0 %v163
  %218 = vmatprep.subr.mxu0 0.0
  %219 = vmatpush1.msra.mxu0 %v164
  %220 = vmatprep.subr.mxu0 0.0
  %221 = vmatpush1.msra.mxu0 %v165
  %222 = vmatprep.subr.mxu0 0.0
  %223 = vmatpush1.msra.mxu0 %v166
  %224 = vmatprep.subr.mxu0 0.0
  %225 = vmatpush1.msra.mxu0 %v167
  %226 = vmatprep.subr.mxu0 0.0
  %227 = vmatpush1.msra.mxu0 %v168
  %228 = vmatprep.subr.mxu0 0.0
  %229 = vmatpush1.msra.mxu0 %v169
  %230 = vmatprep.subr.mxu0 0.0
  %231 = vmatpush1.msra.mxu0 %v170
  %232 = vmatprep.subr.mxu0 0.0
  %233 = vmatpush1.msra.mxu0 %v171
  %234 = vmatprep.subr.mxu0 0.0
  %235 = vmatpush1.msra.mxu0 %v172
  %236 = vmatprep.subr.mxu0 0.0
  %237 = vmatpush1.msra.mxu0 %v173
  %238 = vmatprep.mubr.f32.mxu0 %v15
  %239 = vmatmul.mubr.f32.gmra.mrb[0].mxu0 %v14
  %v240 = vpop.f32.mrb[0].mxu0
  %v241 = vadd.f32 0.0, %v240
  %v242 = vpop.f32.mrb[0].mxu0
  %243 = vmatprep.mubr.f32.mxu0 %v17
  %244 = vmatmul.mubr.f32.gmra.mrb[0].mxu0 %v16
  %v245 = vpop.f32.mrb[0].mxu0
  %v246 = vadd.f32 0.0, %v245
  %v247 = vpop.f32.mrb[0].mxu0
  %248 = vmatprep.mubr.f32.mxu0 %v19
  %249 = vmatmul.mubr.f32.gmra.mrb[0].mxu0 %v18
  %v250 = vpop.f32.mrb[0].mxu0
  %v251 = vadd.f32 0.0, %v250
  %v252 = vpop.f32.mrb[0].mxu0
  %253 = vmatprep.mubr.f32.mxu0 %v21
  %254 = vmatmul.mubr.f32.gmra.mrb[0].mxu0 %v20
  %v255 = vpop.f32.mrb[0].mxu0
  %v256 = vadd.f32 0.0, %v255
  %v257 = vpop.f32.mrb[0].mxu0
  %258 = vmatprep.mubr.f32.mxu0 %v23
  %259 = vmatmul.mubr.f32.gmra.mrb[0].mxu0 %v22
  %v260 = vpop.f32.mrb[0].mxu0
  %v261 = vadd.f32 0.0, %v260
  %v262 = vpop.f32.mrb[0].mxu0
  %263 = vmatprep.mubr.f32.mxu0 %v25
  %264 = vmatmul.mubr.f32.gmra.mrb[0].mxu0 %v24
  %v265 = vpop.f32.mrb[0].mxu0
  %v266 = vadd.f32 0.0, %v265
  %v267 = vpop.f32.mrb[0].mxu0
  %268 = vmatprep.mubr.f32.mxu0 %v27
  %269 = vmatmul.mubr.f32.gmra.mrb[0].mxu0 %v26
  %v270 = vpop.f32.mrb[0].mxu0
  %v271 = vadd.f32 0.0, %v270
  %v272 = vpop.f32.mrb[0].mxu0
  %273 = vmatprep.mubr.f32.mxu0 %v29
  %274 = vmatmul.mubr.f32.gmra.mrb[0].mxu0 %v28
  %v275 = vpop.f32.mrb[0].mxu0
  %v276 = vadd.f32 0.0, %v275
  %v277 = vpop.f32.mrb[0].mxu0
  %278 = vmatprep.mubr.f32.mxu0 %v31
  %279 = vmatmul.mubr.f32.gmra.mrb[0].mxu0 %v30
  %v280 = vpop.f32.mrb[0].mxu0
  %v281 = vadd.f32 0.0, %v280
  %v282 = vpop.f32.mrb[0].mxu0
  %283 = vmatprep.mubr.f32.mxu0 %v33
  %284 = vmatmul.mubr.f32.gmra.mrb[0].mxu0 %v32
  %v285 = vpop.f32.mrb[0].mxu0
  %v286 = vadd.f32 0.0, %v285
  %v287 = vpop.f32.mrb[0].mxu0
  %288 = vmatprep.mubr.f32.mxu0 %v35
  %289 = vmatmul.mubr.f32.gmra.mrb[0].mxu0 %v34
  %v290 = vpop.f32.mrb[0].mxu0
  %v291 = vadd.f32 0.0, %v290
  %v292 = vpop.f32.mrb[0].mxu0
  %293 = vmatprep.mubr.f32.mxu0 %v37
  %294 = vmatmul.mubr.f32.gmra.mrb[0].mxu0 %v36
  %v295 = vpop.f32.mrb[0].mxu0
  %v296 = vadd.f32 0.0, %v295
  %v297 = vpop.f32.mrb[0].mxu0
  %298 = vmatprep.mubr.f32.mxu0 %v39
  %299 = vmatmul.mubr.f32.gmra.mrb[0].mxu0 %v38
  %v300 = vpop.f32.mrb[0].mxu0
  %v301 = vadd.f32 0.0, %v300
  %v302 = vpop.f32.mrb[0].mxu0
  %303 = vmatprep.mubr.f32.mxu0 %v41
  %304 = vmatmul.mubr.f32.gmra.mrb[0].mxu0 %v40
  %v305 = vpop.f32.mrb[0].mxu0
  %v306 = vadd.f32 0.0, %v305
  %v307 = vpop.f32.mrb[0].mxu0
  %308 = vmatprep.mubr.f32.mxu0 %v43
  %309 = vmatmul.mubr.f32.gmra.mrb[0].mxu0 %v42
  %v310 = vpop.f32.mrb[0].mxu0
  %v311 = vadd.f32 0.0, %v310
  %v312 = vpop.f32.mrb[0].mxu0
  %313 = vmatprep.mubr.f32.mxu0 %v45
  %314 = vmatmul.mubr.f32.gmra.mrb[0].mxu0 %v44
  %v315 = vpop.f32.mrb[0].mxu0
  %v316 = vadd.f32 0.0, %v315
  %v317 = vpop.f32.mrb[0].mxu0
  %318 = vmatprep.mubr.f32.mxu0 %v47
  %319 = vmatmul.mubr.f32.gmra.mrb[0].mxu0 %v46
  %v320 = vpop.f32.mrb[0].mxu0
  %v321 = vadd.f32 0.0, %v320
  %v322 = vpop.f32.mrb[0].mxu0
  %323 = vmatprep.mubr.f32.mxu0 %v49
  %324 = vmatmul.mubr.f32.gmra.mrb[0].mxu0 %v48
  %v325 = vpop.f32.mrb[0].mxu0
  %v326 = vadd.f32 0.0, %v325
  %v327 = vpop.f32.mrb[0].mxu0
  %328 = vmatprep.mubr.f32.mxu0 %v51
  %329 = vmatmul.mubr.f32.gmra.mrb[0].mxu0 %v50
  %v330 = vpop.f32.mrb[0].mxu0
  %v331 = vadd.f32 0.0, %v330
  %v332 = vpop.f32.mrb[0].mxu0
  %333 = vmatprep.mubr.f32.mxu0 %v53
  %334 = vmatmul.mubr.f32.gmra.mrb[0].mxu0 %v52
  %v335 = vpop.f32.mrb[0].mxu0
  %v336 = vadd.f32 0.0, %v335
  %v337 = vpop.f32.mrb[0].mxu0
  %338 = vmatprep.mubr.f32.mxu0 %v55
  %339 = vmatmul.mubr.f32.gmra.mrb[0].mxu0 %v54
  %v340 = vpop.f32.mrb[0].mxu0
  %v341 = vadd.f32 0.0, %v340
  %v342 = vpop.f32.mrb[0].mxu0
  %343 = vmatprep.mubr.f32.mxu0 %v57
  %344 = vmatmul.mubr.f32.gmra.mrb[0].mxu0 %v56
  %v345 = vpop.f32.mrb[0].mxu0
  %v346 = vadd.f32 0.0, %v345
  %v347 = vpop.f32.mrb[0].mxu0
  %348 = vmatprep.mubr.f32.mxu0 %v59
  %349 = vmatmul.mubr.f32.gmra.mrb[0].mxu0 %v58
  %v350 = vpop.f32.mrb[0].mxu0
  %v351 = vadd.f32 0.0, %v350
  %v352 = vpop.f32.mrb[0].mxu0
  %353 = vmatprep.mubr.f32.mxu0 %v61
  %354 = vmatmul.mubr.f32.gmra.mrb[0].mxu0 %v60
  %v355 = vpop.f32.mrb[0].mxu0
  %v356 = vadd.f32 0.0, %v355
  %v357 = vpop.f32.mrb[0].mxu0
  %358 = vmatprep.mubr.f32.mxu0 %v63
  %359 = vmatmul.mubr.f32.gmra.mrb[0].mxu0 %v62
  %v360 = vpop.f32.mrb[0].mxu0
  %v361 = vadd.f32 0.0, %v360
  %v362 = vpop.f32.mrb[0].mxu0
  %363 = vmatprep.mubr.f32.mxu0 %v65
  %364 = vmatmul.mubr.f32.gmra.mrb[0].mxu0 %v64
  %v365 = vpop.f32.mrb[0].mxu0
  %v366 = vadd.f32 0.0, %v365
  %v367 = vpop.f32.mrb[0].mxu0
  %368 = vmatprep.mubr.f32.mxu0 %v67
  %369 = vmatmul.mubr.f32.gmra.mrb[0].mxu0 %v66
  %v370 = vpop.f32.mrb[0].mxu0
  %v371 = vadd.f32 0.0, %v370
  %v372 = vpop.f32.mrb[0].mxu0
  %373 = vmatprep.mubr.f32.mxu0 %v69
  %374 = vmatmul.mubr.f32.gmra.mrb[0].mxu0 %v68
  %v375 = vpop.f32.mrb[0].mxu0
  %v376 = vadd.f32 0.0, %v375
  %v377 = vpop.f32.mrb[0].mxu0
  %378 = vmatprep.mubr.f32.mxu0 %v71
  %379 = vmatmul.mubr.f32.gmra.mrb[0].mxu0 %v70
  %v380 = vpop.f32.mrb[0].mxu0
  %v381 = vadd.f32 0.0, %v380
  %v382 = vpop.f32.mrb[0].mxu0
  %383 = vmatprep.mubr.f32.mxu0 %v73
  %384 = vmatmul.mubr.f32.gmra.mrb[0].mxu0 %v72
  %v385 = vpop.f32.mrb[0].mxu0
  %v386 = vadd.f32 0.0, %v385
  %v387 = vpop.f32.mrb[0].mxu0
  %388 = vmatprep.mubr.f32.mxu0 %v75
  %389 = vmatmul.mubr.f32.gmra.mrb[0].mxu0 %v74
  %v390 = vpop.f32.mrb[0].mxu0
  %v391 = vadd.f32 0.0, %v390
  %v392 = vpop.f32.mrb[0].mxu0
  %393 = vmatprep.mubr.f32.mxu0 %v77
  %394 = vmatmul.mubr.f32.gmra.mrb[0].mxu0 %v76
  %v395 = vpop.f32.mrb[0].mxu0
  %v396 = vadd.f32 0.0, %v395
  %v397 = vpop.f32.mrb[0].mxu0
  %398 = vmatprep.mubr.f32.mxu0 %v79
  %399 = vmatmul.mubr.f32.gmra.mrb[0].mxu0 %v78
  %v400 = vpop.f32.mrb[0].mxu0
  %v401 = vadd.f32 0.0, %v400
  %v402 = vpop.f32.mrb[0].mxu0
  %403 = vmatprep.mubr.f32.mxu0 %v81
  %404 = vmatmul.mubr.f32.gmra.mrb[0].mxu0 %v80
  %v405 = vpop.f32.mrb[0].mxu0
  %v406 = vadd.f32 0.0, %v405
  %v407 = vpop.f32.mrb[0].mxu0
  %408 = vmatprep.mubr.f32.mxu0 %v83
  %409 = vmatmul.mubr.f32.gmra.mrb[0].mxu0 %v82
  %v410 = vpop.f32.mrb[0].mxu0
  %v411 = vadd.f32 0.0, %v410
  %v412 = vpop.f32.mrb[0].mxu0
  %413 = vmatprep.mubr.f32.mxu0 %v85
  %414 = vmatmul.mubr.f32.gmra.mrb[0].mxu0 %v84
  %v415 = vpop.f32.mrb[0].mxu0
  %v416 = vadd.f32 0.0, %v415
  %v417 = vpop.f32.mrb[0].mxu0
  %418 = vmatprep.mubr.f32.mxu0 %v87
  %419 = vmatmul.mubr.f32.gmra.mrb[0].mxu0 %v86
  %v420 = vpop.f32.mrb[0].mxu0
  %v421 = vadd.f32 0.0, %v420
  %v422 = vpop.f32.mrb[0].mxu0
  %423 = vmatprep.mubr.f32.mxu0 %v89
  %424 = vmatmul.mubr.f32.gmra.mrb[0].mxu0 %v88
  %v425 = vpop.f32.mrb[0].mxu0
  %v426 = vadd.f32 0.0, %v425
  %v427 = vpop.f32.mrb[0].mxu0
  %428 = vmatprep.mubr.f32.mxu0 %v91
  %429 = vmatmul.mubr.f32.gmra.mrb[0].mxu0 %v90
  %v430 = vpop.f32.mrb[0].mxu0
  %v431 = vadd.f32 0.0, %v430
  %v432 = vpop.f32.mrb[0].mxu0
  %433 = vmatprep.mubr.f32.mxu0 %v93
  %434 = vmatmul.mubr.f32.gmra.mrb[0].mxu0 %v92
  %v435 = vpop.f32.mrb[0].mxu0
  %v436 = vadd.f32 0.0, %v435
  %v437 = vpop.f32.mrb[0].mxu0
  %438 = vmatprep.mubr.f32.mxu0 %v95
  %439 = vmatmul.mubr.f32.gmra.mrb[0].mxu0 %v94
  %v440 = vpop.f32.mrb[0].mxu0
  %v441 = vadd.f32 0.0, %v440
  %v442 = vpop.f32.mrb[0].mxu0
  %443 = vmatprep.mubr.f32.mxu0 %v97
  %444 = vmatmul.mubr.f32.gmra.mrb[0].mxu0 %v96
  %v445 = vpop.f32.mrb[0].mxu0
  %v446 = vadd.f32 0.0, %v445
  %v447 = vpop.f32.mrb[0].mxu0
  %448 = vmatprep.mubr.f32.mxu0 %v99
  %449 = vmatmul.mubr.f32.gmra.mrb[0].mxu0 %v98
  %v450 = vpop.f32.mrb[0].mxu0
  %v451 = vadd.f32 0.0, %v450
  %v452 = vpop.f32.mrb[0].mxu0
  %453 = vmatprep.mubr.f32.mxu0 %v101
  %454 = vmatmul.mubr.f32.gmra.mrb[0].mxu0 %v100
  %v455 = vpop.f32.mrb[0].mxu0
  %v456 = vadd.f32 0.0, %v455
  %v457 = vpop.f32.mrb[0].mxu0
  %458 = vmatprep.mubr.f32.mxu0 %v103
  %459 = vmatmul.mubr.f32.gmra.mrb[0].mxu0 %v102
  %v460 = vpop.f32.mrb[0].mxu0
  %v461 = vadd.f32 0.0, %v460
  %v462 = vpop.f32.mrb[0].mxu0
  %463 = vmatprep.mubr.f32.mxu0 %v105
  %464 = vmatmul.mubr.f32.gmra.mrb[0].mxu0 %v104
  %v465 = vpop.f32.mrb[0].mxu0
  %v466 = vadd.f32 0.0, %v465
  %v467 = vpop.f32.mrb[0].mxu0
  %468 = vmatprep.mubr.f32.mxu0 %v107
  %469 = vmatmul.mubr.f32.gmra.mrb[0].mxu0 %v106
  %v470 = vpop.f32.mrb[0].mxu0
  %v471 = vadd.f32 0.0, %v470
  %v472 = vpop.f32.mrb[0].mxu0
  %473 = vmatprep.mubr.f32.mxu0 %v109
  %474 = vmatmul.mubr.f32.gmra.mrb[0].mxu0 %v108
  %v475 = vpop.f32.mrb[0].mxu0
  %v476 = vadd.f32 0.0, %v475
  %v477 = vpop.f32.mrb[0].mxu0
  %478 = vmatprep.mubr.f32.mxu0 %v111
  %479 = vmatmul.mubr.f32.gmra.mrb[0].mxu0 %v110
  %v480 = vpop.f32.mrb[0].mxu0
  %v481 = vadd.f32 0.0, %v480
  %v482 = vpop.f32.mrb[0].mxu0
  %483 = vmatprep.mubr.f32.mxu0 %v113
  %484 = vmatmul.mubr.f32.gmra.mrb[0].mxu0 %v112
  %v485 = vpop.f32.mrb[0].mxu0
  %v486 = vadd.f32 0.0, %v485
  %v487 = vpop.f32.mrb[0].mxu0
  %488 = vmatprep.mubr.f32.mxu0 %v115
  %489 = vmatmul.mubr.f32.gmra.mrb[0].mxu0 %v114
  %v490 = vpop.f32.mrb[0].mxu0
  %v491 = vadd.f32 0.0, %v490
  %v492 = vpop.f32.mrb[0].mxu0
  %493 = vmatprep.mubr.f32.mxu0 %v117
  %494 = vmatmul.mubr.f32.gmra.mrb[0].mxu0 %v116
  %v495 = vpop.f32.mrb[0].mxu0
  %v496 = vadd.f32 0.0, %v495
  %v497 = vpop.f32.mrb[0].mxu0
  %498 = vmatprep.mubr.f32.mxu0 %v119
  %499 = vmatmul.mubr.f32.gmra.mrb[0].mxu0 %v118
  %v500 = vpop.f32.mrb[0].mxu0
  %v501 = vadd.f32 0.0, %v500
  %v502 = vpop.f32.mrb[0].mxu0
  %503 = vmatprep.mubr.f32.mxu0 %v121
  %504 = vmatmul.mubr.f32.gmra.mrb[0].mxu0 %v120
  %v505 = vpop.f32.mrb[0].mxu0
  %v506 = vadd.f32 0.0, %v505
  %v507 = vpop.f32.mrb[0].mxu0
  %508 = vmatprep.mubr.f32.mxu0 %v123
  %509 = vmatmul.mubr.f32.gmra.mrb[0].mxu0 %v122
  %v510 = vpop.f32.mrb[0].mxu0
  %v511 = vadd.f32 0.0, %v510
  %v512 = vpop.f32.mrb[0].mxu0
  %513 = vmatprep.mubr.f32.mxu0 %v125
  %514 = vmatmul.mubr.f32.gmra.mrb[0].mxu0 %v124
  %v515 = vpop.f32.mrb[0].mxu0
  %v516 = vadd.f32 0.0, %v515
  %v517 = vpop.f32.mrb[0].mxu0
  %518 = vmatprep.mubr.f32.mxu0 %v127
  %519 = vmatmul.mubr.f32.gmra.mrb[0].mxu0 %v126
  %v520 = vpop.f32.mrb[0].mxu0
  %v521 = vadd.f32 0.0, %v520
  %v522 = vpop.f32.mrb[0].mxu0
  %523 = vmatprep.mubr.f32.mxu0 %v129
  %524 = vmatmul.mubr.f32.gmra.mrb[0].mxu0 %v128
  %v525 = vpop.f32.mrb[0].mxu0
  %v526 = vadd.f32 0.0, %v525
  %v527 = vpop.f32.mrb[0].mxu0
  %528 = vmatprep.mubr.f32.mxu0 %v131
  %529 = vmatmul.mubr.f32.gmra.mrb[0].mxu0 %v130
  %v530 = vpop.f32.mrb[0].mxu0
  %v531 = vadd.f32 0.0, %v530
  %v532 = vpop.f32.mrb[0].mxu0
  %533 = vmatprep.mubr.f32.mxu0 %v133
  %534 = vmatmul.mubr.f32.gmra.mrb[0].mxu0 %v132
  %v535 = vpop.f32.mrb[0].mxu0
  %v536 = vadd.f32 0.0, %v535
  %v537 = vpop.f32.mrb[0].mxu0
  %538 = vmatprep.mubr.f32.mxu0 %v135
  %539 = vmatmul.mubr.f32.gmra.mrb[0].mxu0 %v134
  %v540 = vpop.f32.mrb[0].mxu0
  %v541 = vadd.f32 0.0, %v540
  %v542 = vpop.f32.mrb[0].mxu0
  %543 = vmatprep.mubr.f32.mxu0 %v137
  %544 = vmatmul.mubr.f32.gmra.mrb[0].mxu0 %v136
  %v545 = vpop.f32.mrb[0].mxu0
  %v546 = vadd.f32 0.0, %v545
  %v547 = vpop.f32.mrb[0].mxu0
  %548 = vmatprep.mubr.f32.mxu0 %v139
  %549 = vmatmul.mubr.f32.gmra.mrb[0].mxu0 %v138
  %v550 = vpop.f32.mrb[0].mxu0
  %v551 = vadd.f32 0.0, %v550
  %v552 = vpop.f32.mrb[0].mxu0
  %553 = vmatprep.mubr.f32.mxu0 %v141
  %554 = vmatmul.mubr.f32.gmra.mrb[0].mxu0 %v140
  %v555 = vpop.f32.mrb[0].mxu0
  %v556 = vadd.f32 0.0, %v555
  %v557 = vpop.f32.mrb[0].mxu0
  %558 = vdwg.mxu0
  %vm559 = vcmask 162816
  %v560 = vsel %vm559, %v241, -inf
  %v561 = vsel %vm559, %v251, -inf
  %v562 = vmax.f32 %v560, %v561
  %v563 = vsel %vm559, %v261, -inf
  %v564 = vmax.f32 %v562, %v563
  %v565 = vsel %vm559, %v271, -inf
  %v566 = vmax.f32 %v564, %v565
  %v567 = vsel %vm559, %v246, -inf
  %v568 = vsel %vm559, %v256, -inf
  %v569 = vmax.f32 %v567, %v568
  %v570 = vsel %vm559, %v266, -inf
  %v571 = vmax.f32 %v569, %v570
  %v572 = vsel %vm559, %v276, -inf
  %v573 = vmax.f32 %v571, %v572
  %v574 = vsel %vm559, %v281, -inf
  %v575 = vsel %vm559, %v291, -inf
  %v576 = vmax.f32 %v574, %v575
  %v577 = vsel %vm559, %v301, -inf
  %v578 = vmax.f32 %v576, %v577
  %v579 = vsel %vm559, %v311, -inf
  %v580 = vmax.f32 %v578, %v579
  %v581 = vsel %vm559, %v286, -inf
  %v582 = vsel %vm559, %v296, -inf
  %v583 = vmax.f32 %v581, %v582
  %v584 = vsel %vm559, %v306, -inf
  %v585 = vmax.f32 %v583, %v584
  %v586 = vsel %vm559, %v316, -inf
  %v587 = vmax.f32 %v585, %v586
  %v588 = vsel %vm559, %v321, -inf
  %v589 = vsel %vm559, %v331, -inf
  %v590 = vmax.f32 %v588, %v589
  %v591 = vsel %vm559, %v341, -inf
  %v592 = vmax.f32 %v590, %v591
  %v593 = vsel %vm559, %v351, -inf
  %v594 = vmax.f32 %v592, %v593
  %v595 = vsel %vm559, %v326, -inf
  %v596 = vsel %vm559, %v336, -inf
  %v597 = vmax.f32 %v595, %v596
  %v598 = vsel %vm559, %v346, -inf
  %v599 = vmax.f32 %v597, %v598
  %v600 = vsel %vm559, %v356, -inf
  %v601 = vmax.f32 %v599, %v600
  %v602 = vsel %vm559, %v361, -inf
  %v603 = vsel %vm559, %v371, -inf
  %v604 = vmax.f32 %v602, %v603
  %v605 = vsel %vm559, %v381, -inf
  %v606 = vmax.f32 %v604, %v605
  %v607 = vsel %vm559, %v391, -inf
  %v608 = vmax.f32 %v606, %v607
  %v609 = vsel %vm559, %v366, -inf
  %v610 = vsel %vm559, %v376, -inf
  %v611 = vmax.f32 %v609, %v610
  %v612 = vsel %vm559, %v386, -inf
  %v613 = vmax.f32 %v611, %v612
  %v614 = vsel %vm559, %v396, -inf
  %v615 = vmax.f32 %v613, %v614
  %v616 = vsel %vm559, %v401, -inf
  %v617 = vsel %vm559, %v411, -inf
  %v618 = vmax.f32 %v616, %v617
  %v619 = vsel %vm559, %v421, -inf
  %v620 = vmax.f32 %v618, %v619
  %v621 = vsel %vm559, %v431, -inf
  %v622 = vmax.f32 %v620, %v621
  %v623 = vsel %vm559, %v406, -inf
  %v624 = vsel %vm559, %v416, -inf
  %v625 = vmax.f32 %v623, %v624
  %v626 = vsel %vm559, %v426, -inf
  %v627 = vmax.f32 %v625, %v626
  %v628 = vsel %vm559, %v436, -inf
  %v629 = vmax.f32 %v627, %v628
  %v630 = vsel %vm559, %v441, -inf
  %v631 = vsel %vm559, %v451, -inf
  %v632 = vmax.f32 %v630, %v631
  %v633 = vsel %vm559, %v461, -inf
  %v634 = vmax.f32 %v632, %v633
  %v635 = vsel %vm559, %v471, -inf
  %v636 = vmax.f32 %v634, %v635
  %v637 = vsel %vm559, %v446, -inf
  %v638 = vsel %vm559, %v456, -inf
  %v639 = vmax.f32 %v637, %v638
  %v640 = vsel %vm559, %v466, -inf
  %v641 = vmax.f32 %v639, %v640
  %v642 = vsel %vm559, %v476, -inf
  %v643 = vmax.f32 %v641, %v642
  %v644 = vsel %vm559, %v481, -inf
  %v645 = vsel %vm559, %v491, -inf
  %v646 = vmax.f32 %v644, %v645
  %v647 = vsel %vm559, %v501, -inf
  %v648 = vmax.f32 %v646, %v647
  %v649 = vsel %vm559, %v511, -inf
  %v650 = vmax.f32 %v648, %v649
  %v651 = vsel %vm559, %v486, -inf
  %v652 = vsel %vm559, %v496, -inf
  %v653 = vmax.f32 %v651, %v652
  %v654 = vsel %vm559, %v506, -inf
  %v655 = vmax.f32 %v653, %v654
  %v656 = vsel %vm559, %v516, -inf
  %v657 = vmax.f32 %v655, %v656
  %v658 = vsel %vm559, %v521, -inf
  %v659 = vsel %vm559, %v531, -inf
  %v660 = vmax.f32 %v658, %v659
  %v661 = vsel %vm559, %v541, -inf
  %v662 = vmax.f32 %v660, %v661
  %v663 = vsel %vm559, %v551, -inf
  %v664 = vmax.f32 %v662, %v663
  %v665 = vsel %vm559, %v526, -inf
  %v666 = vsel %vm559, %v536, -inf
  %v667 = vmax.f32 %v665, %v666
  %v668 = vsel %vm559, %v546, -inf
  %v669 = vmax.f32 %v667, %v668
  %v670 = vsel %vm559, %v556, -inf
  %v671 = vmax.f32 %v669, %v670
  %v672 = vld [vmem:[%s2] sm:$0x1]
  %v674 = vlaneseq
  %v675 = vshrl.u32 %v674, 7
  %v676 = vsub.s32 0, %v675
  %v677 = vrot.slane %v672, %v676
  %v679 = vadd.f32 %v566, %v677
  %v680 = vadd.f32 %v573, %v677
  %v681 = vadd.f32 %v580, %v677
  %v682 = vadd.f32 %v587, %v677
  %v683 = vadd.f32 %v594, %v677
  %v684 = vadd.f32 %v601, %v677
  %v685 = vadd.f32 %v608, %v677
  %v686 = vadd.f32 %v615, %v677
  %v687 = vadd.f32 %v622, %v677
  %v688 = vadd.f32 %v629, %v677
  %v689 = vadd.f32 %v636, %v677
  %v690 = vadd.f32 %v643, %v677
  %v691 = vadd.f32 %v650, %v677
  %v692 = vadd.f32 %v657, %v677
  %v693 = vadd.f32 %v664, %v677
  %v694 = vadd.f32 %v671, %v677
  %v695 = vmax.f32 %v679, 0.0
  %v696 = vmax.f32 %v680, 0.0
  %v697 = vmax.f32 %v681, 0.0
  %v698 = vmax.f32 %v682, 0.0
  %v699 = vmax.f32 %v683, 0.0
  %v700 = vmax.f32 %v684, 0.0
  %v701 = vmax.f32 %v685, 0.0
  %v702 = vmax.f32 %v686, 0.0
  %v703 = vmax.f32 %v687, 0.0
  %v704 = vmax.f32 %v688, 0.0
  %v705 = vmax.f32 %v689, 0.0
  %v706 = vmax.f32 %v690, 0.0
  %v707 = vmax.f32 %v691, 0.0
  %v708 = vmax.f32 %v692, 0.0
  %v709 = vmax.f32 %v693, 0.0
  %v710 = vmax.f32 %v694, 0.0
  %711 = vst.msk [vmem:[%s3] sm:$0xff] %vm559, %v695
  %712 = vst.msk [vmem:[%s3 + $0x8] sm:$0xff] %vm559, %v696
  %713 = vst.msk [vmem:[%s3 + $0x10] sm:$0xff] %vm559, %v697
  %714 = vst.msk [vmem:[%s3 + $0x18] sm:$0xff] %vm559, %v698
  %715 = vst.msk [vmem:[%s3 + $0x20] sm:$0xff] %vm559, %v699
  %716 = vst.msk [vmem:[%s3 + $0x28] sm:$0xff] %vm559, %v700
  %717 = vst.msk [vmem:[%s3 + $0x30] sm:$0xff] %vm559, %v701
  %718 = vst.msk [vmem:[%s3 + $0x38] sm:$0xff] %vm559, %v702
  %719 = vst.msk [vmem:[%s3 + $0x40] sm:$0xff] %vm559, %v703
  %720 = vst.msk [vmem:[%s3 + $0x48] sm:$0xff] %vm559, %v704
  %721 = vst.msk [vmem:[%s3 + $0x50] sm:$0xff] %vm559, %v705
  %722 = vst.msk [vmem:[%s3 + $0x58] sm:$0xff] %vm559, %v706
  %723 = vst.msk [vmem:[%s3 + $0x60] sm:$0xff] %vm559, %v707
  %724 = vst.msk [vmem:[%s3 + $0x68] sm:$0xff] %vm559, %v708
  %725 = vst.msk [vmem:[%s3 + $0x70] sm:$0xff] %vm559, %v709
  %726 = vst.msk [vmem:[%s3 + $0x78] sm:$0xff] %vm559, %v710
  // Predicated region
  $region14: #{forward.4} parent=0 // pred_check
    _
  $region15: #{forward.4} parent=0 // pred_check_branch
    %728 = sbr.rel (0) target = $region17
  $region16: #{forward.4} parent=0 // pred_region
    _
  $region17: #{forward.4} parent=0 // pred_fallthru
    _
  // Predicated region
  $region18: #{forward.4} parent=0 // pred_check
    _
  $region19: #{forward.4} parent=0 // pred_check_branch
    %730 = sbr.rel (0) target = $region21
  $region20: #{forward.4} parent=0 // pred_region
    _
  $region21: #{forward.4} parent=0 // pred_fallthru
    _

// kernel: forward.5
$region0: #{forward.5}
  #allocation0 [shape = 'u32[]', space=smem, size = 0x4, offset = 0x4, fixed_abs, tag = 'smem constant byte address 0x4 - core index']
  #allocation1 [shape = 'u32[144,128]{1,0:T(1,128)}', space=vmem, size = 0x12000, scoped, tag = 'internal scratch']
  %s0 = inlined_call_operand.vmem [shape: f32[8,320], index: 0, kind: input, shape index: {}]
  %s1 = inlined_call_operand.vmem [shape: f32[320,50], index: 1, kind: input, shape index: {}]
  %s2 = inlined_call_operand.vmem [shape: f32[1,50], index: 2, kind: input, shape index: {}]
  %s3 = inlined_call_operand.vmem [shape: f32[50,10], index: 3, kind: input, shape index: {}]
  %s4 = inlined_call_operand.vmem [shape: f32[1,10], index: 4, kind: input, shape index: {}]
  %s5 = inlined_call_operand.vmem [shape: f32[8,10], index: 5, kind: output, shape index: {}]
  %s6 = sld [smem:[#allocation0]]
  $region30: #{forward.5} parent=0
    _
  %s8 = ssub.s32 1, %s6
  %s9 = scalar_select 0, %s8, %s6
  // Predicated region
  $region2: #{forward.5} parent=0 // pred_check
    _
  $region3: #{forward.5} parent=0 // pred_check_branch
    %11 = sbr.rel (0) target = $region5
  $region4: #{forward.5} parent=0 // pred_region
    _
  $region5: #{forward.5} parent=0 // pred_fallthru
    _
  // Predicated region
  $region6: #{forward.5} parent=0 // pred_check
    _
  $region7: #{forward.5} parent=0 // pred_check_branch
    %13 = sbr.rel (0) target = $region9
  $region8: #{forward.5} parent=0 // pred_region
    _
  $region9: #{forward.5} parent=0 // pred_fallthru
    _
  // Predicated region
  $region10: #{forward.5} parent=0 // pred_check
    _
  $region11: #{forward.5} parent=0 // pred_check_branch
    %15 = sbr.rel (0) target = $region13
  $region12: #{forward.5} parent=0 // pred_region
    _
  $region13: #{forward.5} parent=0 // pred_fallthru
    _
  // Predicated region
  $region14: #{forward.5} parent=0 // pred_check
    _
  $region15: #{forward.5} parent=0 // pred_check_branch
    %17 = sbr.rel (0) target = $region17
  $region16: #{forward.5} parent=0 // pred_region
    _
  $region17: #{forward.5} parent=0 // pred_fallthru
    _
  // Predicated region
  $region18: #{forward.5} parent=0 // pred_check
    _
  $region19: #{forward.5} parent=0 // pred_check_branch
    %19 = sbr.rel (0) target = $region21
  $region20: #{forward.5} parent=0 // pred_region
    _
  $region21: #{forward.5} parent=0 // pred_fallthru
    _
  %v20 = vld [vmem:[%s0] sm:$0xff]
  %v21 = vld [vmem:[%s0 + $0x8] sm:$0xff]
  %v22 = vld [vmem:[%s0 + $0x10] sm:$0xff]
  %v23 = vld [vmem:[%s1] sm:$0xff]
  %v24 = vld [vmem:[%s1 + $0x8] sm:$0xff]
  %v25 = vld [vmem:[%s1 + $0x10] sm:$0xff]
  %v26 = vld [vmem:[%s1 + $0x18] sm:$0xff]
  %v27 = vld [vmem:[%s1 + $0x20] sm:$0xff]
  %v28 = vld [vmem:[%s1 + $0x28] sm:$0xff]
  %v29 = vld [vmem:[%s1 + $0x30] sm:$0xff]
  %v30 = vld [vmem:[%s1 + $0x38] sm:$0xff]
  %v31 = vld [vmem:[%s1 + $0x40] sm:$0xff]
  %v32 = vld [vmem:[%s1 + $0x48] sm:$0xff]
  %v33 = vld [vmem:[%s1 + $0x50] sm:$0xff]
  %v34 = vld [vmem:[%s1 + $0x58] sm:$0xff]
  %v35 = vld [vmem:[%s1 + $0x60] sm:$0xff]
  %v36 = vld [vmem:[%s1 + $0x68] sm:$0xff]
  %v37 = vld [vmem:[%s1 + $0x70] sm:$0xff]
  %v38 = vld [vmem:[%s1 + $0x78] sm:$0xff]
  %v39 = vld [vmem:[%s1 + $0x80] sm:$0xff]
  %v40 = vld [vmem:[%s1 + $0x88] sm:$0xff]
  %v41 = vld [vmem:[%s1 + $0x90] sm:$0xff]
  %v42 = vld [vmem:[%s1 + $0x98] sm:$0xff]
  %v43 = vld [vmem:[%s1 + $0xa0] sm:$0xff]
  %v44 = vld [vmem:[%s1 + $0xa8] sm:$0xff]
  %v45 = vld [vmem:[%s1 + $0xb0] sm:$0xff]
  %v46 = vld [vmem:[%s1 + $0xb8] sm:$0xff]
  %v47 = vld [vmem:[%s1 + $0xc0] sm:$0xff]
  %v48 = vld [vmem:[%s1 + $0xc8] sm:$0xff]
  %v49 = vld [vmem:[%s1 + $0xd0] sm:$0xff]
  %v50 = vld [vmem:[%s1 + $0xd8] sm:$0xff]
  %v51 = vld [vmem:[%s1 + $0xe0] sm:$0xff]
  %v52 = vld [vmem:[%s1 + $0xe8] sm:$0xff]
  %v53 = vld [vmem:[%s1 + $0xf0] sm:$0xff]
  %v54 = vld [vmem:[%s1 + $0xf8] sm:$0xff]
  %v55 = vld [vmem:[%s1 + $0x100] sm:$0xff]
  %v56 = vld [vmem:[%s1 + $0x108] sm:$0xff]
  %v57 = vld [vmem:[%s1 + $0x110] sm:$0xff]
  %v58 = vld [vmem:[%s1 + $0x118] sm:$0xff]
  %v59 = vld [vmem:[%s1 + $0x120] sm:$0xff]
  %v60 = vld [vmem:[%s1 + $0x128] sm:$0xff]
  %v61 = vld [vmem:[%s1 + $0x130] sm:$0xff]
  %v62 = vld [vmem:[%s1 + $0x138] sm:$0xff]
  %v63 = vld [vmem:[%s2] sm:$0x1]
  %v65 = vlaneseq
  %v66 = vshrl.u32 %v65, 7
  %v67 = vsub.s32 0, %v66
  %v68 = vrot.slane %v63, %v67
  %vm70 = vcmask 523264
  %v72 = vsel %vm70, %v22, 0
  %74 = vmatprep.subr.mxu0 0.0
  %75 = vmatpush1.msra.mxu0 %v23
  %76 = vmatprep.subr.mxu0 0.0
  %77 = vmatpush1.msra.mxu0 %v24
  %78 = vmatprep.subr.mxu0 0.0
  %79 = vmatpush1.msra.mxu0 %v25
  %80 = vmatprep.subr.mxu0 0.0
  %81 = vmatpush1.msra.mxu0 %v26
  %82 = vmatprep.subr.mxu0 0.0
  %83 = vmatpush1.msra.mxu0 %v27
  %84 = vmatprep.subr.mxu0 0.0
  %85 = vmatpush1.msra.mxu0 %v28
  %86 = vmatprep.subr.mxu0 0.0
  %87 = vmatpush1.msra.mxu0 %v29
  %88 = vmatprep.subr.mxu0 0.0
  %89 = vmatpush1.msra.mxu0 %v30
  %90 = vmatprep.subr.mxu0 0.0
  %91 = vmatpush1.msra.mxu0 %v31
  %92 = vmatprep.subr.mxu0 0.0
  %93 = vmatpush1.msra.mxu0 %v32
  %94 = vmatprep.subr.mxu0 0.0
  %95 = vmatpush1.msra.mxu0 %v33
  %96 = vmatprep.subr.mxu0 0.0
  %97 = vmatpush1.msra.mxu0 %v34
  %98 = vmatprep.subr.mxu0 0.0
  %99 = vmatpush1.msra.mxu0 %v35
  %100 = vmatprep.subr.mxu0 0.0
  %101 = vmatpush1.msra.mxu0 %v36
  %102 = vmatprep.subr.mxu0 0.0
  %103 = vmatpush1.msra.mxu0 %v37
  %104 = vmatprep.subr.mxu0 0.0
  %105 = vmatpush1.msra.mxu0 %v38
  %106 = vmatprep.subr.mxu0 0.0
  %107 = vmatpush1.msra.mxu0 %v39
  %108 = vmatprep.subr.mxu0 0.0
  %109 = vmatpush1.msra.mxu0 %v40
  %110 = vmatprep.subr.mxu0 0.0
  %111 = vmatpush1.msra.mxu0 %v41
  %112 = vmatprep.subr.mxu0 0.0
  %113 = vmatpush1.msra.mxu0 %v42
  %114 = vmatprep.subr.mxu0 0.0
  %115 = vmatpush1.msra.mxu0 %v43
  %116 = vmatprep.subr.mxu0 0.0
  %117 = vmatpush1.msra.mxu0 %v44
  %118 = vmatprep.subr.mxu0 0.0
  %119 = vmatpush1.msra.mxu0 %v45
  %120 = vmatprep.subr.mxu0 0.0
  %121 = vmatpush1.msra.mxu0 %v46
  %122 = vmatprep.subr.mxu0 0.0
  %123 = vmatpush1.msra.mxu0 %v47
  %124 = vmatprep.subr.mxu0 0.0
  %125 = vmatpush1.msra.mxu0 %v48
  %126 = vmatprep.subr.mxu0 0.0
  %127 = vmatpush1.msra.mxu0 %v49
  %128 = vmatprep.subr.mxu0 0.0
  %129 = vmatpush1.msra.mxu0 %v50
  %130 = vmatprep.subr.mxu0 0.0
  %131 = vmatpush1.msra.mxu0 %v51
  %132 = vmatprep.subr.mxu0 0.0
  %133 = vmatpush1.msra.mxu0 %v52
  %134 = vmatprep.subr.mxu0 0.0
  %135 = vmatpush1.msra.mxu0 %v53
  %136 = vmatprep.subr.mxu0 0.0
  %137 = vmatpush1.msra.mxu0 %v54
  %138 = vmatprep.mubr.f32.mxu0 %v21
  %139 = vmatmul.mubr.f32.gmra.mrb[0].mxu0 %v20
  %v140 = vpop.f32.mrb[0].mxu0
  %v141 = vadd.f32 %v68, %v140
  %v142 = vpop.f32.mrb[0].mxu0
  %143 = vdwg.mxu0
  %144 = vmatprep.subr.mxu0 0.0
  %145 = vmatpush1.msra.mxu0 %v55
  %146 = vmatprep.subr.mxu0 0.0
  %147 = vmatpush1.msra.mxu0 %v56
  %148 = vmatprep.subr.mxu0 0.0
  %149 = vmatpush1.msra.mxu0 %v57
  %150 = vmatprep.subr.mxu0 0.0
  %151 = vmatpush1.msra.mxu0 %v58
  %152 = vmatprep.subr.mxu0 0.0
  %153 = vmatpush1.msra.mxu0 %v59
  %154 = vmatprep.subr.mxu0 0.0
  %155 = vmatpush1.msra.mxu0 %v60
  %156 = vmatprep.subr.mxu0 0.0
  %157 = vmatpush1.msra.mxu0 %v61
  %158 = vmatprep.subr.mxu0 0.0
  %159 = vmatpush1.msra.mxu0 %v62
  %160 = vmatprep.subr.mxu0 0.0
  %161 = vmatpush1.msra.mxu0 0.0
  %162 = vmatprep.subr.mxu0 0.0
  %163 = vmatpush1.msra.mxu0 0.0
  %164 = vmatprep.subr.mxu0 0.0
  %165 = vmatpush1.msra.mxu0 0.0
  %166 = vmatprep.subr.mxu0 0.0
  %167 = vmatpush1.msra.mxu0 0.0
  %168 = vmatprep.subr.mxu0 0.0
  %169 = vmatpush1.msra.mxu0 0.0
  %170 = vmatprep.subr.mxu0 0.0
  %171 = vmatpush1.msra.mxu0 0.0
  %172 = vmatprep.subr.mxu0 0.0
  %173 = vmatpush1.msra.mxu0 0.0
  %174 = vmatprep.subr.mxu0 0.0
  %175 = vmatpush1.msra.mxu0 0.0
  %176 = vmatprep.subr.mxu0 0.0
  %177 = vmatpush1.msra.mxu0 0.0
  %178 = vmatprep.subr.mxu0 0.0
  %179 = vmatpush1.msra.mxu0 0.0
  %180 = vmatprep.subr.mxu0 0.0
  %181 = vmatpush1.msra.mxu0 0.0
  %182 = vmatprep.subr.mxu0 0.0
  %183 = vmatpush1.msra.mxu0 0.0
  %184 = vmatprep.subr.mxu0 0.0
  %185 = vmatpush1.msra.mxu0 0.0
  %186 = vmatprep.subr.mxu0 0.0
  %187 = vmatpush1.msra.mxu0 0.0
  %188 = vmatprep.subr.mxu0 0.0
  %189 = vmatpush1.msra.mxu0 0.0
  %190 = vmatprep.subr.mxu0 0.0
  %191 = vmatpush1.msra.mxu0 0.0
  %192 = vmatprep.subr.mxu0 0.0
  %193 = vmatpush1.msra.mxu0 0.0
  %194 = vmatprep.subr.mxu0 0.0
  %195 = vmatpush1.msra.mxu0 0.0
  %196 = vmatprep.subr.mxu0 0.0
  %197 = vmatpush1.msra.mxu0 0.0
  %198 = vmatprep.subr.mxu0 0.0
  %199 = vmatpush1.msra.mxu0 0.0
  %200 = vmatprep.subr.mxu0 0.0
  %201 = vmatpush1.msra.mxu0 0.0
  %202 = vmatprep.subr.mxu0 0.0
  %203 = vmatpush1.msra.mxu0 0.0
  %204 = vmatprep.subr.mxu0 0.0
  %205 = vmatpush1.msra.mxu0 0.0
  %206 = vmatprep.subr.mxu0 0.0
  %207 = vmatpush1.msra.mxu0 0.0
  %208 = vmatprep.mubr.f32.mxu0 0.0
  %209 = vmatmul.mubr.f32.gmra.mrb[0].mxu0 %v72
  %v210 = vpop.f32.mrb[0].mxu0
  %v211 = vadd.f32 %v141, %v210
  %v212 = vpop.f32.mrb[0].mxu0
  %213 = vdwg.mxu0
  %v214 = vmax.f32 %v211, 0.0
  %v215 = vld [vmem:[%s3] sm:$0xff]
  %v216 = vld [vmem:[%s3 + $0x8] sm:$0xff]
  %v217 = vld [vmem:[%s3 + $0x10] sm:$0xff]
  %v218 = vld [vmem:[%s3 + $0x18] sm:$0xff]
  %v219 = vld [vmem:[%s3 + $0x20] sm:$0xff]
  %v220 = vld [vmem:[%s3 + $0x28] sm:$0xff]
  %v221 = vld [vmem:[%s3 + $0x30] sm:$0x3]
  %v222 = vld [vmem:[%s4] sm:$0x1]
  %v224 = vlaneseq
  %v225 = vshrl.u32 %v224, 7
  %v226 = vsub.s32 0, %v225
  %v227 = vrot.slane %v222, %v226
  %vm229 = vcmask 408576
  %v231 = vsel %vm229, %v214, 0
  %vm233 = vcmask 1041408
  %v235 = vsel %vm233, %v221, 0
  %237 = vmatprep.subr.mxu0 0.0
  %238 = vmatpush1.msra.mxu0 %v215
  %239 = vmatprep.subr.mxu0 0.0
  %240 = vmatpush1.msra.mxu0 %v216
  %241 = vmatprep.subr.mxu0 0.0
  %242 = vmatpush1.msra.mxu0 %v217
  %243 = vmatprep.subr.mxu0 0.0
  %244 = vmatpush1.msra.mxu0 %v218
  %245 = vmatprep.subr.mxu0 0.0
  %246 = vmatpush1.msra.mxu0 %v219
  %247 = vmatprep.subr.mxu0 0.0
  %248 = vmatpush1.msra.mxu0 %v220
  %249 = vmatprep.subr.mxu0 0.0
  %250 = vmatpush1.msra.mxu0 %v235
  %251 = vmatprep.subr.mxu0 0.0
  %252 = vmatpush1.msra.mxu0 0.0
  %253 = vmatprep.subr.mxu0 0.0
  %254 = vmatpush1.msra.mxu0 0.0
  %255 = vmatprep.subr.mxu0 0.0
  %256 = vmatpush1.msra.mxu0 0.0
  %257 = vmatprep.subr.mxu0 0.0
  %258 = vmatpush1.msra.mxu0 0.0
  %259 = vmatprep.subr.mxu0 0.0
  %260 = vmatpush1.msra.mxu0 0.0
  %261 = vmatprep.subr.mxu0 0.0
  %262 = vmatpush1.msra.mxu0 0.0
  %263 = vmatprep.subr.mxu0 0.0
  %264 = vmatpush1.msra.mxu0 0.0
  %265 = vmatprep.subr.mxu0 0.0
  %266 = vmatpush1.msra.mxu0 0.0
  %267 = vmatprep.subr.mxu0 0.0
  %268 = vmatpush1.msra.mxu0 0.0
  %269 = vmatprep.subr.mxu0 0.0
  %270 = vmatpush1.msra.mxu0 0.0
  %271 = vmatprep.subr.mxu0 0.0
  %272 = vmatpush1.msra.mxu0 0.0
  %273 = vmatprep.subr.mxu0 0.0
  %274 = vmatpush1.msra.mxu0 0.0
  %275 = vmatprep.subr.mxu0 0.0
  %276 = vmatpush1.msra.mxu0 0.0
  %277 = vmatprep.subr.mxu0 0.0
  %278 = vmatpush1.msra.mxu0 0.0
  %279 = vmatprep.subr.mxu0 0.0
  %280 = vmatpush1.msra.mxu0 0.0
  %281 = vmatprep.subr.mxu0 0.0
  %282 = vmatpush1.msra.mxu0 0.0
  %283 = vmatprep.subr.mxu0 0.0
  %284 = vmatpush1.msra.mxu0 0.0
  %285 = vmatprep.subr.mxu0 0.0
  %286 = vmatpush1.msra.mxu0 0.0
  %287 = vmatprep.subr.mxu0 0.0
  %288 = vmatpush1.msra.mxu0 0.0
  %289 = vmatprep.subr.mxu0 0.0
  %290 = vmatpush1.msra.mxu0 0.0
  %291 = vmatprep.subr.mxu0 0.0
  %292 = vmatpush1.msra.mxu0 0.0
  %293 = vmatprep.subr.mxu0 0.0
  %294 = vmatpush1.msra.mxu0 0.0
  %295 = vmatprep.subr.mxu0 0.0
  %296 = vmatpush1.msra.mxu0 0.0
  %297 = vmatprep.subr.mxu0 0.0
  %298 = vmatpush1.msra.mxu0 0.0
  %299 = vmatprep.subr.mxu0 0.0
  %300 = vmatpush1.msra.mxu0 0.0
  %301 = vmatprep.mubr.f32.mxu0 0.0
  %302 = vmatmul.mubr.f32.gmra.mrb[0].mxu0 %v231
  %v303 = vpop.f32.mrb[0].mxu0
  %v304 = vadd.f32 %v227, %v303
  %v305 = vpop.f32.mrb[0].mxu0
  %306 = vdwg.mxu0
  %vm307 = vcmask 80896
  %v308 = vsel %vm307, %v304, -inf
  %309 = vmax.xlane.f32.xlu0 %v308
  %v310 = vpop.xlane.xlu0 %309
  %v311 = vsub.f32 %v304, %v310
  %v312 = vmul.f32 %v311, 1.442695
  %v313 = vpow.pop %v312
  %v314 = vsel %vm307, %v313, 0.0
  %315 = vadd.xlane.f32.xlu0 %v314
  %v316 = vpop.xlane.xlu0 %315
  %v317 = vlog2.pop %v316
  %v318 = vmul.f32 %v317, 0.6931472
  %v319 = vsub.f32 %v311, %v318
  %320 = vst.msk [vmem:[%s5] sm:$0xff] %vm307, %v319
  // Predicated region
  $region22: #{forward.5} parent=0 // pred_check
    _
  $region23: #{forward.5} parent=0 // pred_check_branch
    %322 = sbr.rel (0) target = $region25
  $region24: #{forward.5} parent=0 // pred_region
    _
  $region25: #{forward.5} parent=0 // pred_fallthru
    _
  // Predicated region
  $region26: #{forward.5} parent=0 // pred_check
    _
  $region27: #{forward.5} parent=0 // pred_check_branch
    %324 = sbr.rel (0) target = $region29
  $region28: #{forward.5} parent=0 // pred_region
    _
  $region29: #{forward.5} parent=0 // pred_fallthru
    _

</llo_original>
